<compile_context>
chip_gen: v7x
topology: tpu7x:2x2x1
jax: 0.10.0
libtpu: 0.0.40
codegen_flags: <defaults>
</compile_context>

<pallas_src>
import functools
import math

import jax
import jax.numpy as jnp
from jax.experimental import pallas as pl
from jax.experimental.pallas import tpu as pltpu


# ----------------------------- in-kernel helpers ---------------------------


def _mha_add_ln(x, kv_src, wq, bq, wkv, bkv, wo, bo, gamma, beta, *, num_heads, eps):
    """Multi-head attention + residual + LayerNorm on VMEM-resident f32 arrays.

    x:      (Tq, E) query source (also the residual)
    kv_src: (Tk, E) key/value source
    wq: (E, E), wkv: (E, 2E)  (fused K|V projection), wo: (E, E)
    """
    Tq, E = x.shape
    H = num_heads
    dh = E // H
    scale = 1.0 / math.sqrt(dh)

    q = jnp.dot(x, wq, preferred_element_type=jnp.float32) + bq            # (Tq, E)
    kvp = jnp.dot(kv_src, wkv, preferred_element_type=jnp.float32) + bkv   # (Tk, 2E)
    k = kvp[:, :E]
    v = kvp[:, E:2 * E]

    # Per-head attention; output projection folded into the head loop:
    #   concat_h(ctx_h) @ Wo == sum_h ctx_h @ Wo[h*dh:(h+1)*dh, :]
    attn = jnp.zeros((Tq, E), jnp.float32) + bo
    for h in range(H):
        sl = slice(h * dh, (h + 1) * dh)
        s = jax.lax.dot_general(q[:, sl] * scale, k[:, sl],
                                (((1,), (1,)), ((), ())),
                                preferred_element_type=jnp.float32)        # (Tq, Tk)
        s = s - jnp.max(s, axis=-1, keepdims=True)
        p = jnp.exp(s)
        p = p * pl.reciprocal(jnp.sum(p, axis=-1, keepdims=True), approx=True)
        ctx = jnp.dot(p, v[:, sl], preferred_element_type=jnp.float32)     # (Tq, dh)
        attn = attn + jnp.dot(ctx, wo[sl, :], preferred_element_type=jnp.float32)

    y = x + attn
    mean = jnp.mean(y, axis=-1, keepdims=True)
    var = jnp.mean((y - mean) ** 2, axis=-1, keepdims=True)
    yn = (y - mean) * jax.lax.rsqrt(var + eps)
    return yn * gamma + beta


# ----------------------------- Pallas kernels ------------------------------


def _attn_pair_kernel(x_ref, mem_ref, *rest, num_heads, eps):
    """Fused [self-attn + LN1] -> [cross-attn + LN2] for one batch element."""
    (sa_wq, sa_bq, sa_wkv, sa_bkv, sa_wo, sa_bo, ln1_g, ln1_b,
     ca_wq, ca_bq, ca_wkv, ca_bkv, ca_wo, ca_bo, ln2_g, ln2_b, o_ref) = rest

    x = x_ref[0].astype(jnp.float32)      # (T, E)
    mem = mem_ref[0].astype(jnp.float32)  # (S, E)

    x1 = _mha_add_ln(x, x,
                     sa_wq[...], sa_bq[...], sa_wkv[...], sa_bkv[...],
                     sa_wo[...], sa_bo[...], ln1_g[...], ln1_b[...],
                     num_heads=num_heads, eps=eps)
    x2 = _mha_add_ln(x1, mem,
                     ca_wq[...], ca_bq[...], ca_wkv[...], ca_bkv[...],
                     ca_wo[...], ca_bo[...], ln2_g[...], ln2_b[...],
                     num_heads=num_heads, eps=eps)
    o_ref[0] = x2.astype(o_ref.dtype)


def _ffn_kernel(x_ref, w1_ref, b1_ref, w2_ref, b2_ref, g_ref, beta_ref, o_ref, *, eps):
    """Fused linear1 + ReLU + linear2 + residual add + LayerNorm on a row block."""
    x = x_ref[...].astype(jnp.float32)                                       # (tm, E)
    h = jnp.dot(x, w1_ref[...], preferred_element_type=jnp.float32) + b1_ref[...]
    h = jnp.maximum(h, 0.0)
    y = jnp.dot(h, w2_ref[...], preferred_element_type=jnp.float32) + b2_ref[...]
    y = x + y
    mean = jnp.mean(y, axis=-1, keepdims=True)
    var = jnp.mean((y - mean) ** 2, axis=-1, keepdims=True)
    yn = (y - mean) * jax.lax.rsqrt(var + eps)
    o_ref[...] = (yn * g_ref[...] + beta_ref[...]).astype(o_ref.dtype)


def _heads_kernel(x_ref, w_ref, b_ref, o_ref):
    """Fused confidence + class heads: one 128-padded matmul, sigmoid on column 0."""
    y = jnp.dot(x_ref[...], w_ref[...], preferred_element_type=jnp.float32) + b_ref[...]
    col = jax.lax.broadcasted_iota(jnp.int32, y.shape, 1)
    y = jnp.where(col == 0, jax.nn.sigmoid(y), y)
    o_ref[...] = y.astype(o_ref.dtype)


# ----------------------------- wrappers -------------------------------------


def _pick_row_tile(m):
    """Largest row tile (multiple of 8, divides m) that still yields >=2 grid steps."""
    best = None
    for tm in (512, 256, 128, 64, 32, 16, 8):
        if tm <= m and m % tm == 0:
            if best is None:
                best = tm
            if m // tm >= 2:
                return tm
    return best if best is not None else m


def attn_pair_block(x, mem, layer, num_heads, eps=1e-5):
    """x: (N, T, E), mem: (N, S, E) -> (N, T, E). One batch element per grid step."""
    N, T, E = x.shape
    S = mem.shape[1]
    sa, ca = layer["sa"], layer["ca"]
    operands = [
        sa["wq"], sa["bq"], sa["wkv"], sa["bkv"], sa["wo"], sa["bo"],
        layer["ln1_g"], layer["ln1_b"],
        ca["wq"], ca["bq"], ca["wkv"], ca["bkv"], ca["wo"], ca["bo"],
        layer["ln2_g"], layer["ln2_b"],
    ]
    full2d = lambda a: pl.BlockSpec(a.shape, lambda i: (0, 0))
    in_specs = ([pl.BlockSpec((1, T, E), lambda i: (i, 0, 0)),
                 pl.BlockSpec((1, S, E), lambda i: (i, 0, 0))]
                + [full2d(a) for a in operands])
    kernel = functools.partial(_attn_pair_kernel, num_heads=num_heads, eps=eps)
    return pl.pallas_call(
        kernel,
        out_shape=jax.ShapeDtypeStruct((N, T, E), x.dtype),
        grid=(N,),
        in_specs=in_specs,
        out_specs=pl.BlockSpec((1, T, E), lambda i: (i, 0, 0)),
        compiler_params=pltpu.CompilerParams(dimension_semantics=("parallel",)),
    )(x, mem, *operands)


def ffn_block(x2d, layer, eps=1e-5):
    """x2d: (M, E) token-major slab -> (M, E). Row-tiled, parallel grid."""
    M, E = x2d.shape
    F = layer["w1"].shape[1]
    tm = _pick_row_tile(M)
    kernel = functools.partial(_ffn_kernel, eps=eps)
    return pl.pallas_call(
        kernel,
        out_shape=jax.ShapeDtypeStruct((M, E), x2d.dtype),
        grid=(M // tm,),
        in_specs=[
            pl.BlockSpec((tm, E), lambda i: (i, 0)),
            pl.BlockSpec((E, F), lambda i: (0, 0)),
            pl.BlockSpec((1, F), lambda i: (0, 0)),
            pl.BlockSpec((F, E), lambda i: (0, 0)),
            pl.BlockSpec((1, E), lambda i: (0, 0)),
            pl.BlockSpec((1, E), lambda i: (0, 0)),
            pl.BlockSpec((1, E), lambda i: (0, 0)),
        ],
        out_specs=pl.BlockSpec((tm, E), lambda i: (i, 0)),
        compiler_params=pltpu.CompilerParams(dimension_semantics=("parallel",)),
    )(x2d, layer["w1"], layer["b1"], layer["w2"], layer["b2"],
      layer["ln3_g"], layer["ln3_b"])


def heads_block(x2d, w, b):
    """x2d: (M, E) -> (M, P) where P = 128-padded (1 + num_classes)."""
    M, E = x2d.shape
    P = w.shape[1]
    tm = _pick_row_tile(M)
    return pl.pallas_call(
        _heads_kernel,
        out_shape=jax.ShapeDtypeStruct((M, P), x2d.dtype),
        grid=(M // tm,),
        in_specs=[
            pl.BlockSpec((tm, E), lambda i: (i, 0)),
            pl.BlockSpec((E, P), lambda i: (0, 0)),
            pl.BlockSpec((1, P), lambda i: (0, 0)),
        ],
        out_specs=pl.BlockSpec((tm, P), lambda i: (i, 0)),
        compiler_params=pltpu.CompilerParams(dimension_semantics=("parallel",)),
    )(x2d, w, b)


# ----------------------------- forward ---------------------------------------


def transformer_decoder_forward(params, encoder_output, tgt, num_heads, num_classes):
    """encoder_output: (S, N, E), tgt: (T, N, E) -> (confidence (T,N,1), class (T,N,C))."""
    # Single layout change to batch-major, carried end-to-end (no per-attention transposes).
    x = jnp.transpose(tgt, (1, 0, 2))              # (N, T, E)
    mem = jnp.transpose(encoder_output, (1, 0, 2)) # (N, S, E)
    N, T, E = x.shape

    for layer in params["layers"]:
        x = attn_pair_block(x, mem, layer, num_heads)
        x = ffn_block(x.reshape(N * T, E), layer).reshape(N, T, E)

    y = heads_block(x.reshape(N * T, E), params["w_heads"], params["b_heads"])
    y = y.reshape(N, T, -1).transpose(1, 0, 2)     # (T, N, P)
    confidence = y[:, :, 0:1]
    class_out = y[:, :, 1:1 + num_classes]
    return confidence, class_out


# ----------------------------- deterministic init --------------------------


def init_params(key, embed_size, num_heads, num_layers, num_classes, dim_ff=2048):
    E = embed_size

    def uniform(k, shape, fan_in):
        bound = 1.0 / math.sqrt(fan_in)
        return jax.random.uniform(k, shape, jnp.float32, -bound, bound)

    def attn_init(k):
        ks = jax.random.split(k, 6)
        return dict(
            wq=uniform(ks[0], (E, E), E),          bq=uniform(ks[1], (1, E), E),
            wkv=uniform(ks[2], (E, 2 * E), E),     bkv=uniform(ks[3], (1, 2 * E), E),
            wo=uniform(ks[4], (E, E), E),          bo=uniform(ks[5], (1, E), E),
        )

    keys = jax.random.split(key, num_layers + 1)
    layers = []
    for lkey in keys[:num_layers]:
        ks = jax.random.split(lkey, 6)
        layers.append(dict(
            sa=attn_init(ks[0]),
            ca=attn_init(ks[1]),
            w1=uniform(ks[2], (E, dim_ff), E),     b1=uniform(ks[3], (1, dim_ff), E),
            w2=uniform(ks[4], (dim_ff, E), dim_ff), b2=uniform(ks[5], (1, E), dim_ff),
            ln1_g=jnp.ones((1, E), jnp.float32),   ln1_b=jnp.zeros((1, E), jnp.float32),
            ln2_g=jnp.ones((1, E), jnp.float32),   ln2_b=jnp.zeros((1, E), jnp.float32),
            ln3_g=jnp.ones((1, E), jnp.float32),   ln3_b=jnp.zeros((1, E), jnp.float32),
        ))

    hk = jax.random.split(keys[-1], 4)
    w_conf = uniform(hk[0], (E, 1), E)
    b_conf = uniform(hk[1], (1, 1), E)
    w_cls = uniform(hk[2], (E, num_classes), E)
    b_cls = uniform(hk[3], (1, num_classes), E)

    n_out = 1 + num_classes
    P = ((n_out + 127) // 128) * 128               # lane-dense padded head width
    w_heads = jnp.zeros((E, P), jnp.float32)
    w_heads = w_heads.at[:, 0:1].set(w_conf).at[:, 1:n_out].set(w_cls)
    b_heads = jnp.zeros((1, P), jnp.float32)
    b_heads = b_heads.at[:, 0:1].set(b_conf).at[:, 1:n_out].set(b_cls)

    return dict(layers=layers, w_heads=w_heads, b_heads=b_heads)


# ----------------------------- main -----------------------------------------


if __name__ == "__main__":
    embed_size = 32
    num_heads = 4
    num_decoder_layers = 2
    num_classes = 10
    T, S, N = 8, 8, 2          # tgt len, memory len, batch

    root = jax.random.PRNGKey(0)
    k_params, k_mem, k_tgt = jax.random.split(root, 3)

    params = init_params(k_params, embed_size, num_heads,
                         num_decoder_layers, num_classes)

    encoder_output = jax.random.normal(k_mem, (S, N, embed_size), jnp.float32)
    tgt = jax.random.normal(k_tgt, (T, N, embed_size), jnp.float32)

    fwd = jax.jit(functools.partial(transformer_decoder_forward,
                                    num_heads=num_heads, num_classes=num_classes))
    confidence, class_out = fwd(params, encoder_output, tgt)
    jax.block_until_ready((confidence, class_out))

    assert confidence.shape == (T, N, 1)
    assert class_out.shape == (T, N, num_classes)
    assert bool(jnp.all(jnp.isfinite(confidence))) and bool(jnp.all(jnp.isfinite(class_out)))
    print("KERNEL_OK")
</pallas_src>

<mosaic_0001>
module attributes {stable_mosaic.version = 11 : i64} {
  func.func @_ffn_kernel(%arg0: i32, %arg1: memref<8x32xf32, #tpu.memory_space<vmem>>, %arg2: memref<32x2048xf32, #tpu.memory_space<vmem>>, %arg3: memref<1x2048xf32, #tpu.memory_space<vmem>>, %arg4: memref<2048x32xf32, #tpu.memory_space<vmem>>, %arg5: memref<1x32xf32, #tpu.memory_space<vmem>>, %arg6: memref<1x32xf32, #tpu.memory_space<vmem>>, %arg7: memref<1x32xf32, #tpu.memory_space<vmem>>, %arg8: memref<8x32xf32, #tpu.memory_space<vmem>>) attributes {dimension_semantics = [#tpu.dimension_semantics<parallel>], iteration_bounds = array<i64: 2>, scalar_prefetch = 0 : i64, scratch_operands = 0 : i64, tpu.core_type = #tpu.core_type<tc>, window_params = [{transform_indices = @transform_0, window_bounds = array<i64: 8, 32>}, {pipeline_mode = #tpu.pipeline_mode<synchronous>, transform_indices = @transform_1, window_bounds = array<i64: 32, 2048>}, {pipeline_mode = #tpu.pipeline_mode<synchronous>, transform_indices = @transform_2, window_bounds = array<i64: 1, 2048>}, {pipeline_mode = #tpu.pipeline_mode<synchronous>, transform_indices = @transform_3, window_bounds = array<i64: 2048, 32>}, {pipeline_mode = #tpu.pipeline_mode<synchronous>, transform_indices = @transform_4, window_bounds = array<i64: 1, 32>}, {pipeline_mode = #tpu.pipeline_mode<synchronous>, transform_indices = @transform_5, window_bounds = array<i64: 1, 32>}, {pipeline_mode = #tpu.pipeline_mode<synchronous>, transform_indices = @transform_6, window_bounds = array<i64: 1, 32>}, {transform_indices = @transform_7, window_bounds = array<i64: 8, 32>}]} {
    %c0 = arith.constant 0 : index
    %c0_0 = arith.constant 0 : index
    %0 = vector.load %arg1[%c0, %c0_0] : memref<8x32xf32, #tpu.memory_space<vmem>>, vector<8x32xf32>
    %c0_1 = arith.constant 0 : index
    %c0_2 = arith.constant 0 : index
    %1 = vector.load %arg2[%c0_1, %c0_2] : memref<32x2048xf32, #tpu.memory_space<vmem>>, vector<32x2048xf32>
    %cst = arith.constant dense<0.000000e+00> : vector<8x2048xf32>
    %2 = tpu.matmul %0, %1, %cst {dimension_numbers = #tpu.dot_dimension_numbers<[1], [0], [0], [1], [0, 0, 1, 1], [], []>} : vector<8x32xf32>, vector<32x2048xf32>, vector<8x2048xf32> -> vector<8x2048xf32>
    %c0_3 = arith.constant 0 : index
    %c0_4 = arith.constant 0 : index
    %3 = vector.load %arg3[%c0_3, %c0_4] : memref<1x2048xf32, #tpu.memory_space<vmem>>, vector<1x2048xf32>
    %4 = vector.broadcast %3 : vector<1x2048xf32> to vector<8x2048xf32>
    %5 = arith.addf %2, %4 : vector<8x2048xf32>
    %cst_5 = arith.constant 0.000000e+00 : f32
    %6 = vector.broadcast %cst_5 : f32 to vector<8x2048xf32>
    %7 = arith.maximumf %5, %6 : vector<8x2048xf32>
    %c0_6 = arith.constant 0 : index
    %c0_7 = arith.constant 0 : index
    %8 = vector.load %arg4[%c0_6, %c0_7] : memref<2048x32xf32, #tpu.memory_space<vmem>>, vector<2048x32xf32>
    %cst_8 = arith.constant dense<0.000000e+00> : vector<8x32xf32>
    %9 = tpu.matmul %7, %8, %cst_8 {dimension_numbers = #tpu.dot_dimension_numbers<[1], [0], [0], [1], [0, 0, 1, 1], [], []>} : vector<8x2048xf32>, vector<2048x32xf32>, vector<8x32xf32> -> vector<8x32xf32>
    %c0_9 = arith.constant 0 : index
    %c0_10 = arith.constant 0 : index
    %10 = vector.load %arg5[%c0_9, %c0_10] : memref<1x32xf32, #tpu.memory_space<vmem>>, vector<1x32xf32>
    %11 = vector.broadcast %10 : vector<1x32xf32> to vector<8x32xf32>
    %12 = arith.addf %9, %11 : vector<8x32xf32>
    %13 = arith.addf %0, %12 : vector<8x32xf32>
    %cst_11 = arith.constant dense<0.000000e+00> : vector<8xf32>
    %14 = vector.multi_reduction <add>, %13, %cst_11 [1] : vector<8x32xf32> to vector<8xf32>
    %15 = vector.shape_cast %14 : vector<8xf32> to vector<8x1xf32>
    %cst_12 = arith.constant 3.200000e+01 : f32
    %16 = vector.broadcast %cst_12 : f32 to vector<8x1xf32>
    %17 = arith.divf %15, %16 : vector<8x1xf32>
    %18 = vector.broadcast %17 : vector<8x1xf32> to vector<8x32xf32>
    %19 = arith.subf %13, %18 : vector<8x32xf32>
    %20 = arith.mulf %19, %19 : vector<8x32xf32>
    %cst_13 = arith.constant dense<0.000000e+00> : vector<8xf32>
    %21 = vector.multi_reduction <add>, %20, %cst_13 [1] : vector<8x32xf32> to vector<8xf32>
    %22 = vector.shape_cast %21 : vector<8xf32> to vector<8x1xf32>
    %cst_14 = arith.constant 3.200000e+01 : f32
    %23 = vector.broadcast %cst_14 : f32 to vector<8x1xf32>
    %24 = arith.divf %22, %23 : vector<8x1xf32>
    %25 = vector.broadcast %17 : vector<8x1xf32> to vector<8x32xf32>
    %26 = arith.subf %13, %25 : vector<8x32xf32>
    %cst_15 = arith.constant 9.99999974E-6 : f32
    %27 = vector.broadcast %cst_15 : f32 to vector<8x1xf32>
    %28 = arith.addf %24, %27 : vector<8x1xf32>
    %29 = math.rsqrt %28 : vector<8x1xf32>
    %30 = vector.broadcast %29 : vector<8x1xf32> to vector<8x32xf32>
    %31 = arith.mulf %26, %30 : vector<8x32xf32>
    %c0_16 = arith.constant 0 : index
    %c0_17 = arith.constant 0 : index
    %32 = vector.load %arg6[%c0_16, %c0_17] : memref<1x32xf32, #tpu.memory_space<vmem>>, vector<1x32xf32>
    %33 = vector.broadcast %32 : vector<1x32xf32> to vector<8x32xf32>
    %34 = arith.mulf %31, %33 : vector<8x32xf32>
    %c0_18 = arith.constant 0 : index
    %c0_19 = arith.constant 0 : index
    %35 = vector.load %arg7[%c0_18, %c0_19] : memref<1x32xf32, #tpu.memory_space<vmem>>, vector<1x32xf32>
    %36 = vector.broadcast %35 : vector<1x32xf32> to vector<8x32xf32>
    %37 = arith.addf %34, %36 : vector<8x32xf32>
    %c0_20 = arith.constant 0 : index
    %c0_21 = arith.constant 0 : index
    %38 = vector.load %arg8[%c0_20, %c0_21] : memref<8x32xf32, #tpu.memory_space<vmem>>, vector<8x32xf32>
    tpu.vector_store %arg8[%c0_20, %c0_21], %37 {strides = array<i32>} : memref<8x32xf32, #tpu.memory_space<vmem>>, vector<8x32xf32>,
    return
  }
  func.func @transform_0(%arg0: i32) -> (i32, i32) {
    %c0_i32 = arith.constant 0 : i32
    %c0_i32_0 = arith.constant 0 : i32
    return %arg0, %c0_i32 : i32, i32
  }
  func.func @transform_1(%arg0: i32) -> (i32, i32) {
    %c0_i32 = arith.constant 0 : i32
    %c0_i32_0 = arith.constant 0 : i32
    %c0_i32_1 = arith.constant 0 : i32
    return %c0_i32, %c0_i32_0 : i32, i32
  }
  func.func @transform_2(%arg0: i32) -> (i32, i32) {
    %c0_i32 = arith.constant 0 : i32
    %c0_i32_0 = arith.constant 0 : i32
    %c0_i32_1 = arith.constant 0 : i32
    return %c0_i32, %c0_i32_0 : i32, i32
  }
  func.func @transform_3(%arg0: i32) -> (i32, i32) {
    %c0_i32 = arith.constant 0 : i32
    %c0_i32_0 = arith.constant 0 : i32
    %c0_i32_1 = arith.constant 0 : i32
    return %c0_i32, %c0_i32_0 : i32, i32
  }
  func.func @transform_4(%arg0: i32) -> (i32, i32) {
    %c0_i32 = arith.constant 0 : i32
    %c0_i32_0 = arith.constant 0 : i32
    %c0_i32_1 = arith.constant 0 : i32
    return %c0_i32, %c0_i32_0 : i32, i32
  }
  func.func @transform_5(%arg0: i32) -> (i32, i32) {
    %c0_i32 = arith.constant 0 : i32
    %c0_i32_0 = arith.constant 0 : i32
    %c0_i32_1 = arith.constant 0 : i32
    return %c0_i32, %c0_i32_0 : i32, i32
  }
  func.func @transform_6(%arg0: i32) -> (i32, i32) {
    %c0_i32 = arith.constant 0 : i32
    %c0_i32_0 = arith.constant 0 : i32
    %c0_i32_1 = arith.constant 0 : i32
    return %c0_i32, %c0_i32_0 : i32, i32
  }
  func.func @transform_7(%arg0: i32) -> (i32, i32) {
    %c0_i32 = arith.constant 0 : i32
    %c0_i32_0 = arith.constant 0 : i32
    return %arg0, %c0_i32 : i32, i32
  }
}

module attributes {stable_mosaic.version = 11 : i64} {
  func.func @_attn_pair_kernel(%arg0: i32, %arg1: memref<1x8x32xf32, #tpu.memory_space<vmem>>, %arg2: memref<1x8x32xf32, #tpu.memory_space<vmem>>, %arg3: memref<32x32xf32, #tpu.memory_space<vmem>>, %arg4: memref<1x32xf32, #tpu.memory_space<vmem>>, %arg5: memref<32x64xf32, #tpu.memory_space<vmem>>, %arg6: memref<1x64xf32, #tpu.memory_space<vmem>>, %arg7: memref<32x32xf32, #tpu.memory_space<vmem>>, %arg8: memref<1x32xf32, #tpu.memory_space<vmem>>, %arg9: memref<1x32xf32, #tpu.memory_space<vmem>>, %arg10: memref<1x32xf32, #tpu.memory_space<vmem>>, %arg11: memref<32x32xf32, #tpu.memory_space<vmem>>, %arg12: memref<1x32xf32, #tpu.memory_space<vmem>>, %arg13: memref<32x64xf32, #tpu.memory_space<vmem>>, %arg14: memref<1x64xf32, #tpu.memory_space<vmem>>, %arg15: memref<32x32xf32, #tpu.memory_space<vmem>>, %arg16: memref<1x32xf32, #tpu.memory_space<vmem>>, %arg17: memref<1x32xf32, #tpu.memory_space<vmem>>, %arg18: memref<1x32xf32, #tpu.memory_space<vmem>>, %arg19: memref<1x8x32xf32, #tpu.memory_space<vmem>>) attributes {dimension_semantics = [#tpu.dimension_semantics<parallel>], iteration_bounds = array<i64: 2>, scalar_prefetch = 0 : i64, scratch_operands = 0 : i64, tpu.core_type = #tpu.core_type<tc>, window_params = [{transform_indices = @transform_0, window_bounds = array<i64: 1, 8, 32>}, {transform_indices = @transform_1, window_bounds = array<i64: 1, 8, 32>}, {pipeline_mode = #tpu.pipeline_mode<synchronous>, transform_indices = @transform_2, window_bounds = array<i64: 32, 32>}, {pipeline_mode = #tpu.pipeline_mode<synchronous>, transform_indices = @transform_3, window_bounds = array<i64: 1, 32>}, {pipeline_mode = #tpu.pipeline_mode<synchronous>, transform_indices = @transform_4, window_bounds = array<i64: 32, 64>}, {pipeline_mode = #tpu.pipeline_mode<synchronous>, transform_indices = @transform_5, window_bounds = array<i64: 1, 64>}, {pipeline_mode = #tpu.pipeline_mode<synchronous>, transform_indices = @transform_6, window_bounds = array<i64: 32, 32>}, {pipeline_mode = #tpu.pipeline_mode<synchronous>, transform_indices = @transform_7, window_bounds = array<i64: 1, 32>}, {pipeline_mode = #tpu.pipeline_mode<synchronous>, transform_indices = @transform_8, window_bounds = array<i64: 1, 32>}, {pipeline_mode = #tpu.pipeline_mode<synchronous>, transform_indices = @transform_9, window_bounds = array<i64: 1, 32>}, {pipeline_mode = #tpu.pipeline_mode<synchronous>, transform_indices = @transform_10, window_bounds = array<i64: 32, 32>}, {pipeline_mode = #tpu.pipeline_mode<synchronous>, transform_indices = @transform_11, window_bounds = array<i64: 1, 32>}, {pipeline_mode = #tpu.pipeline_mode<synchronous>, transform_indices = @transform_12, window_bounds = array<i64: 32, 64>}, {pipeline_mode = #tpu.pipeline_mode<synchronous>, transform_indices = @transform_13, window_bounds = array<i64: 1, 64>}, {pipeline_mode = #tpu.pipeline_mode<synchronous>, transform_indices = @transform_14, window_bounds = array<i64: 32, 32>}, {pipeline_mode = #tpu.pipeline_mode<synchronous>, transform_indices = @transform_15, window_bounds = array<i64: 1, 32>}, {pipeline_mode = #tpu.pipeline_mode<synchronous>, transform_indices = @transform_16, window_bounds = array<i64: 1, 32>}, {pipeline_mode = #tpu.pipeline_mode<synchronous>, transform_indices = @transform_17, window_bounds = array<i64: 1, 32>}, {transform_indices = @transform_18, window_bounds = array<i64: 1, 8, 32>}]} {
    %c0 = arith.constant 0 : index
    %c0_0 = arith.constant 0 : index
    %c0_1 = arith.constant 0 : index
    %0 = vector.load %arg1[%c0, %c0_0, %c0_1] : memref<1x8x32xf32, #tpu.memory_space<vmem>>, vector<1x8x32xf32>
    %1 = vector.shape_cast %0 : vector<1x8x32xf32> to vector<8x32xf32>
    %c0_2 = arith.constant 0 : index
    %c0_3 = arith.constant 0 : index
    %c0_4 = arith.constant 0 : index
    %2 = vector.load %arg2[%c0_2, %c0_3, %c0_4] : memref<1x8x32xf32, #tpu.memory_space<vmem>>, vector<1x8x32xf32>
    %3 = vector.shape_cast %2 : vector<1x8x32xf32> to vector<8x32xf32>
    %c0_5 = arith.constant 0 : index
    %c0_6 = arith.constant 0 : index
    %4 = vector.load %arg3[%c0_5, %c0_6] : memref<32x32xf32, #tpu.memory_space<vmem>>, vector<32x32xf32>
    %c0_7 = arith.constant 0 : index
    %c0_8 = arith.constant 0 : index
    %5 = vector.load %arg4[%c0_7, %c0_8] : memref<1x32xf32, #tpu.memory_space<vmem>>, vector<1x32xf32>
    %c0_9 = arith.constant 0 : index
    %c0_10 = arith.constant 0 : index
    %6 = vector.load %arg5[%c0_9, %c0_10] : memref<32x64xf32, #tpu.memory_space<vmem>>, vector<32x64xf32>
    %c0_11 = arith.constant 0 : index
    %c0_12 = arith.constant 0 : index
    %7 = vector.load %arg6[%c0_11, %c0_12] : memref<1x64xf32, #tpu.memory_space<vmem>>, vector<1x64xf32>
    %c0_13 = arith.constant 0 : index
    %c0_14 = arith.constant 0 : index
    %8 = vector.load %arg7[%c0_13, %c0_14] : memref<32x32xf32, #tpu.memory_space<vmem>>, vector<32x32xf32>
    %c0_15 = arith.constant 0 : index
    %c0_16 = arith.constant 0 : index
    %9 = vector.load %arg8[%c0_15, %c0_16] : memref<1x32xf32, #tpu.memory_space<vmem>>, vector<1x32xf32>
    %c0_17 = arith.constant 0 : index
    %c0_18 = arith.constant 0 : index
    %10 = vector.load %arg9[%c0_17, %c0_18] : memref<1x32xf32, #tpu.memory_space<vmem>>, vector<1x32xf32>
    %c0_19 = arith.constant 0 : index
    %c0_20 = arith.constant 0 : index
    %11 = vector.load %arg10[%c0_19, %c0_20] : memref<1x32xf32, #tpu.memory_space<vmem>>, vector<1x32xf32>
    %cst = arith.constant dense<0.000000e+00> : vector<8x32xf32>
    %12 = tpu.matmul %1, %4, %cst {dimension_numbers = #tpu.dot_dimension_numbers<[1], [0], [0], [1], [0, 0, 1, 1], [], []>} : vector<8x32xf32>, vector<32x32xf32>, vector<8x32xf32> -> vector<8x32xf32>
    %13 = vector.broadcast %5 : vector<1x32xf32> to vector<8x32xf32>
    %14 = arith.addf %12, %13 : vector<8x32xf32>
    %cst_21 = arith.constant dense<0.000000e+00> : vector<8x64xf32>
    %15 = tpu.matmul %1, %6, %cst_21 {dimension_numbers = #tpu.dot_dimension_numbers<[1], [0], [0], [1], [0, 0, 1, 1], [], []>} : vector<8x32xf32>, vector<32x64xf32>, vector<8x64xf32> -> vector<8x64xf32>
    %16 = vector.broadcast %7 : vector<1x64xf32> to vector<8x64xf32>
    %17 = arith.addf %15, %16 : vector<8x64xf32>
    %18 = vector.extract_strided_slice %17 {offsets = [0, 0], sizes = [8, 32], strides = [1, 1]} : vector<8x64xf32> to vector<8x32xf32>
    %19 = vector.extract_strided_slice %17 {offsets = [0, 32], sizes = [8, 32], strides = [1, 1]} : vector<8x64xf32> to vector<8x32xf32>
    %cst_22 = arith.constant 0.000000e+00 : f32
    %20 = vector.broadcast %cst_22 : f32 to vector<8x32xf32>
    %21 = vector.broadcast %9 : vector<1x32xf32> to vector<8x32xf32>
    %22 = arith.addf %20, %21 : vector<8x32xf32>
    %23 = vector.extract_strided_slice %14 {offsets = [0, 0], sizes = [8, 8], strides = [1, 1]} : vector<8x32xf32> to vector<8x8xf32>
    %cst_23 = arith.constant 0.353553385 : f32
    %24 = vector.broadcast %cst_23 : f32 to vector<8x8xf32>
    %25 = arith.mulf %23, %24 : vector<8x8xf32>
    %26 = vector.extract_strided_slice %18 {offsets = [0, 0], sizes = [8, 8], strides = [1, 1]} : vector<8x32xf32> to vector<8x8xf32>
    %cst_24 = arith.constant dense<0.000000e+00> : vector<8x8xf32>
    %27 = tpu.matmul %25, %26, %cst_24 {dimension_numbers = #tpu.dot_dimension_numbers<[1], [1], [0], [0], [0, 0, 1, 0], [], []>} : vector<8x8xf32>, vector<8x8xf32>, vector<8x8xf32> -> vector<8x8xf32>
    %cst_25 = arith.constant dense<0xFF800000> : vector<8xf32>
    %28 = vector.multi_reduction <maximumf>, %27, %cst_25 [1] : vector<8x8xf32> to vector<8xf32>
    %29 = vector.shape_cast %28 : vector<8xf32> to vector<8x1xf32>
    %30 = vector.broadcast %29 : vector<8x1xf32> to vector<8x8xf32>
    %31 = arith.subf %27, %30 : vector<8x8xf32>
    %32 = math.exp %31 : vector<8x8xf32>
    %cst_26 = arith.constant dense<0.000000e+00> : vector<8xf32>
    %33 = vector.multi_reduction <add>, %32, %cst_26 [1] : vector<8x8xf32> to vector<8xf32>
    %34 = vector.shape_cast %33 : vector<8xf32> to vector<8x1xf32>
    %35 = tpu.reciprocal %34 {approx = true} : vector<8x1xf32> -> vector<8x1xf32>
    %36 = vector.broadcast %35 : vector<8x1xf32> to vector<8x8xf32>
    %37 = arith.mulf %32, %36 : vector<8x8xf32>
    %38 = vector.extract_strided_slice %19 {offsets = [0, 0], sizes = [8, 8], strides = [1, 1]} : vector<8x32xf32> to vector<8x8xf32>
    %cst_27 = arith.constant dense<0.000000e+00> : vector<8x8xf32>
    %39 = tpu.matmul %37, %38, %cst_27 {dimension_numbers = #tpu.dot_dimension_numbers<[1], [0], [0], [1], [0, 0, 1, 1], [], []>} : vector<8x8xf32>, vector<8x8xf32>, vector<8x8xf32> -> vector<8x8xf32>
    %40 = vector.extract_strided_slice %8 {offsets = [0, 0], sizes = [8, 32], strides = [1, 1]} : vector<32x32xf32> to vector<8x32xf32>
    %cst_28 = arith.constant dense<0.000000e+00> : vector<8x32xf32>
    %41 = tpu.matmul %39, %40, %cst_28 {dimension_numbers = #tpu.dot_dimension_numbers<[1], [0], [0], [1], [0, 0, 1, 1], [], []>} : vector<8x8xf32>, vector<8x32xf32>, vector<8x32xf32> -> vector<8x32xf32>
    %42 = arith.addf %22, %41 : vector<8x32xf32>
    %43 = vector.extract_strided_slice %14 {offsets = [0, 8], sizes = [8, 8], strides = [1, 1]} : vector<8x32xf32> to vector<8x8xf32>
    %cst_29 = arith.constant 0.353553385 : f32
    %44 = vector.broadcast %cst_29 : f32 to vector<8x8xf32>
    %45 = arith.mulf %43, %44 : vector<8x8xf32>
    %46 = vector.extract_strided_slice %18 {offsets = [0, 8], sizes = [8, 8], strides = [1, 1]} : vector<8x32xf32> to vector<8x8xf32>
    %cst_30 = arith.constant dense<0.000000e+00> : vector<8x8xf32>
    %47 = tpu.matmul %45, %46, %cst_30 {dimension_numbers = #tpu.dot_dimension_numbers<[1], [1], [0], [0], [0, 0, 1, 0], [], []>} : vector<8x8xf32>, vector<8x8xf32>, vector<8x8xf32> -> vector<8x8xf32>
    %cst_31 = arith.constant dense<0xFF800000> : vector<8xf32>
    %48 = vector.multi_reduction <maximumf>, %47, %cst_31 [1] : vector<8x8xf32> to vector<8xf32>
    %49 = vector.shape_cast %48 : vector<8xf32> to vector<8x1xf32>
    %50 = vector.broadcast %49 : vector<8x1xf32> to vector<8x8xf32>
    %51 = arith.subf %47, %50 : vector<8x8xf32>
    %52 = math.exp %51 : vector<8x8xf32>
    %cst_32 = arith.constant dense<0.000000e+00> : vector<8xf32>
    %53 = vector.multi_reduction <add>, %52, %cst_32 [1] : vector<8x8xf32> to vector<8xf32>
    %54 = vector.shape_cast %53 : vector<8xf32> to vector<8x1xf32>
    %55 = tpu.reciprocal %54 {approx = true} : vector<8x1xf32> -> vector<8x1xf32>
    %56 = vector.broadcast %55 : vector<8x1xf32> to vector<8x8xf32>
    %57 = arith.mulf %52, %56 : vector<8x8xf32>
    %58 = vector.extract_strided_slice %19 {offsets = [0, 8], sizes = [8, 8], strides = [1, 1]} : vector<8x32xf32> to vector<8x8xf32>
    %cst_33 = arith.constant dense<0.000000e+00> : vector<8x8xf32>
    %59 = tpu.matmul %57, %58, %cst_33 {dimension_numbers = #tpu.dot_dimension_numbers<[1], [0], [0], [1], [0, 0, 1, 1], [], []>} : vector<8x8xf32>, vector<8x8xf32>, vector<8x8xf32> -> vector<8x8xf32>
    %60 = vector.extract_strided_slice %8 {offsets = [8, 0], sizes = [8, 32], strides = [1, 1]} : vector<32x32xf32> to vector<8x32xf32>
    %cst_34 = arith.constant dense<0.000000e+00> : vector<8x32xf32>
    %61 = tpu.matmul %59, %60, %cst_34 {dimension_numbers = #tpu.dot_dimension_numbers<[1], [0], [0], [1], [0, 0, 1, 1], [], []>} : vector<8x8xf32>, vector<8x32xf32>, vector<8x32xf32> -> vector<8x32xf32>
    %62 = arith.addf %42, %61 : vector<8x32xf32>
    %63 = vector.extract_strided_slice %14 {offsets = [0, 16], sizes = [8, 8], strides = [1, 1]} : vector<8x32xf32> to vector<8x8xf32>
    %cst_35 = arith.constant 0.353553385 : f32
    %64 = vector.broadcast %cst_35 : f32 to vector<8x8xf32>
    %65 = arith.mulf %63, %64 : vector<8x8xf32>
    %66 = vector.extract_strided_slice %18 {offsets = [0, 16], sizes = [8, 8], strides = [1, 1]} : vector<8x32xf32> to vector<8x8xf32>
    %cst_36 = arith.constant dense<0.000000e+00> : vector<8x8xf32>
    %67 = tpu.matmul %65, %66, %cst_36 {dimension_numbers = #tpu.dot_dimension_numbers<[1], [1], [0], [0], [0, 0, 1, 0], [], []>} : vector<8x8xf32>, vector<8x8xf32>, vector<8x8xf32> -> vector<8x8xf32>
    %cst_37 = arith.constant dense<0xFF800000> : vector<8xf32>
    %68 = vector.multi_reduction <maximumf>, %67, %cst_37 [1] : vector<8x8xf32> to vector<8xf32>
    %69 = vector.shape_cast %68 : vector<8xf32> to vector<8x1xf32>
    %70 = vector.broadcast %69 : vector<8x1xf32> to vector<8x8xf32>
    %71 = arith.subf %67, %70 : vector<8x8xf32>
    %72 = math.exp %71 : vector<8x8xf32>
    %cst_38 = arith.constant dense<0.000000e+00> : vector<8xf32>
    %73 = vector.multi_reduction <add>, %72, %cst_38 [1] : vector<8x8xf32> to vector<8xf32>
    %74 = vector.shape_cast %73 : vector<8xf32> to vector<8x1xf32>
    %75 = tpu.reciprocal %74 {approx = true} : vector<8x1xf32> -> vector<8x1xf32>
    %76 = vector.broadcast %75 : vector<8x1xf32> to vector<8x8xf32>
    %77 = arith.mulf %72, %76 : vector<8x8xf32>
    %78 = vector.extract_strided_slice %19 {offsets = [0, 16], sizes = [8, 8], strides = [1, 1]} : vector<8x32xf32> to vector<8x8xf32>
    %cst_39 = arith.constant dense<0.000000e+00> : vector<8x8xf32>
    %79 = tpu.matmul %77, %78, %cst_39 {dimension_numbers = #tpu.dot_dimension_numbers<[1], [0], [0], [1], [0, 0, 1, 1], [], []>} : vector<8x8xf32>, vector<8x8xf32>, vector<8x8xf32> -> vector<8x8xf32>
    %80 = vector.extract_strided_slice %8 {offsets = [16, 0], sizes = [8, 32], strides = [1, 1]} : vector<32x32xf32> to vector<8x32xf32>
    %cst_40 = arith.constant dense<0.000000e+00> : vector<8x32xf32>
    %81 = tpu.matmul %79, %80, %cst_40 {dimension_numbers = #tpu.dot_dimension_numbers<[1], [0], [0], [1], [0, 0, 1, 1], [], []>} : vector<8x8xf32>, vector<8x32xf32>, vector<8x32xf32> -> vector<8x32xf32>
    %82 = arith.addf %62, %81 : vector<8x32xf32>
    %83 = vector.extract_strided_slice %14 {offsets = [0, 24], sizes = [8, 8], strides = [1, 1]} : vector<8x32xf32> to vector<8x8xf32>
    %cst_41 = arith.constant 0.353553385 : f32
    %84 = vector.broadcast %cst_41 : f32 to vector<8x8xf32>
    %85 = arith.mulf %83, %84 : vector<8x8xf32>
    %86 = vector.extract_strided_slice %18 {offsets = [0, 24], sizes = [8, 8], strides = [1, 1]} : vector<8x32xf32> to vector<8x8xf32>
    %cst_42 = arith.constant dense<0.000000e+00> : vector<8x8xf32>
    %87 = tpu.matmul %85, %86, %cst_42 {dimension_numbers = #tpu.dot_dimension_numbers<[1], [1], [0], [0], [0, 0, 1, 0], [], []>} : vector<8x8xf32>, vector<8x8xf32>, vector<8x8xf32> -> vector<8x8xf32>
    %cst_43 = arith.constant dense<0xFF800000> : vector<8xf32>
    %88 = vector.multi_reduction <maximumf>, %87, %cst_43 [1] : vector<8x8xf32> to vector<8xf32>
    %89 = vector.shape_cast %88 : vector<8xf32> to vector<8x1xf32>
    %90 = vector.broadcast %89 : vector<8x1xf32> to vector<8x8xf32>
    %91 = arith.subf %87, %90 : vector<8x8xf32>
    %92 = math.exp %91 : vector<8x8xf32>
    %cst_44 = arith.constant dense<0.000000e+00> : vector<8xf32>
    %93 = vector.multi_reduction <add>, %92, %cst_44 [1] : vector<8x8xf32> to vector<8xf32>
    %94 = vector.shape_cast %93 : vector<8xf32> to vector<8x1xf32>
    %95 = tpu.reciprocal %94 {approx = true} : vector<8x1xf32> -> vector<8x1xf32>
    %96 = vector.broadcast %95 : vector<8x1xf32> to vector<8x8xf32>
    %97 = arith.mulf %92, %96 : vector<8x8xf32>
    %98 = vector.extract_strided_slice %19 {offsets = [0, 24], sizes = [8, 8], strides = [1, 1]} : vector<8x32xf32> to vector<8x8xf32>
    %cst_45 = arith.constant dense<0.000000e+00> : vector<8x8xf32>
    %99 = tpu.matmul %97, %98, %cst_45 {dimension_numbers = #tpu.dot_dimension_numbers<[1], [0], [0], [1], [0, 0, 1, 1], [], []>} : vector<8x8xf32>, vector<8x8xf32>, vector<8x8xf32> -> vector<8x8xf32>
    %100 = vector.extract_strided_slice %8 {offsets = [24, 0], sizes = [8, 32], strides = [1, 1]} : vector<32x32xf32> to vector<8x32xf32>
    %cst_46 = arith.constant dense<0.000000e+00> : vector<8x32xf32>
    %101 = tpu.matmul %99, %100, %cst_46 {dimension_numbers = #tpu.dot_dimension_numbers<[1], [0], [0], [1], [0, 0, 1, 1], [], []>} : vector<8x8xf32>, vector<8x32xf32>, vector<8x32xf32> -> vector<8x32xf32>
    %102 = arith.addf %82, %101 : vector<8x32xf32>
    %103 = arith.addf %1, %102 : vector<8x32xf32>
    %cst_47 = arith.constant dense<0.000000e+00> : vector<8xf32>
    %104 = vector.multi_reduction <add>, %103, %cst_47 [1] : vector<8x32xf32> to vector<8xf32>
    %105 = vector.shape_cast %104 : vector<8xf32> to vector<8x1xf32>
    %cst_48 = arith.constant 3.200000e+01 : f32
    %106 = vector.broadcast %cst_48 : f32 to vector<8x1xf32>
    %107 = arith.divf %105, %106 : vector<8x1xf32>
    %108 = vector.broadcast %107 : vector<8x1xf32> to vector<8x32xf32>
    %109 = arith.subf %103, %108 : vector<8x32xf32>
    %110 = arith.mulf %109, %109 : vector<8x32xf32>
    %cst_49 = arith.constant dense<0.000000e+00> : vector<8xf32>
    %111 = vector.multi_reduction <add>, %110, %cst_49 [1] : vector<8x32xf32> to vector<8xf32>
    %112 = vector.shape_cast %111 : vector<8xf32> to vector<8x1xf32>
    %cst_50 = arith.constant 3.200000e+01 : f32
    %113 = vector.broadcast %cst_50 : f32 to vector<8x1xf32>
    %114 = arith.divf %112, %113 : vector<8x1xf32>
    %115 = vector.broadcast %107 : vector<8x1xf32> to vector<8x32xf32>
    %116 = arith.subf %103, %115 : vector<8x32xf32>
    %cst_51 = arith.constant 9.99999974E-6 : f32
    %117 = vector.broadcast %cst_51 : f32 to vector<8x1xf32>
    %118 = arith.addf %114, %117 : vector<8x1xf32>
    %119 = math.rsqrt %118 : vector<8x1xf32>
    %120 = vector.broadcast %119 : vector<8x1xf32> to vector<8x32xf32>
    %121 = arith.mulf %116, %120 : vector<8x32xf32>
    %122 = vector.broadcast %10 : vector<1x32xf32> to vector<8x32xf32>
    %123 = arith.mulf %121, %122 : vector<8x32xf32>
    %124 = vector.broadcast %11 : vector<1x32xf32> to vector<8x32xf32>
    %125 = arith.addf %123, %124 : vector<8x32xf32>
    %c0_52 = arith.constant 0 : index
    %c0_53 = arith.constant 0 : index
    %126 = vector.load %arg11[%c0_52, %c0_53] : memref<32x32xf32, #tpu.memory_space<vmem>>, vector<32x32xf32>
    %c0_54 = arith.constant 0 : index
    %c0_55 = arith.constant 0 : index
    %127 = vector.load %arg12[%c0_54, %c0_55] : memref<1x32xf32, #tpu.memory_space<vmem>>, vector<1x32xf32>
    %c0_56 = arith.constant 0 : index
    %c0_57 = arith.constant 0 : index
    %128 = vector.load %arg13[%c0_56, %c0_57] : memref<32x64xf32, #tpu.memory_space<vmem>>, vector<32x64xf32>
    %c0_58 = arith.constant 0 : index
    %c0_59 = arith.constant 0 : index
    %129 = vector.load %arg14[%c0_58, %c0_59] : memref<1x64xf32, #tpu.memory_space<vmem>>, vector<1x64xf32>
    %c0_60 = arith.constant 0 : index
    %c0_61 = arith.constant 0 : index
    %130 = vector.load %arg15[%c0_60, %c0_61] : memref<32x32xf32, #tpu.memory_space<vmem>>, vector<32x32xf32>
    %c0_62 = arith.constant 0 : index
    %c0_63 = arith.constant 0 : index
    %131 = vector.load %arg16[%c0_62, %c0_63] : memref<1x32xf32, #tpu.memory_space<vmem>>, vector<1x32xf32>
    %c0_64 = arith.constant 0 : index
    %c0_65 = arith.constant 0 : index
    %132 = vector.load %arg17[%c0_64, %c0_65] : memref<1x32xf32, #tpu.memory_space<vmem>>, vector<1x32xf32>
    %c0_66 = arith.constant 0 : index
    %c0_67 = arith.constant 0 : index
    %133 = vector.load %arg18[%c0_66, %c0_67] : memref<1x32xf32, #tpu.memory_space<vmem>>, vector<1x32xf32>
    %cst_68 = arith.constant dense<0.000000e+00> : vector<8x32xf32>
    %134 = tpu.matmul %125, %126, %cst_68 {dimension_numbers = #tpu.dot_dimension_numbers<[1], [0], [0], [1], [0, 0, 1, 1], [], []>} : vector<8x32xf32>, vector<32x32xf32>, vector<8x32xf32> -> vector<8x32xf32>
    %135 = vector.broadcast %127 : vector<1x32xf32> to vector<8x32xf32>
    %136 = arith.addf %134, %135 : vector<8x32xf32>
    %cst_69 = arith.constant dense<0.000000e+00> : vector<8x64xf32>
    %137 = tpu.matmul %3, %128, %cst_69 {dimension_numbers = #tpu.dot_dimension_numbers<[1], [0], [0], [1], [0, 0, 1, 1], [], []>} : vector<8x32xf32>, vector<32x64xf32>, vector<8x64xf32> -> vector<8x64xf32>
    %138 = vector.broadcast %129 : vector<1x64xf32> to vector<8x64xf32>
    %139 = arith.addf %137, %138 : vector<8x64xf32>
    %140 = vector.extract_strided_slice %139 {offsets = [0, 0], sizes = [8, 32], strides = [1, 1]} : vector<8x64xf32> to vector<8x32xf32>
    %141 = vector.extract_strided_slice %139 {offsets = [0, 32], sizes = [8, 32], strides = [1, 1]} : vector<8x64xf32> to vector<8x32xf32>
    %cst_70 = arith.constant 0.000000e+00 : f32
    %142 = vector.broadcast %cst_70 : f32 to vector<8x32xf32>
    %143 = vector.broadcast %131 : vector<1x32xf32> to vector<8x32xf32>
    %144 = arith.addf %142, %143 : vector<8x32xf32>
    %145 = vector.extract_strided_slice %136 {offsets = [0, 0], sizes = [8, 8], strides = [1, 1]} : vector<8x32xf32> to vector<8x8xf32>
    %cst_71 = arith.constant 0.353553385 : f32
    %146 = vector.broadcast %cst_71 : f32 to vector<8x8xf32>
    %147 = arith.mulf %145, %146 : vector<8x8xf32>
    %148 = vector.extract_strided_slice %140 {offsets = [0, 0], sizes = [8, 8], strides = [1, 1]} : vector<8x32xf32> to vector<8x8xf32>
    %cst_72 = arith.constant dense<0.000000e+00> : vector<8x8xf32>
    %149 = tpu.matmul %147, %148, %cst_72 {dimension_numbers = #tpu.dot_dimension_numbers<[1], [1], [0], [0], [0, 0, 1, 0], [], []>} : vector<8x8xf32>, vector<8x8xf32>, vector<8x8xf32> -> vector<8x8xf32>
    %cst_73 = arith.constant dense<0xFF800000> : vector<8xf32>
    %150 = vector.multi_reduction <maximumf>, %149, %cst_73 [1] : vector<8x8xf32> to vector<8xf32>
    %151 = vector.shape_cast %150 : vector<8xf32> to vector<8x1xf32>
    %152 = vector.broadcast %151 : vector<8x1xf32> to vector<8x8xf32>
    %153 = arith.subf %149, %152 : vector<8x8xf32>
    %154 = math.exp %153 : vector<8x8xf32>
    %cst_74 = arith.constant dense<0.000000e+00> : vector<8xf32>
    %155 = vector.multi_reduction <add>, %154, %cst_74 [1] : vector<8x8xf32> to vector<8xf32>
    %156 = vector.shape_cast %155 : vector<8xf32> to vector<8x1xf32>
    %157 = tpu.reciprocal %156 {approx = true} : vector<8x1xf32> -> vector<8x1xf32>
    %158 = vector.broadcast %157 : vector<8x1xf32> to vector<8x8xf32>
    %159 = arith.mulf %154, %158 : vector<8x8xf32>
    %160 = vector.extract_strided_slice %141 {offsets = [0, 0], sizes = [8, 8], strides = [1, 1]} : vector<8x32xf32> to vector<8x8xf32>
    %cst_75 = arith.constant dense<0.000000e+00> : vector<8x8xf32>
    %161 = tpu.matmul %159, %160, %cst_75 {dimension_numbers = #tpu.dot_dimension_numbers<[1], [0], [0], [1], [0, 0, 1, 1], [], []>} : vector<8x8xf32>, vector<8x8xf32>, vector<8x8xf32> -> vector<8x8xf32>
    %162 = vector.extract_strided_slice %130 {offsets = [0, 0], sizes = [8, 32], strides = [1, 1]} : vector<32x32xf32> to vector<8x32xf32>
    %cst_76 = arith.constant dense<0.000000e+00> : vector<8x32xf32>
    %163 = tpu.matmul %161, %162, %cst_76 {dimension_numbers = #tpu.dot_dimension_numbers<[1], [0], [0], [1], [0, 0, 1, 1], [], []>} : vector<8x8xf32>, vector<8x32xf32>, vector<8x32xf32> -> vector<8x32xf32>
    %164 = arith.addf %144, %163 : vector<8x32xf32>
    %165 = vector.extract_strided_slice %136 {offsets = [0, 8], sizes = [8, 8], strides = [1, 1]} : vector<8x32xf32> to vector<8x8xf32>
    %cst_77 = arith.constant 0.353553385 : f32
    %166 = vector.broadcast %cst_77 : f32 to vector<8x8xf32>
    %167 = arith.mulf %165, %166 : vector<8x8xf32>
    %168 = vector.extract_strided_slice %140 {offsets = [0, 8], sizes = [8, 8], strides = [1, 1]} : vector<8x32xf32> to vector<8x8xf32>
    %cst_78 = arith.constant dense<0.000000e+00> : vector<8x8xf32>
    %169 = tpu.matmul %167, %168, %cst_78 {dimension_numbers = #tpu.dot_dimension_numbers<[1], [1], [0], [0], [0, 0, 1, 0], [], []>} : vector<8x8xf32>, vector<8x8xf32>, vector<8x8xf32> -> vector<8x8xf32>
    %cst_79 = arith.constant dense<0xFF800000> : vector<8xf32>
    %170 = vector.multi_reduction <maximumf>, %169, %cst_79 [1] : vector<8x8xf32> to vector<8xf32>
    %171 = vector.shape_cast %170 : vector<8xf32> to vector<8x1xf32>
    %172 = vector.broadcast %171 : vector<8x1xf32> to vector<8x8xf32>
    %173 = arith.subf %169, %172 : vector<8x8xf32>
    %174 = math.exp %173 : vector<8x8xf32>
    %cst_80 = arith.constant dense<0.000000e+00> : vector<8xf32>
    %175 = vector.multi_reduction <add>, %174, %cst_80 [1] : vector<8x8xf32> to vector<8xf32>
    %176 = vector.shape_cast %175 : vector<8xf32> to vector<8x1xf32>
    %177 = tpu.reciprocal %176 {approx = true} : vector<8x1xf32> -> vector<8x1xf32>
    %178 = vector.broadcast %177 : vector<8x1xf32> to vector<8x8xf32>
    %179 = arith.mulf %174, %178 : vector<8x8xf32>
    %180 = vector.extract_strided_slice %141 {offsets = [0, 8], sizes = [8, 8], strides = [1, 1]} : vector<8x32xf32> to vector<8x8xf32>
    %cst_81 = arith.constant dense<0.000000e+00> : vector<8x8xf32>
    %181 = tpu.matmul %179, %180, %cst_81 {dimension_numbers = #tpu.dot_dimension_numbers<[1], [0], [0], [1], [0, 0, 1, 1], [], []>} : vector<8x8xf32>, vector<8x8xf32>, vector<8x8xf32> -> vector<8x8xf32>
    %182 = vector.extract_strided_slice %130 {offsets = [8, 0], sizes = [8, 32], strides = [1, 1]} : vector<32x32xf32> to vector<8x32xf32>
    %cst_82 = arith.constant dense<0.000000e+00> : vector<8x32xf32>
    %183 = tpu.matmul %181, %182, %cst_82 {dimension_numbers = #tpu.dot_dimension_numbers<[1], [0], [0], [1], [0, 0, 1, 1], [], []>} : vector<8x8xf32>, vector<8x32xf32>, vector<8x32xf32> -> vector<8x32xf32>
    %184 = arith.addf %164, %183 : vector<8x32xf32>
    %185 = vector.extract_strided_slice %136 {offsets = [0, 16], sizes = [8, 8], strides = [1, 1]} : vector<8x32xf32> to vector<8x8xf32>
    %cst_83 = arith.constant 0.353553385 : f32
    %186 = vector.broadcast %cst_83 : f32 to vector<8x8xf32>
    %187 = arith.mulf %185, %186 : vector<8x8xf32>
    %188 = vector.extract_strided_slice %140 {offsets = [0, 16], sizes = [8, 8], strides = [1, 1]} : vector<8x32xf32> to vector<8x8xf32>
    %cst_84 = arith.constant dense<0.000000e+00> : vector<8x8xf32>
    %189 = tpu.matmul %187, %188, %cst_84 {dimension_numbers = #tpu.dot_dimension_numbers<[1], [1], [0], [0], [0, 0, 1, 0], [], []>} : vector<8x8xf32>, vector<8x8xf32>, vector<8x8xf32> -> vector<8x8xf32>
    %cst_85 = arith.constant dense<0xFF800000> : vector<8xf32>
    %190 = vector.multi_reduction <maximumf>, %189, %cst_85 [1] : vector<8x8xf32> to vector<8xf32>
    %191 = vector.shape_cast %190 : vector<8xf32> to vector<8x1xf32>
    %192 = vector.broadcast %191 : vector<8x1xf32> to vector<8x8xf32>
    %193 = arith.subf %189, %192 : vector<8x8xf32>
    %194 = math.exp %193 : vector<8x8xf32>
    %cst_86 = arith.constant dense<0.000000e+00> : vector<8xf32>
    %195 = vector.multi_reduction <add>, %194, %cst_86 [1] : vector<8x8xf32> to vector<8xf32>
    %196 = vector.shape_cast %195 : vector<8xf32> to vector<8x1xf32>
    %197 = tpu.reciprocal %196 {approx = true} : vector<8x1xf32> -> vector<8x1xf32>
    %198 = vector.broadcast %197 : vector<8x1xf32> to vector<8x8xf32>
    %199 = arith.mulf %194, %198 : vector<8x8xf32>
    %200 = vector.extract_strided_slice %141 {offsets = [0, 16], sizes = [8, 8], strides = [1, 1]} : vector<8x32xf32> to vector<8x8xf32>
    %cst_87 = arith.constant dense<0.000000e+00> : vector<8x8xf32>
    %201 = tpu.matmul %199, %200, %cst_87 {dimension_numbers = #tpu.dot_dimension_numbers<[1], [0], [0], [1], [0, 0, 1, 1], [], []>} : vector<8x8xf32>, vector<8x8xf32>, vector<8x8xf32> -> vector<8x8xf32>
    %202 = vector.extract_strided_slice %130 {offsets = [16, 0], sizes = [8, 32], strides = [1, 1]} : vector<32x32xf32> to vector<8x32xf32>
    %cst_88 = arith.constant dense<0.000000e+00> : vector<8x32xf32>
    %203 = tpu.matmul %201, %202, %cst_88 {dimension_numbers = #tpu.dot_dimension_numbers<[1], [0], [0], [1], [0, 0, 1, 1], [], []>} : vector<8x8xf32>, vector<8x32xf32>, vector<8x32xf32> -> vector<8x32xf32>
    %204 = arith.addf %184, %203 : vector<8x32xf32>
    %205 = vector.extract_strided_slice %136 {offsets = [0, 24], sizes = [8, 8], strides = [1, 1]} : vector<8x32xf32> to vector<8x8xf32>
    %cst_89 = arith.constant 0.353553385 : f32
    %206 = vector.broadcast %cst_89 : f32 to vector<8x8xf32>
    %207 = arith.mulf %205, %206 : vector<8x8xf32>
    %208 = vector.extract_strided_slice %140 {offsets = [0, 24], sizes = [8, 8], strides = [1, 1]} : vector<8x32xf32> to vector<8x8xf32>
    %cst_90 = arith.constant dense<0.000000e+00> : vector<8x8xf32>
    %209 = tpu.matmul %207, %208, %cst_90 {dimension_numbers = #tpu.dot_dimension_numbers<[1], [1], [0], [0], [0, 0, 1, 0], [], []>} : vector<8x8xf32>, vector<8x8xf32>, vector<8x8xf32> -> vector<8x8xf32>
    %cst_91 = arith.constant dense<0xFF800000> : vector<8xf32>
    %210 = vector.multi_reduction <maximumf>, %209, %cst_91 [1] : vector<8x8xf32> to vector<8xf32>
    %211 = vector.shape_cast %210 : vector<8xf32> to vector<8x1xf32>
    %212 = vector.broadcast %211 : vector<8x1xf32> to vector<8x8xf32>
    %213 = arith.subf %209, %212 : vector<8x8xf32>
    %214 = math.exp %213 : vector<8x8xf32>
    %cst_92 = arith.constant dense<0.000000e+00> : vector<8xf32>
    %215 = vector.multi_reduction <add>, %214, %cst_92 [1] : vector<8x8xf32> to vector<8xf32>
    %216 = vector.shape_cast %215 : vector<8xf32> to vector<8x1xf32>
    %217 = tpu.reciprocal %216 {approx = true} : vector<8x1xf32> -> vector<8x1xf32>
    %218 = vector.broadcast %217 : vector<8x1xf32> to vector<8x8xf32>
    %219 = arith.mulf %214, %218 : vector<8x8xf32>
    %220 = vector.extract_strided_slice %141 {offsets = [0, 24], sizes = [8, 8], strides = [1, 1]} : vector<8x32xf32> to vector<8x8xf32>
    %cst_93 = arith.constant dense<0.000000e+00> : vector<8x8xf32>
    %221 = tpu.matmul %219, %220, %cst_93 {dimension_numbers = #tpu.dot_dimension_numbers<[1], [0], [0], [1], [0, 0, 1, 1], [], []>} : vector<8x8xf32>, vector<8x8xf32>, vector<8x8xf32> -> vector<8x8xf32>
    %222 = vector.extract_strided_slice %130 {offsets = [24, 0], sizes = [8, 32], strides = [1, 1]} : vector<32x32xf32> to vector<8x32xf32>
    %cst_94 = arith.constant dense<0.000000e+00> : vector<8x32xf32>
    %223 = tpu.matmul %221, %222, %cst_94 {dimension_numbers = #tpu.dot_dimension_numbers<[1], [0], [0], [1], [0, 0, 1, 1], [], []>} : vector<8x8xf32>, vector<8x32xf32>, vector<8x32xf32> -> vector<8x32xf32>
    %224 = arith.addf %204, %223 : vector<8x32xf32>
    %225 = arith.addf %125, %224 : vector<8x32xf32>
    %cst_95 = arith.constant dense<0.000000e+00> : vector<8xf32>
    %226 = vector.multi_reduction <add>, %225, %cst_95 [1] : vector<8x32xf32> to vector<8xf32>
    %227 = vector.shape_cast %226 : vector<8xf32> to vector<8x1xf32>
    %cst_96 = arith.constant 3.200000e+01 : f32
    %228 = vector.broadcast %cst_96 : f32 to vector<8x1xf32>
    %229 = arith.divf %227, %228 : vector<8x1xf32>
    %230 = vector.broadcast %229 : vector<8x1xf32> to vector<8x32xf32>
    %231 = arith.subf %225, %230 : vector<8x32xf32>
    %232 = arith.mulf %231, %231 : vector<8x32xf32>
    %cst_97 = arith.constant dense<0.000000e+00> : vector<8xf32>
    %233 = vector.multi_reduction <add>, %232, %cst_97 [1] : vector<8x32xf32> to vector<8xf32>
    %234 = vector.shape_cast %233 : vector<8xf32> to vector<8x1xf32>
    %cst_98 = arith.constant 3.200000e+01 : f32
    %235 = vector.broadcast %cst_98 : f32 to vector<8x1xf32>
    %236 = arith.divf %234, %235 : vector<8x1xf32>
    %237 = vector.broadcast %229 : vector<8x1xf32> to vector<8x32xf32>
    %238 = arith.subf %225, %237 : vector<8x32xf32>
    %cst_99 = arith.constant 9.99999974E-6 : f32
    %239 = vector.broadcast %cst_99 : f32 to vector<8x1xf32>
    %240 = arith.addf %236, %239 : vector<8x1xf32>
    %241 = math.rsqrt %240 : vector<8x1xf32>
    %242 = vector.broadcast %241 : vector<8x1xf32> to vector<8x32xf32>
    %243 = arith.mulf %238, %242 : vector<8x32xf32>
    %244 = vector.broadcast %132 : vector<1x32xf32> to vector<8x32xf32>
    %245 = arith.mulf %243, %244 : vector<8x32xf32>
    %246 = vector.broadcast %133 : vector<1x32xf32> to vector<8x32xf32>
    %247 = arith.addf %245, %246 : vector<8x32xf32>
    %c0_100 = arith.constant 0 : index
    %c0_101 = arith.constant 0 : index
    %c0_102 = arith.constant 0 : index
    %248 = vector.load %arg19[%c0_100, %c0_101, %c0_102] : memref<1x8x32xf32, #tpu.memory_space<vmem>>, vector<1x8x32xf32>
    %249 = vector.shape_cast %248 : vector<1x8x32xf32> to vector<8x32xf32>
    %250 = vector.shape_cast %247 : vector<8x32xf32> to vector<1x8x32xf32>
    tpu.vector_store %arg19[%c0_100, %c0_101, %c0_102], %250 {strides = array<i32>} : memref<1x8x32xf32, #tpu.memory_space<vmem>>, vector<1x8x32xf32>,
    return
  }
  func.func @transform_0(%arg0: i32) -> (i32, i32, i32) {
    %c0_i32 = arith.constant 0 : i32
    %c0_i32_0 = arith.constant 0 : i32
    %c0_i32_1 = arith.constant 0 : i32
    return %arg0, %c0_i32, %c0_i32_0 : i32, i32, i32
  }
  func.func @transform_1(%arg0: i32) -> (i32, i32, i32) {
    %c0_i32 = arith.constant 0 : i32
    %c0_i32_0 = arith.constant 0 : i32
    %c0_i32_1 = arith.constant 0 : i32
    return %arg0, %c0_i32, %c0_i32_0 : i32, i32, i32
  }
  func.func @transform_2(%arg0: i32) -> (i32, i32) {
    %c0_i32 = arith.constant 0 : i32
    %c0_i32_0 = arith.constant 0 : i32
    %c0_i32_1 = arith.constant 0 : i32
    return %c0_i32, %c0_i32_0 : i32, i32
  }
  func.func @transform_3(%arg0: i32) -> (i32, i32) {
    %c0_i32 = arith.constant 0 : i32
    %c0_i32_0 = arith.constant 0 : i32
    %c0_i32_1 = arith.constant 0 : i32
    return %c0_i32, %c0_i32_0 : i32, i32
  }
  func.func @transform_4(%arg0: i32) -> (i32, i32) {
    %c0_i32 = arith.constant 0 : i32
    %c0_i32_0 = arith.constant 0 : i32
    %c0_i32_1 = arith.constant 0 : i32
    return %c0_i32, %c0_i32_0 : i32, i32
  }
  func.func @transform_5(%arg0: i32) -> (i32, i32) {
    %c0_i32 = arith.constant 0 : i32
    %c0_i32_0 = arith.constant 0 : i32
    %c0_i32_1 = arith.constant 0 : i32
    return %c0_i32, %c0_i32_0 : i32, i32
  }
  func.func @transform_6(%arg0: i32) -> (i32, i32) {
    %c0_i32 = arith.constant 0 : i32
    %c0_i32_0 = arith.constant 0 : i32
    %c0_i32_1 = arith.constant 0 : i32
    return %c0_i32, %c0_i32_0 : i32, i32
  }
  func.func @transform_7(%arg0: i32) -> (i32, i32) {
    %c0_i32 = arith.constant 0 : i32
    %c0_i32_0 = arith.constant 0 : i32
    %c0_i32_1 = arith.constant 0 : i32
    return %c0_i32, %c0_i32_0 : i32, i32
  }
  func.func @transform_8(%arg0: i32) -> (i32, i32) {
    %c0_i32 = arith.constant 0 : i32
    %c0_i32_0 = arith.constant 0 : i32
    %c0_i32_1 = arith.constant 0 : i32
    return %c0_i32, %c0_i32_0 : i32, i32
  }
  func.func @transform_9(%arg0: i32) -> (i32, i32) {
    %c0_i32 = arith.constant 0 : i32
    %c0_i32_0 = arith.constant 0 : i32
    %c0_i32_1 = arith.constant 0 : i32
    return %c0_i32, %c0_i32_0 : i32, i32
  }
  func.func @transform_10(%arg0: i32) -> (i32, i32) {
    %c0_i32 = arith.constant 0 : i32
    %c0_i32_0 = arith.constant 0 : i32
    %c0_i32_1 = arith.constant 0 : i32
    return %c0_i32, %c0_i32_0 : i32, i32
  }
  func.func @transform_11(%arg0: i32) -> (i32, i32) {
    %c0_i32 = arith.constant 0 : i32
    %c0_i32_0 = arith.constant 0 : i32
    %c0_i32_1 = arith.constant 0 : i32
    return %c0_i32, %c0_i32_0 : i32, i32
  }
  func.func @transform_12(%arg0: i32) -> (i32, i32) {
    %c0_i32 = arith.constant 0 : i32
    %c0_i32_0 = arith.constant 0 : i32
    %c0_i32_1 = arith.constant 0 : i32
    return %c0_i32, %c0_i32_0 : i32, i32
  }
  func.func @transform_13(%arg0: i32) -> (i32, i32) {
    %c0_i32 = arith.constant 0 : i32
    %c0_i32_0 = arith.constant 0 : i32
    %c0_i32_1 = arith.constant 0 : i32
    return %c0_i32, %c0_i32_0 : i32, i32
  }
  func.func @transform_14(%arg0: i32) -> (i32, i32) {
    %c0_i32 = arith.constant 0 : i32
    %c0_i32_0 = arith.constant 0 : i32
    %c0_i32_1 = arith.constant 0 : i32
    return %c0_i32, %c0_i32_0 : i32, i32
  }
  func.func @transform_15(%arg0: i32) -> (i32, i32) {
    %c0_i32 = arith.constant 0 : i32
    %c0_i32_0 = arith.constant 0 : i32
    %c0_i32_1 = arith.constant 0 : i32
    return %c0_i32, %c0_i32_0 : i32, i32
  }
  func.func @transform_16(%arg0: i32) -> (i32, i32) {
    %c0_i32 = arith.constant 0 : i32
    %c0_i32_0 = arith.constant 0 : i32
    %c0_i32_1 = arith.constant 0 : i32
    return %c0_i32, %c0_i32_0 : i32, i32
  }
  func.func @transform_17(%arg0: i32) -> (i32, i32) {
    %c0_i32 = arith.constant 0 : i32
    %c0_i32_0 = arith.constant 0 : i32
    %c0_i32_1 = arith.constant 0 : i32
    return %c0_i32, %c0_i32_0 : i32, i32
  }
  func.func @transform_18(%arg0: i32) -> (i32, i32, i32) {
    %c0_i32 = arith.constant 0 : i32
    %c0_i32_0 = arith.constant 0 : i32
    %c0_i32_1 = arith.constant 0 : i32
    return %arg0, %c0_i32, %c0_i32_0 : i32, i32, i32
  }
}

module attributes {stable_mosaic.version = 11 : i64} {
  func.func @_attn_pair_kernel(%arg0: i32, %arg1: memref<1x8x32xf32, #tpu.memory_space<vmem>>, %arg2: memref<1x8x32xf32, #tpu.memory_space<vmem>>, %arg3: memref<32x32xf32, #tpu.memory_space<vmem>>, %arg4: memref<1x32xf32, #tpu.memory_space<vmem>>, %arg5: memref<32x64xf32, #tpu.memory_space<vmem>>, %arg6: memref<1x64xf32, #tpu.memory_space<vmem>>, %arg7: memref<32x32xf32, #tpu.memory_space<vmem>>, %arg8: memref<1x32xf32, #tpu.memory_space<vmem>>, %arg9: memref<1x32xf32, #tpu.memory_space<vmem>>, %arg10: memref<1x32xf32, #tpu.memory_space<vmem>>, %arg11: memref<32x32xf32, #tpu.memory_space<vmem>>, %arg12: memref<1x32xf32, #tpu.memory_space<vmem>>, %arg13: memref<32x64xf32, #tpu.memory_space<vmem>>, %arg14: memref<1x64xf32, #tpu.memory_space<vmem>>, %arg15: memref<32x32xf32, #tpu.memory_space<vmem>>, %arg16: memref<1x32xf32, #tpu.memory_space<vmem>>, %arg17: memref<1x32xf32, #tpu.memory_space<vmem>>, %arg18: memref<1x32xf32, #tpu.memory_space<vmem>>, %arg19: memref<1x8x32xf32, #tpu.memory_space<vmem>>) attributes {dimension_semantics = [#tpu.dimension_semantics<parallel>], iteration_bounds = array<i64: 2>, scalar_prefetch = 0 : i64, scratch_operands = 0 : i64, tpu.core_type = #tpu.core_type<tc>, window_params = [{transform_indices = @transform_0, window_bounds = array<i64: 1, 8, 32>}, {transform_indices = @transform_1, window_bounds = array<i64: 1, 8, 32>}, {pipeline_mode = #tpu.pipeline_mode<synchronous>, transform_indices = @transform_2, window_bounds = array<i64: 32, 32>}, {pipeline_mode = #tpu.pipeline_mode<synchronous>, transform_indices = @transform_3, window_bounds = array<i64: 1, 32>}, {pipeline_mode = #tpu.pipeline_mode<synchronous>, transform_indices = @transform_4, window_bounds = array<i64: 32, 64>}, {pipeline_mode = #tpu.pipeline_mode<synchronous>, transform_indices = @transform_5, window_bounds = array<i64: 1, 64>}, {pipeline_mode = #tpu.pipeline_mode<synchronous>, transform_indices = @transform_6, window_bounds = array<i64: 32, 32>}, {pipeline_mode = #tpu.pipeline_mode<synchronous>, transform_indices = @transform_7, window_bounds = array<i64: 1, 32>}, {pipeline_mode = #tpu.pipeline_mode<synchronous>, transform_indices = @transform_8, window_bounds = array<i64: 1, 32>}, {pipeline_mode = #tpu.pipeline_mode<synchronous>, transform_indices = @transform_9, window_bounds = array<i64: 1, 32>}, {pipeline_mode = #tpu.pipeline_mode<synchronous>, transform_indices = @transform_10, window_bounds = array<i64: 32, 32>}, {pipeline_mode = #tpu.pipeline_mode<synchronous>, transform_indices = @transform_11, window_bounds = array<i64: 1, 32>}, {pipeline_mode = #tpu.pipeline_mode<synchronous>, transform_indices = @transform_12, window_bounds = array<i64: 32, 64>}, {pipeline_mode = #tpu.pipeline_mode<synchronous>, transform_indices = @transform_13, window_bounds = array<i64: 1, 64>}, {pipeline_mode = #tpu.pipeline_mode<synchronous>, transform_indices = @transform_14, window_bounds = array<i64: 32, 32>}, {pipeline_mode = #tpu.pipeline_mode<synchronous>, transform_indices = @transform_15, window_bounds = array<i64: 1, 32>}, {pipeline_mode = #tpu.pipeline_mode<synchronous>, transform_indices = @transform_16, window_bounds = array<i64: 1, 32>}, {pipeline_mode = #tpu.pipeline_mode<synchronous>, transform_indices = @transform_17, window_bounds = array<i64: 1, 32>}, {transform_indices = @transform_18, window_bounds = array<i64: 1, 8, 32>}]} {
    %c0 = arith.constant 0 : index
    %c0_0 = arith.constant 0 : index
    %c0_1 = arith.constant 0 : index
    %0 = vector.load %arg1[%c0, %c0_0, %c0_1] : memref<1x8x32xf32, #tpu.memory_space<vmem>>, vector<1x8x32xf32>
    %1 = vector.shape_cast %0 : vector<1x8x32xf32> to vector<8x32xf32>
    %c0_2 = arith.constant 0 : index
    %c0_3 = arith.constant 0 : index
    %c0_4 = arith.constant 0 : index
    %2 = vector.load %arg2[%c0_2, %c0_3, %c0_4] : memref<1x8x32xf32, #tpu.memory_space<vmem>>, vector<1x8x32xf32>
    %3 = vector.shape_cast %2 : vector<1x8x32xf32> to vector<8x32xf32>
    %c0_5 = arith.constant 0 : index
    %c0_6 = arith.constant 0 : index
    %4 = vector.load %arg3[%c0_5, %c0_6] : memref<32x32xf32, #tpu.memory_space<vmem>>, vector<32x32xf32>
    %c0_7 = arith.constant 0 : index
    %c0_8 = arith.constant 0 : index
    %5 = vector.load %arg4[%c0_7, %c0_8] : memref<1x32xf32, #tpu.memory_space<vmem>>, vector<1x32xf32>
    %c0_9 = arith.constant 0 : index
    %c0_10 = arith.constant 0 : index
    %6 = vector.load %arg5[%c0_9, %c0_10] : memref<32x64xf32, #tpu.memory_space<vmem>>, vector<32x64xf32>
    %c0_11 = arith.constant 0 : index
    %c0_12 = arith.constant 0 : index
    %7 = vector.load %arg6[%c0_11, %c0_12] : memref<1x64xf32, #tpu.memory_space<vmem>>, vector<1x64xf32>
    %c0_13 = arith.constant 0 : index
    %c0_14 = arith.constant 0 : index
    %8 = vector.load %arg7[%c0_13, %c0_14] : memref<32x32xf32, #tpu.memory_space<vmem>>, vector<32x32xf32>
    %c0_15 = arith.constant 0 : index
    %c0_16 = arith.constant 0 : index
    %9 = vector.load %arg8[%c0_15, %c0_16] : memref<1x32xf32, #tpu.memory_space<vmem>>, vector<1x32xf32>
    %c0_17 = arith.constant 0 : index
    %c0_18 = arith.constant 0 : index
    %10 = vector.load %arg9[%c0_17, %c0_18] : memref<1x32xf32, #tpu.memory_space<vmem>>, vector<1x32xf32>
    %c0_19 = arith.constant 0 : index
    %c0_20 = arith.constant 0 : index
    %11 = vector.load %arg10[%c0_19, %c0_20] : memref<1x32xf32, #tpu.memory_space<vmem>>, vector<1x32xf32>
    %cst = arith.constant dense<0.000000e+00> : vector<8x32xf32>
    %12 = tpu.matmul %1, %4, %cst {dimension_numbers = #tpu.dot_dimension_numbers<[1], [0], [0], [1], [0, 0, 1, 1], [], []>} : vector<8x32xf32>, vector<32x32xf32>, vector<8x32xf32> -> vector<8x32xf32>
    %13 = vector.broadcast %5 : vector<1x32xf32> to vector<8x32xf32>
    %14 = arith.addf %12, %13 : vector<8x32xf32>
    %cst_21 = arith.constant dense<0.000000e+00> : vector<8x64xf32>
    %15 = tpu.matmul %1, %6, %cst_21 {dimension_numbers = #tpu.dot_dimension_numbers<[1], [0], [0], [1], [0, 0, 1, 1], [], []>} : vector<8x32xf32>, vector<32x64xf32>, vector<8x64xf32> -> vector<8x64xf32>
    %16 = vector.broadcast %7 : vector<1x64xf32> to vector<8x64xf32>
    %17 = arith.addf %15, %16 : vector<8x64xf32>
    %18 = vector.extract_strided_slice %17 {offsets = [0, 0], sizes = [8, 32], strides = [1, 1]} : vector<8x64xf32> to vector<8x32xf32>
    %19 = vector.extract_strided_slice %17 {offsets = [0, 32], sizes = [8, 32], strides = [1, 1]} : vector<8x64xf32> to vector<8x32xf32>
    %cst_22 = arith.constant 0.000000e+00 : f32
    %20 = vector.broadcast %cst_22 : f32 to vector<8x32xf32>
    %21 = vector.broadcast %9 : vector<1x32xf32> to vector<8x32xf32>
    %22 = arith.addf %20, %21 : vector<8x32xf32>
    %23 = vector.extract_strided_slice %14 {offsets = [0, 0], sizes = [8, 8], strides = [1, 1]} : vector<8x32xf32> to vector<8x8xf32>
    %cst_23 = arith.constant 0.353553385 : f32
    %24 = vector.broadcast %cst_23 : f32 to vector<8x8xf32>
    %25 = arith.mulf %23, %24 : vector<8x8xf32>
    %26 = vector.extract_strided_slice %18 {offsets = [0, 0], sizes = [8, 8], strides = [1, 1]} : vector<8x32xf32> to vector<8x8xf32>
    %cst_24 = arith.constant dense<0.000000e+00> : vector<8x8xf32>
    %27 = tpu.matmul %25, %26, %cst_24 {dimension_numbers = #tpu.dot_dimension_numbers<[1], [1], [0], [0], [0, 0, 1, 0], [], []>} : vector<8x8xf32>, vector<8x8xf32>, vector<8x8xf32> -> vector<8x8xf32>
    %cst_25 = arith.constant dense<0xFF800000> : vector<8xf32>
    %28 = vector.multi_reduction <maximumf>, %27, %cst_25 [1] : vector<8x8xf32> to vector<8xf32>
    %29 = vector.shape_cast %28 : vector<8xf32> to vector<8x1xf32>
    %30 = vector.broadcast %29 : vector<8x1xf32> to vector<8x8xf32>
    %31 = arith.subf %27, %30 : vector<8x8xf32>
    %32 = math.exp %31 : vector<8x8xf32>
    %cst_26 = arith.constant dense<0.000000e+00> : vector<8xf32>
    %33 = vector.multi_reduction <add>, %32, %cst_26 [1] : vector<8x8xf32> to vector<8xf32>
    %34 = vector.shape_cast %33 : vector<8xf32> to vector<8x1xf32>
    %35 = tpu.reciprocal %34 {approx = true} : vector<8x1xf32> -> vector<8x1xf32>
    %36 = vector.broadcast %35 : vector<8x1xf32> to vector<8x8xf32>
    %37 = arith.mulf %32, %36 : vector<8x8xf32>
    %38 = vector.extract_strided_slice %19 {offsets = [0, 0], sizes = [8, 8], strides = [1, 1]} : vector<8x32xf32> to vector<8x8xf32>
    %cst_27 = arith.constant dense<0.000000e+00> : vector<8x8xf32>
    %39 = tpu.matmul %37, %38, %cst_27 {dimension_numbers = #tpu.dot_dimension_numbers<[1], [0], [0], [1], [0, 0, 1, 1], [], []>} : vector<8x8xf32>, vector<8x8xf32>, vector<8x8xf32> -> vector<8x8xf32>
    %40 = vector.extract_strided_slice %8 {offsets = [0, 0], sizes = [8, 32], strides = [1, 1]} : vector<32x32xf32> to vector<8x32xf32>
    %cst_28 = arith.constant dense<0.000000e+00> : vector<8x32xf32>
    %41 = tpu.matmul %39, %40, %cst_28 {dimension_numbers = #tpu.dot_dimension_numbers<[1], [0], [0], [1], [0, 0, 1, 1], [], []>} : vector<8x8xf32>, vector<8x32xf32>, vector<8x32xf32> -> vector<8x32xf32>
    %42 = arith.addf %22, %41 : vector<8x32xf32>
    %43 = vector.extract_strided_slice %14 {offsets = [0, 8], sizes = [8, 8], strides = [1, 1]} : vector<8x32xf32> to vector<8x8xf32>
    %cst_29 = arith.constant 0.353553385 : f32
    %44 = vector.broadcast %cst_29 : f32 to vector<8x8xf32>
    %45 = arith.mulf %43, %44 : vector<8x8xf32>
    %46 = vector.extract_strided_slice %18 {offsets = [0, 8], sizes = [8, 8], strides = [1, 1]} : vector<8x32xf32> to vector<8x8xf32>
    %cst_30 = arith.constant dense<0.000000e+00> : vector<8x8xf32>
    %47 = tpu.matmul %45, %46, %cst_30 {dimension_numbers = #tpu.dot_dimension_numbers<[1], [1], [0], [0], [0, 0, 1, 0], [], []>} : vector<8x8xf32>, vector<8x8xf32>, vector<8x8xf32> -> vector<8x8xf32>
    %cst_31 = arith.constant dense<0xFF800000> : vector<8xf32>
    %48 = vector.multi_reduction <maximumf>, %47, %cst_31 [1] : vector<8x8xf32> to vector<8xf32>
    %49 = vector.shape_cast %48 : vector<8xf32> to vector<8x1xf32>
    %50 = vector.broadcast %49 : vector<8x1xf32> to vector<8x8xf32>
    %51 = arith.subf %47, %50 : vector<8x8xf32>
    %52 = math.exp %51 : vector<8x8xf32>
    %cst_32 = arith.constant dense<0.000000e+00> : vector<8xf32>
    %53 = vector.multi_reduction <add>, %52, %cst_32 [1] : vector<8x8xf32> to vector<8xf32>
    %54 = vector.shape_cast %53 : vector<8xf32> to vector<8x1xf32>
    %55 = tpu.reciprocal %54 {approx = true} : vector<8x1xf32> -> vector<8x1xf32>
    %56 = vector.broadcast %55 : vector<8x1xf32> to vector<8x8xf32>
    %57 = arith.mulf %52, %56 : vector<8x8xf32>
    %58 = vector.extract_strided_slice %19 {offsets = [0, 8], sizes = [8, 8], strides = [1, 1]} : vector<8x32xf32> to vector<8x8xf32>
    %cst_33 = arith.constant dense<0.000000e+00> : vector<8x8xf32>
    %59 = tpu.matmul %57, %58, %cst_33 {dimension_numbers = #tpu.dot_dimension_numbers<[1], [0], [0], [1], [0, 0, 1, 1], [], []>} : vector<8x8xf32>, vector<8x8xf32>, vector<8x8xf32> -> vector<8x8xf32>
    %60 = vector.extract_strided_slice %8 {offsets = [8, 0], sizes = [8, 32], strides = [1, 1]} : vector<32x32xf32> to vector<8x32xf32>
    %cst_34 = arith.constant dense<0.000000e+00> : vector<8x32xf32>
    %61 = tpu.matmul %59, %60, %cst_34 {dimension_numbers = #tpu.dot_dimension_numbers<[1], [0], [0], [1], [0, 0, 1, 1], [], []>} : vector<8x8xf32>, vector<8x32xf32>, vector<8x32xf32> -> vector<8x32xf32>
    %62 = arith.addf %42, %61 : vector<8x32xf32>
    %63 = vector.extract_strided_slice %14 {offsets = [0, 16], sizes = [8, 8], strides = [1, 1]} : vector<8x32xf32> to vector<8x8xf32>
    %cst_35 = arith.constant 0.353553385 : f32
    %64 = vector.broadcast %cst_35 : f32 to vector<8x8xf32>
    %65 = arith.mulf %63, %64 : vector<8x8xf32>
    %66 = vector.extract_strided_slice %18 {offsets = [0, 16], sizes = [8, 8], strides = [1, 1]} : vector<8x32xf32> to vector<8x8xf32>
    %cst_36 = arith.constant dense<0.000000e+00> : vector<8x8xf32>
    %67 = tpu.matmul %65, %66, %cst_36 {dimension_numbers = #tpu.dot_dimension_numbers<[1], [1], [0], [0], [0, 0, 1, 0], [], []>} : vector<8x8xf32>, vector<8x8xf32>, vector<8x8xf32> -> vector<8x8xf32>
    %cst_37 = arith.constant dense<0xFF800000> : vector<8xf32>
    %68 = vector.multi_reduction <maximumf>, %67, %cst_37 [1] : vector<8x8xf32> to vector<8xf32>
    %69 = vector.shape_cast %68 : vector<8xf32> to vector<8x1xf32>
    %70 = vector.broadcast %69 : vector<8x1xf32> to vector<8x8xf32>
    %71 = arith.subf %67, %70 : vector<8x8xf32>
    %72 = math.exp %71 : vector<8x8xf32>
    %cst_38 = arith.constant dense<0.000000e+00> : vector<8xf32>
    %73 = vector.multi_reduction <add>, %72, %cst_38 [1] : vector<8x8xf32> to vector<8xf32>
    %74 = vector.shape_cast %73 : vector<8xf32> to vector<8x1xf32>
    %75 = tpu.reciprocal %74 {approx = true} : vector<8x1xf32> -> vector<8x1xf32>
    %76 = vector.broadcast %75 : vector<8x1xf32> to vector<8x8xf32>
    %77 = arith.mulf %72, %76 : vector<8x8xf32>
    %78 = vector.extract_strided_slice %19 {offsets = [0, 16], sizes = [8, 8], strides = [1, 1]} : vector<8x32xf32> to vector<8x8xf32>
    %cst_39 = arith.constant dense<0.000000e+00> : vector<8x8xf32>
    %79 = tpu.matmul %77, %78, %cst_39 {dimension_numbers = #tpu.dot_dimension_numbers<[1], [0], [0], [1], [0, 0, 1, 1], [], []>} : vector<8x8xf32>, vector<8x8xf32>, vector<8x8xf32> -> vector<8x8xf32>
    %80 = vector.extract_strided_slice %8 {offsets = [16, 0], sizes = [8, 32], strides = [1, 1]} : vector<32x32xf32> to vector<8x32xf32>
    %cst_40 = arith.constant dense<0.000000e+00> : vector<8x32xf32>
    %81 = tpu.matmul %79, %80, %cst_40 {dimension_numbers = #tpu.dot_dimension_numbers<[1], [0], [0], [1], [0, 0, 1, 1], [], []>} : vector<8x8xf32>, vector<8x32xf32>, vector<8x32xf32> -> vector<8x32xf32>
    %82 = arith.addf %62, %81 : vector<8x32xf32>
    %83 = vector.extract_strided_slice %14 {offsets = [0, 24], sizes = [8, 8], strides = [1, 1]} : vector<8x32xf32> to vector<8x8xf32>
    %cst_41 = arith.constant 0.353553385 : f32
    %84 = vector.broadcast %cst_41 : f32 to vector<8x8xf32>
    %85 = arith.mulf %83, %84 : vector<8x8xf32>
    %86 = vector.extract_strided_slice %18 {offsets = [0, 24], sizes = [8, 8], strides = [1, 1]} : vector<8x32xf32> to vector<8x8xf32>
    %cst_42 = arith.constant dense<0.000000e+00> : vector<8x8xf32>
    %87 = tpu.matmul %85, %86, %cst_42 {dimension_numbers = #tpu.dot_dimension_numbers<[1], [1], [0], [0], [0, 0, 1, 0], [], []>} : vector<8x8xf32>, vector<8x8xf32>, vector<8x8xf32> -> vector<8x8xf32>
    %cst_43 = arith.constant dense<0xFF800000> : vector<8xf32>
    %88 = vector.multi_reduction <maximumf>, %87, %cst_43 [1] : vector<8x8xf32> to vector<8xf32>
    %89 = vector.shape_cast %88 : vector<8xf32> to vector<8x1xf32>
    %90 = vector.broadcast %89 : vector<8x1xf32> to vector<8x8xf32>
    %91 = arith.subf %87, %90 : vector<8x8xf32>
    %92 = math.exp %91 : vector<8x8xf32>
    %cst_44 = arith.constant dense<0.000000e+00> : vector<8xf32>
    %93 = vector.multi_reduction <add>, %92, %cst_44 [1] : vector<8x8xf32> to vector<8xf32>
    %94 = vector.shape_cast %93 : vector<8xf32> to vector<8x1xf32>
    %95 = tpu.reciprocal %94 {approx = true} : vector<8x1xf32> -> vector<8x1xf32>
    %96 = vector.broadcast %95 : vector<8x1xf32> to vector<8x8xf32>
    %97 = arith.mulf %92, %96 : vector<8x8xf32>
    %98 = vector.extract_strided_slice %19 {offsets = [0, 24], sizes = [8, 8], strides = [1, 1]} : vector<8x32xf32> to vector<8x8xf32>
    %cst_45 = arith.constant dense<0.000000e+00> : vector<8x8xf32>
    %99 = tpu.matmul %97, %98, %cst_45 {dimension_numbers = #tpu.dot_dimension_numbers<[1], [0], [0], [1], [0, 0, 1, 1], [], []>} : vector<8x8xf32>, vector<8x8xf32>, vector<8x8xf32> -> vector<8x8xf32>
    %100 = vector.extract_strided_slice %8 {offsets = [24, 0], sizes = [8, 32], strides = [1, 1]} : vector<32x32xf32> to vector<8x32xf32>
    %cst_46 = arith.constant dense<0.000000e+00> : vector<8x32xf32>
    %101 = tpu.matmul %99, %100, %cst_46 {dimension_numbers = #tpu.dot_dimension_numbers<[1], [0], [0], [1], [0, 0, 1, 1], [], []>} : vector<8x8xf32>, vector<8x32xf32>, vector<8x32xf32> -> vector<8x32xf32>
    %102 = arith.addf %82, %101 : vector<8x32xf32>
    %103 = arith.addf %1, %102 : vector<8x32xf32>
    %cst_47 = arith.constant dense<0.000000e+00> : vector<8xf32>
    %104 = vector.multi_reduction <add>, %103, %cst_47 [1] : vector<8x32xf32> to vector<8xf32>
    %105 = vector.shape_cast %104 : vector<8xf32> to vector<8x1xf32>
    %cst_48 = arith.constant 3.200000e+01 : f32
    %106 = vector.broadcast %cst_48 : f32 to vector<8x1xf32>
    %107 = arith.divf %105, %106 : vector<8x1xf32>
    %108 = vector.broadcast %107 : vector<8x1xf32> to vector<8x32xf32>
    %109 = arith.subf %103, %108 : vector<8x32xf32>
    %110 = arith.mulf %109, %109 : vector<8x32xf32>
    %cst_49 = arith.constant dense<0.000000e+00> : vector<8xf32>
    %111 = vector.multi_reduction <add>, %110, %cst_49 [1] : vector<8x32xf32> to vector<8xf32>
    %112 = vector.shape_cast %111 : vector<8xf32> to vector<8x1xf32>
    %cst_50 = arith.constant 3.200000e+01 : f32
    %113 = vector.broadcast %cst_50 : f32 to vector<8x1xf32>
    %114 = arith.divf %112, %113 : vector<8x1xf32>
    %115 = vector.broadcast %107 : vector<8x1xf32> to vector<8x32xf32>
    %116 = arith.subf %103, %115 : vector<8x32xf32>
    %cst_51 = arith.constant 9.99999974E-6 : f32
    %117 = vector.broadcast %cst_51 : f32 to vector<8x1xf32>
    %118 = arith.addf %114, %117 : vector<8x1xf32>
    %119 = math.rsqrt %118 : vector<8x1xf32>
    %120 = vector.broadcast %119 : vector<8x1xf32> to vector<8x32xf32>
    %121 = arith.mulf %116, %120 : vector<8x32xf32>
    %122 = vector.broadcast %10 : vector<1x32xf32> to vector<8x32xf32>
    %123 = arith.mulf %121, %122 : vector<8x32xf32>
    %124 = vector.broadcast %11 : vector<1x32xf32> to vector<8x32xf32>
    %125 = arith.addf %123, %124 : vector<8x32xf32>
    %c0_52 = arith.constant 0 : index
    %c0_53 = arith.constant 0 : index
    %126 = vector.load %arg11[%c0_52, %c0_53] : memref<32x32xf32, #tpu.memory_space<vmem>>, vector<32x32xf32>
    %c0_54 = arith.constant 0 : index
    %c0_55 = arith.constant 0 : index
    %127 = vector.load %arg12[%c0_54, %c0_55] : memref<1x32xf32, #tpu.memory_space<vmem>>, vector<1x32xf32>
    %c0_56 = arith.constant 0 : index
    %c0_57 = arith.constant 0 : index
    %128 = vector.load %arg13[%c0_56, %c0_57] : memref<32x64xf32, #tpu.memory_space<vmem>>, vector<32x64xf32>
    %c0_58 = arith.constant 0 : index
    %c0_59 = arith.constant 0 : index
    %129 = vector.load %arg14[%c0_58, %c0_59] : memref<1x64xf32, #tpu.memory_space<vmem>>, vector<1x64xf32>
    %c0_60 = arith.constant 0 : index
    %c0_61 = arith.constant 0 : index
    %130 = vector.load %arg15[%c0_60, %c0_61] : memref<32x32xf32, #tpu.memory_space<vmem>>, vector<32x32xf32>
    %c0_62 = arith.constant 0 : index
    %c0_63 = arith.constant 0 : index
    %131 = vector.load %arg16[%c0_62, %c0_63] : memref<1x32xf32, #tpu.memory_space<vmem>>, vector<1x32xf32>
    %c0_64 = arith.constant 0 : index
    %c0_65 = arith.constant 0 : index
    %132 = vector.load %arg17[%c0_64, %c0_65] : memref<1x32xf32, #tpu.memory_space<vmem>>, vector<1x32xf32>
    %c0_66 = arith.constant 0 : index
    %c0_67 = arith.constant 0 : index
    %133 = vector.load %arg18[%c0_66, %c0_67] : memref<1x32xf32, #tpu.memory_space<vmem>>, vector<1x32xf32>
    %cst_68 = arith.constant dense<0.000000e+00> : vector<8x32xf32>
    %134 = tpu.matmul %125, %126, %cst_68 {dimension_numbers = #tpu.dot_dimension_numbers<[1], [0], [0], [1], [0, 0, 1, 1], [], []>} : vector<8x32xf32>, vector<32x32xf32>, vector<8x32xf32> -> vector<8x32xf32>
    %135 = vector.broadcast %127 : vector<1x32xf32> to vector<8x32xf32>
    %136 = arith.addf %134, %135 : vector<8x32xf32>
    %cst_69 = arith.constant dense<0.000000e+00> : vector<8x64xf32>
    %137 = tpu.matmul %3, %128, %cst_69 {dimension_numbers = #tpu.dot_dimension_numbers<[1], [0], [0], [1], [0, 0, 1, 1], [], []>} : vector<8x32xf32>, vector<32x64xf32>, vector<8x64xf32> -> vector<8x64xf32>
    %138 = vector.broadcast %129 : vector<1x64xf32> to vector<8x64xf32>
    %139 = arith.addf %137, %138 : vector<8x64xf32>
    %140 = vector.extract_strided_slice %139 {offsets = [0, 0], sizes = [8, 32], strides = [1, 1]} : vector<8x64xf32> to vector<8x32xf32>
    %141 = vector.extract_strided_slice %139 {offsets = [0, 32], sizes = [8, 32], strides = [1, 1]} : vector<8x64xf32> to vector<8x32xf32>
    %cst_70 = arith.constant 0.000000e+00 : f32
    %142 = vector.broadcast %cst_70 : f32 to vector<8x32xf32>
    %143 = vector.broadcast %131 : vector<1x32xf32> to vector<8x32xf32>
    %144 = arith.addf %142, %143 : vector<8x32xf32>
    %145 = vector.extract_strided_slice %136 {offsets = [0, 0], sizes = [8, 8], strides = [1, 1]} : vector<8x32xf32> to vector<8x8xf32>
    %cst_71 = arith.constant 0.353553385 : f32
    %146 = vector.broadcast %cst_71 : f32 to vector<8x8xf32>
    %147 = arith.mulf %145, %146 : vector<8x8xf32>
    %148 = vector.extract_strided_slice %140 {offsets = [0, 0], sizes = [8, 8], strides = [1, 1]} : vector<8x32xf32> to vector<8x8xf32>
    %cst_72 = arith.constant dense<0.000000e+00> : vector<8x8xf32>
    %149 = tpu.matmul %147, %148, %cst_72 {dimension_numbers = #tpu.dot_dimension_numbers<[1], [1], [0], [0], [0, 0, 1, 0], [], []>} : vector<8x8xf32>, vector<8x8xf32>, vector<8x8xf32> -> vector<8x8xf32>
    %cst_73 = arith.constant dense<0xFF800000> : vector<8xf32>
    %150 = vector.multi_reduction <maximumf>, %149, %cst_73 [1] : vector<8x8xf32> to vector<8xf32>
    %151 = vector.shape_cast %150 : vector<8xf32> to vector<8x1xf32>
    %152 = vector.broadcast %151 : vector<8x1xf32> to vector<8x8xf32>
    %153 = arith.subf %149, %152 : vector<8x8xf32>
    %154 = math.exp %153 : vector<8x8xf32>
    %cst_74 = arith.constant dense<0.000000e+00> : vector<8xf32>
    %155 = vector.multi_reduction <add>, %154, %cst_74 [1] : vector<8x8xf32> to vector<8xf32>
    %156 = vector.shape_cast %155 : vector<8xf32> to vector<8x1xf32>
    %157 = tpu.reciprocal %156 {approx = true} : vector<8x1xf32> -> vector<8x1xf32>
    %158 = vector.broadcast %157 : vector<8x1xf32> to vector<8x8xf32>
    %159 = arith.mulf %154, %158 : vector<8x8xf32>
    %160 = vector.extract_strided_slice %141 {offsets = [0, 0], sizes = [8, 8], strides = [1, 1]} : vector<8x32xf32> to vector<8x8xf32>
    %cst_75 = arith.constant dense<0.000000e+00> : vector<8x8xf32>
    %161 = tpu.matmul %159, %160, %cst_75 {dimension_numbers = #tpu.dot_dimension_numbers<[1], [0], [0], [1], [0, 0, 1, 1], [], []>} : vector<8x8xf32>, vector<8x8xf32>, vector<8x8xf32> -> vector<8x8xf32>
    %162 = vector.extract_strided_slice %130 {offsets = [0, 0], sizes = [8, 32], strides = [1, 1]} : vector<32x32xf32> to vector<8x32xf32>
    %cst_76 = arith.constant dense<0.000000e+00> : vector<8x32xf32>
    %163 = tpu.matmul %161, %162, %cst_76 {dimension_numbers = #tpu.dot_dimension_numbers<[1], [0], [0], [1], [0, 0, 1, 1], [], []>} : vector<8x8xf32>, vector<8x32xf32>, vector<8x32xf32> -> vector<8x32xf32>
    %164 = arith.addf %144, %163 : vector<8x32xf32>
    %165 = vector.extract_strided_slice %136 {offsets = [0, 8], sizes = [8, 8], strides = [1, 1]} : vector<8x32xf32> to vector<8x8xf32>
    %cst_77 = arith.constant 0.353553385 : f32
    %166 = vector.broadcast %cst_77 : f32 to vector<8x8xf32>
    %167 = arith.mulf %165, %166 : vector<8x8xf32>
    %168 = vector.extract_strided_slice %140 {offsets = [0, 8], sizes = [8, 8], strides = [1, 1]} : vector<8x32xf32> to vector<8x8xf32>
    %cst_78 = arith.constant dense<0.000000e+00> : vector<8x8xf32>
    %169 = tpu.matmul %167, %168, %cst_78 {dimension_numbers = #tpu.dot_dimension_numbers<[1], [1], [0], [0], [0, 0, 1, 0], [], []>} : vector<8x8xf32>, vector<8x8xf32>, vector<8x8xf32> -> vector<8x8xf32>
    %cst_79 = arith.constant dense<0xFF800000> : vector<8xf32>
    %170 = vector.multi_reduction <maximumf>, %169, %cst_79 [1] : vector<8x8xf32> to vector<8xf32>
    %171 = vector.shape_cast %170 : vector<8xf32> to vector<8x1xf32>
    %172 = vector.broadcast %171 : vector<8x1xf32> to vector<8x8xf32>
    %173 = arith.subf %169, %172 : vector<8x8xf32>
    %174 = math.exp %173 : vector<8x8xf32>
    %cst_80 = arith.constant dense<0.000000e+00> : vector<8xf32>
    %175 = vector.multi_reduction <add>, %174, %cst_80 [1] : vector<8x8xf32> to vector<8xf32>
    %176 = vector.shape_cast %175 : vector<8xf32> to vector<8x1xf32>
    %177 = tpu.reciprocal %176 {approx = true} : vector<8x1xf32> -> vector<8x1xf32>
    %178 = vector.broadcast %177 : vector<8x1xf32> to vector<8x8xf32>
    %179 = arith.mulf %174, %178 : vector<8x8xf32>
    %180 = vector.extract_strided_slice %141 {offsets = [0, 8], sizes = [8, 8], strides = [1, 1]} : vector<8x32xf32> to vector<8x8xf32>
    %cst_81 = arith.constant dense<0.000000e+00> : vector<8x8xf32>
    %181 = tpu.matmul %179, %180, %cst_81 {dimension_numbers = #tpu.dot_dimension_numbers<[1], [0], [0], [1], [0, 0, 1, 1], [], []>} : vector<8x8xf32>, vector<8x8xf32>, vector<8x8xf32> -> vector<8x8xf32>
    %182 = vector.extract_strided_slice %130 {offsets = [8, 0], sizes = [8, 32], strides = [1, 1]} : vector<32x32xf32> to vector<8x32xf32>
    %cst_82 = arith.constant dense<0.000000e+00> : vector<8x32xf32>
    %183 = tpu.matmul %181, %182, %cst_82 {dimension_numbers = #tpu.dot_dimension_numbers<[1], [0], [0], [1], [0, 0, 1, 1], [], []>} : vector<8x8xf32>, vector<8x32xf32>, vector<8x32xf32> -> vector<8x32xf32>
    %184 = arith.addf %164, %183 : vector<8x32xf32>
    %185 = vector.extract_strided_slice %136 {offsets = [0, 16], sizes = [8, 8], strides = [1, 1]} : vector<8x32xf32> to vector<8x8xf32>
    %cst_83 = arith.constant 0.353553385 : f32
    %186 = vector.broadcast %cst_83 : f32 to vector<8x8xf32>
    %187 = arith.mulf %185, %186 : vector<8x8xf32>
    %188 = vector.extract_strided_slice %140 {offsets = [0, 16], sizes = [8, 8], strides = [1, 1]} : vector<8x32xf32> to vector<8x8xf32>
    %cst_84 = arith.constant dense<0.000000e+00> : vector<8x8xf32>
    %189 = tpu.matmul %187, %188, %cst_84 {dimension_numbers = #tpu.dot_dimension_numbers<[1], [1], [0], [0], [0, 0, 1, 0], [], []>} : vector<8x8xf32>, vector<8x8xf32>, vector<8x8xf32> -> vector<8x8xf32>
    %cst_85 = arith.constant dense<0xFF800000> : vector<8xf32>
    %190 = vector.multi_reduction <maximumf>, %189, %cst_85 [1] : vector<8x8xf32> to vector<8xf32>
    %191 = vector.shape_cast %190 : vector<8xf32> to vector<8x1xf32>
    %192 = vector.broadcast %191 : vector<8x1xf32> to vector<8x8xf32>
    %193 = arith.subf %189, %192 : vector<8x8xf32>
    %194 = math.exp %193 : vector<8x8xf32>
    %cst_86 = arith.constant dense<0.000000e+00> : vector<8xf32>
    %195 = vector.multi_reduction <add>, %194, %cst_86 [1] : vector<8x8xf32> to vector<8xf32>
    %196 = vector.shape_cast %195 : vector<8xf32> to vector<8x1xf32>
    %197 = tpu.reciprocal %196 {approx = true} : vector<8x1xf32> -> vector<8x1xf32>
    %198 = vector.broadcast %197 : vector<8x1xf32> to vector<8x8xf32>
    %199 = arith.mulf %194, %198 : vector<8x8xf32>
    %200 = vector.extract_strided_slice %141 {offsets = [0, 16], sizes = [8, 8], strides = [1, 1]} : vector<8x32xf32> to vector<8x8xf32>
    %cst_87 = arith.constant dense<0.000000e+00> : vector<8x8xf32>
    %201 = tpu.matmul %199, %200, %cst_87 {dimension_numbers = #tpu.dot_dimension_numbers<[1], [0], [0], [1], [0, 0, 1, 1], [], []>} : vector<8x8xf32>, vector<8x8xf32>, vector<8x8xf32> -> vector<8x8xf32>
    %202 = vector.extract_strided_slice %130 {offsets = [16, 0], sizes = [8, 32], strides = [1, 1]} : vector<32x32xf32> to vector<8x32xf32>
    %cst_88 = arith.constant dense<0.000000e+00> : vector<8x32xf32>
    %203 = tpu.matmul %201, %202, %cst_88 {dimension_numbers = #tpu.dot_dimension_numbers<[1], [0], [0], [1], [0, 0, 1, 1], [], []>} : vector<8x8xf32>, vector<8x32xf32>, vector<8x32xf32> -> vector<8x32xf32>
    %204 = arith.addf %184, %203 : vector<8x32xf32>
    %205 = vector.extract_strided_slice %136 {offsets = [0, 24], sizes = [8, 8], strides = [1, 1]} : vector<8x32xf32> to vector<8x8xf32>
    %cst_89 = arith.constant 0.353553385 : f32
    %206 = vector.broadcast %cst_89 : f32 to vector<8x8xf32>
    %207 = arith.mulf %205, %206 : vector<8x8xf32>
    %208 = vector.extract_strided_slice %140 {offsets = [0, 24], sizes = [8, 8], strides = [1, 1]} : vector<8x32xf32> to vector<8x8xf32>
    %cst_90 = arith.constant dense<0.000000e+00> : vector<8x8xf32>
    %209 = tpu.matmul %207, %208, %cst_90 {dimension_numbers = #tpu.dot_dimension_numbers<[1], [1], [0], [0], [0, 0, 1, 0], [], []>} : vector<8x8xf32>, vector<8x8xf32>, vector<8x8xf32> -> vector<8x8xf32>
    %cst_91 = arith.constant dense<0xFF800000> : vector<8xf32>
    %210 = vector.multi_reduction <maximumf>, %209, %cst_91 [1] : vector<8x8xf32> to vector<8xf32>
    %211 = vector.shape_cast %210 : vector<8xf32> to vector<8x1xf32>
    %212 = vector.broadcast %211 : vector<8x1xf32> to vector<8x8xf32>
    %213 = arith.subf %209, %212 : vector<8x8xf32>
    %214 = math.exp %213 : vector<8x8xf32>
    %cst_92 = arith.constant dense<0.000000e+00> : vector<8xf32>
    %215 = vector.multi_reduction <add>, %214, %cst_92 [1] : vector<8x8xf32> to vector<8xf32>
    %216 = vector.shape_cast %215 : vector<8xf32> to vector<8x1xf32>
    %217 = tpu.reciprocal %216 {approx = true} : vector<8x1xf32> -> vector<8x1xf32>
    %218 = vector.broadcast %217 : vector<8x1xf32> to vector<8x8xf32>
    %219 = arith.mulf %214, %218 : vector<8x8xf32>
    %220 = vector.extract_strided_slice %141 {offsets = [0, 24], sizes = [8, 8], strides = [1, 1]} : vector<8x32xf32> to vector<8x8xf32>
    %cst_93 = arith.constant dense<0.000000e+00> : vector<8x8xf32>
    %221 = tpu.matmul %219, %220, %cst_93 {dimension_numbers = #tpu.dot_dimension_numbers<[1], [0], [0], [1], [0, 0, 1, 1], [], []>} : vector<8x8xf32>, vector<8x8xf32>, vector<8x8xf32> -> vector<8x8xf32>
    %222 = vector.extract_strided_slice %130 {offsets = [24, 0], sizes = [8, 32], strides = [1, 1]} : vector<32x32xf32> to vector<8x32xf32>
    %cst_94 = arith.constant dense<0.000000e+00> : vector<8x32xf32>
    %223 = tpu.matmul %221, %222, %cst_94 {dimension_numbers = #tpu.dot_dimension_numbers<[1], [0], [0], [1], [0, 0, 1, 1], [], []>} : vector<8x8xf32>, vector<8x32xf32>, vector<8x32xf32> -> vector<8x32xf32>
    %224 = arith.addf %204, %223 : vector<8x32xf32>
    %225 = arith.addf %125, %224 : vector<8x32xf32>
    %cst_95 = arith.constant dense<0.000000e+00> : vector<8xf32>
    %226 = vector.multi_reduction <add>, %225, %cst_95 [1] : vector<8x32xf32> to vector<8xf32>
    %227 = vector.shape_cast %226 : vector<8xf32> to vector<8x1xf32>
    %cst_96 = arith.constant 3.200000e+01 : f32
    %228 = vector.broadcast %cst_96 : f32 to vector<8x1xf32>
    %229 = arith.divf %227, %228 : vector<8x1xf32>
    %230 = vector.broadcast %229 : vector<8x1xf32> to vector<8x32xf32>
    %231 = arith.subf %225, %230 : vector<8x32xf32>
    %232 = arith.mulf %231, %231 : vector<8x32xf32>
    %cst_97 = arith.constant dense<0.000000e+00> : vector<8xf32>
    %233 = vector.multi_reduction <add>, %232, %cst_97 [1] : vector<8x32xf32> to vector<8xf32>
    %234 = vector.shape_cast %233 : vector<8xf32> to vector<8x1xf32>
    %cst_98 = arith.constant 3.200000e+01 : f32
    %235 = vector.broadcast %cst_98 : f32 to vector<8x1xf32>
    %236 = arith.divf %234, %235 : vector<8x1xf32>
    %237 = vector.broadcast %229 : vector<8x1xf32> to vector<8x32xf32>
    %238 = arith.subf %225, %237 : vector<8x32xf32>
    %cst_99 = arith.constant 9.99999974E-6 : f32
    %239 = vector.broadcast %cst_99 : f32 to vector<8x1xf32>
    %240 = arith.addf %236, %239 : vector<8x1xf32>
    %241 = math.rsqrt %240 : vector<8x1xf32>
    %242 = vector.broadcast %241 : vector<8x1xf32> to vector<8x32xf32>
    %243 = arith.mulf %238, %242 : vector<8x32xf32>
    %244 = vector.broadcast %132 : vector<1x32xf32> to vector<8x32xf32>
    %245 = arith.mulf %243, %244 : vector<8x32xf32>
    %246 = vector.broadcast %133 : vector<1x32xf32> to vector<8x32xf32>
    %247 = arith.addf %245, %246 : vector<8x32xf32>
    %c0_100 = arith.constant 0 : index
    %c0_101 = arith.constant 0 : index
    %c0_102 = arith.constant 0 : index
    %248 = vector.load %arg19[%c0_100, %c0_101, %c0_102] : memref<1x8x32xf32, #tpu.memory_space<vmem>>, vector<1x8x32xf32>
    %249 = vector.shape_cast %248 : vector<1x8x32xf32> to vector<8x32xf32>
    %250 = vector.shape_cast %247 : vector<8x32xf32> to vector<1x8x32xf32>
    tpu.vector_store %arg19[%c0_100, %c0_101, %c0_102], %250 {strides = array<i32>} : memref<1x8x32xf32, #tpu.memory_space<vmem>>, vector<1x8x32xf32>,
    return
  }
  func.func @transform_0(%arg0: i32) -> (i32, i32, i32) {
    %c0_i32 = arith.constant 0 : i32
    %c0_i32_0 = arith.constant 0 : i32
    %c0_i32_1 = arith.constant 0 : i32
    return %arg0, %c0_i32, %c0_i32_0 : i32, i32, i32
  }
  func.func @transform_1(%arg0: i32) -> (i32, i32, i32) {
    %c0_i32 = arith.constant 0 : i32
    %c0_i32_0 = arith.constant 0 : i32
    %c0_i32_1 = arith.constant 0 : i32
    return %arg0, %c0_i32, %c0_i32_0 : i32, i32, i32
  }
  func.func @transform_2(%arg0: i32) -> (i32, i32) {
    %c0_i32 = arith.constant 0 : i32
    %c0_i32_0 = arith.constant 0 : i32
    %c0_i32_1 = arith.constant 0 : i32
    return %c0_i32, %c0_i32_0 : i32, i32
  }
  func.func @transform_3(%arg0: i32) -> (i32, i32) {
    %c0_i32 = arith.constant 0 : i32
    %c0_i32_0 = arith.constant 0 : i32
    %c0_i32_1 = arith.constant 0 : i32
    return %c0_i32, %c0_i32_0 : i32, i32
  }
  func.func @transform_4(%arg0: i32) -> (i32, i32) {
    %c0_i32 = arith.constant 0 : i32
    %c0_i32_0 = arith.constant 0 : i32
    %c0_i32_1 = arith.constant 0 : i32
    return %c0_i32, %c0_i32_0 : i32, i32
  }
  func.func @transform_5(%arg0: i32) -> (i32, i32) {
    %c0_i32 = arith.constant 0 : i32
    %c0_i32_0 = arith.constant 0 : i32
    %c0_i32_1 = arith.constant 0 : i32
    return %c0_i32, %c0_i32_0 : i32, i32
  }
  func.func @transform_6(%arg0: i32) -> (i32, i32) {
    %c0_i32 = arith.constant 0 : i32
    %c0_i32_0 = arith.constant 0 : i32
    %c0_i32_1 = arith.constant 0 : i32
    return %c0_i32, %c0_i32_0 : i32, i32
  }
  func.func @transform_7(%arg0: i32) -> (i32, i32) {
    %c0_i32 = arith.constant 0 : i32
    %c0_i32_0 = arith.constant 0 : i32
    %c0_i32_1 = arith.constant 0 : i32
    return %c0_i32, %c0_i32_0 : i32, i32
  }
  func.func @transform_8(%arg0: i32) -> (i32, i32) {
    %c0_i32 = arith.constant 0 : i32
    %c0_i32_0 = arith.constant 0 : i32
    %c0_i32_1 = arith.constant 0 : i32
    return %c0_i32, %c0_i32_0 : i32, i32
  }
  func.func @transform_9(%arg0: i32) -> (i32, i32) {
    %c0_i32 = arith.constant 0 : i32
    %c0_i32_0 = arith.constant 0 : i32
    %c0_i32_1 = arith.constant 0 : i32
    return %c0_i32, %c0_i32_0 : i32, i32
  }
  func.func @transform_10(%arg0: i32) -> (i32, i32) {
    %c0_i32 = arith.constant 0 : i32
    %c0_i32_0 = arith.constant 0 : i32
    %c0_i32_1 = arith.constant 0 : i32
    return %c0_i32, %c0_i32_0 : i32, i32
  }
  func.func @transform_11(%arg0: i32) -> (i32, i32) {
    %c0_i32 = arith.constant 0 : i32
    %c0_i32_0 = arith.constant 0 : i32
    %c0_i32_1 = arith.constant 0 : i32
    return %c0_i32, %c0_i32_0 : i32, i32
  }
  func.func @transform_12(%arg0: i32) -> (i32, i32) {
    %c0_i32 = arith.constant 0 : i32
    %c0_i32_0 = arith.constant 0 : i32
    %c0_i32_1 = arith.constant 0 : i32
    return %c0_i32, %c0_i32_0 : i32, i32
  }
  func.func @transform_13(%arg0: i32) -> (i32, i32) {
    %c0_i32 = arith.constant 0 : i32
    %c0_i32_0 = arith.constant 0 : i32
    %c0_i32_1 = arith.constant 0 : i32
    return %c0_i32, %c0_i32_0 : i32, i32
  }
  func.func @transform_14(%arg0: i32) -> (i32, i32) {
    %c0_i32 = arith.constant 0 : i32
    %c0_i32_0 = arith.constant 0 : i32
    %c0_i32_1 = arith.constant 0 : i32
    return %c0_i32, %c0_i32_0 : i32, i32
  }
  func.func @transform_15(%arg0: i32) -> (i32, i32) {
    %c0_i32 = arith.constant 0 : i32
    %c0_i32_0 = arith.constant 0 : i32
    %c0_i32_1 = arith.constant 0 : i32
    return %c0_i32, %c0_i32_0 : i32, i32
  }
  func.func @transform_16(%arg0: i32) -> (i32, i32) {
    %c0_i32 = arith.constant 0 : i32
    %c0_i32_0 = arith.constant 0 : i32
    %c0_i32_1 = arith.constant 0 : i32
    return %c0_i32, %c0_i32_0 : i32, i32
  }
  func.func @transform_17(%arg0: i32) -> (i32, i32) {
    %c0_i32 = arith.constant 0 : i32
    %c0_i32_0 = arith.constant 0 : i32
    %c0_i32_1 = arith.constant 0 : i32
    return %c0_i32, %c0_i32_0 : i32, i32
  }
  func.func @transform_18(%arg0: i32) -> (i32, i32, i32) {
    %c0_i32 = arith.constant 0 : i32
    %c0_i32_0 = arith.constant 0 : i32
    %c0_i32_1 = arith.constant 0 : i32
    return %arg0, %c0_i32, %c0_i32_0 : i32, i32, i32
  }
}

module attributes {stable_mosaic.version = 11 : i64} {
  func.func @_heads_kernel(%arg0: i32, %arg1: memref<8x32xf32, #tpu.memory_space<vmem>>, %arg2: memref<32x128xf32, #tpu.memory_space<vmem>>, %arg3: memref<1x128xf32, #tpu.memory_space<vmem>>, %arg4: memref<8x128xf32, #tpu.memory_space<vmem>>) attributes {dimension_semantics = [#tpu.dimension_semantics<parallel>], iteration_bounds = array<i64: 2>, scalar_prefetch = 0 : i64, scratch_operands = 0 : i64, tpu.core_type = #tpu.core_type<tc>, window_params = [{transform_indices = @transform_0, window_bounds = array<i64: 8, 32>}, {pipeline_mode = #tpu.pipeline_mode<synchronous>, transform_indices = @transform_1, window_bounds = array<i64: 32, 128>}, {pipeline_mode = #tpu.pipeline_mode<synchronous>, transform_indices = @transform_2, window_bounds = array<i64: 1, 128>}, {transform_indices = @transform_3, window_bounds = array<i64: 8, 128>}]} {
    %c0 = arith.constant 0 : index
    %c0_0 = arith.constant 0 : index
    %0 = vector.load %arg1[%c0, %c0_0] : memref<8x32xf32, #tpu.memory_space<vmem>>, vector<8x32xf32>
    %c0_1 = arith.constant 0 : index
    %c0_2 = arith.constant 0 : index
    %1 = vector.load %arg2[%c0_1, %c0_2] : memref<32x128xf32, #tpu.memory_space<vmem>>, vector<32x128xf32>
    %cst = arith.constant dense<0.000000e+00> : vector<8x128xf32>
    %2 = tpu.matmul %0, %1, %cst {dimension_numbers = #tpu.dot_dimension_numbers<[1], [0], [0], [1], [0, 0, 1, 1], [], []>} : vector<8x32xf32>, vector<32x128xf32>, vector<8x128xf32> -> vector<8x128xf32>
    %c0_3 = arith.constant 0 : index
    %c0_4 = arith.constant 0 : index
    %3 = vector.load %arg3[%c0_3, %c0_4] : memref<1x128xf32, #tpu.memory_space<vmem>>, vector<1x128xf32>
    %4 = vector.broadcast %3 : vector<1x128xf32> to vector<8x128xf32>
    %5 = arith.addf %2, %4 : vector<8x128xf32>
    %6 = tpu.iota {dimensions = array<i32: 1>} : vector<8x128xi32>
    %c0_i32 = arith.constant 0 : i32
    %7 = vector.broadcast %c0_i32 : i32 to vector<8x128xi32>
    %8 = arith.cmpi eq, %6, %7 : vector<8x128xi32>
    %9 = arith.negf %5 : vector<8x128xf32>
    %10 = math.exp %9 : vector<8x128xf32>
    %cst_5 = arith.constant 1.000000e+00 : f32
    %11 = vector.broadcast %cst_5 : f32 to vector<8x128xf32>
    %12 = arith.addf %11, %10 : vector<8x128xf32>
    %13 = arith.divf %11, %12 : vector<8x128xf32>
    %14 = arith.select %8, %13, %5 : vector<8x128xi1>, vector<8x128xf32>
    %c0_6 = arith.constant 0 : index
    %c0_7 = arith.constant 0 : index
    %15 = vector.load %arg4[%c0_6, %c0_7] : memref<8x128xf32, #tpu.memory_space<vmem>>, vector<8x128xf32>
    tpu.vector_store %arg4[%c0_6, %c0_7], %14 {strides = array<i32>} : memref<8x128xf32, #tpu.memory_space<vmem>>, vector<8x128xf32>,
    return
  }
  func.func @transform_0(%arg0: i32) -> (i32, i32) {
    %c0_i32 = arith.constant 0 : i32
    %c0_i32_0 = arith.constant 0 : i32
    return %arg0, %c0_i32 : i32, i32
  }
  func.func @transform_1(%arg0: i32) -> (i32, i32) {
    %c0_i32 = arith.constant 0 : i32
    %c0_i32_0 = arith.constant 0 : i32
    %c0_i32_1 = arith.constant 0 : i32
    return %c0_i32, %c0_i32_0 : i32, i32
  }
  func.func @transform_2(%arg0: i32) -> (i32, i32) {
    %c0_i32 = arith.constant 0 : i32
    %c0_i32_0 = arith.constant 0 : i32
    %c0_i32_1 = arith.constant 0 : i32
    return %c0_i32, %c0_i32_0 : i32, i32
  }
  func.func @transform_3(%arg0: i32) -> (i32, i32) {
    %c0_i32 = arith.constant 0 : i32
    %c0_i32_0 = arith.constant 0 : i32
    return %arg0, %c0_i32 : i32, i32
  }
}

</mosaic_0001>

<llo_original>
// kernel: transformer_decoder_forward.9
$region0: #{transformer_decoder_forward.9}
  #allocation0 [shape = 'u32[]', space=smem, size = 0x4, offset = 0x4, fixed_abs, tag = 'smem constant byte address 0x4 - core index']
  #allocation1 [shape = 'u32[144,128]{1,0:T(1,128)}', space=vmem, size = 0x12000, scoped, tag = 'internal scratch']
  %s0 = inlined_call_operand.vmem [shape: f32[16,32], index: 0, kind: input, shape index: {}]
  %s1 = inlined_call_operand.vmem [shape: f32[32,128], index: 1, kind: input, shape index: {}]
  %s2 = inlined_call_operand.vmem [shape: f32[1,128], index: 2, kind: input, shape index: {}]
  %s3 = inlined_call_operand.vmem [shape: f32[16,128], index: 3, kind: output, shape index: {}]
  %s4 = sld [smem:[#allocation0]]
  $region45: #{transformer_decoder_forward.9} parent=0
    _
  %s6 = ssub.s32 1, %s4
  %s7 = scalar_select 0, %s6, %s4
  loop: start=0, step=1, limit=4
  $region2: #{transformer_decoder_forward.9} parent=0 // loop_pre_header
    _
  $region3: #{transformer_decoder_forward.9} parent=0 // loop_header
    %s9 = sphi 0, %s13
    %p10 = scmp.ge.s32.totalorder %s9, 4
    %s19 = sphi 0, %s21
    %s22 = sphi 0, %s19
    %s23 = sphi 0, %s22
    %s39 = sphi 0, %s23
    %s43 = sphi 0, %s43
    %s45 = sphi 0, %s43
    %s46 = sphi 0, %s45
    %s60 = sphi 0, %s46
    %s64 = sphi 0, %s64
    %s66 = sphi 0, %s64
    %s67 = sphi 0, %s66
    %s81 = sphi 0, %s67
    %s87 = sphi 0, %s89
    %s90 = sphi 0, %s87
    %s91 = sphi 0, %s90
    %s107 = sphi 0, %s91
  $region4: #{transformer_decoder_forward.9} parent=0 // loop_header_branch
    %12 = sbr.rel (%p10) target = $region8
  $region5: #{transformer_decoder_forward.9} parent=0 // loop_body
    %s14 = ssub.s32 %s9, 1
    %s15 = ssub.s32 %s9, 2
    %s16 = sadd.s32 %s9, 1
    %s17 = ssub.s32 %s9, %s16
    %p18 = scmp.eq.s32.totalorder %s17, 0
    %s20 = sadd.s32 %s19, 1
    %s21 = scalar_select %p18, %s19, %s20
    %p24 = pneg %p18
    %p25 = scmp.eq.s32.totalorder %s9, 1
    %p26 = por %p24, %p25
    %p27 = scmp.ne.s32.totalorder %s19, %s22
    %p28 = scmp.eq.s32.totalorder %s9, 0
    %p29 = por %p27, %p28
    %p30 = scmp.ne.s32.totalorder %s19, %s22
    %p31 = scmp.eq.s32.totalorder %s14, 1
    %p32 = por %p30, %p31
    %p33 = scmp.ne.s32.totalorder %s22, %s23
    %p34 = scmp.eq.s32.totalorder %s14, 0
    %p35 = por %p33, %p34
    %p36 = scmp.ne.s32.totalorder %s22, %s23
    %p37 = scmp.eq.s32.totalorder %s15, 1
    %p38 = por %p36, %p37
    %p40 = scmp.ne.s32.totalorder %s23, %s39
    %p41 = scmp.eq.s32.totalorder %s15, 0
    %p42 = por %p40, %p41
    %s44 = sadd.s32 %s43, 1
    %p47 = scmp.eq.s32.totalorder %s9, 1
    %p48 = scmp.ne.s32.totalorder %s43, %s45
    %p49 = scmp.eq.s32.totalorder %s9, 0
    %p50 = por %p48, %p49
    %p51 = scmp.ne.s32.totalorder %s43, %s45
    %p52 = scmp.eq.s32.totalorder %s14, 1
    %p53 = por %p51, %p52
    %p54 = scmp.ne.s32.totalorder %s45, %s46
    %p55 = scmp.eq.s32.totalorder %s14, 0
    %p56 = por %p54, %p55
    %p57 = scmp.ne.s32.totalorder %s45, %s46
    %p58 = scmp.eq.s32.totalorder %s15, 1
    %p59 = por %p57, %p58
    %p61 = scmp.ne.s32.totalorder %s46, %s60
    %p62 = scmp.eq.s32.totalorder %s15, 0
    %p63 = por %p61, %p62
    %s65 = sadd.s32 %s64, 1
    %p68 = scmp.eq.s32.totalorder %s9, 1
    %p69 = scmp.ne.s32.totalorder %s64, %s66
    %p70 = scmp.eq.s32.totalorder %s9, 0
    %p71 = por %p69, %p70
    %p72 = scmp.ne.s32.totalorder %s64, %s66
    %p73 = scmp.eq.s32.totalorder %s14, 1
    %p74 = por %p72, %p73
    %p75 = scmp.ne.s32.totalorder %s66, %s67
    %p76 = scmp.eq.s32.totalorder %s14, 0
    %p77 = por %p75, %p76
    %p78 = scmp.ne.s32.totalorder %s66, %s67
    %p79 = scmp.eq.s32.totalorder %s15, 1
    %p80 = por %p78, %p79
    %p82 = scmp.ne.s32.totalorder %s67, %s81
    %p83 = scmp.eq.s32.totalorder %s15, 0
    %p84 = por %p82, %p83
    %s85 = ssub.s32 %s9, %s16
    %p86 = scmp.eq.s32.totalorder %s85, 0
    %s88 = sadd.s32 %s87, 1
    %s89 = scalar_select %p86, %s87, %s88
    %p92 = pneg %p86
    %p93 = scmp.eq.s32.totalorder %s9, 1
    %p94 = por %p92, %p93
    %p95 = scmp.ne.s32.totalorder %s87, %s90
    %p96 = scmp.eq.s32.totalorder %s9, 0
    %p97 = por %p95, %p96
    %p98 = scmp.ne.s32.totalorder %s87, %s90
    %p99 = scmp.eq.s32.totalorder %s14, 1
    %p100 = por %p98, %p99
    %p101 = scmp.ne.s32.totalorder %s90, %s91
    %p102 = scmp.eq.s32.totalorder %s14, 0
    %p103 = por %p101, %p102
    %p104 = scmp.ne.s32.totalorder %s90, %s91
    %p105 = scmp.eq.s32.totalorder %s15, 1
    %p106 = por %p104, %p105
    %p108 = scmp.ne.s32.totalorder %s91, %s107
    %p109 = scmp.eq.s32.totalorder %s15, 0
    %p110 = por %p108, %p109
    %p111 = scmp.le.s32.totalorder 1, %s9
    %p112 = scmp.lt.s32.totalorder %s9, 3
    %p113 = pnand %p111, %p112
    %p114 = pneg %p113
    // Predicated region
    $region9: #{transformer_decoder_forward.9} parent=5 // pred_check
      _
    $region10: #{transformer_decoder_forward.9} parent=5 // pred_check_branch
      %116 = sbr.rel (%p113) target = $region12
    $region11: #{transformer_decoder_forward.9} parent=5 // pred_region
      %s117 = ssub.s32 %s9, 1
      // Predicated region
      $region13: #{transformer_decoder_forward.9} parent=11 // pred_check
        %p118 = pneg %p56
      $region14: #{transformer_decoder_forward.9} parent=11 // pred_check_branch
        %120 = sbr.rel (%p118) target = $region16
      $region15: #{transformer_decoder_forward.9} parent=11 // pred_region
        _
      $region16: #{transformer_decoder_forward.9} parent=11 // pred_fallthru
        _
      // Predicated region
      $region17: #{transformer_decoder_forward.9} parent=11 // pred_check
        %p121 = pneg %p77
      $region18: #{transformer_decoder_forward.9} parent=11 // pred_check_branch
        %123 = sbr.rel (%p121) target = $region20
      $region19: #{transformer_decoder_forward.9} parent=11 // pred_region
        _
      $region20: #{transformer_decoder_forward.9} parent=11 // pred_fallthru
        _
    $region12: #{transformer_decoder_forward.9} parent=5 // pred_fallthru
      _
    %p124 = scmp.lt.s32.totalorder %s9, 2
    // Predicated region
    $region21: #{transformer_decoder_forward.9} parent=5 // pred_check
      %p125 = pneg %p124
    $region22: #{transformer_decoder_forward.9} parent=5 // pred_check_branch
      %127 = sbr.rel (%p125) target = $region24
    $region23: #{transformer_decoder_forward.9} parent=5 // pred_region
      // Predicated region
      $region25: #{transformer_decoder_forward.9} parent=23 // pred_check
        %p128 = pneg %p29
      $region26: #{transformer_decoder_forward.9} parent=23 // pred_check_branch
        %130 = sbr.rel (%p128) target = $region28
      $region27: #{transformer_decoder_forward.9} parent=23 // pred_region
        %p131 = scmp.lt.s32.totalorder %s9, 1
        %s132 = scalar_select %p131, %s9, 1
        %s133 = smul.addr %s132, 8
        %s134 = scalar_lea.vmem %s0, %s133
      $region28: #{transformer_decoder_forward.9} parent=23 // pred_fallthru
        _
    $region24: #{transformer_decoder_forward.9} parent=5 // pred_fallthru
      _
    %p135 = scmp.le.s32.totalorder 1, %s9
    %p136 = scmp.lt.s32.totalorder %s9, 3
    %p137 = pnand %p135, %p136
    %p138 = pneg %p137
    // Predicated region
    $region29: #{transformer_decoder_forward.9} parent=5 // pred_check
      _
    $region30: #{transformer_decoder_forward.9} parent=5 // pred_check_branch
      %140 = sbr.rel (%p137) target = $region32
    $region31: #{transformer_decoder_forward.9} parent=5 // pred_region
      %s141 = ssub.s32 %s9, 1
      %p142 = scmp.lt.s32.totalorder %s14, 1
      %s143 = scalar_select %p142, %s14, 1
      %s144 = smul.addr %s143, 8
      %s145 = scalar_lea.vmem %s0, %s144
      %p146 = pneg %p35
      %p147 = pneg %p32
      %p148 = pneg %p56
      %p149 = pneg %p53
      %p150 = pneg %p77
      %p151 = pneg %p74
      %p152 = pneg %p103
      %p153 = pneg %p100
      %p154 = scmp.lt.s32.totalorder %s14, 1
      %s155 = scalar_select %p154, %s14, 1
      %s156 = smul.addr %s155, 8
      %s157 = scalar_lea.vmem %s3, %s156
      %p158 = scmp.lt.s32.totalorder %s14, 1
      %s159 = scalar_select %p158, %s14, 1
      %s160 = smul.addr %s159, 8
      %s161 = scalar_lea.vmem %s0, %s160
      %p162 = scmp.lt.s32.totalorder %s14, 1
      %s163 = scalar_select %p162, %s14, 1
      %s164 = smul.addr %s163, 8
      %s165 = scalar_lea.vmem %s3, %s164
      %v166 = vld [vmem:[%s161] sm:$0xff]
      %v167 = vld [vmem:[%s1] sm:$0xff]
      %v168 = vld [vmem:[%s1 + $0x8] sm:$0xff]
      %v169 = vld [vmem:[%s1 + $0x10] sm:$0xff]
      %v170 = vld [vmem:[%s1 + $0x18] sm:$0xff]
      %v171 = vld [vmem:[%s2] sm:$0x1]
      %v173 = vlaneseq
      %v174 = vshrl.u32 %v173, 7
      %v175 = vsub.s32 0, %v174
      %v176 = vrot.slane %v171, %v175
      %vm178 = vcmask 261120
      %v180 = vsel %vm178, %v166, 0
      %182 = vmatprep.subr.mxu0 0.0
      %183 = vmatpush1.msra.mxu0 %v167
      %184 = vmatprep.subr.mxu0 0.0
      %185 = vmatpush1.msra.mxu0 %v168
      %186 = vmatprep.subr.mxu0 0.0
      %187 = vmatpush1.msra.mxu0 %v169
      %188 = vmatprep.subr.mxu0 0.0
      %189 = vmatpush1.msra.mxu0 %v170
      %190 = vmatprep.subr.mxu0 0.0
      %191 = vmatpush1.msra.mxu0 0.0
      %192 = vmatprep.subr.mxu0 0.0
      %193 = vmatpush1.msra.mxu0 0.0
      %194 = vmatprep.subr.mxu0 0.0
      %195 = vmatpush1.msra.mxu0 0.0
      %196 = vmatprep.subr.mxu0 0.0
      %197 = vmatpush1.msra.mxu0 0.0
      %198 = vmatprep.subr.mxu0 0.0
      %199 = vmatpush1.msra.mxu0 0.0
      %200 = vmatprep.subr.mxu0 0.0
      %201 = vmatpush1.msra.mxu0 0.0
      %202 = vmatprep.subr.mxu0 0.0
      %203 = vmatpush1.msra.mxu0 0.0
      %204 = vmatprep.subr.mxu0 0.0
      %205 = vmatpush1.msra.mxu0 0.0
      %206 = vmatprep.subr.mxu0 0.0
      %207 = vmatpush1.msra.mxu0 0.0
      %208 = vmatprep.subr.mxu0 0.0
      %209 = vmatpush1.msra.mxu0 0.0
      %210 = vmatprep.subr.mxu0 0.0
      %211 = vmatpush1.msra.mxu0 0.0
      %212 = vmatprep.subr.mxu0 0.0
      %213 = vmatpush1.msra.mxu0 0.0
      %214 = vmatprep.subr.mxu0 0.0
      %215 = vmatpush1.msra.mxu0 0.0
      %216 = vmatprep.subr.mxu0 0.0
      %217 = vmatpush1.msra.mxu0 0.0
      %218 = vmatprep.subr.mxu0 0.0
      %219 = vmatpush1.msra.mxu0 0.0
      %220 = vmatprep.subr.mxu0 0.0
      %221 = vmatpush1.msra.mxu0 0.0
      %222 = vmatprep.subr.mxu0 0.0
      %223 = vmatpush1.msra.mxu0 0.0
      %224 = vmatprep.subr.mxu0 0.0
      %225 = vmatpush1.msra.mxu0 0.0
      %226 = vmatprep.subr.mxu0 0.0
      %227 = vmatpush1.msra.mxu0 0.0
      %228 = vmatprep.subr.mxu0 0.0
      %229 = vmatpush1.msra.mxu0 0.0
      %230 = vmatprep.subr.mxu0 0.0
      %231 = vmatpush1.msra.mxu0 0.0
      %232 = vmatprep.subr.mxu0 0.0
      %233 = vmatpush1.msra.mxu0 0.0
      %234 = vmatprep.subr.mxu0 0.0
      %235 = vmatpush1.msra.mxu0 0.0
      %236 = vmatprep.subr.mxu0 0.0
      %237 = vmatpush1.msra.mxu0 0.0
      %238 = vmatprep.subr.mxu0 0.0
      %239 = vmatpush1.msra.mxu0 0.0
      %240 = vmatprep.subr.mxu0 0.0
      %241 = vmatpush1.msra.mxu0 0.0
      %242 = vmatprep.subr.mxu0 0.0
      %243 = vmatpush1.msra.mxu0 0.0
      %244 = vmatprep.subr.mxu0 0.0
      %245 = vmatpush1.msra.mxu0 0.0
      %246 = vmatprep.mubr.f32.mxu0 0.0
      %247 = vmatmul.mubr.f32.gmra.mrb[0].mxu0 %v180
      %v248 = vpop.f32.mrb[0].mxu0
      %v249 = vadd.f32 %v176, %v248
      %v250 = vpop.f32.mrb[0].mxu0
      %251 = vdwg.mxu0
      %v252 = vlaneseq
      %v253 = vand.u32 %v252, 127
      %vm254 = vcmp.eq.s32.totalorder %v253, 0
      %v255 = vxor.u32 %v249, 2147483648
      %v256 = vmul.f32 %v255, 1.442695
      %v257 = vpow.pop %v256
      %v258 = vadd.f32 %v257, 1.0
      %v259 = vrcp.pop %v258
      %v260 = vmul.f32 1.0, %v259
      %v261 = vsel %vm254, %v260, %v249
      %262 = vst [vmem:[%s165] sm:$0xff] %v261
      %p263 = scmp.lt.s32.totalorder %s14, 1
      %s264 = scalar_select %p263, %s14, 1
      %s265 = smul.addr %s264, 8
      %s266 = scalar_lea.vmem %s3, %s265
      // Predicated region
      $region33: #{transformer_decoder_forward.9} parent=31 // pred_check
        %p267 = pneg %p100
      $region34: #{transformer_decoder_forward.9} parent=31 // pred_check_branch
        %269 = sbr.rel (%p267) target = $region36
      $region35: #{transformer_decoder_forward.9} parent=31 // pred_region
        _
      $region36: #{transformer_decoder_forward.9} parent=31 // pred_fallthru
        _
    $region32: #{transformer_decoder_forward.9} parent=5 // pred_fallthru
      _
    %p270 = scmp.le.s32.totalorder 2, %s9
    // Predicated region
    $region37: #{transformer_decoder_forward.9} parent=5 // pred_check
      %p271 = pneg %p270
    $region38: #{transformer_decoder_forward.9} parent=5 // pred_check_branch
      %273 = sbr.rel (%p271) target = $region40
    $region39: #{transformer_decoder_forward.9} parent=5 // pred_region
      %s274 = ssub.s32 %s9, 2
      // Predicated region
      $region41: #{transformer_decoder_forward.9} parent=39 // pred_check
        %p275 = pneg %p106
      $region42: #{transformer_decoder_forward.9} parent=39 // pred_check_branch
        %277 = sbr.rel (%p275) target = $region44
      $region43: #{transformer_decoder_forward.9} parent=39 // pred_region
        %p278 = scmp.lt.s32.totalorder %s15, 1
        %s279 = scalar_select %p278, %s15, 1
        %s280 = smul.addr %s279, 8
        %s281 = scalar_lea.vmem %s3, %s280
      $region44: #{transformer_decoder_forward.9} parent=39 // pred_fallthru
        _
    $region40: #{transformer_decoder_forward.9} parent=5 // pred_fallthru
      _
  $region6: #{transformer_decoder_forward.9} parent=0 // loop_footer
    %s13 = sadd.s32 1, %s9
  $region7: #{transformer_decoder_forward.9} parent=0 // loop_footer_branch
    %8 = sbr.rel target = $region3
  $region8: #{transformer_decoder_forward.9} parent=0 // loop_exit
    _

// kernel: transformer_decoder_forward.6
$region0: #{transformer_decoder_forward.6}
  #allocation0 [shape = 'u32[]', space=smem, size = 0x4, offset = 0x4, fixed_abs, tag = 'smem constant byte address 0x4 - core index']
  #allocation1 [shape = 'u32[144,128]{1,0:T(1,128)}', space=vmem, size = 0x12000, scoped, tag = 'internal scratch']
  %s0 = inlined_call_operand.vmem [shape: f32[16,32], index: 0, kind: input, shape index: {}]
  %s1 = inlined_call_operand.vmem [shape: f32[32,2048], index: 1, kind: input, shape index: {}]
  %s2 = inlined_call_operand.vmem [shape: f32[1,2048], index: 2, kind: input, shape index: {}]
  %s3 = inlined_call_operand.vmem [shape: f32[2048,32], index: 3, kind: input, shape index: {}]
  %s4 = inlined_call_operand.vmem [shape: f32[1,32], index: 4, kind: input, shape index: {}]
  %s5 = inlined_call_operand.vmem [shape: f32[1,32], index: 5, kind: input, shape index: {}]
  %s6 = inlined_call_operand.vmem [shape: f32[1,32], index: 6, kind: input, shape index: {}]
  %s7 = inlined_call_operand.vmem [shape: f32[16,32], index: 7, kind: output, shape index: {}]
  %s8 = sld [smem:[#allocation0]]
  $region61: #{transformer_decoder_forward.6} parent=0
    _
  %s10 = ssub.s32 1, %s8
  %s11 = scalar_select 0, %s10, %s8
  loop: start=0, step=1, limit=4
  $region2: #{transformer_decoder_forward.6} parent=0 // loop_pre_header
    _
  $region3: #{transformer_decoder_forward.6} parent=0 // loop_header
    %s13 = sphi 0, %s17
    %p14 = scmp.ge.s32.totalorder %s13, 4
    %s23 = sphi 0, %s25
    %s26 = sphi 0, %s23
    %s27 = sphi 0, %s26
    %s43 = sphi 0, %s27
    %s47 = sphi 0, %s47
    %s49 = sphi 0, %s47
    %s50 = sphi 0, %s49
    %s64 = sphi 0, %s50
    %s68 = sphi 0, %s68
    %s70 = sphi 0, %s68
    %s71 = sphi 0, %s70
    %s85 = sphi 0, %s71
    %s89 = sphi 0, %s89
    %s91 = sphi 0, %s89
    %s92 = sphi 0, %s91
    %s106 = sphi 0, %s92
    %s110 = sphi 0, %s110
    %s112 = sphi 0, %s110
    %s113 = sphi 0, %s112
    %s127 = sphi 0, %s113
    %s131 = sphi 0, %s131
    %s133 = sphi 0, %s131
    %s134 = sphi 0, %s133
    %s148 = sphi 0, %s134
    %s152 = sphi 0, %s152
    %s154 = sphi 0, %s152
    %s155 = sphi 0, %s154
    %s169 = sphi 0, %s155
    %s175 = sphi 0, %s177
    %s178 = sphi 0, %s175
    %s179 = sphi 0, %s178
    %s195 = sphi 0, %s179
  $region4: #{transformer_decoder_forward.6} parent=0 // loop_header_branch
    %16 = sbr.rel (%p14) target = $region8
  $region5: #{transformer_decoder_forward.6} parent=0 // loop_body
    %s18 = ssub.s32 %s13, 1
    %s19 = ssub.s32 %s13, 2
    %s20 = sadd.s32 %s13, 1
    %s21 = ssub.s32 %s13, %s20
    %p22 = scmp.eq.s32.totalorder %s21, 0
    %s24 = sadd.s32 %s23, 1
    %s25 = scalar_select %p22, %s23, %s24
    %p28 = pneg %p22
    %p29 = scmp.eq.s32.totalorder %s13, 1
    %p30 = por %p28, %p29
    %p31 = scmp.ne.s32.totalorder %s23, %s26
    %p32 = scmp.eq.s32.totalorder %s13, 0
    %p33 = por %p31, %p32
    %p34 = scmp.ne.s32.totalorder %s23, %s26
    %p35 = scmp.eq.s32.totalorder %s18, 1
    %p36 = por %p34, %p35
    %p37 = scmp.ne.s32.totalorder %s26, %s27
    %p38 = scmp.eq.s32.totalorder %s18, 0
    %p39 = por %p37, %p38
    %p40 = scmp.ne.s32.totalorder %s26, %s27
    %p41 = scmp.eq.s32.totalorder %s19, 1
    %p42 = por %p40, %p41
    %p44 = scmp.ne.s32.totalorder %s27, %s43
    %p45 = scmp.eq.s32.totalorder %s19, 0
    %p46 = por %p44, %p45
    %s48 = sadd.s32 %s47, 1
    %p51 = scmp.eq.s32.totalorder %s13, 1
    %p52 = scmp.ne.s32.totalorder %s47, %s49
    %p53 = scmp.eq.s32.totalorder %s13, 0
    %p54 = por %p52, %p53
    %p55 = scmp.ne.s32.totalorder %s47, %s49
    %p56 = scmp.eq.s32.totalorder %s18, 1
    %p57 = por %p55, %p56
    %p58 = scmp.ne.s32.totalorder %s49, %s50
    %p59 = scmp.eq.s32.totalorder %s18, 0
    %p60 = por %p58, %p59
    %p61 = scmp.ne.s32.totalorder %s49, %s50
    %p62 = scmp.eq.s32.totalorder %s19, 1
    %p63 = por %p61, %p62
    %p65 = scmp.ne.s32.totalorder %s50, %s64
    %p66 = scmp.eq.s32.totalorder %s19, 0
    %p67 = por %p65, %p66
    %s69 = sadd.s32 %s68, 1
    %p72 = scmp.eq.s32.totalorder %s13, 1
    %p73 = scmp.ne.s32.totalorder %s68, %s70
    %p74 = scmp.eq.s32.totalorder %s13, 0
    %p75 = por %p73, %p74
    %p76 = scmp.ne.s32.totalorder %s68, %s70
    %p77 = scmp.eq.s32.totalorder %s18, 1
    %p78 = por %p76, %p77
    %p79 = scmp.ne.s32.totalorder %s70, %s71
    %p80 = scmp.eq.s32.totalorder %s18, 0
    %p81 = por %p79, %p80
    %p82 = scmp.ne.s32.totalorder %s70, %s71
    %p83 = scmp.eq.s32.totalorder %s19, 1
    %p84 = por %p82, %p83
    %p86 = scmp.ne.s32.totalorder %s71, %s85
    %p87 = scmp.eq.s32.totalorder %s19, 0
    %p88 = por %p86, %p87
    %s90 = sadd.s32 %s89, 1
    %p93 = scmp.eq.s32.totalorder %s13, 1
    %p94 = scmp.ne.s32.totalorder %s89, %s91
    %p95 = scmp.eq.s32.totalorder %s13, 0
    %p96 = por %p94, %p95
    %p97 = scmp.ne.s32.totalorder %s89, %s91
    %p98 = scmp.eq.s32.totalorder %s18, 1
    %p99 = por %p97, %p98
    %p100 = scmp.ne.s32.totalorder %s91, %s92
    %p101 = scmp.eq.s32.totalorder %s18, 0
    %p102 = por %p100, %p101
    %p103 = scmp.ne.s32.totalorder %s91, %s92
    %p104 = scmp.eq.s32.totalorder %s19, 1
    %p105 = por %p103, %p104
    %p107 = scmp.ne.s32.totalorder %s92, %s106
    %p108 = scmp.eq.s32.totalorder %s19, 0
    %p109 = por %p107, %p108
    %s111 = sadd.s32 %s110, 1
    %p114 = scmp.eq.s32.totalorder %s13, 1
    %p115 = scmp.ne.s32.totalorder %s110, %s112
    %p116 = scmp.eq.s32.totalorder %s13, 0
    %p117 = por %p115, %p116
    %p118 = scmp.ne.s32.totalorder %s110, %s112
    %p119 = scmp.eq.s32.totalorder %s18, 1
    %p120 = por %p118, %p119
    %p121 = scmp.ne.s32.totalorder %s112, %s113
    %p122 = scmp.eq.s32.totalorder %s18, 0
    %p123 = por %p121, %p122
    %p124 = scmp.ne.s32.totalorder %s112, %s113
    %p125 = scmp.eq.s32.totalorder %s19, 1
    %p126 = por %p124, %p125
    %p128 = scmp.ne.s32.totalorder %s113, %s127
    %p129 = scmp.eq.s32.totalorder %s19, 0
    %p130 = por %p128, %p129
    %s132 = sadd.s32 %s131, 1
    %p135 = scmp.eq.s32.totalorder %s13, 1
    %p136 = scmp.ne.s32.totalorder %s131, %s133
    %p137 = scmp.eq.s32.totalorder %s13, 0
    %p138 = por %p136, %p137
    %p139 = scmp.ne.s32.totalorder %s131, %s133
    %p140 = scmp.eq.s32.totalorder %s18, 1
    %p141 = por %p139, %p140
    %p142 = scmp.ne.s32.totalorder %s133, %s134
    %p143 = scmp.eq.s32.totalorder %s18, 0
    %p144 = por %p142, %p143
    %p145 = scmp.ne.s32.totalorder %s133, %s134
    %p146 = scmp.eq.s32.totalorder %s19, 1
    %p147 = por %p145, %p146
    %p149 = scmp.ne.s32.totalorder %s134, %s148
    %p150 = scmp.eq.s32.totalorder %s19, 0
    %p151 = por %p149, %p150
    %s153 = sadd.s32 %s152, 1
    %p156 = scmp.eq.s32.totalorder %s13, 1
    %p157 = scmp.ne.s32.totalorder %s152, %s154
    %p158 = scmp.eq.s32.totalorder %s13, 0
    %p159 = por %p157, %p158
    %p160 = scmp.ne.s32.totalorder %s152, %s154
    %p161 = scmp.eq.s32.totalorder %s18, 1
    %p162 = por %p160, %p161
    %p163 = scmp.ne.s32.totalorder %s154, %s155
    %p164 = scmp.eq.s32.totalorder %s18, 0
    %p165 = por %p163, %p164
    %p166 = scmp.ne.s32.totalorder %s154, %s155
    %p167 = scmp.eq.s32.totalorder %s19, 1
    %p168 = por %p166, %p167
    %p170 = scmp.ne.s32.totalorder %s155, %s169
    %p171 = scmp.eq.s32.totalorder %s19, 0
    %p172 = por %p170, %p171
    %s173 = ssub.s32 %s13, %s20
    %p174 = scmp.eq.s32.totalorder %s173, 0
    %s176 = sadd.s32 %s175, 1
    %s177 = scalar_select %p174, %s175, %s176
    %p180 = pneg %p174
    %p181 = scmp.eq.s32.totalorder %s13, 1
    %p182 = por %p180, %p181
    %p183 = scmp.ne.s32.totalorder %s175, %s178
    %p184 = scmp.eq.s32.totalorder %s13, 0
    %p185 = por %p183, %p184
    %p186 = scmp.ne.s32.totalorder %s175, %s178
    %p187 = scmp.eq.s32.totalorder %s18, 1
    %p188 = por %p186, %p187
    %p189 = scmp.ne.s32.totalorder %s178, %s179
    %p190 = scmp.eq.s32.totalorder %s18, 0
    %p191 = por %p189, %p190
    %p192 = scmp.ne.s32.totalorder %s178, %s179
    %p193 = scmp.eq.s32.totalorder %s19, 1
    %p194 = por %p192, %p193
    %p196 = scmp.ne.s32.totalorder %s179, %s195
    %p197 = scmp.eq.s32.totalorder %s19, 0
    %p198 = por %p196, %p197
    %p199 = scmp.le.s32.totalorder 1, %s13
    %p200 = scmp.lt.s32.totalorder %s13, 3
    %p201 = pnand %p199, %p200
    %p202 = pneg %p201
    // Predicated region
    $region9: #{transformer_decoder_forward.6} parent=5 // pred_check
      _
    $region10: #{transformer_decoder_forward.6} parent=5 // pred_check_branch
      %204 = sbr.rel (%p201) target = $region12
    $region11: #{transformer_decoder_forward.6} parent=5 // pred_region
      %s205 = ssub.s32 %s13, 1
      // Predicated region
      $region13: #{transformer_decoder_forward.6} parent=11 // pred_check
        %p206 = pneg %p60
      $region14: #{transformer_decoder_forward.6} parent=11 // pred_check_branch
        %208 = sbr.rel (%p206) target = $region16
      $region15: #{transformer_decoder_forward.6} parent=11 // pred_region
        _
      $region16: #{transformer_decoder_forward.6} parent=11 // pred_fallthru
        _
      // Predicated region
      $region17: #{transformer_decoder_forward.6} parent=11 // pred_check
        %p209 = pneg %p81
      $region18: #{transformer_decoder_forward.6} parent=11 // pred_check_branch
        %211 = sbr.rel (%p209) target = $region20
      $region19: #{transformer_decoder_forward.6} parent=11 // pred_region
        _
      $region20: #{transformer_decoder_forward.6} parent=11 // pred_fallthru
        _
      // Predicated region
      $region21: #{transformer_decoder_forward.6} parent=11 // pred_check
        %p212 = pneg %p102
      $region22: #{transformer_decoder_forward.6} parent=11 // pred_check_branch
        %214 = sbr.rel (%p212) target = $region24
      $region23: #{transformer_decoder_forward.6} parent=11 // pred_region
        _
      $region24: #{transformer_decoder_forward.6} parent=11 // pred_fallthru
        _
      // Predicated region
      $region25: #{transformer_decoder_forward.6} parent=11 // pred_check
        %p215 = pneg %p123
      $region26: #{transformer_decoder_forward.6} parent=11 // pred_check_branch
        %217 = sbr.rel (%p215) target = $region28
      $region27: #{transformer_decoder_forward.6} parent=11 // pred_region
        _
      $region28: #{transformer_decoder_forward.6} parent=11 // pred_fallthru
        _
      // Predicated region
      $region29: #{transformer_decoder_forward.6} parent=11 // pred_check
        %p218 = pneg %p144
      $region30: #{transformer_decoder_forward.6} parent=11 // pred_check_branch
        %220 = sbr.rel (%p218) target = $region32
      $region31: #{transformer_decoder_forward.6} parent=11 // pred_region
        _
      $region32: #{transformer_decoder_forward.6} parent=11 // pred_fallthru
        _
      // Predicated region
      $region33: #{transformer_decoder_forward.6} parent=11 // pred_check
        %p221 = pneg %p165
      $region34: #{transformer_decoder_forward.6} parent=11 // pred_check_branch
        %223 = sbr.rel (%p221) target = $region36
      $region35: #{transformer_decoder_forward.6} parent=11 // pred_region
        _
      $region36: #{transformer_decoder_forward.6} parent=11 // pred_fallthru
        _
    $region12: #{transformer_decoder_forward.6} parent=5 // pred_fallthru
      _
    %p224 = scmp.lt.s32.totalorder %s13, 2
    // Predicated region
    $region37: #{transformer_decoder_forward.6} parent=5 // pred_check
      %p225 = pneg %p224
    $region38: #{transformer_decoder_forward.6} parent=5 // pred_check_branch
      %227 = sbr.rel (%p225) target = $region40
    $region39: #{transformer_decoder_forward.6} parent=5 // pred_region
      // Predicated region
      $region41: #{transformer_decoder_forward.6} parent=39 // pred_check
        %p228 = pneg %p33
      $region42: #{transformer_decoder_forward.6} parent=39 // pred_check_branch
        %230 = sbr.rel (%p228) target = $region44
      $region43: #{transformer_decoder_forward.6} parent=39 // pred_region
        %p231 = scmp.lt.s32.totalorder %s13, 1
        %s232 = scalar_select %p231, %s13, 1
        %s233 = smul.addr %s232, 8
        %s234 = scalar_lea.vmem %s0, %s233
      $region44: #{transformer_decoder_forward.6} parent=39 // pred_fallthru
        _
    $region40: #{transformer_decoder_forward.6} parent=5 // pred_fallthru
      _
    %p235 = scmp.le.s32.totalorder 1, %s13
    %p236 = scmp.lt.s32.totalorder %s13, 3
    %p237 = pnand %p235, %p236
    %p238 = pneg %p237
    // Predicated region
    $region45: #{transformer_decoder_forward.6} parent=5 // pred_check
      _
    $region46: #{transformer_decoder_forward.6} parent=5 // pred_check_branch
      %240 = sbr.rel (%p237) target = $region48
    $region47: #{transformer_decoder_forward.6} parent=5 // pred_region
      %s241 = ssub.s32 %s13, 1
      %p242 = scmp.lt.s32.totalorder %s18, 1
      %s243 = scalar_select %p242, %s18, 1
      %s244 = smul.addr %s243, 8
      %s245 = scalar_lea.vmem %s0, %s244
      %p246 = pneg %p39
      %p247 = pneg %p36
      %p248 = pneg %p60
      %p249 = pneg %p57
      %p250 = pneg %p81
      %p251 = pneg %p78
      %p252 = pneg %p102
      %p253 = pneg %p99
      %p254 = pneg %p123
      %p255 = pneg %p120
      %p256 = pneg %p144
      %p257 = pneg %p141
      %p258 = pneg %p165
      %p259 = pneg %p162
      %p260 = pneg %p191
      %p261 = pneg %p188
      %p262 = scmp.lt.s32.totalorder %s18, 1
      %s263 = scalar_select %p262, %s18, 1
      %s264 = smul.addr %s263, 8
      %s265 = scalar_lea.vmem %s7, %s264
      %p266 = scmp.lt.s32.totalorder %s18, 1
      %s267 = scalar_select %p266, %s18, 1
      %s268 = smul.addr %s267, 8
      %s269 = scalar_lea.vmem %s0, %s268
      %p270 = scmp.lt.s32.totalorder %s18, 1
      %s271 = scalar_select %p270, %s18, 1
      %s272 = smul.addr %s271, 8
      %s273 = scalar_lea.vmem %s7, %s272
      %v274 = vld [vmem:[%s269] sm:$0xff]
      %v275 = vld [vmem:[%s1] sm:$0xff]
      %v276 = vld [vmem:[%s1 + $0x8] sm:$0xff]
      %v277 = vld [vmem:[%s1 + $0x10] sm:$0xff]
      %v278 = vld [vmem:[%s1 + $0x18] sm:$0xff]
      %v279 = vld [vmem:[%s1 + $0x20] sm:$0xff]
      %v280 = vld [vmem:[%s1 + $0x28] sm:$0xff]
      %v281 = vld [vmem:[%s1 + $0x30] sm:$0xff]
      %v282 = vld [vmem:[%s1 + $0x38] sm:$0xff]
      %v283 = vld [vmem:[%s1 + $0x40] sm:$0xff]
      %v284 = vld [vmem:[%s1 + $0x48] sm:$0xff]
      %v285 = vld [vmem:[%s1 + $0x50] sm:$0xff]
      %v286 = vld [vmem:[%s1 + $0x58] sm:$0xff]
      %v287 = vld [vmem:[%s1 + $0x60] sm:$0xff]
      %v288 = vld [vmem:[%s1 + $0x68] sm:$0xff]
      %v289 = vld [vmem:[%s1 + $0x70] sm:$0xff]
      %v290 = vld [vmem:[%s1 + $0x78] sm:$0xff]
      %v291 = vld [vmem:[%s1 + $0x80] sm:$0xff]
      %v292 = vld [vmem:[%s1 + $0x88] sm:$0xff]
      %v293 = vld [vmem:[%s1 + $0x90] sm:$0xff]
      %v294 = vld [vmem:[%s1 + $0x98] sm:$0xff]
      %v295 = vld [vmem:[%s1 + $0xa0] sm:$0xff]
      %v296 = vld [vmem:[%s1 + $0xa8] sm:$0xff]
      %v297 = vld [vmem:[%s1 + $0xb0] sm:$0xff]
      %v298 = vld [vmem:[%s1 + $0xb8] sm:$0xff]
      %v299 = vld [vmem:[%s1 + $0xc0] sm:$0xff]
      %v300 = vld [vmem:[%s1 + $0xc8] sm:$0xff]
      %v301 = vld [vmem:[%s1 + $0xd0] sm:$0xff]
      %v302 = vld [vmem:[%s1 + $0xd8] sm:$0xff]
      %v303 = vld [vmem:[%s1 + $0xe0] sm:$0xff]
      %v304 = vld [vmem:[%s1 + $0xe8] sm:$0xff]
      %v305 = vld [vmem:[%s1 + $0xf0] sm:$0xff]
      %v306 = vld [vmem:[%s1 + $0xf8] sm:$0xff]
      %v307 = vld [vmem:[%s1 + $0x100] sm:$0xff]
      %v308 = vld [vmem:[%s1 + $0x108] sm:$0xff]
      %v309 = vld [vmem:[%s1 + $0x110] sm:$0xff]
      %v310 = vld [vmem:[%s1 + $0x118] sm:$0xff]
      %v311 = vld [vmem:[%s1 + $0x120] sm:$0xff]
      %v312 = vld [vmem:[%s1 + $0x128] sm:$0xff]
      %v313 = vld [vmem:[%s1 + $0x130] sm:$0xff]
      %v314 = vld [vmem:[%s1 + $0x138] sm:$0xff]
      %v315 = vld [vmem:[%s1 + $0x140] sm:$0xff]
      %v316 = vld [vmem:[%s1 + $0x148] sm:$0xff]
      %v317 = vld [vmem:[%s1 + $0x150] sm:$0xff]
      %v318 = vld [vmem:[%s1 + $0x158] sm:$0xff]
      %v319 = vld [vmem:[%s1 + $0x160] sm:$0xff]
      %v320 = vld [vmem:[%s1 + $0x168] sm:$0xff]
      %v321 = vld [vmem:[%s1 + $0x170] sm:$0xff]
      %v322 = vld [vmem:[%s1 + $0x178] sm:$0xff]
      %v323 = vld [vmem:[%s1 + $0x180] sm:$0xff]
      %v324 = vld [vmem:[%s1 + $0x188] sm:$0xff]
      %v325 = vld [vmem:[%s1 + $0x190] sm:$0xff]
      %v326 = vld [vmem:[%s1 + $0x198] sm:$0xff]
      %v327 = vld [vmem:[%s1 + $0x1a0] sm:$0xff]
      %v328 = vld [vmem:[%s1 + $0x1a8] sm:$0xff]
      %v329 = vld [vmem:[%s1 + $0x1b0] sm:$0xff]
      %v330 = vld [vmem:[%s1 + $0x1b8] sm:$0xff]
      %v331 = vld [vmem:[%s1 + $0x1c0] sm:$0xff]
      %v332 = vld [vmem:[%s1 + $0x1c8] sm:$0xff]
      %v333 = vld [vmem:[%s1 + $0x1d0] sm:$0xff]
      %v334 = vld [vmem:[%s1 + $0x1d8] sm:$0xff]
      %v335 = vld [vmem:[%s1 + $0x1e0] sm:$0xff]
      %v336 = vld [vmem:[%s1 + $0x1e8] sm:$0xff]
      %v337 = vld [vmem:[%s1 + $0x1f0] sm:$0xff]
      %v338 = vld [vmem:[%s1 + $0x1f8] sm:$0xff]
      %v339 = vld [vmem:[%s2] sm:$0xff]
      %v340 = vld [vmem:[%s2 + $0x8] sm:$0xff]
      %v343 = vlaneseq
      %v344 = vshrl.u32 %v343, 7
      %v345 = vsub.s32 0, %v344
      %v346 = vrot.slane %v339, %v345
      %v347 = vlaneseq
      %v348 = vshrl.u32 %v347, 7
      %v349 = vsub.s32 1, %v348
      %v350 = vrot.slane %v339, %v349
      %v351 = vlaneseq
      %v352 = vshrl.u32 %v351, 7
      %v353 = vsub.s32 2, %v352
      %v354 = vrot.slane %v339, %v353
      %v355 = vlaneseq
      %v356 = vshrl.u32 %v355, 7
      %v357 = vsub.s32 3, %v356
      %v358 = vrot.slane %v339, %v357
      %v359 = vlaneseq
      %v360 = vshrl.u32 %v359, 7
      %v361 = vsub.s32 4, %v360
      %v362 = vrot.slane %v339, %v361
      %v363 = vlaneseq
      %v364 = vshrl.u32 %v363, 7
      %v365 = vsub.s32 5, %v364
      %v366 = vrot.slane %v339, %v365
      %v367 = vlaneseq
      %v368 = vshrl.u32 %v367, 7
      %v369 = vsub.s32 6, %v368
      %v370 = vrot.slane %v339, %v369
      %v371 = vlaneseq
      %v372 = vshrl.u32 %v371, 7
      %v373 = vsub.s32 7, %v372
      %v374 = vrot.slane %v339, %v373
      %v375 = vlaneseq
      %v376 = vshrl.u32 %v375, 7
      %v377 = vsub.s32 0, %v376
      %v378 = vrot.slane %v340, %v377
      %v379 = vlaneseq
      %v380 = vshrl.u32 %v379, 7
      %v381 = vsub.s32 1, %v380
      %v382 = vrot.slane %v340, %v381
      %v383 = vlaneseq
      %v384 = vshrl.u32 %v383, 7
      %v385 = vsub.s32 2, %v384
      %v386 = vrot.slane %v340, %v385
      %v387 = vlaneseq
      %v388 = vshrl.u32 %v387, 7
      %v389 = vsub.s32 3, %v388
      %v390 = vrot.slane %v340, %v389
      %v391 = vlaneseq
      %v392 = vshrl.u32 %v391, 7
      %v393 = vsub.s32 4, %v392
      %v394 = vrot.slane %v340, %v393
      %v395 = vlaneseq
      %v396 = vshrl.u32 %v395, 7
      %v397 = vsub.s32 5, %v396
      %v398 = vrot.slane %v340, %v397
      %v399 = vlaneseq
      %v400 = vshrl.u32 %v399, 7
      %v401 = vsub.s32 6, %v400
      %v402 = vrot.slane %v340, %v401
      %v403 = vlaneseq
      %v404 = vshrl.u32 %v403, 7
      %v405 = vsub.s32 7, %v404
      %v406 = vrot.slane %v340, %v405
      %vm423 = vcmask 261120
      %v425 = vsel %vm423, %v274, 0
      %427 = vmatprep.subr.mxu0 %v276
      %428 = vmatpush1.msra.mxu0 %v275
      %429 = vmatprep.subr.mxu0 %v292
      %430 = vmatpush1.msra.mxu0 %v291
      %431 = vmatprep.subr.mxu0 %v308
      %432 = vmatpush1.msra.mxu0 %v307
      %433 = vmatprep.subr.mxu0 %v324
      %434 = vmatpush1.msra.mxu0 %v323
      %435 = vmatprep.subr.mxu0 0.0
      %436 = vmatpush1.msra.mxu0 0.0
      %437 = vmatprep.subr.mxu0 0.0
      %438 = vmatpush1.msra.mxu0 0.0
      %439 = vmatprep.subr.mxu0 0.0
      %440 = vmatpush1.msra.mxu0 0.0
      %441 = vmatprep.subr.mxu0 0.0
      %442 = vmatpush1.msra.mxu0 0.0
      %443 = vmatprep.subr.mxu0 0.0
      %444 = vmatpush1.msra.mxu0 0.0
      %445 = vmatprep.subr.mxu0 0.0
      %446 = vmatpush1.msra.mxu0 0.0
      %447 = vmatprep.subr.mxu0 0.0
      %448 = vmatpush1.msra.mxu0 0.0
      %449 = vmatprep.subr.mxu0 0.0
      %450 = vmatpush1.msra.mxu0 0.0
      %451 = vmatprep.subr.mxu0 0.0
      %452 = vmatpush1.msra.mxu0 0.0
      %453 = vmatprep.subr.mxu0 0.0
      %454 = vmatpush1.msra.mxu0 0.0
      %455 = vmatprep.subr.mxu0 0.0
      %456 = vmatpush1.msra.mxu0 0.0
      %457 = vmatprep.subr.mxu0 0.0
      %458 = vmatpush1.msra.mxu0 0.0
      %459 = vmatprep.subr.mxu0 0.0
      %460 = vmatpush1.msra.mxu0 0.0
      %461 = vmatprep.subr.mxu0 0.0
      %462 = vmatpush1.msra.mxu0 0.0
      %463 = vmatprep.subr.mxu0 0.0
      %464 = vmatpush1.msra.mxu0 0.0
      %465 = vmatprep.subr.mxu0 0.0
      %466 = vmatpush1.msra.mxu0 0.0
      %467 = vmatprep.subr.mxu0 0.0
      %468 = vmatpush1.msra.mxu0 0.0
      %469 = vmatprep.subr.mxu0 0.0
      %470 = vmatpush1.msra.mxu0 0.0
      %471 = vmatprep.subr.mxu0 0.0
      %472 = vmatpush1.msra.mxu0 0.0
      %473 = vmatprep.subr.mxu0 0.0
      %474 = vmatpush1.msra.mxu0 0.0
      %475 = vmatprep.subr.mxu0 0.0
      %476 = vmatpush1.msra.mxu0 0.0
      %477 = vmatprep.subr.mxu0 0.0
      %478 = vmatpush1.msra.mxu0 0.0
      %479 = vmatprep.subr.mxu0 0.0
      %480 = vmatpush1.msra.mxu0 0.0
      %481 = vmatprep.subr.mxu0 0.0
      %482 = vmatpush1.msra.mxu0 0.0
      %483 = vmatprep.subr.mxu0 0.0
      %484 = vmatpush1.msra.mxu0 0.0
      %485 = vmatprep.subr.mxu0 0.0
      %486 = vmatpush1.msra.mxu0 0.0
      %487 = vmatprep.subr.mxu0 0.0
      %488 = vmatpush1.msra.mxu0 0.0
      %489 = vmatprep.subr.mxu0 0.0
      %490 = vmatpush1.msra.mxu0 0.0
      %491 = vmatprep.mubr.f32.mxu0 0.0
      %492 = vmatmul.mubr.f32.gmra.mrb[0].mxu0 %v425
      %v493 = vpop.f32.mrb[0].mxu0
      %v494 = vadd.f32 %v346, %v493
      %v495 = vpop.f32.mrb[0].mxu0
      %v496 = vadd.f32 %v350, %v495
      %497 = vdwg.mxu0
      %498 = vmatprep.subr.mxu0 %v278
      %499 = vmatpush1.msra.mxu0 %v277
      %500 = vmatprep.subr.mxu0 %v294
      %501 = vmatpush1.msra.mxu0 %v293
      %502 = vmatprep.subr.mxu0 %v310
      %503 = vmatpush1.msra.mxu0 %v309
      %504 = vmatprep.subr.mxu0 %v326
      %505 = vmatpush1.msra.mxu0 %v325
      %506 = vmatprep.subr.mxu0 0.0
      %507 = vmatpush1.msra.mxu0 0.0
      %508 = vmatprep.subr.mxu0 0.0
      %509 = vmatpush1.msra.mxu0 0.0
      %510 = vmatprep.subr.mxu0 0.0
      %511 = vmatpush1.msra.mxu0 0.0
      %512 = vmatprep.subr.mxu0 0.0
      %513 = vmatpush1.msra.mxu0 0.0
      %514 = vmatprep.subr.mxu0 0.0
      %515 = vmatpush1.msra.mxu0 0.0
      %516 = vmatprep.subr.mxu0 0.0
      %517 = vmatpush1.msra.mxu0 0.0
      %518 = vmatprep.subr.mxu0 0.0
      %519 = vmatpush1.msra.mxu0 0.0
      %520 = vmatprep.subr.mxu0 0.0
      %521 = vmatpush1.msra.mxu0 0.0
      %522 = vmatprep.subr.mxu0 0.0
      %523 = vmatpush1.msra.mxu0 0.0
      %524 = vmatprep.subr.mxu0 0.0
      %525 = vmatpush1.msra.mxu0 0.0
      %526 = vmatprep.subr.mxu0 0.0
      %527 = vmatpush1.msra.mxu0 0.0
      %528 = vmatprep.subr.mxu0 0.0
      %529 = vmatpush1.msra.mxu0 0.0
      %530 = vmatprep.subr.mxu0 0.0
      %531 = vmatpush1.msra.mxu0 0.0
      %532 = vmatprep.subr.mxu0 0.0
      %533 = vmatpush1.msra.mxu0 0.0
      %534 = vmatprep.subr.mxu0 0.0
      %535 = vmatpush1.msra.mxu0 0.0
      %536 = vmatprep.subr.mxu0 0.0
      %537 = vmatpush1.msra.mxu0 0.0
      %538 = vmatprep.subr.mxu0 0.0
      %539 = vmatpush1.msra.mxu0 0.0
      %540 = vmatprep.subr.mxu0 0.0
      %541 = vmatpush1.msra.mxu0 0.0
      %542 = vmatprep.subr.mxu0 0.0
      %543 = vmatpush1.msra.mxu0 0.0
      %544 = vmatprep.subr.mxu0 0.0
      %545 = vmatpush1.msra.mxu0 0.0
      %546 = vmatprep.subr.mxu0 0.0
      %547 = vmatpush1.msra.mxu0 0.0
      %548 = vmatprep.subr.mxu0 0.0
      %549 = vmatpush1.msra.mxu0 0.0
      %550 = vmatprep.subr.mxu0 0.0
      %551 = vmatpush1.msra.mxu0 0.0
      %552 = vmatprep.subr.mxu0 0.0
      %553 = vmatpush1.msra.mxu0 0.0
      %554 = vmatprep.subr.mxu0 0.0
      %555 = vmatpush1.msra.mxu0 0.0
      %556 = vmatprep.subr.mxu0 0.0
      %557 = vmatpush1.msra.mxu0 0.0
      %558 = vmatprep.subr.mxu0 0.0
      %559 = vmatpush1.msra.mxu0 0.0
      %560 = vmatprep.subr.mxu0 0.0
      %561 = vmatpush1.msra.mxu0 0.0
      %562 = vmatprep.mubr.f32.mxu0 0.0
      %563 = vmatmul.mubr.f32.gmra.mrb[0].mxu0 %v425
      %v564 = vpop.f32.mrb[0].mxu0
      %v565 = vadd.f32 %v354, %v564
      %v566 = vpop.f32.mrb[0].mxu0
      %v567 = vadd.f32 %v358, %v566
      %568 = vdwg.mxu0
      %569 = vmatprep.subr.mxu0 %v280
      %570 = vmatpush1.msra.mxu0 %v279
      %571 = vmatprep.subr.mxu0 %v296
      %572 = vmatpush1.msra.mxu0 %v295
      %573 = vmatprep.subr.mxu0 %v312
      %574 = vmatpush1.msra.mxu0 %v311
      %575 = vmatprep.subr.mxu0 %v328
      %576 = vmatpush1.msra.mxu0 %v327
      %577 = vmatprep.subr.mxu0 0.0
      %578 = vmatpush1.msra.mxu0 0.0
      %579 = vmatprep.subr.mxu0 0.0
      %580 = vmatpush1.msra.mxu0 0.0
      %581 = vmatprep.subr.mxu0 0.0
      %582 = vmatpush1.msra.mxu0 0.0
      %583 = vmatprep.subr.mxu0 0.0
      %584 = vmatpush1.msra.mxu0 0.0
      %585 = vmatprep.subr.mxu0 0.0
      %586 = vmatpush1.msra.mxu0 0.0
      %587 = vmatprep.subr.mxu0 0.0
      %588 = vmatpush1.msra.mxu0 0.0
      %589 = vmatprep.subr.mxu0 0.0
      %590 = vmatpush1.msra.mxu0 0.0
      %591 = vmatprep.subr.mxu0 0.0
      %592 = vmatpush1.msra.mxu0 0.0
      %593 = vmatprep.subr.mxu0 0.0
      %594 = vmatpush1.msra.mxu0 0.0
      %595 = vmatprep.subr.mxu0 0.0
      %596 = vmatpush1.msra.mxu0 0.0
      %597 = vmatprep.subr.mxu0 0.0
      %598 = vmatpush1.msra.mxu0 0.0
      %599 = vmatprep.subr.mxu0 0.0
      %600 = vmatpush1.msra.mxu0 0.0
      %601 = vmatprep.subr.mxu0 0.0
      %602 = vmatpush1.msra.mxu0 0.0
      %603 = vmatprep.subr.mxu0 0.0
      %604 = vmatpush1.msra.mxu0 0.0
      %605 = vmatprep.subr.mxu0 0.0
      %606 = vmatpush1.msra.mxu0 0.0
      %607 = vmatprep.subr.mxu0 0.0
      %608 = vmatpush1.msra.mxu0 0.0
      %609 = vmatprep.subr.mxu0 0.0
      %610 = vmatpush1.msra.mxu0 0.0
      %611 = vmatprep.subr.mxu0 0.0
      %612 = vmatpush1.msra.mxu0 0.0
      %613 = vmatprep.subr.mxu0 0.0
      %614 = vmatpush1.msra.mxu0 0.0
      %615 = vmatprep.subr.mxu0 0.0
      %616 = vmatpush1.msra.mxu0 0.0
      %617 = vmatprep.subr.mxu0 0.0
      %618 = vmatpush1.msra.mxu0 0.0
      %619 = vmatprep.subr.mxu0 0.0
      %620 = vmatpush1.msra.mxu0 0.0
      %621 = vmatprep.subr.mxu0 0.0
      %622 = vmatpush1.msra.mxu0 0.0
      %623 = vmatprep.subr.mxu0 0.0
      %624 = vmatpush1.msra.mxu0 0.0
      %625 = vmatprep.subr.mxu0 0.0
      %626 = vmatpush1.msra.mxu0 0.0
      %627 = vmatprep.subr.mxu0 0.0
      %628 = vmatpush1.msra.mxu0 0.0
      %629 = vmatprep.subr.mxu0 0.0
      %630 = vmatpush1.msra.mxu0 0.0
      %631 = vmatprep.subr.mxu0 0.0
      %632 = vmatpush1.msra.mxu0 0.0
      %633 = vmatprep.mubr.f32.mxu0 0.0
      %634 = vmatmul.mubr.f32.gmra.mrb[0].mxu0 %v425
      %v635 = vpop.f32.mrb[0].mxu0
      %v636 = vadd.f32 %v362, %v635
      %v637 = vpop.f32.mrb[0].mxu0
      %v638 = vadd.f32 %v366, %v637
      %639 = vdwg.mxu0
      %640 = vmatprep.subr.mxu0 %v282
      %641 = vmatpush1.msra.mxu0 %v281
      %642 = vmatprep.subr.mxu0 %v298
      %643 = vmatpush1.msra.mxu0 %v297
      %644 = vmatprep.subr.mxu0 %v314
      %645 = vmatpush1.msra.mxu0 %v313
      %646 = vmatprep.subr.mxu0 %v330
      %647 = vmatpush1.msra.mxu0 %v329
      %648 = vmatprep.subr.mxu0 0.0
      %649 = vmatpush1.msra.mxu0 0.0
      %650 = vmatprep.subr.mxu0 0.0
      %651 = vmatpush1.msra.mxu0 0.0
      %652 = vmatprep.subr.mxu0 0.0
      %653 = vmatpush1.msra.mxu0 0.0
      %654 = vmatprep.subr.mxu0 0.0
      %655 = vmatpush1.msra.mxu0 0.0
      %656 = vmatprep.subr.mxu0 0.0
      %657 = vmatpush1.msra.mxu0 0.0
      %658 = vmatprep.subr.mxu0 0.0
      %659 = vmatpush1.msra.mxu0 0.0
      %660 = vmatprep.subr.mxu0 0.0
      %661 = vmatpush1.msra.mxu0 0.0
      %662 = vmatprep.subr.mxu0 0.0
      %663 = vmatpush1.msra.mxu0 0.0
      %664 = vmatprep.subr.mxu0 0.0
      %665 = vmatpush1.msra.mxu0 0.0
      %666 = vmatprep.subr.mxu0 0.0
      %667 = vmatpush1.msra.mxu0 0.0
      %668 = vmatprep.subr.mxu0 0.0
      %669 = vmatpush1.msra.mxu0 0.0
      %670 = vmatprep.subr.mxu0 0.0
      %671 = vmatpush1.msra.mxu0 0.0
      %672 = vmatprep.subr.mxu0 0.0
      %673 = vmatpush1.msra.mxu0 0.0
      %674 = vmatprep.subr.mxu0 0.0
      %675 = vmatpush1.msra.mxu0 0.0
      %676 = vmatprep.subr.mxu0 0.0
      %677 = vmatpush1.msra.mxu0 0.0
      %678 = vmatprep.subr.mxu0 0.0
      %679 = vmatpush1.msra.mxu0 0.0
      %680 = vmatprep.subr.mxu0 0.0
      %681 = vmatpush1.msra.mxu0 0.0
      %682 = vmatprep.subr.mxu0 0.0
      %683 = vmatpush1.msra.mxu0 0.0
      %684 = vmatprep.subr.mxu0 0.0
      %685 = vmatpush1.msra.mxu0 0.0
      %686 = vmatprep.subr.mxu0 0.0
      %687 = vmatpush1.msra.mxu0 0.0
      %688 = vmatprep.subr.mxu0 0.0
      %689 = vmatpush1.msra.mxu0 0.0
      %690 = vmatprep.subr.mxu0 0.0
      %691 = vmatpush1.msra.mxu0 0.0
      %692 = vmatprep.subr.mxu0 0.0
      %693 = vmatpush1.msra.mxu0 0.0
      %694 = vmatprep.subr.mxu0 0.0
      %695 = vmatpush1.msra.mxu0 0.0
      %696 = vmatprep.subr.mxu0 0.0
      %697 = vmatpush1.msra.mxu0 0.0
      %698 = vmatprep.subr.mxu0 0.0
      %699 = vmatpush1.msra.mxu0 0.0
      %700 = vmatprep.subr.mxu0 0.0
      %701 = vmatpush1.msra.mxu0 0.0
      %702 = vmatprep.subr.mxu0 0.0
      %703 = vmatpush1.msra.mxu0 0.0
      %704 = vmatprep.mubr.f32.mxu0 0.0
      %705 = vmatmul.mubr.f32.gmra.mrb[0].mxu0 %v425
      %v706 = vpop.f32.mrb[0].mxu0
      %v707 = vadd.f32 %v370, %v706
      %v708 = vpop.f32.mrb[0].mxu0
      %v709 = vadd.f32 %v374, %v708
      %710 = vdwg.mxu0
      %711 = vmatprep.subr.mxu0 %v284
      %712 = vmatpush1.msra.mxu0 %v283
      %713 = vmatprep.subr.mxu0 %v300
      %714 = vmatpush1.msra.mxu0 %v299
      %715 = vmatprep.subr.mxu0 %v316
      %716 = vmatpush1.msra.mxu0 %v315
      %717 = vmatprep.subr.mxu0 %v332
      %718 = vmatpush1.msra.mxu0 %v331
      %719 = vmatprep.subr.mxu0 0.0
      %720 = vmatpush1.msra.mxu0 0.0
      %721 = vmatprep.subr.mxu0 0.0
      %722 = vmatpush1.msra.mxu0 0.0
      %723 = vmatprep.subr.mxu0 0.0
      %724 = vmatpush1.msra.mxu0 0.0
      %725 = vmatprep.subr.mxu0 0.0
      %726 = vmatpush1.msra.mxu0 0.0
      %727 = vmatprep.subr.mxu0 0.0
      %728 = vmatpush1.msra.mxu0 0.0
      %729 = vmatprep.subr.mxu0 0.0
      %730 = vmatpush1.msra.mxu0 0.0
      %731 = vmatprep.subr.mxu0 0.0
      %732 = vmatpush1.msra.mxu0 0.0
      %733 = vmatprep.subr.mxu0 0.0
      %734 = vmatpush1.msra.mxu0 0.0
      %735 = vmatprep.subr.mxu0 0.0
      %736 = vmatpush1.msra.mxu0 0.0
      %737 = vmatprep.subr.mxu0 0.0
      %738 = vmatpush1.msra.mxu0 0.0
      %739 = vmatprep.subr.mxu0 0.0
      %740 = vmatpush1.msra.mxu0 0.0
      %741 = vmatprep.subr.mxu0 0.0
      %742 = vmatpush1.msra.mxu0 0.0
      %743 = vmatprep.subr.mxu0 0.0
      %744 = vmatpush1.msra.mxu0 0.0
      %745 = vmatprep.subr.mxu0 0.0
      %746 = vmatpush1.msra.mxu0 0.0
      %747 = vmatprep.subr.mxu0 0.0
      %748 = vmatpush1.msra.mxu0 0.0
      %749 = vmatprep.subr.mxu0 0.0
      %750 = vmatpush1.msra.mxu0 0.0
      %751 = vmatprep.subr.mxu0 0.0
      %752 = vmatpush1.msra.mxu0 0.0
      %753 = vmatprep.subr.mxu0 0.0
      %754 = vmatpush1.msra.mxu0 0.0
      %755 = vmatprep.subr.mxu0 0.0
      %756 = vmatpush1.msra.mxu0 0.0
      %757 = vmatprep.subr.mxu0 0.0
      %758 = vmatpush1.msra.mxu0 0.0
      %759 = vmatprep.subr.mxu0 0.0
      %760 = vmatpush1.msra.mxu0 0.0
      %761 = vmatprep.subr.mxu0 0.0
      %762 = vmatpush1.msra.mxu0 0.0
      %763 = vmatprep.subr.mxu0 0.0
      %764 = vmatpush1.msra.mxu0 0.0
      %765 = vmatprep.subr.mxu0 0.0
      %766 = vmatpush1.msra.mxu0 0.0
      %767 = vmatprep.subr.mxu0 0.0
      %768 = vmatpush1.msra.mxu0 0.0
      %769 = vmatprep.subr.mxu0 0.0
      %770 = vmatpush1.msra.mxu0 0.0
      %771 = vmatprep.subr.mxu0 0.0
      %772 = vmatpush1.msra.mxu0 0.0
      %773 = vmatprep.subr.mxu0 0.0
      %774 = vmatpush1.msra.mxu0 0.0
      %775 = vmatprep.mubr.f32.mxu0 0.0
      %776 = vmatmul.mubr.f32.gmra.mrb[0].mxu0 %v425
      %v777 = vpop.f32.mrb[0].mxu0
      %v778 = vadd.f32 %v378, %v777
      %v779 = vpop.f32.mrb[0].mxu0
      %v780 = vadd.f32 %v382, %v779
      %781 = vdwg.mxu0
      %782 = vmatprep.subr.mxu0 %v286
      %783 = vmatpush1.msra.mxu0 %v285
      %784 = vmatprep.subr.mxu0 %v302
      %785 = vmatpush1.msra.mxu0 %v301
      %786 = vmatprep.subr.mxu0 %v318
      %787 = vmatpush1.msra.mxu0 %v317
      %788 = vmatprep.subr.mxu0 %v334
      %789 = vmatpush1.msra.mxu0 %v333
      %790 = vmatprep.subr.mxu0 0.0
      %791 = vmatpush1.msra.mxu0 0.0
      %792 = vmatprep.subr.mxu0 0.0
      %793 = vmatpush1.msra.mxu0 0.0
      %794 = vmatprep.subr.mxu0 0.0
      %795 = vmatpush1.msra.mxu0 0.0
      %796 = vmatprep.subr.mxu0 0.0
      %797 = vmatpush1.msra.mxu0 0.0
      %798 = vmatprep.subr.mxu0 0.0
      %799 = vmatpush1.msra.mxu0 0.0
      %800 = vmatprep.subr.mxu0 0.0
      %801 = vmatpush1.msra.mxu0 0.0
      %802 = vmatprep.subr.mxu0 0.0
      %803 = vmatpush1.msra.mxu0 0.0
      %804 = vmatprep.subr.mxu0 0.0
      %805 = vmatpush1.msra.mxu0 0.0
      %806 = vmatprep.subr.mxu0 0.0
      %807 = vmatpush1.msra.mxu0 0.0
      %808 = vmatprep.subr.mxu0 0.0
      %809 = vmatpush1.msra.mxu0 0.0
      %810 = vmatprep.subr.mxu0 0.0
      %811 = vmatpush1.msra.mxu0 0.0
      %812 = vmatprep.subr.mxu0 0.0
      %813 = vmatpush1.msra.mxu0 0.0
      %814 = vmatprep.subr.mxu0 0.0
      %815 = vmatpush1.msra.mxu0 0.0
      %816 = vmatprep.subr.mxu0 0.0
      %817 = vmatpush1.msra.mxu0 0.0
      %818 = vmatprep.subr.mxu0 0.0
      %819 = vmatpush1.msra.mxu0 0.0
      %820 = vmatprep.subr.mxu0 0.0
      %821 = vmatpush1.msra.mxu0 0.0
      %822 = vmatprep.subr.mxu0 0.0
      %823 = vmatpush1.msra.mxu0 0.0
      %824 = vmatprep.subr.mxu0 0.0
      %825 = vmatpush1.msra.mxu0 0.0
      %826 = vmatprep.subr.mxu0 0.0
      %827 = vmatpush1.msra.mxu0 0.0
      %828 = vmatprep.subr.mxu0 0.0
      %829 = vmatpush1.msra.mxu0 0.0
      %830 = vmatprep.subr.mxu0 0.0
      %831 = vmatpush1.msra.mxu0 0.0
      %832 = vmatprep.subr.mxu0 0.0
      %833 = vmatpush1.msra.mxu0 0.0
      %834 = vmatprep.subr.mxu0 0.0
      %835 = vmatpush1.msra.mxu0 0.0
      %836 = vmatprep.subr.mxu0 0.0
      %837 = vmatpush1.msra.mxu0 0.0
      %838 = vmatprep.subr.mxu0 0.0
      %839 = vmatpush1.msra.mxu0 0.0
      %840 = vmatprep.subr.mxu0 0.0
      %841 = vmatpush1.msra.mxu0 0.0
      %842 = vmatprep.subr.mxu0 0.0
      %843 = vmatpush1.msra.mxu0 0.0
      %844 = vmatprep.subr.mxu0 0.0
      %845 = vmatpush1.msra.mxu0 0.0
      %846 = vmatprep.mubr.f32.mxu0 0.0
      %847 = vmatmul.mubr.f32.gmra.mrb[0].mxu0 %v425
      %v848 = vpop.f32.mrb[0].mxu0
      %v849 = vadd.f32 %v386, %v848
      %v850 = vpop.f32.mrb[0].mxu0
      %v851 = vadd.f32 %v390, %v850
      %852 = vdwg.mxu0
      %853 = vmatprep.subr.mxu0 %v288
      %854 = vmatpush1.msra.mxu0 %v287
      %855 = vmatprep.subr.mxu0 %v304
      %856 = vmatpush1.msra.mxu0 %v303
      %857 = vmatprep.subr.mxu0 %v320
      %858 = vmatpush1.msra.mxu0 %v319
      %859 = vmatprep.subr.mxu0 %v336
      %860 = vmatpush1.msra.mxu0 %v335
      %861 = vmatprep.subr.mxu0 0.0
      %862 = vmatpush1.msra.mxu0 0.0
      %863 = vmatprep.subr.mxu0 0.0
      %864 = vmatpush1.msra.mxu0 0.0
      %865 = vmatprep.subr.mxu0 0.0
      %866 = vmatpush1.msra.mxu0 0.0
      %867 = vmatprep.subr.mxu0 0.0
      %868 = vmatpush1.msra.mxu0 0.0
      %869 = vmatprep.subr.mxu0 0.0
      %870 = vmatpush1.msra.mxu0 0.0
      %871 = vmatprep.subr.mxu0 0.0
      %872 = vmatpush1.msra.mxu0 0.0
      %873 = vmatprep.subr.mxu0 0.0
      %874 = vmatpush1.msra.mxu0 0.0
      %875 = vmatprep.subr.mxu0 0.0
      %876 = vmatpush1.msra.mxu0 0.0
      %877 = vmatprep.subr.mxu0 0.0
      %878 = vmatpush1.msra.mxu0 0.0
      %879 = vmatprep.subr.mxu0 0.0
      %880 = vmatpush1.msra.mxu0 0.0
      %881 = vmatprep.subr.mxu0 0.0
      %882 = vmatpush1.msra.mxu0 0.0
      %883 = vmatprep.subr.mxu0 0.0
      %884 = vmatpush1.msra.mxu0 0.0
      %885 = vmatprep.subr.mxu0 0.0
      %886 = vmatpush1.msra.mxu0 0.0
      %887 = vmatprep.subr.mxu0 0.0
      %888 = vmatpush1.msra.mxu0 0.0
      %889 = vmatprep.subr.mxu0 0.0
      %890 = vmatpush1.msra.mxu0 0.0
      %891 = vmatprep.subr.mxu0 0.0
      %892 = vmatpush1.msra.mxu0 0.0
      %893 = vmatprep.subr.mxu0 0.0
      %894 = vmatpush1.msra.mxu0 0.0
      %895 = vmatprep.subr.mxu0 0.0
      %896 = vmatpush1.msra.mxu0 0.0
      %897 = vmatprep.subr.mxu0 0.0
      %898 = vmatpush1.msra.mxu0 0.0
      %899 = vmatprep.subr.mxu0 0.0
      %900 = vmatpush1.msra.mxu0 0.0
      %901 = vmatprep.subr.mxu0 0.0
      %902 = vmatpush1.msra.mxu0 0.0
      %903 = vmatprep.subr.mxu0 0.0
      %904 = vmatpush1.msra.mxu0 0.0
      %905 = vmatprep.subr.mxu0 0.0
      %906 = vmatpush1.msra.mxu0 0.0
      %907 = vmatprep.subr.mxu0 0.0
      %908 = vmatpush1.msra.mxu0 0.0
      %909 = vmatprep.subr.mxu0 0.0
      %910 = vmatpush1.msra.mxu0 0.0
      %911 = vmatprep.subr.mxu0 0.0
      %912 = vmatpush1.msra.mxu0 0.0
      %913 = vmatprep.subr.mxu0 0.0
      %914 = vmatpush1.msra.mxu0 0.0
      %915 = vmatprep.subr.mxu0 0.0
      %916 = vmatpush1.msra.mxu0 0.0
      %917 = vmatprep.mubr.f32.mxu0 0.0
      %918 = vmatmul.mubr.f32.gmra.mrb[0].mxu0 %v425
      %v919 = vpop.f32.mrb[0].mxu0
      %v920 = vadd.f32 %v394, %v919
      %v921 = vpop.f32.mrb[0].mxu0
      %v922 = vadd.f32 %v398, %v921
      %923 = vdwg.mxu0
      %924 = vmatprep.subr.mxu0 %v290
      %925 = vmatpush1.msra.mxu0 %v289
      %926 = vmatprep.subr.mxu0 %v306
      %927 = vmatpush1.msra.mxu0 %v305
      %928 = vmatprep.subr.mxu0 %v322
      %929 = vmatpush1.msra.mxu0 %v321
      %930 = vmatprep.subr.mxu0 %v338
      %931 = vmatpush1.msra.mxu0 %v337
      %932 = vmatprep.subr.mxu0 0.0
      %933 = vmatpush1.msra.mxu0 0.0
      %934 = vmatprep.subr.mxu0 0.0
      %935 = vmatpush1.msra.mxu0 0.0
      %936 = vmatprep.subr.mxu0 0.0
      %937 = vmatpush1.msra.mxu0 0.0
      %938 = vmatprep.subr.mxu0 0.0
      %939 = vmatpush1.msra.mxu0 0.0
      %940 = vmatprep.subr.mxu0 0.0
      %941 = vmatpush1.msra.mxu0 0.0
      %942 = vmatprep.subr.mxu0 0.0
      %943 = vmatpush1.msra.mxu0 0.0
      %944 = vmatprep.subr.mxu0 0.0
      %945 = vmatpush1.msra.mxu0 0.0
      %946 = vmatprep.subr.mxu0 0.0
      %947 = vmatpush1.msra.mxu0 0.0
      %948 = vmatprep.subr.mxu0 0.0
      %949 = vmatpush1.msra.mxu0 0.0
      %950 = vmatprep.subr.mxu0 0.0
      %951 = vmatpush1.msra.mxu0 0.0
      %952 = vmatprep.subr.mxu0 0.0
      %953 = vmatpush1.msra.mxu0 0.0
      %954 = vmatprep.subr.mxu0 0.0
      %955 = vmatpush1.msra.mxu0 0.0
      %956 = vmatprep.subr.mxu0 0.0
      %957 = vmatpush1.msra.mxu0 0.0
      %958 = vmatprep.subr.mxu0 0.0
      %959 = vmatpush1.msra.mxu0 0.0
      %960 = vmatprep.subr.mxu0 0.0
      %961 = vmatpush1.msra.mxu0 0.0
      %962 = vmatprep.subr.mxu0 0.0
      %963 = vmatpush1.msra.mxu0 0.0
      %964 = vmatprep.subr.mxu0 0.0
      %965 = vmatpush1.msra.mxu0 0.0
      %966 = vmatprep.subr.mxu0 0.0
      %967 = vmatpush1.msra.mxu0 0.0
      %968 = vmatprep.subr.mxu0 0.0
      %969 = vmatpush1.msra.mxu0 0.0
      %970 = vmatprep.subr.mxu0 0.0
      %971 = vmatpush1.msra.mxu0 0.0
      %972 = vmatprep.subr.mxu0 0.0
      %973 = vmatpush1.msra.mxu0 0.0
      %974 = vmatprep.subr.mxu0 0.0
      %975 = vmatpush1.msra.mxu0 0.0
      %976 = vmatprep.subr.mxu0 0.0
      %977 = vmatpush1.msra.mxu0 0.0
      %978 = vmatprep.subr.mxu0 0.0
      %979 = vmatpush1.msra.mxu0 0.0
      %980 = vmatprep.subr.mxu0 0.0
      %981 = vmatpush1.msra.mxu0 0.0
      %982 = vmatprep.subr.mxu0 0.0
      %983 = vmatpush1.msra.mxu0 0.0
      %984 = vmatprep.subr.mxu0 0.0
      %985 = vmatpush1.msra.mxu0 0.0
      %986 = vmatprep.subr.mxu0 0.0
      %987 = vmatpush1.msra.mxu0 0.0
      %988 = vmatprep.mubr.f32.mxu0 0.0
      %989 = vmatmul.mubr.f32.gmra.mrb[0].mxu0 %v425
      %v990 = vpop.f32.mrb[0].mxu0
      %v991 = vadd.f32 %v402, %v990
      %v992 = vpop.f32.mrb[0].mxu0
      %v993 = vadd.f32 %v406, %v992
      %994 = vdwg.mxu0
      %v995 = vmax.f32 %v494, 0.0
      %v996 = vmax.f32 %v496, 0.0
      %v997 = vmax.f32 %v565, 0.0
      %v998 = vmax.f32 %v567, 0.0
      %v999 = vmax.f32 %v636, 0.0
      %v1000 = vmax.f32 %v638, 0.0
      %v1001 = vmax.f32 %v707, 0.0
      %v1002 = vmax.f32 %v709, 0.0
      %v1003 = vmax.f32 %v778, 0.0
      %v1004 = vmax.f32 %v780, 0.0
      %v1005 = vmax.f32 %v849, 0.0
      %v1006 = vmax.f32 %v851, 0.0
      %v1007 = vmax.f32 %v920, 0.0
      %v1008 = vmax.f32 %v922, 0.0
      %v1009 = vmax.f32 %v991, 0.0
      %v1010 = vmax.f32 %v993, 0.0
      %v1011 = vld [vmem:[%s3] sm:$0xff]
      %v1012 = vld [vmem:[%s3 + $0x8] sm:$0xff]
      %v1013 = vld [vmem:[%s3 + $0x10] sm:$0xff]
      %v1014 = vld [vmem:[%s3 + $0x18] sm:$0xff]
      %v1015 = vld [vmem:[%s3 + $0x20] sm:$0xff]
      %v1016 = vld [vmem:[%s3 + $0x28] sm:$0xff]
      %v1017 = vld [vmem:[%s3 + $0x30] sm:$0xff]
      %v1018 = vld [vmem:[%s3 + $0x38] sm:$0xff]
      %v1019 = vld [vmem:[%s3 + $0x40] sm:$0xff]
      %v1020 = vld [vmem:[%s3 + $0x48] sm:$0xff]
      %v1021 = vld [vmem:[%s3 + $0x50] sm:$0xff]
      %v1022 = vld [vmem:[%s3 + $0x58] sm:$0xff]
      %v1023 = vld [vmem:[%s3 + $0x60] sm:$0xff]
      %v1024 = vld [vmem:[%s3 + $0x68] sm:$0xff]
      %v1025 = vld [vmem:[%s3 + $0x70] sm:$0xff]
      %v1026 = vld [vmem:[%s3 + $0x78] sm:$0xff]
      %v1027 = vld [vmem:[%s3 + $0x80] sm:$0xff]
      %v1028 = vld [vmem:[%s3 + $0x88] sm:$0xff]
      %v1029 = vld [vmem:[%s3 + $0x90] sm:$0xff]
      %v1030 = vld [vmem:[%s3 + $0x98] sm:$0xff]
      %v1031 = vld [vmem:[%s3 + $0xa0] sm:$0xff]
      %v1032 = vld [vmem:[%s3 + $0xa8] sm:$0xff]
      %v1033 = vld [vmem:[%s3 + $0xb0] sm:$0xff]
      %v1034 = vld [vmem:[%s3 + $0xb8] sm:$0xff]
      %v1035 = vld [vmem:[%s3 + $0xc0] sm:$0xff]
      %v1036 = vld [vmem:[%s3 + $0xc8] sm:$0xff]
      %v1037 = vld [vmem:[%s3 + $0xd0] sm:$0xff]
      %v1038 = vld [vmem:[%s3 + $0xd8] sm:$0xff]
      %v1039 = vld [vmem:[%s3 + $0xe0] sm:$0xff]
      %v1040 = vld [vmem:[%s3 + $0xe8] sm:$0xff]
      %v1041 = vld [vmem:[%s3 + $0xf0] sm:$0xff]
      %v1042 = vld [vmem:[%s3 + $0xf8] sm:$0xff]
      %v1043 = vld [vmem:[%s3 + $0x100] sm:$0xff]
      %v1044 = vld [vmem:[%s3 + $0x108] sm:$0xff]
      %v1045 = vld [vmem:[%s3 + $0x110] sm:$0xff]
      %v1046 = vld [vmem:[%s3 + $0x118] sm:$0xff]
      %v1047 = vld [vmem:[%s3 + $0x120] sm:$0xff]
      %v1048 = vld [vmem:[%s3 + $0x128] sm:$0xff]
      %v1049 = vld [vmem:[%s3 + $0x130] sm:$0xff]
      %v1050 = vld [vmem:[%s3 + $0x138] sm:$0xff]
      %v1051 = vld [vmem:[%s3 + $0x140] sm:$0xff]
      %v1052 = vld [vmem:[%s3 + $0x148] sm:$0xff]
      %v1053 = vld [vmem:[%s3 + $0x150] sm:$0xff]
      %v1054 = vld [vmem:[%s3 + $0x158] sm:$0xff]
      %v1055 = vld [vmem:[%s3 + $0x160] sm:$0xff]
      %v1056 = vld [vmem:[%s3 + $0x168] sm:$0xff]
      %v1057 = vld [vmem:[%s3 + $0x170] sm:$0xff]
      %v1058 = vld [vmem:[%s3 + $0x178] sm:$0xff]
      %v1059 = vld [vmem:[%s3 + $0x180] sm:$0xff]
      %v1060 = vld [vmem:[%s3 + $0x188] sm:$0xff]
      %v1061 = vld [vmem:[%s3 + $0x190] sm:$0xff]
      %v1062 = vld [vmem:[%s3 + $0x198] sm:$0xff]
      %v1063 = vld [vmem:[%s3 + $0x1a0] sm:$0xff]
      %v1064 = vld [vmem:[%s3 + $0x1a8] sm:$0xff]
      %v1065 = vld [vmem:[%s3 + $0x1b0] sm:$0xff]
      %v1066 = vld [vmem:[%s3 + $0x1b8] sm:$0xff]
      %v1067 = vld [vmem:[%s3 + $0x1c0] sm:$0xff]
      %v1068 = vld [vmem:[%s3 + $0x1c8] sm:$0xff]
      %v1069 = vld [vmem:[%s3 + $0x1d0] sm:$0xff]
      %v1070 = vld [vmem:[%s3 + $0x1d8] sm:$0xff]
      %v1071 = vld [vmem:[%s3 + $0x1e0] sm:$0xff]
      %v1072 = vld [vmem:[%s3 + $0x1e8] sm:$0xff]
      %v1073 = vld [vmem:[%s3 + $0x1f0] sm:$0xff]
      %v1074 = vld [vmem:[%s3 + $0x1f8] sm:$0xff]
      %v1075 = vld [vmem:[%s3 + $0x200] sm:$0xff]
      %v1076 = vld [vmem:[%s3 + $0x208] sm:$0xff]
      %v1077 = vld [vmem:[%s3 + $0x210] sm:$0xff]
      %v1078 = vld [vmem:[%s3 + $0x218] sm:$0xff]
      %v1079 = vld [vmem:[%s3 + $0x220] sm:$0xff]
      %v1080 = vld [vmem:[%s3 + $0x228] sm:$0xff]
      %v1081 = vld [vmem:[%s3 + $0x230] sm:$0xff]
      %v1082 = vld [vmem:[%s3 + $0x238] sm:$0xff]
      %v1083 = vld [vmem:[%s3 + $0x240] sm:$0xff]
      %v1084 = vld [vmem:[%s3 + $0x248] sm:$0xff]
      %v1085 = vld [vmem:[%s3 + $0x250] sm:$0xff]
      %v1086 = vld [vmem:[%s3 + $0x258] sm:$0xff]
      %v1087 = vld [vmem:[%s3 + $0x260] sm:$0xff]
      %v1088 = vld [vmem:[%s3 + $0x268] sm:$0xff]
      %v1089 = vld [vmem:[%s3 + $0x270] sm:$0xff]
      %v1090 = vld [vmem:[%s3 + $0x278] sm:$0xff]
      %v1091 = vld [vmem:[%s3 + $0x280] sm:$0xff]
      %v1092 = vld [vmem:[%s3 + $0x288] sm:$0xff]
      %v1093 = vld [vmem:[%s3 + $0x290] sm:$0xff]
      %v1094 = vld [vmem:[%s3 + $0x298] sm:$0xff]
      %v1095 = vld [vmem:[%s3 + $0x2a0] sm:$0xff]
      %v1096 = vld [vmem:[%s3 + $0x2a8] sm:$0xff]
      %v1097 = vld [vmem:[%s3 + $0x2b0] sm:$0xff]
      %v1098 = vld [vmem:[%s3 + $0x2b8] sm:$0xff]
      %v1099 = vld [vmem:[%s3 + $0x2c0] sm:$0xff]
      %v1100 = vld [vmem:[%s3 + $0x2c8] sm:$0xff]
      %v1101 = vld [vmem:[%s3 + $0x2d0] sm:$0xff]
      %v1102 = vld [vmem:[%s3 + $0x2d8] sm:$0xff]
      %v1103 = vld [vmem:[%s3 + $0x2e0] sm:$0xff]
      %v1104 = vld [vmem:[%s3 + $0x2e8] sm:$0xff]
      %v1105 = vld [vmem:[%s3 + $0x2f0] sm:$0xff]
      %v1106 = vld [vmem:[%s3 + $0x2f8] sm:$0xff]
      %v1107 = vld [vmem:[%s3 + $0x300] sm:$0xff]
      %v1108 = vld [vmem:[%s3 + $0x308] sm:$0xff]
      %v1109 = vld [vmem:[%s3 + $0x310] sm:$0xff]
      %v1110 = vld [vmem:[%s3 + $0x318] sm:$0xff]
      %v1111 = vld [vmem:[%s3 + $0x320] sm:$0xff]
      %v1112 = vld [vmem:[%s3 + $0x328] sm:$0xff]
      %v1113 = vld [vmem:[%s3 + $0x330] sm:$0xff]
      %v1114 = vld [vmem:[%s3 + $0x338] sm:$0xff]
      %v1115 = vld [vmem:[%s3 + $0x340] sm:$0xff]
      %v1116 = vld [vmem:[%s3 + $0x348] sm:$0xff]
      %v1117 = vld [vmem:[%s3 + $0x350] sm:$0xff]
      %v1118 = vld [vmem:[%s3 + $0x358] sm:$0xff]
      %v1119 = vld [vmem:[%s3 + $0x360] sm:$0xff]
      %v1120 = vld [vmem:[%s3 + $0x368] sm:$0xff]
      %v1121 = vld [vmem:[%s3 + $0x370] sm:$0xff]
      %v1122 = vld [vmem:[%s3 + $0x378] sm:$0xff]
      %v1123 = vld [vmem:[%s3 + $0x380] sm:$0xff]
      %v1124 = vld [vmem:[%s3 + $0x388] sm:$0xff]
      %v1125 = vld [vmem:[%s3 + $0x390] sm:$0xff]
      %v1126 = vld [vmem:[%s3 + $0x398] sm:$0xff]
      %v1127 = vld [vmem:[%s3 + $0x3a0] sm:$0xff]
      %v1128 = vld [vmem:[%s3 + $0x3a8] sm:$0xff]
      %v1129 = vld [vmem:[%s3 + $0x3b0] sm:$0xff]
      %v1130 = vld [vmem:[%s3 + $0x3b8] sm:$0xff]
      %v1131 = vld [vmem:[%s3 + $0x3c0] sm:$0xff]
      %v1132 = vld [vmem:[%s3 + $0x3c8] sm:$0xff]
      %v1133 = vld [vmem:[%s3 + $0x3d0] sm:$0xff]
      %v1134 = vld [vmem:[%s3 + $0x3d8] sm:$0xff]
      %v1135 = vld [vmem:[%s3 + $0x3e0] sm:$0xff]
      %v1136 = vld [vmem:[%s3 + $0x3e8] sm:$0xff]
      %v1137 = vld [vmem:[%s3 + $0x3f0] sm:$0xff]
      %v1138 = vld [vmem:[%s3 + $0x3f8] sm:$0xff]
      %v1139 = vld [vmem:[%s3 + $0x400] sm:$0xff]
      %v1140 = vld [vmem:[%s3 + $0x408] sm:$0xff]
      %v1141 = vld [vmem:[%s3 + $0x410] sm:$0xff]
      %v1142 = vld [vmem:[%s3 + $0x418] sm:$0xff]
      %v1143 = vld [vmem:[%s3 + $0x420] sm:$0xff]
      %v1144 = vld [vmem:[%s3 + $0x428] sm:$0xff]
      %v1145 = vld [vmem:[%s3 + $0x430] sm:$0xff]
      %v1146 = vld [vmem:[%s3 + $0x438] sm:$0xff]
      %v1147 = vld [vmem:[%s3 + $0x440] sm:$0xff]
      %v1148 = vld [vmem:[%s3 + $0x448] sm:$0xff]
      %v1149 = vld [vmem:[%s3 + $0x450] sm:$0xff]
      %v1150 = vld [vmem:[%s3 + $0x458] sm:$0xff]
      %v1151 = vld [vmem:[%s3 + $0x460] sm:$0xff]
      %v1152 = vld [vmem:[%s3 + $0x468] sm:$0xff]
      %v1153 = vld [vmem:[%s3 + $0x470] sm:$0xff]
      %v1154 = vld [vmem:[%s3 + $0x478] sm:$0xff]
      %v1155 = vld [vmem:[%s3 + $0x480] sm:$0xff]
      %v1156 = vld [vmem:[%s3 + $0x488] sm:$0xff]
      %v1157 = vld [vmem:[%s3 + $0x490] sm:$0xff]
      %v1158 = vld [vmem:[%s3 + $0x498] sm:$0xff]
      %v1159 = vld [vmem:[%s3 + $0x4a0] sm:$0xff]
      %v1160 = vld [vmem:[%s3 + $0x4a8] sm:$0xff]
      %v1161 = vld [vmem:[%s3 + $0x4b0] sm:$0xff]
      %v1162 = vld [vmem:[%s3 + $0x4b8] sm:$0xff]
      %v1163 = vld [vmem:[%s3 + $0x4c0] sm:$0xff]
      %v1164 = vld [vmem:[%s3 + $0x4c8] sm:$0xff]
      %v1165 = vld [vmem:[%s3 + $0x4d0] sm:$0xff]
      %v1166 = vld [vmem:[%s3 + $0x4d8] sm:$0xff]
      %v1167 = vld [vmem:[%s3 + $0x4e0] sm:$0xff]
      %v1168 = vld [vmem:[%s3 + $0x4e8] sm:$0xff]
      %v1169 = vld [vmem:[%s3 + $0x4f0] sm:$0xff]
      %v1170 = vld [vmem:[%s3 + $0x4f8] sm:$0xff]
      %v1171 = vld [vmem:[%s3 + $0x500] sm:$0xff]
      %v1172 = vld [vmem:[%s3 + $0x508] sm:$0xff]
      %v1173 = vld [vmem:[%s3 + $0x510] sm:$0xff]
      %v1174 = vld [vmem:[%s3 + $0x518] sm:$0xff]
      %v1175 = vld [vmem:[%s3 + $0x520] sm:$0xff]
      %v1176 = vld [vmem:[%s3 + $0x528] sm:$0xff]
      %v1177 = vld [vmem:[%s3 + $0x530] sm:$0xff]
      %v1178 = vld [vmem:[%s3 + $0x538] sm:$0xff]
      %v1179 = vld [vmem:[%s3 + $0x540] sm:$0xff]
      %v1180 = vld [vmem:[%s3 + $0x548] sm:$0xff]
      %v1181 = vld [vmem:[%s3 + $0x550] sm:$0xff]
      %v1182 = vld [vmem:[%s3 + $0x558] sm:$0xff]
      %v1183 = vld [vmem:[%s3 + $0x560] sm:$0xff]
      %v1184 = vld [vmem:[%s3 + $0x568] sm:$0xff]
      %v1185 = vld [vmem:[%s3 + $0x570] sm:$0xff]
      %v1186 = vld [vmem:[%s3 + $0x578] sm:$0xff]
      %v1187 = vld [vmem:[%s3 + $0x580] sm:$0xff]
      %v1188 = vld [vmem:[%s3 + $0x588] sm:$0xff]
      %v1189 = vld [vmem:[%s3 + $0x590] sm:$0xff]
      %v1190 = vld [vmem:[%s3 + $0x598] sm:$0xff]
      %v1191 = vld [vmem:[%s3 + $0x5a0] sm:$0xff]
      %v1192 = vld [vmem:[%s3 + $0x5a8] sm:$0xff]
      %v1193 = vld [vmem:[%s3 + $0x5b0] sm:$0xff]
      %v1194 = vld [vmem:[%s3 + $0x5b8] sm:$0xff]
      %v1195 = vld [vmem:[%s3 + $0x5c0] sm:$0xff]
      %v1196 = vld [vmem:[%s3 + $0x5c8] sm:$0xff]
      %v1197 = vld [vmem:[%s3 + $0x5d0] sm:$0xff]
      %v1198 = vld [vmem:[%s3 + $0x5d8] sm:$0xff]
      %v1199 = vld [vmem:[%s3 + $0x5e0] sm:$0xff]
      %v1200 = vld [vmem:[%s3 + $0x5e8] sm:$0xff]
      %v1201 = vld [vmem:[%s3 + $0x5f0] sm:$0xff]
      %v1202 = vld [vmem:[%s3 + $0x5f8] sm:$0xff]
      %v1203 = vld [vmem:[%s3 + $0x600] sm:$0xff]
      %v1204 = vld [vmem:[%s3 + $0x608] sm:$0xff]
      %v1205 = vld [vmem:[%s3 + $0x610] sm:$0xff]
      %v1206 = vld [vmem:[%s3 + $0x618] sm:$0xff]
      %v1207 = vld [vmem:[%s3 + $0x620] sm:$0xff]
      %v1208 = vld [vmem:[%s3 + $0x628] sm:$0xff]
      %v1209 = vld [vmem:[%s3 + $0x630] sm:$0xff]
      %v1210 = vld [vmem:[%s3 + $0x638] sm:$0xff]
      %v1211 = vld [vmem:[%s3 + $0x640] sm:$0xff]
      %v1212 = vld [vmem:[%s3 + $0x648] sm:$0xff]
      %v1213 = vld [vmem:[%s3 + $0x650] sm:$0xff]
      %v1214 = vld [vmem:[%s3 + $0x658] sm:$0xff]
      %v1215 = vld [vmem:[%s3 + $0x660] sm:$0xff]
      %v1216 = vld [vmem:[%s3 + $0x668] sm:$0xff]
      %v1217 = vld [vmem:[%s3 + $0x670] sm:$0xff]
      %v1218 = vld [vmem:[%s3 + $0x678] sm:$0xff]
      %v1219 = vld [vmem:[%s3 + $0x680] sm:$0xff]
      %v1220 = vld [vmem:[%s3 + $0x688] sm:$0xff]
      %v1221 = vld [vmem:[%s3 + $0x690] sm:$0xff]
      %v1222 = vld [vmem:[%s3 + $0x698] sm:$0xff]
      %v1223 = vld [vmem:[%s3 + $0x6a0] sm:$0xff]
      %v1224 = vld [vmem:[%s3 + $0x6a8] sm:$0xff]
      %v1225 = vld [vmem:[%s3 + $0x6b0] sm:$0xff]
      %v1226 = vld [vmem:[%s3 + $0x6b8] sm:$0xff]
      %v1227 = vld [vmem:[%s3 + $0x6c0] sm:$0xff]
      %v1228 = vld [vmem:[%s3 + $0x6c8] sm:$0xff]
      %v1229 = vld [vmem:[%s3 + $0x6d0] sm:$0xff]
      %v1230 = vld [vmem:[%s3 + $0x6d8] sm:$0xff]
      %v1231 = vld [vmem:[%s3 + $0x6e0] sm:$0xff]
      %v1232 = vld [vmem:[%s3 + $0x6e8] sm:$0xff]
      %v1233 = vld [vmem:[%s3 + $0x6f0] sm:$0xff]
      %v1234 = vld [vmem:[%s3 + $0x6f8] sm:$0xff]
      %v1235 = vld [vmem:[%s3 + $0x700] sm:$0xff]
      %v1236 = vld [vmem:[%s3 + $0x708] sm:$0xff]
      %v1237 = vld [vmem:[%s3 + $0x710] sm:$0xff]
      %v1238 = vld [vmem:[%s3 + $0x718] sm:$0xff]
      %v1239 = vld [vmem:[%s3 + $0x720] sm:$0xff]
      %v1240 = vld [vmem:[%s3 + $0x728] sm:$0xff]
      %v1241 = vld [vmem:[%s3 + $0x730] sm:$0xff]
      %v1242 = vld [vmem:[%s3 + $0x738] sm:$0xff]
      %v1243 = vld [vmem:[%s3 + $0x740] sm:$0xff]
      %v1244 = vld [vmem:[%s3 + $0x748] sm:$0xff]
      %v1245 = vld [vmem:[%s3 + $0x750] sm:$0xff]
      %v1246 = vld [vmem:[%s3 + $0x758] sm:$0xff]
      %v1247 = vld [vmem:[%s3 + $0x760] sm:$0xff]
      %v1248 = vld [vmem:[%s3 + $0x768] sm:$0xff]
      %v1249 = vld [vmem:[%s3 + $0x770] sm:$0xff]
      %v1250 = vld [vmem:[%s3 + $0x778] sm:$0xff]
      %v1251 = vld [vmem:[%s3 + $0x780] sm:$0xff]
      %v1252 = vld [vmem:[%s3 + $0x788] sm:$0xff]
      %v1253 = vld [vmem:[%s3 + $0x790] sm:$0xff]
      %v1254 = vld [vmem:[%s3 + $0x798] sm:$0xff]
      %v1255 = vld [vmem:[%s3 + $0x7a0] sm:$0xff]
      %v1256 = vld [vmem:[%s3 + $0x7a8] sm:$0xff]
      %v1257 = vld [vmem:[%s3 + $0x7b0] sm:$0xff]
      %v1258 = vld [vmem:[%s3 + $0x7b8] sm:$0xff]
      %v1259 = vld [vmem:[%s3 + $0x7c0] sm:$0xff]
      %v1260 = vld [vmem:[%s3 + $0x7c8] sm:$0xff]
      %v1261 = vld [vmem:[%s3 + $0x7d0] sm:$0xff]
      %v1262 = vld [vmem:[%s3 + $0x7d8] sm:$0xff]
      %v1263 = vld [vmem:[%s3 + $0x7e0] sm:$0xff]
      %v1264 = vld [vmem:[%s3 + $0x7e8] sm:$0xff]
      %v1265 = vld [vmem:[%s3 + $0x7f0] sm:$0xff]
      %v1266 = vld [vmem:[%s3 + $0x7f8] sm:$0xff]
      %v1267 = vld [vmem:[%s4] sm:$0x1]
      %v1269 = vlaneseq
      %v1270 = vshrl.u32 %v1269, 7
      %v1271 = vsub.s32 0, %v1270
      %v1272 = vrot.slane %v1267, %v1271
      %1274 = vmatprep.subr.mxu0 0.0
      %1275 = vmatpush1.msra.mxu0 %v1011
      %1276 = vmatprep.subr.mxu0 0.0
      %1277 = vmatpush1.msra.mxu0 %v1012
      %1278 = vmatprep.subr.mxu0 0.0
      %1279 = vmatpush1.msra.mxu0 %v1013
      %1280 = vmatprep.subr.mxu0 0.0
      %1281 = vmatpush1.msra.mxu0 %v1014
      %1282 = vmatprep.subr.mxu0 0.0
      %1283 = vmatpush1.msra.mxu0 %v1015
      %1284 = vmatprep.subr.mxu0 0.0
      %1285 = vmatpush1.msra.mxu0 %v1016
      %1286 = vmatprep.subr.mxu0 0.0
      %1287 = vmatpush1.msra.mxu0 %v1017
      %1288 = vmatprep.subr.mxu0 0.0
      %1289 = vmatpush1.msra.mxu0 %v1018
      %1290 = vmatprep.subr.mxu0 0.0
      %1291 = vmatpush1.msra.mxu0 %v1019
      %1292 = vmatprep.subr.mxu0 0.0
      %1293 = vmatpush1.msra.mxu0 %v1020
      %1294 = vmatprep.subr.mxu0 0.0
      %1295 = vmatpush1.msra.mxu0 %v1021
      %1296 = vmatprep.subr.mxu0 0.0
      %1297 = vmatpush1.msra.mxu0 %v1022
      %1298 = vmatprep.subr.mxu0 0.0
      %1299 = vmatpush1.msra.mxu0 %v1023
      %1300 = vmatprep.subr.mxu0 0.0
      %1301 = vmatpush1.msra.mxu0 %v1024
      %1302 = vmatprep.subr.mxu0 0.0
      %1303 = vmatpush1.msra.mxu0 %v1025
      %1304 = vmatprep.subr.mxu0 0.0
      %1305 = vmatpush1.msra.mxu0 %v1026
      %1306 = vmatprep.subr.mxu0 0.0
      %1307 = vmatpush1.msra.mxu0 %v1027
      %1308 = vmatprep.subr.mxu0 0.0
      %1309 = vmatpush1.msra.mxu0 %v1028
      %1310 = vmatprep.subr.mxu0 0.0
      %1311 = vmatpush1.msra.mxu0 %v1029
      %1312 = vmatprep.subr.mxu0 0.0
      %1313 = vmatpush1.msra.mxu0 %v1030
      %1314 = vmatprep.subr.mxu0 0.0
      %1315 = vmatpush1.msra.mxu0 %v1031
      %1316 = vmatprep.subr.mxu0 0.0
      %1317 = vmatpush1.msra.mxu0 %v1032
      %1318 = vmatprep.subr.mxu0 0.0
      %1319 = vmatpush1.msra.mxu0 %v1033
      %1320 = vmatprep.subr.mxu0 0.0
      %1321 = vmatpush1.msra.mxu0 %v1034
      %1322 = vmatprep.subr.mxu0 0.0
      %1323 = vmatpush1.msra.mxu0 %v1035
      %1324 = vmatprep.subr.mxu0 0.0
      %1325 = vmatpush1.msra.mxu0 %v1036
      %1326 = vmatprep.subr.mxu0 0.0
      %1327 = vmatpush1.msra.mxu0 %v1037
      %1328 = vmatprep.subr.mxu0 0.0
      %1329 = vmatpush1.msra.mxu0 %v1038
      %1330 = vmatprep.subr.mxu0 0.0
      %1331 = vmatpush1.msra.mxu0 %v1039
      %1332 = vmatprep.subr.mxu0 0.0
      %1333 = vmatpush1.msra.mxu0 %v1040
      %1334 = vmatprep.subr.mxu0 0.0
      %1335 = vmatpush1.msra.mxu0 %v1041
      %1336 = vmatprep.subr.mxu0 0.0
      %1337 = vmatpush1.msra.mxu0 %v1042
      %1338 = vmatprep.mubr.f32.mxu0 %v996
      %1339 = vmatmul.mubr.f32.gmra.mrb[0].mxu0 %v995
      %v1340 = vpop.f32.mrb[0].mxu0
      %v1341 = vadd.f32 %v1272, %v1340
      %v1342 = vpop.f32.mrb[0].mxu0
      %1343 = vdwg.mxu0
      %1344 = vmatprep.subr.mxu0 0.0
      %1345 = vmatpush1.msra.mxu0 %v1043
      %1346 = vmatprep.subr.mxu0 0.0
      %1347 = vmatpush1.msra.mxu0 %v1044
      %1348 = vmatprep.subr.mxu0 0.0
      %1349 = vmatpush1.msra.mxu0 %v1045
      %1350 = vmatprep.subr.mxu0 0.0
      %1351 = vmatpush1.msra.mxu0 %v1046
      %1352 = vmatprep.subr.mxu0 0.0
      %1353 = vmatpush1.msra.mxu0 %v1047
      %1354 = vmatprep.subr.mxu0 0.0
      %1355 = vmatpush1.msra.mxu0 %v1048
      %1356 = vmatprep.subr.mxu0 0.0
      %1357 = vmatpush1.msra.mxu0 %v1049
      %1358 = vmatprep.subr.mxu0 0.0
      %1359 = vmatpush1.msra.mxu0 %v1050
      %1360 = vmatprep.subr.mxu0 0.0
      %1361 = vmatpush1.msra.mxu0 %v1051
      %1362 = vmatprep.subr.mxu0 0.0
      %1363 = vmatpush1.msra.mxu0 %v1052
      %1364 = vmatprep.subr.mxu0 0.0
      %1365 = vmatpush1.msra.mxu0 %v1053
      %1366 = vmatprep.subr.mxu0 0.0
      %1367 = vmatpush1.msra.mxu0 %v1054
      %1368 = vmatprep.subr.mxu0 0.0
      %1369 = vmatpush1.msra.mxu0 %v1055
      %1370 = vmatprep.subr.mxu0 0.0
      %1371 = vmatpush1.msra.mxu0 %v1056
      %1372 = vmatprep.subr.mxu0 0.0
      %1373 = vmatpush1.msra.mxu0 %v1057
      %1374 = vmatprep.subr.mxu0 0.0
      %1375 = vmatpush1.msra.mxu0 %v1058
      %1376 = vmatprep.subr.mxu0 0.0
      %1377 = vmatpush1.msra.mxu0 %v1059
      %1378 = vmatprep.subr.mxu0 0.0
      %1379 = vmatpush1.msra.mxu0 %v1060
      %1380 = vmatprep.subr.mxu0 0.0
      %1381 = vmatpush1.msra.mxu0 %v1061
      %1382 = vmatprep.subr.mxu0 0.0
      %1383 = vmatpush1.msra.mxu0 %v1062
      %1384 = vmatprep.subr.mxu0 0.0
      %1385 = vmatpush1.msra.mxu0 %v1063
      %1386 = vmatprep.subr.mxu0 0.0
      %1387 = vmatpush1.msra.mxu0 %v1064
      %1388 = vmatprep.subr.mxu0 0.0
      %1389 = vmatpush1.msra.mxu0 %v1065
      %1390 = vmatprep.subr.mxu0 0.0
      %1391 = vmatpush1.msra.mxu0 %v1066
      %1392 = vmatprep.subr.mxu0 0.0
      %1393 = vmatpush1.msra.mxu0 %v1067
      %1394 = vmatprep.subr.mxu0 0.0
      %1395 = vmatpush1.msra.mxu0 %v1068
      %1396 = vmatprep.subr.mxu0 0.0
      %1397 = vmatpush1.msra.mxu0 %v1069
      %1398 = vmatprep.subr.mxu0 0.0
      %1399 = vmatpush1.msra.mxu0 %v1070
      %1400 = vmatprep.subr.mxu0 0.0
      %1401 = vmatpush1.msra.mxu0 %v1071
      %1402 = vmatprep.subr.mxu0 0.0
      %1403 = vmatpush1.msra.mxu0 %v1072
      %1404 = vmatprep.subr.mxu0 0.0
      %1405 = vmatpush1.msra.mxu0 %v1073
      %1406 = vmatprep.subr.mxu0 0.0
      %1407 = vmatpush1.msra.mxu0 %v1074
      %1408 = vmatprep.mubr.f32.mxu0 %v998
      %1409 = vmatmul.mubr.f32.gmra.mrb[0].mxu0 %v997
      %v1410 = vpop.f32.mrb[0].mxu0
      %v1411 = vadd.f32 %v1341, %v1410
      %v1412 = vpop.f32.mrb[0].mxu0
      %1413 = vdwg.mxu0
      %1414 = vmatprep.subr.mxu0 0.0
      %1415 = vmatpush1.msra.mxu0 %v1075
      %1416 = vmatprep.subr.mxu0 0.0
      %1417 = vmatpush1.msra.mxu0 %v1076
      %1418 = vmatprep.subr.mxu0 0.0
      %1419 = vmatpush1.msra.mxu0 %v1077
      %1420 = vmatprep.subr.mxu0 0.0
      %1421 = vmatpush1.msra.mxu0 %v1078
      %1422 = vmatprep.subr.mxu0 0.0
      %1423 = vmatpush1.msra.mxu0 %v1079
      %1424 = vmatprep.subr.mxu0 0.0
      %1425 = vmatpush1.msra.mxu0 %v1080
      %1426 = vmatprep.subr.mxu0 0.0
      %1427 = vmatpush1.msra.mxu0 %v1081
      %1428 = vmatprep.subr.mxu0 0.0
      %1429 = vmatpush1.msra.mxu0 %v1082
      %1430 = vmatprep.subr.mxu0 0.0
      %1431 = vmatpush1.msra.mxu0 %v1083
      %1432 = vmatprep.subr.mxu0 0.0
      %1433 = vmatpush1.msra.mxu0 %v1084
      %1434 = vmatprep.subr.mxu0 0.0
      %1435 = vmatpush1.msra.mxu0 %v1085
      %1436 = vmatprep.subr.mxu0 0.0
      %1437 = vmatpush1.msra.mxu0 %v1086
      %1438 = vmatprep.subr.mxu0 0.0
      %1439 = vmatpush1.msra.mxu0 %v1087
      %1440 = vmatprep.subr.mxu0 0.0
      %1441 = vmatpush1.msra.mxu0 %v1088
      %1442 = vmatprep.subr.mxu0 0.0
      %1443 = vmatpush1.msra.mxu0 %v1089
      %1444 = vmatprep.subr.mxu0 0.0
      %1445 = vmatpush1.msra.mxu0 %v1090
      %1446 = vmatprep.subr.mxu0 0.0
      %1447 = vmatpush1.msra.mxu0 %v1091
      %1448 = vmatprep.subr.mxu0 0.0
      %1449 = vmatpush1.msra.mxu0 %v1092
      %1450 = vmatprep.subr.mxu0 0.0
      %1451 = vmatpush1.msra.mxu0 %v1093
      %1452 = vmatprep.subr.mxu0 0.0
      %1453 = vmatpush1.msra.mxu0 %v1094
      %1454 = vmatprep.subr.mxu0 0.0
      %1455 = vmatpush1.msra.mxu0 %v1095
      %1456 = vmatprep.subr.mxu0 0.0
      %1457 = vmatpush1.msra.mxu0 %v1096
      %1458 = vmatprep.subr.mxu0 0.0
      %1459 = vmatpush1.msra.mxu0 %v1097
      %1460 = vmatprep.subr.mxu0 0.0
      %1461 = vmatpush1.msra.mxu0 %v1098
      %1462 = vmatprep.subr.mxu0 0.0
      %1463 = vmatpush1.msra.mxu0 %v1099
      %1464 = vmatprep.subr.mxu0 0.0
      %1465 = vmatpush1.msra.mxu0 %v1100
      %1466 = vmatprep.subr.mxu0 0.0
      %1467 = vmatpush1.msra.mxu0 %v1101
      %1468 = vmatprep.subr.mxu0 0.0
      %1469 = vmatpush1.msra.mxu0 %v1102
      %1470 = vmatprep.subr.mxu0 0.0
      %1471 = vmatpush1.msra.mxu0 %v1103
      %1472 = vmatprep.subr.mxu0 0.0
      %1473 = vmatpush1.msra.mxu0 %v1104
      %1474 = vmatprep.subr.mxu0 0.0
      %1475 = vmatpush1.msra.mxu0 %v1105
      %1476 = vmatprep.subr.mxu0 0.0
      %1477 = vmatpush1.msra.mxu0 %v1106
      %1478 = vmatprep.mubr.f32.mxu0 %v1000
      %1479 = vmatmul.mubr.f32.gmra.mrb[0].mxu0 %v999
      %v1480 = vpop.f32.mrb[0].mxu0
      %v1481 = vadd.f32 %v1411, %v1480
      %v1482 = vpop.f32.mrb[0].mxu0
      %1483 = vdwg.mxu0
      %1484 = vmatprep.subr.mxu0 0.0
      %1485 = vmatpush1.msra.mxu0 %v1107
      %1486 = vmatprep.subr.mxu0 0.0
      %1487 = vmatpush1.msra.mxu0 %v1108
      %1488 = vmatprep.subr.mxu0 0.0
      %1489 = vmatpush1.msra.mxu0 %v1109
      %1490 = vmatprep.subr.mxu0 0.0
      %1491 = vmatpush1.msra.mxu0 %v1110
      %1492 = vmatprep.subr.mxu0 0.0
      %1493 = vmatpush1.msra.mxu0 %v1111
      %1494 = vmatprep.subr.mxu0 0.0
      %1495 = vmatpush1.msra.mxu0 %v1112
      %1496 = vmatprep.subr.mxu0 0.0
      %1497 = vmatpush1.msra.mxu0 %v1113
      %1498 = vmatprep.subr.mxu0 0.0
      %1499 = vmatpush1.msra.mxu0 %v1114
      %1500 = vmatprep.subr.mxu0 0.0
      %1501 = vmatpush1.msra.mxu0 %v1115
      %1502 = vmatprep.subr.mxu0 0.0
      %1503 = vmatpush1.msra.mxu0 %v1116
      %1504 = vmatprep.subr.mxu0 0.0
      %1505 = vmatpush1.msra.mxu0 %v1117
      %1506 = vmatprep.subr.mxu0 0.0
      %1507 = vmatpush1.msra.mxu0 %v1118
      %1508 = vmatprep.subr.mxu0 0.0
      %1509 = vmatpush1.msra.mxu0 %v1119
      %1510 = vmatprep.subr.mxu0 0.0
      %1511 = vmatpush1.msra.mxu0 %v1120
      %1512 = vmatprep.subr.mxu0 0.0
      %1513 = vmatpush1.msra.mxu0 %v1121
      %1514 = vmatprep.subr.mxu0 0.0
      %1515 = vmatpush1.msra.mxu0 %v1122
      %1516 = vmatprep.subr.mxu0 0.0
      %1517 = vmatpush1.msra.mxu0 %v1123
      %1518 = vmatprep.subr.mxu0 0.0
      %1519 = vmatpush1.msra.mxu0 %v1124
      %1520 = vmatprep.subr.mxu0 0.0
      %1521 = vmatpush1.msra.mxu0 %v1125
      %1522 = vmatprep.subr.mxu0 0.0
      %1523 = vmatpush1.msra.mxu0 %v1126
      %1524 = vmatprep.subr.mxu0 0.0
      %1525 = vmatpush1.msra.mxu0 %v1127
      %1526 = vmatprep.subr.mxu0 0.0
      %1527 = vmatpush1.msra.mxu0 %v1128
      %1528 = vmatprep.subr.mxu0 0.0
      %1529 = vmatpush1.msra.mxu0 %v1129
      %1530 = vmatprep.subr.mxu0 0.0
      %1531 = vmatpush1.msra.mxu0 %v1130
      %1532 = vmatprep.subr.mxu0 0.0
      %1533 = vmatpush1.msra.mxu0 %v1131
      %1534 = vmatprep.subr.mxu0 0.0
      %1535 = vmatpush1.msra.mxu0 %v1132
      %1536 = vmatprep.subr.mxu0 0.0
      %1537 = vmatpush1.msra.mxu0 %v1133
      %1538 = vmatprep.subr.mxu0 0.0
      %1539 = vmatpush1.msra.mxu0 %v1134
      %1540 = vmatprep.subr.mxu0 0.0
      %1541 = vmatpush1.msra.mxu0 %v1135
      %1542 = vmatprep.subr.mxu0 0.0
      %1543 = vmatpush1.msra.mxu0 %v1136
      %1544 = vmatprep.subr.mxu0 0.0
      %1545 = vmatpush1.msra.mxu0 %v1137
      %1546 = vmatprep.subr.mxu0 0.0
      %1547 = vmatpush1.msra.mxu0 %v1138
      %1548 = vmatprep.mubr.f32.mxu0 %v1002
      %1549 = vmatmul.mubr.f32.gmra.mrb[0].mxu0 %v1001
      %v1550 = vpop.f32.mrb[0].mxu0
      %v1551 = vadd.f32 %v1481, %v1550
      %v1552 = vpop.f32.mrb[0].mxu0
      %1553 = vdwg.mxu0
      %1554 = vmatprep.subr.mxu0 0.0
      %1555 = vmatpush1.msra.mxu0 %v1139
      %1556 = vmatprep.subr.mxu0 0.0
      %1557 = vmatpush1.msra.mxu0 %v1140
      %1558 = vmatprep.subr.mxu0 0.0
      %1559 = vmatpush1.msra.mxu0 %v1141
      %1560 = vmatprep.subr.mxu0 0.0
      %1561 = vmatpush1.msra.mxu0 %v1142
      %1562 = vmatprep.subr.mxu0 0.0
      %1563 = vmatpush1.msra.mxu0 %v1143
      %1564 = vmatprep.subr.mxu0 0.0
      %1565 = vmatpush1.msra.mxu0 %v1144
      %1566 = vmatprep.subr.mxu0 0.0
      %1567 = vmatpush1.msra.mxu0 %v1145
      %1568 = vmatprep.subr.mxu0 0.0
      %1569 = vmatpush1.msra.mxu0 %v1146
      %1570 = vmatprep.subr.mxu0 0.0
      %1571 = vmatpush1.msra.mxu0 %v1147
      %1572 = vmatprep.subr.mxu0 0.0
      %1573 = vmatpush1.msra.mxu0 %v1148
      %1574 = vmatprep.subr.mxu0 0.0
      %1575 = vmatpush1.msra.mxu0 %v1149
      %1576 = vmatprep.subr.mxu0 0.0
      %1577 = vmatpush1.msra.mxu0 %v1150
      %1578 = vmatprep.subr.mxu0 0.0
      %1579 = vmatpush1.msra.mxu0 %v1151
      %1580 = vmatprep.subr.mxu0 0.0
      %1581 = vmatpush1.msra.mxu0 %v1152
      %1582 = vmatprep.subr.mxu0 0.0
      %1583 = vmatpush1.msra.mxu0 %v1153
      %1584 = vmatprep.subr.mxu0 0.0
      %1585 = vmatpush1.msra.mxu0 %v1154
      %1586 = vmatprep.subr.mxu0 0.0
      %1587 = vmatpush1.msra.mxu0 %v1155
      %1588 = vmatprep.subr.mxu0 0.0
      %1589 = vmatpush1.msra.mxu0 %v1156
      %1590 = vmatprep.subr.mxu0 0.0
      %1591 = vmatpush1.msra.mxu0 %v1157
      %1592 = vmatprep.subr.mxu0 0.0
      %1593 = vmatpush1.msra.mxu0 %v1158
      %1594 = vmatprep.subr.mxu0 0.0
      %1595 = vmatpush1.msra.mxu0 %v1159
      %1596 = vmatprep.subr.mxu0 0.0
      %1597 = vmatpush1.msra.mxu0 %v1160
      %1598 = vmatprep.subr.mxu0 0.0
      %1599 = vmatpush1.msra.mxu0 %v1161
      %1600 = vmatprep.subr.mxu0 0.0
      %1601 = vmatpush1.msra.mxu0 %v1162
      %1602 = vmatprep.subr.mxu0 0.0
      %1603 = vmatpush1.msra.mxu0 %v1163
      %1604 = vmatprep.subr.mxu0 0.0
      %1605 = vmatpush1.msra.mxu0 %v1164
      %1606 = vmatprep.subr.mxu0 0.0
      %1607 = vmatpush1.msra.mxu0 %v1165
      %1608 = vmatprep.subr.mxu0 0.0
      %1609 = vmatpush1.msra.mxu0 %v1166
      %1610 = vmatprep.subr.mxu0 0.0
      %1611 = vmatpush1.msra.mxu0 %v1167
      %1612 = vmatprep.subr.mxu0 0.0
      %1613 = vmatpush1.msra.mxu0 %v1168
      %1614 = vmatprep.subr.mxu0 0.0
      %1615 = vmatpush1.msra.mxu0 %v1169
      %1616 = vmatprep.subr.mxu0 0.0
      %1617 = vmatpush1.msra.mxu0 %v1170
      %1618 = vmatprep.mubr.f32.mxu0 %v1004
      %1619 = vmatmul.mubr.f32.gmra.mrb[0].mxu0 %v1003
      %v1620 = vpop.f32.mrb[0].mxu0
      %v1621 = vadd.f32 %v1551, %v1620
      %v1622 = vpop.f32.mrb[0].mxu0
      %1623 = vdwg.mxu0
      %1624 = vmatprep.subr.mxu0 0.0
      %1625 = vmatpush1.msra.mxu0 %v1171
      %1626 = vmatprep.subr.mxu0 0.0
      %1627 = vmatpush1.msra.mxu0 %v1172
      %1628 = vmatprep.subr.mxu0 0.0
      %1629 = vmatpush1.msra.mxu0 %v1173
      %1630 = vmatprep.subr.mxu0 0.0
      %1631 = vmatpush1.msra.mxu0 %v1174
      %1632 = vmatprep.subr.mxu0 0.0
      %1633 = vmatpush1.msra.mxu0 %v1175
      %1634 = vmatprep.subr.mxu0 0.0
      %1635 = vmatpush1.msra.mxu0 %v1176
      %1636 = vmatprep.subr.mxu0 0.0
      %1637 = vmatpush1.msra.mxu0 %v1177
      %1638 = vmatprep.subr.mxu0 0.0
      %1639 = vmatpush1.msra.mxu0 %v1178
      %1640 = vmatprep.subr.mxu0 0.0
      %1641 = vmatpush1.msra.mxu0 %v1179
      %1642 = vmatprep.subr.mxu0 0.0
      %1643 = vmatpush1.msra.mxu0 %v1180
      %1644 = vmatprep.subr.mxu0 0.0
      %1645 = vmatpush1.msra.mxu0 %v1181
      %1646 = vmatprep.subr.mxu0 0.0
      %1647 = vmatpush1.msra.mxu0 %v1182
      %1648 = vmatprep.subr.mxu0 0.0
      %1649 = vmatpush1.msra.mxu0 %v1183
      %1650 = vmatprep.subr.mxu0 0.0
      %1651 = vmatpush1.msra.mxu0 %v1184
      %1652 = vmatprep.subr.mxu0 0.0
      %1653 = vmatpush1.msra.mxu0 %v1185
      %1654 = vmatprep.subr.mxu0 0.0
      %1655 = vmatpush1.msra.mxu0 %v1186
      %1656 = vmatprep.subr.mxu0 0.0
      %1657 = vmatpush1.msra.mxu0 %v1187
      %1658 = vmatprep.subr.mxu0 0.0
      %1659 = vmatpush1.msra.mxu0 %v1188
      %1660 = vmatprep.subr.mxu0 0.0
      %1661 = vmatpush1.msra.mxu0 %v1189
      %1662 = vmatprep.subr.mxu0 0.0
      %1663 = vmatpush1.msra.mxu0 %v1190
      %1664 = vmatprep.subr.mxu0 0.0
      %1665 = vmatpush1.msra.mxu0 %v1191
      %1666 = vmatprep.subr.mxu0 0.0
      %1667 = vmatpush1.msra.mxu0 %v1192
      %1668 = vmatprep.subr.mxu0 0.0
      %1669 = vmatpush1.msra.mxu0 %v1193
      %1670 = vmatprep.subr.mxu0 0.0
      %1671 = vmatpush1.msra.mxu0 %v1194
      %1672 = vmatprep.subr.mxu0 0.0
      %1673 = vmatpush1.msra.mxu0 %v1195
      %1674 = vmatprep.subr.mxu0 0.0
      %1675 = vmatpush1.msra.mxu0 %v1196
      %1676 = vmatprep.subr.mxu0 0.0
      %1677 = vmatpush1.msra.mxu0 %v1197
      %1678 = vmatprep.subr.mxu0 0.0
      %1679 = vmatpush1.msra.mxu0 %v1198
      %1680 = vmatprep.subr.mxu0 0.0
      %1681 = vmatpush1.msra.mxu0 %v1199
      %1682 = vmatprep.subr.mxu0 0.0
      %1683 = vmatpush1.msra.mxu0 %v1200
      %1684 = vmatprep.subr.mxu0 0.0
      %1685 = vmatpush1.msra.mxu0 %v1201
      %1686 = vmatprep.subr.mxu0 0.0
      %1687 = vmatpush1.msra.mxu0 %v1202
      %1688 = vmatprep.mubr.f32.mxu0 %v1006
      %1689 = vmatmul.mubr.f32.gmra.mrb[0].mxu0 %v1005
      %v1690 = vpop.f32.mrb[0].mxu0
      %v1691 = vadd.f32 %v1621, %v1690
      %v1692 = vpop.f32.mrb[0].mxu0
      %1693 = vdwg.mxu0
      %1694 = vmatprep.subr.mxu0 0.0
      %1695 = vmatpush1.msra.mxu0 %v1203
      %1696 = vmatprep.subr.mxu0 0.0
      %1697 = vmatpush1.msra.mxu0 %v1204
      %1698 = vmatprep.subr.mxu0 0.0
      %1699 = vmatpush1.msra.mxu0 %v1205
      %1700 = vmatprep.subr.mxu0 0.0
      %1701 = vmatpush1.msra.mxu0 %v1206
      %1702 = vmatprep.subr.mxu0 0.0
      %1703 = vmatpush1.msra.mxu0 %v1207
      %1704 = vmatprep.subr.mxu0 0.0
      %1705 = vmatpush1.msra.mxu0 %v1208
      %1706 = vmatprep.subr.mxu0 0.0
      %1707 = vmatpush1.msra.mxu0 %v1209
      %1708 = vmatprep.subr.mxu0 0.0
      %1709 = vmatpush1.msra.mxu0 %v1210
      %1710 = vmatprep.subr.mxu0 0.0
      %1711 = vmatpush1.msra.mxu0 %v1211
      %1712 = vmatprep.subr.mxu0 0.0
      %1713 = vmatpush1.msra.mxu0 %v1212
      %1714 = vmatprep.subr.mxu0 0.0
      %1715 = vmatpush1.msra.mxu0 %v1213
      %1716 = vmatprep.subr.mxu0 0.0
      %1717 = vmatpush1.msra.mxu0 %v1214
      %1718 = vmatprep.subr.mxu0 0.0
      %1719 = vmatpush1.msra.mxu0 %v1215
      %1720 = vmatprep.subr.mxu0 0.0
      %1721 = vmatpush1.msra.mxu0 %v1216
      %1722 = vmatprep.subr.mxu0 0.0
      %1723 = vmatpush1.msra.mxu0 %v1217
      %1724 = vmatprep.subr.mxu0 0.0
      %1725 = vmatpush1.msra.mxu0 %v1218
      %1726 = vmatprep.subr.mxu0 0.0
      %1727 = vmatpush1.msra.mxu0 %v1219
      %1728 = vmatprep.subr.mxu0 0.0
      %1729 = vmatpush1.msra.mxu0 %v1220
      %1730 = vmatprep.subr.mxu0 0.0
      %1731 = vmatpush1.msra.mxu0 %v1221
      %1732 = vmatprep.subr.mxu0 0.0
      %1733 = vmatpush1.msra.mxu0 %v1222
      %1734 = vmatprep.subr.mxu0 0.0
      %1735 = vmatpush1.msra.mxu0 %v1223
      %1736 = vmatprep.subr.mxu0 0.0
      %1737 = vmatpush1.msra.mxu0 %v1224
      %1738 = vmatprep.subr.mxu0 0.0
      %1739 = vmatpush1.msra.mxu0 %v1225
      %1740 = vmatprep.subr.mxu0 0.0
      %1741 = vmatpush1.msra.mxu0 %v1226
      %1742 = vmatprep.subr.mxu0 0.0
      %1743 = vmatpush1.msra.mxu0 %v1227
      %1744 = vmatprep.subr.mxu0 0.0
      %1745 = vmatpush1.msra.mxu0 %v1228
      %1746 = vmatprep.subr.mxu0 0.0
      %1747 = vmatpush1.msra.mxu0 %v1229
      %1748 = vmatprep.subr.mxu0 0.0
      %1749 = vmatpush1.msra.mxu0 %v1230
      %1750 = vmatprep.subr.mxu0 0.0
      %1751 = vmatpush1.msra.mxu0 %v1231
      %1752 = vmatprep.subr.mxu0 0.0
      %1753 = vmatpush1.msra.mxu0 %v1232
      %1754 = vmatprep.subr.mxu0 0.0
      %1755 = vmatpush1.msra.mxu0 %v1233
      %1756 = vmatprep.subr.mxu0 0.0
      %1757 = vmatpush1.msra.mxu0 %v1234
      %1758 = vmatprep.mubr.f32.mxu0 %v1008
      %1759 = vmatmul.mubr.f32.gmra.mrb[0].mxu0 %v1007
      %v1760 = vpop.f32.mrb[0].mxu0
      %v1761 = vadd.f32 %v1691, %v1760
      %v1762 = vpop.f32.mrb[0].mxu0
      %1763 = vdwg.mxu0
      %1764 = vmatprep.subr.mxu0 0.0
      %1765 = vmatpush1.msra.mxu0 %v1235
      %1766 = vmatprep.subr.mxu0 0.0
      %1767 = vmatpush1.msra.mxu0 %v1236
      %1768 = vmatprep.subr.mxu0 0.0
      %1769 = vmatpush1.msra.mxu0 %v1237
      %1770 = vmatprep.subr.mxu0 0.0
      %1771 = vmatpush1.msra.mxu0 %v1238
      %1772 = vmatprep.subr.mxu0 0.0
      %1773 = vmatpush1.msra.mxu0 %v1239
      %1774 = vmatprep.subr.mxu0 0.0
      %1775 = vmatpush1.msra.mxu0 %v1240
      %1776 = vmatprep.subr.mxu0 0.0
      %1777 = vmatpush1.msra.mxu0 %v1241
      %1778 = vmatprep.subr.mxu0 0.0
      %1779 = vmatpush1.msra.mxu0 %v1242
      %1780 = vmatprep.subr.mxu0 0.0
      %1781 = vmatpush1.msra.mxu0 %v1243
      %1782 = vmatprep.subr.mxu0 0.0
      %1783 = vmatpush1.msra.mxu0 %v1244
      %1784 = vmatprep.subr.mxu0 0.0
      %1785 = vmatpush1.msra.mxu0 %v1245
      %1786 = vmatprep.subr.mxu0 0.0
      %1787 = vmatpush1.msra.mxu0 %v1246
      %1788 = vmatprep.subr.mxu0 0.0
      %1789 = vmatpush1.msra.mxu0 %v1247
      %1790 = vmatprep.subr.mxu0 0.0
      %1791 = vmatpush1.msra.mxu0 %v1248
      %1792 = vmatprep.subr.mxu0 0.0
      %1793 = vmatpush1.msra.mxu0 %v1249
      %1794 = vmatprep.subr.mxu0 0.0
      %1795 = vmatpush1.msra.mxu0 %v1250
      %1796 = vmatprep.subr.mxu0 0.0
      %1797 = vmatpush1.msra.mxu0 %v1251
      %1798 = vmatprep.subr.mxu0 0.0
      %1799 = vmatpush1.msra.mxu0 %v1252
      %1800 = vmatprep.subr.mxu0 0.0
      %1801 = vmatpush1.msra.mxu0 %v1253
      %1802 = vmatprep.subr.mxu0 0.0
      %1803 = vmatpush1.msra.mxu0 %v1254
      %1804 = vmatprep.subr.mxu0 0.0
      %1805 = vmatpush1.msra.mxu0 %v1255
      %1806 = vmatprep.subr.mxu0 0.0
      %1807 = vmatpush1.msra.mxu0 %v1256
      %1808 = vmatprep.subr.mxu0 0.0
      %1809 = vmatpush1.msra.mxu0 %v1257
      %1810 = vmatprep.subr.mxu0 0.0
      %1811 = vmatpush1.msra.mxu0 %v1258
      %1812 = vmatprep.subr.mxu0 0.0
      %1813 = vmatpush1.msra.mxu0 %v1259
      %1814 = vmatprep.subr.mxu0 0.0
      %1815 = vmatpush1.msra.mxu0 %v1260
      %1816 = vmatprep.subr.mxu0 0.0
      %1817 = vmatpush1.msra.mxu0 %v1261
      %1818 = vmatprep.subr.mxu0 0.0
      %1819 = vmatpush1.msra.mxu0 %v1262
      %1820 = vmatprep.subr.mxu0 0.0
      %1821 = vmatpush1.msra.mxu0 %v1263
      %1822 = vmatprep.subr.mxu0 0.0
      %1823 = vmatpush1.msra.mxu0 %v1264
      %1824 = vmatprep.subr.mxu0 0.0
      %1825 = vmatpush1.msra.mxu0 %v1265
      %1826 = vmatprep.subr.mxu0 0.0
      %1827 = vmatpush1.msra.mxu0 %v1266
      %1828 = vmatprep.mubr.f32.mxu0 %v1010
      %1829 = vmatmul.mubr.f32.gmra.mrb[0].mxu0 %v1009
      %v1830 = vpop.f32.mrb[0].mxu0
      %v1831 = vadd.f32 %v1761, %v1830
      %v1832 = vpop.f32.mrb[0].mxu0
      %1833 = vdwg.mxu0
      %v1834 = vadd.f32 %v274, %v1831
      %v1835 = vsel %vm423, %v1834, 0.0
      %1836 = vadd.xlane.f32.xlu0 %v1835
      %v1837 = vpop.xlane.xlu0 %1836
      %v1838 = vrcp.pop 32.0
      %v1839 = vmul.f32 %v1837, %v1838
      %v1840 = vsub.f32 %v1834, %v1839
      %v1841 = vmul.f32 %v1840, %v1840
      %v1842 = vsel %vm423, %v1841, 0.0
      %1843 = vadd.xlane.f32.xlu0 %v1842
      %v1844 = vpop.xlane.xlu0 %1843
      %v1845 = vmul.f32 %v1844, %v1838
      %v1846 = vadd.f32 %v1845, 1e-05
      %v1847 = vrsqrt.pop %v1846
      %v1848 = vmul.f32 %v1840, %v1847
      %v1849 = vld [vmem:[%s5] sm:$0x1]
      %v1851 = vlaneseq
      %v1852 = vshrl.u32 %v1851, 7
      %v1853 = vsub.s32 0, %v1852
      %v1854 = vrot.slane %v1849, %v1853
      %v1856 = vmul.f32 %v1848, %v1854
      %v1857 = vld [vmem:[%s6] sm:$0x1]
      %v1859 = vlaneseq
      %v1860 = vshrl.u32 %v1859, 7
      %v1861 = vsub.s32 0, %v1860
      %v1862 = vrot.slane %v1857, %v1861
      %v1864 = vadd.f32 %v1856, %v1862
      %1865 = vst.msk [vmem:[%s273] sm:$0xff] %vm423, %v1864
      %p1866 = scmp.lt.s32.totalorder %s18, 1
      %s1867 = scalar_select %p1866, %s18, 1
      %s1868 = smul.addr %s1867, 8
      %s1869 = scalar_lea.vmem %s7, %s1868
      // Predicated region
      $region49: #{transformer_decoder_forward.6} parent=47 // pred_check
        %p1870 = pneg %p188
      $region50: #{transformer_decoder_forward.6} parent=47 // pred_check_branch
        %1872 = sbr.rel (%p1870) target = $region52
      $region51: #{transformer_decoder_forward.6} parent=47 // pred_region
        _
      $region52: #{transformer_decoder_forward.6} parent=47 // pred_fallthru
        _
    $region48: #{transformer_decoder_forward.6} parent=5 // pred_fallthru
      _
    %p1873 = scmp.le.s32.totalorder 2, %s13
    // Predicated region
    $region53: #{transformer_decoder_forward.6} parent=5 // pred_check
      %p1874 = pneg %p1873
    $region54: #{transformer_decoder_forward.6} parent=5 // pred_check_branch
      %1876 = sbr.rel (%p1874) target = $region56
    $region55: #{transformer_decoder_forward.6} parent=5 // pred_region
      %s1877 = ssub.s32 %s13, 2
      // Predicated region
      $region57: #{transformer_decoder_forward.6} parent=55 // pred_check
        %p1878 = pneg %p194
      $region58: #{transformer_decoder_forward.6} parent=55 // pred_check_branch
        %1880 = sbr.rel (%p1878) target = $region60
      $region59: #{transformer_decoder_forward.6} parent=55 // pred_region
        %p1881 = scmp.lt.s32.totalorder %s19, 1
        %s1882 = scalar_select %p1881, %s19, 1
        %s1883 = smul.addr %s1882, 8
        %s1884 = scalar_lea.vmem %s7, %s1883
      $region60: #{transformer_decoder_forward.6} parent=55 // pred_fallthru
        _
    $region56: #{transformer_decoder_forward.6} parent=5 // pred_fallthru
      _
  $region6: #{transformer_decoder_forward.6} parent=0 // loop_footer
    %s17 = sadd.s32 1, %s13
  $region7: #{transformer_decoder_forward.6} parent=0 // loop_footer_branch
    %12 = sbr.rel target = $region3
  $region8: #{transformer_decoder_forward.6} parent=0 // loop_exit
    _

// kernel: transformer_decoder_forward.5
$region0: #{transformer_decoder_forward.5}
  #allocation0 [shape = 'u32[]', space=smem, size = 0x4, offset = 0x4, fixed_abs, tag = 'smem constant byte address 0x4 - core index']
  #allocation1 [shape = 'u32[144,128]{1,0:T(1,128)}', space=vmem, size = 0x12000, scoped, tag = 'internal scratch']
  %s0 = inlined_call_operand.vmem [shape: f32[2,8,32], index: 0, kind: input, shape index: {}]
  %s1 = inlined_call_operand.vmem [shape: f32[2,8,32], index: 1, kind: input, shape index: {}]
  %s2 = inlined_call_operand.vmem [shape: f32[32,32], index: 2, kind: input, shape index: {}]
  %s3 = inlined_call_operand.vmem [shape: f32[1,32], index: 3, kind: input, shape index: {}]
  %s4 = inlined_call_operand.vmem [shape: f32[32,64], index: 4, kind: input, shape index: {}]
  %s5 = inlined_call_operand.hbm [shape: f32[1,64], index: 5, kind: input, shape index: {}]
  %s6 = inlined_call_operand.vmem [shape: f32[32,32], index: 6, kind: input, shape index: {}]
  %s7 = inlined_call_operand.vmem [shape: f32[1,32], index: 7, kind: input, shape index: {}]
  %s8 = inlined_call_operand.hbm [shape: f32[1,32], index: 8, kind: input, shape index: {}]
  %s9 = inlined_call_operand.hbm [shape: f32[1,32], index: 9, kind: input, shape index: {}]
  %s10 = inlined_call_operand.hbm [shape: f32[32,32], index: 10, kind: input, shape index: {}]
  %s11 = inlined_call_operand.hbm [shape: f32[1,32], index: 11, kind: input, shape index: {}]
  %s12 = inlined_call_operand.hbm [shape: f32[32,64], index: 12, kind: input, shape index: {}]
  %s13 = inlined_call_operand.hbm [shape: f32[1,64], index: 13, kind: input, shape index: {}]
  %s14 = inlined_call_operand.hbm [shape: f32[32,32], index: 14, kind: input, shape index: {}]
  %s15 = inlined_call_operand.hbm [shape: f32[1,32], index: 15, kind: input, shape index: {}]
  %s16 = inlined_call_operand.hbm [shape: f32[1,32], index: 16, kind: input, shape index: {}]
  %s17 = inlined_call_operand.hbm [shape: f32[1,32], index: 17, kind: input, shape index: {}]
  %s18 = inlined_call_operand.vmem [shape: f32[2,8,32], index: 18, kind: output, shape index: {}]
  %s19 = sld [smem:[#allocation0]]
  $region149: #{transformer_decoder_forward.5} parent=0
    _
  %s21 = ssub.s32 1, %s19
  %s22 = scalar_select 0, %s21, %s19
  $region1: #{transformer_decoder_forward.5} parent=0
    #allocation2 [shape = 'u8[512]{0}', space=vmem, size = 0x400, scoped, tag = 'input window, operand 5, single buffered']
    #allocation3 [shape = 's32[2]{0}', space=sflag, size = 0x8, scoped, tag = 'scoped memory for transformer_decoder_forward.5']
    #allocation4 [shape = 'u8[512]{0}', space=vmem, size = 0x400, scoped, tag = 'input window, operand 8, single buffered']
    #allocation5 [shape = 's32[1]{0}', space=sflag, size = 0x4, scoped, tag = 'scoped memory for transformer_decoder_forward.5']
    #allocation6 [shape = 'u8[512]{0}', space=vmem, size = 0x400, scoped, tag = 'input window, operand 9, single buffered']
    #allocation7 [shape = 'u8[16384]{0}', space=vmem, size = 0x4000, scoped, tag = 'input window, operand 10, single buffered']
    #allocation8 [shape = 's32[1]{0}', space=sflag, size = 0x4, scoped, tag = 'scoped memory for transformer_decoder_forward.5']
    #allocation9 [shape = 'u8[512]{0}', space=vmem, size = 0x400, scoped, tag = 'input window, operand 11, single buffered']
    #allocation10 [shape = 'u8[16384]{0}', space=vmem, size = 0x4000, scoped, tag = 'input window, operand 12, single buffered']
    #allocation11 [shape = 's32[1]{0}', space=sflag, size = 0x4, scoped, tag = 'scoped memory for transformer_decoder_forward.5']
    #allocation12 [shape = 'u8[512]{0}', space=vmem, size = 0x400, scoped, tag = 'input window, operand 13, single buffered']
    #allocation13 [shape = 'u8[16384]{0}', space=vmem, size = 0x4000, scoped, tag = 'input window, operand 14, single buffered']
    #allocation14 [shape = 's32[1]{0}', space=sflag, size = 0x4, scoped, tag = 'scoped memory for transformer_decoder_forward.5']
    #allocation15 [shape = 'u8[512]{0}', space=vmem, size = 0x400, scoped, tag = 'input window, operand 15, single buffered']
    #allocation16 [shape = 'u8[512]{0}', space=vmem, size = 0x400, scoped, tag = 'input window, operand 16, single buffered']
    #allocation17 [shape = 's32[1]{0}', space=sflag, size = 0x4, scoped, tag = 'scoped memory for transformer_decoder_forward.5']
    #allocation18 [shape = 'u8[512]{0}', space=vmem, size = 0x400, scoped, tag = 'input window, operand 17, single buffered']
    %23 = vsyncpa [#allocation3], 0
    %24 = vsyncpa [#allocation5], 0
    %25 = vsyncpa [#allocation8], 0
    %26 = vsyncpa [#allocation11], 0
    %27 = vsyncpa [#allocation14], 0
    %28 = vsyncpa [#allocation17], 0
    loop: start=0, step=1, limit=4
    $region2: #{transformer_decoder_forward.5} parent=1 // loop_pre_header
      _
    $region3: #{transformer_decoder_forward.5} parent=1 // loop_header
      %s30 = sphi 0, %s34
      %p31 = scmp.ge.s32.totalorder %s30, 4
      %s40 = sphi 0, %s42
      %s43 = sphi 0, %s40
      %s44 = sphi 0, %s43
      %s60 = sphi 0, %s44
      %s66 = sphi 0, %s68
      %s69 = sphi 0, %s66
      %s70 = sphi 0, %s69
      %s86 = sphi 0, %s70
      %s90 = sphi 0, %s90
      %s92 = sphi 0, %s90
      %s93 = sphi 0, %s92
      %s107 = sphi 0, %s93
      %s111 = sphi 0, %s111
      %s113 = sphi 0, %s111
      %s114 = sphi 0, %s113
      %s128 = sphi 0, %s114
      %s132 = sphi 0, %s132
      %s134 = sphi 0, %s132
      %s135 = sphi 0, %s134
      %s149 = sphi 0, %s135
      %s153 = sphi 0, %s153
      %s155 = sphi 0, %s153
      %s156 = sphi 0, %s155
      %s170 = sphi 0, %s156
      %s174 = sphi 0, %s174
      %s176 = sphi 0, %s174
      %s177 = sphi 0, %s176
      %s191 = sphi 0, %s177
      %s195 = sphi 0, %s195
      %s197 = sphi 0, %s195
      %s198 = sphi 0, %s197
      %s212 = sphi 0, %s198
      %s216 = sphi 0, %s216
      %s218 = sphi 0, %s216
      %s219 = sphi 0, %s218
      %s233 = sphi 0, %s219
      %s237 = sphi 0, %s237
      %s239 = sphi 0, %s237
      %s240 = sphi 0, %s239
      %s254 = sphi 0, %s240
      %s258 = sphi 0, %s258
      %s260 = sphi 0, %s258
      %s261 = sphi 0, %s260
      %s275 = sphi 0, %s261
      %s279 = sphi 0, %s279
      %s281 = sphi 0, %s279
      %s282 = sphi 0, %s281
      %s296 = sphi 0, %s282
      %s300 = sphi 0, %s300
      %s302 = sphi 0, %s300
      %s303 = sphi 0, %s302
      %s317 = sphi 0, %s303
      %s321 = sphi 0, %s321
      %s323 = sphi 0, %s321
      %s324 = sphi 0, %s323
      %s338 = sphi 0, %s324
      %s342 = sphi 0, %s342
      %s344 = sphi 0, %s342
      %s345 = sphi 0, %s344
      %s359 = sphi 0, %s345
      %s363 = sphi 0, %s363
      %s365 = sphi 0, %s363
      %s366 = sphi 0, %s365
      %s380 = sphi 0, %s366
      %s384 = sphi 0, %s384
      %s386 = sphi 0, %s384
      %s387 = sphi 0, %s386
      %s401 = sphi 0, %s387
      %s405 = sphi 0, %s405
      %s407 = sphi 0, %s405
      %s408 = sphi 0, %s407
      %s422 = sphi 0, %s408
      %s428 = sphi 0, %s430
      %s431 = sphi 0, %s428
      %s432 = sphi 0, %s431
      %s448 = sphi 0, %s432
    $region4: #{transformer_decoder_forward.5} parent=1 // loop_header_branch
      %33 = sbr.rel (%p31) target = $region8
    $region5: #{transformer_decoder_forward.5} parent=1 // loop_body
      %s35 = ssub.s32 %s30, 1
      %s36 = ssub.s32 %s30, 2
      %s37 = sadd.s32 %s30, 1
      %s38 = ssub.s32 %s30, %s37
      %p39 = scmp.eq.s32.totalorder %s38, 0
      %s41 = sadd.s32 %s40, 1
      %s42 = scalar_select %p39, %s40, %s41
      %p45 = pneg %p39
      %p46 = scmp.eq.s32.totalorder %s30, 1
      %p47 = por %p45, %p46
      %p48 = scmp.ne.s32.totalorder %s40, %s43
      %p49 = scmp.eq.s32.totalorder %s30, 0
      %p50 = por %p48, %p49
      %p51 = scmp.ne.s32.totalorder %s40, %s43
      %p52 = scmp.eq.s32.totalorder %s35, 1
      %p53 = por %p51, %p52
      %p54 = scmp.ne.s32.totalorder %s43, %s44
      %p55 = scmp.eq.s32.totalorder %s35, 0
      %p56 = por %p54, %p55
      %p57 = scmp.ne.s32.totalorder %s43, %s44
      %p58 = scmp.eq.s32.totalorder %s36, 1
      %p59 = por %p57, %p58
      %p61 = scmp.ne.s32.totalorder %s44, %s60
      %p62 = scmp.eq.s32.totalorder %s36, 0
      %p63 = por %p61, %p62
      %s64 = ssub.s32 %s30, %s37
      %p65 = scmp.eq.s32.totalorder %s64, 0
      %s67 = sadd.s32 %s66, 1
      %s68 = scalar_select %p65, %s66, %s67
      %p71 = pneg %p65
      %p72 = scmp.eq.s32.totalorder %s30, 1
      %p73 = por %p71, %p72
      %p74 = scmp.ne.s32.totalorder %s66, %s69
      %p75 = scmp.eq.s32.totalorder %s30, 0
      %p76 = por %p74, %p75
      %p77 = scmp.ne.s32.totalorder %s66, %s69
      %p78 = scmp.eq.s32.totalorder %s35, 1
      %p79 = por %p77, %p78
      %p80 = scmp.ne.s32.totalorder %s69, %s70
      %p81 = scmp.eq.s32.totalorder %s35, 0
      %p82 = por %p80, %p81
      %p83 = scmp.ne.s32.totalorder %s69, %s70
      %p84 = scmp.eq.s32.totalorder %s36, 1
      %p85 = por %p83, %p84
      %p87 = scmp.ne.s32.totalorder %s70, %s86
      %p88 = scmp.eq.s32.totalorder %s36, 0
      %p89 = por %p87, %p88
      %s91 = sadd.s32 %s90, 1
      %p94 = scmp.eq.s32.totalorder %s30, 1
      %p95 = scmp.ne.s32.totalorder %s90, %s92
      %p96 = scmp.eq.s32.totalorder %s30, 0
      %p97 = por %p95, %p96
      %p98 = scmp.ne.s32.totalorder %s90, %s92
      %p99 = scmp.eq.s32.totalorder %s35, 1
      %p100 = por %p98, %p99
      %p101 = scmp.ne.s32.totalorder %s92, %s93
      %p102 = scmp.eq.s32.totalorder %s35, 0
      %p103 = por %p101, %p102
      %p104 = scmp.ne.s32.totalorder %s92, %s93
      %p105 = scmp.eq.s32.totalorder %s36, 1
      %p106 = por %p104, %p105
      %p108 = scmp.ne.s32.totalorder %s93, %s107
      %p109 = scmp.eq.s32.totalorder %s36, 0
      %p110 = por %p108, %p109
      %s112 = sadd.s32 %s111, 1
      %p115 = scmp.eq.s32.totalorder %s30, 1
      %p116 = scmp.ne.s32.totalorder %s111, %s113
      %p117 = scmp.eq.s32.totalorder %s30, 0
      %p118 = por %p116, %p117
      %p119 = scmp.ne.s32.totalorder %s111, %s113
      %p120 = scmp.eq.s32.totalorder %s35, 1
      %p121 = por %p119, %p120
      %p122 = scmp.ne.s32.totalorder %s113, %s114
      %p123 = scmp.eq.s32.totalorder %s35, 0
      %p124 = por %p122, %p123
      %p125 = scmp.ne.s32.totalorder %s113, %s114
      %p126 = scmp.eq.s32.totalorder %s36, 1
      %p127 = por %p125, %p126
      %p129 = scmp.ne.s32.totalorder %s114, %s128
      %p130 = scmp.eq.s32.totalorder %s36, 0
      %p131 = por %p129, %p130
      %s133 = sadd.s32 %s132, 1
      %p136 = scmp.eq.s32.totalorder %s30, 1
      %p137 = scmp.ne.s32.totalorder %s132, %s134
      %p138 = scmp.eq.s32.totalorder %s30, 0
      %p139 = por %p137, %p138
      %p140 = scmp.ne.s32.totalorder %s132, %s134
      %p141 = scmp.eq.s32.totalorder %s35, 1
      %p142 = por %p140, %p141
      %p143 = scmp.ne.s32.totalorder %s134, %s135
      %p144 = scmp.eq.s32.totalorder %s35, 0
      %p145 = por %p143, %p144
      %p146 = scmp.ne.s32.totalorder %s134, %s135
      %p147 = scmp.eq.s32.totalorder %s36, 1
      %p148 = por %p146, %p147
      %p150 = scmp.ne.s32.totalorder %s135, %s149
      %p151 = scmp.eq.s32.totalorder %s36, 0
      %p152 = por %p150, %p151
      %s154 = sadd.s32 %s153, 1
      %p157 = scmp.eq.s32.totalorder %s30, 1
      %p158 = scmp.ne.s32.totalorder %s153, %s155
      %p159 = scmp.eq.s32.totalorder %s30, 0
      %p160 = por %p158, %p159
      %p161 = scmp.ne.s32.totalorder %s153, %s155
      %p162 = scmp.eq.s32.totalorder %s35, 1
      %p163 = por %p161, %p162
      %p164 = scmp.ne.s32.totalorder %s155, %s156
      %p165 = scmp.eq.s32.totalorder %s35, 0
      %p166 = por %p164, %p165
      %p167 = scmp.ne.s32.totalorder %s155, %s156
      %p168 = scmp.eq.s32.totalorder %s36, 1
      %p169 = por %p167, %p168
      %p171 = scmp.ne.s32.totalorder %s156, %s170
      %p172 = scmp.eq.s32.totalorder %s36, 0
      %p173 = por %p171, %p172
      %s175 = sadd.s32 %s174, 1
      %p178 = scmp.eq.s32.totalorder %s30, 1
      %p179 = scmp.ne.s32.totalorder %s174, %s176
      %p180 = scmp.eq.s32.totalorder %s30, 0
      %p181 = por %p179, %p180
      %p182 = scmp.ne.s32.totalorder %s174, %s176
      %p183 = scmp.eq.s32.totalorder %s35, 1
      %p184 = por %p182, %p183
      %p185 = scmp.ne.s32.totalorder %s176, %s177
      %p186 = scmp.eq.s32.totalorder %s35, 0
      %p187 = por %p185, %p186
      %p188 = scmp.ne.s32.totalorder %s176, %s177
      %p189 = scmp.eq.s32.totalorder %s36, 1
      %p190 = por %p188, %p189
      %p192 = scmp.ne.s32.totalorder %s177, %s191
      %p193 = scmp.eq.s32.totalorder %s36, 0
      %p194 = por %p192, %p193
      %s196 = sadd.s32 %s195, 1
      %p199 = scmp.eq.s32.totalorder %s30, 1
      %p200 = scmp.ne.s32.totalorder %s195, %s197
      %p201 = scmp.eq.s32.totalorder %s30, 0
      %p202 = por %p200, %p201
      %p203 = scmp.ne.s32.totalorder %s195, %s197
      %p204 = scmp.eq.s32.totalorder %s35, 1
      %p205 = por %p203, %p204
      %p206 = scmp.ne.s32.totalorder %s197, %s198
      %p207 = scmp.eq.s32.totalorder %s35, 0
      %p208 = por %p206, %p207
      %p209 = scmp.ne.s32.totalorder %s197, %s198
      %p210 = scmp.eq.s32.totalorder %s36, 1
      %p211 = por %p209, %p210
      %p213 = scmp.ne.s32.totalorder %s198, %s212
      %p214 = scmp.eq.s32.totalorder %s36, 0
      %p215 = por %p213, %p214
      %s217 = sadd.s32 %s216, 1
      %p220 = scmp.eq.s32.totalorder %s30, 1
      %p221 = scmp.ne.s32.totalorder %s216, %s218
      %p222 = scmp.eq.s32.totalorder %s30, 0
      %p223 = por %p221, %p222
      %p224 = scmp.ne.s32.totalorder %s216, %s218
      %p225 = scmp.eq.s32.totalorder %s35, 1
      %p226 = por %p224, %p225
      %p227 = scmp.ne.s32.totalorder %s218, %s219
      %p228 = scmp.eq.s32.totalorder %s35, 0
      %p229 = por %p227, %p228
      %p230 = scmp.ne.s32.totalorder %s218, %s219
      %p231 = scmp.eq.s32.totalorder %s36, 1
      %p232 = por %p230, %p231
      %p234 = scmp.ne.s32.totalorder %s219, %s233
      %p235 = scmp.eq.s32.totalorder %s36, 0
      %p236 = por %p234, %p235
      %s238 = sadd.s32 %s237, 1
      %p241 = scmp.eq.s32.totalorder %s30, 1
      %p242 = scmp.ne.s32.totalorder %s237, %s239
      %p243 = scmp.eq.s32.totalorder %s30, 0
      %p244 = por %p242, %p243
      %p245 = scmp.ne.s32.totalorder %s237, %s239
      %p246 = scmp.eq.s32.totalorder %s35, 1
      %p247 = por %p245, %p246
      %p248 = scmp.ne.s32.totalorder %s239, %s240
      %p249 = scmp.eq.s32.totalorder %s35, 0
      %p250 = por %p248, %p249
      %p251 = scmp.ne.s32.totalorder %s239, %s240
      %p252 = scmp.eq.s32.totalorder %s36, 1
      %p253 = por %p251, %p252
      %p255 = scmp.ne.s32.totalorder %s240, %s254
      %p256 = scmp.eq.s32.totalorder %s36, 0
      %p257 = por %p255, %p256
      %s259 = sadd.s32 %s258, 1
      %p262 = scmp.eq.s32.totalorder %s30, 1
      %p263 = scmp.ne.s32.totalorder %s258, %s260
      %p264 = scmp.eq.s32.totalorder %s30, 0
      %p265 = por %p263, %p264
      %p266 = scmp.ne.s32.totalorder %s258, %s260
      %p267 = scmp.eq.s32.totalorder %s35, 1
      %p268 = por %p266, %p267
      %p269 = scmp.ne.s32.totalorder %s260, %s261
      %p270 = scmp.eq.s32.totalorder %s35, 0
      %p271 = por %p269, %p270
      %p272 = scmp.ne.s32.totalorder %s260, %s261
      %p273 = scmp.eq.s32.totalorder %s36, 1
      %p274 = por %p272, %p273
      %p276 = scmp.ne.s32.totalorder %s261, %s275
      %p277 = scmp.eq.s32.totalorder %s36, 0
      %p278 = por %p276, %p277
      %s280 = sadd.s32 %s279, 1
      %p283 = scmp.eq.s32.totalorder %s30, 1
      %p284 = scmp.ne.s32.totalorder %s279, %s281
      %p285 = scmp.eq.s32.totalorder %s30, 0
      %p286 = por %p284, %p285
      %p287 = scmp.ne.s32.totalorder %s279, %s281
      %p288 = scmp.eq.s32.totalorder %s35, 1
      %p289 = por %p287, %p288
      %p290 = scmp.ne.s32.totalorder %s281, %s282
      %p291 = scmp.eq.s32.totalorder %s35, 0
      %p292 = por %p290, %p291
      %p293 = scmp.ne.s32.totalorder %s281, %s282
      %p294 = scmp.eq.s32.totalorder %s36, 1
      %p295 = por %p293, %p294
      %p297 = scmp.ne.s32.totalorder %s282, %s296
      %p298 = scmp.eq.s32.totalorder %s36, 0
      %p299 = por %p297, %p298
      %s301 = sadd.s32 %s300, 1
      %p304 = scmp.eq.s32.totalorder %s30, 1
      %p305 = scmp.ne.s32.totalorder %s300, %s302
      %p306 = scmp.eq.s32.totalorder %s30, 0
      %p307 = por %p305, %p306
      %p308 = scmp.ne.s32.totalorder %s300, %s302
      %p309 = scmp.eq.s32.totalorder %s35, 1
      %p310 = por %p308, %p309
      %p311 = scmp.ne.s32.totalorder %s302, %s303
      %p312 = scmp.eq.s32.totalorder %s35, 0
      %p313 = por %p311, %p312
      %p314 = scmp.ne.s32.totalorder %s302, %s303
      %p315 = scmp.eq.s32.totalorder %s36, 1
      %p316 = por %p314, %p315
      %p318 = scmp.ne.s32.totalorder %s303, %s317
      %p319 = scmp.eq.s32.totalorder %s36, 0
      %p320 = por %p318, %p319
      %s322 = sadd.s32 %s321, 1
      %p325 = scmp.eq.s32.totalorder %s30, 1
      %p326 = scmp.ne.s32.totalorder %s321, %s323
      %p327 = scmp.eq.s32.totalorder %s30, 0
      %p328 = por %p326, %p327
      %p329 = scmp.ne.s32.totalorder %s321, %s323
      %p330 = scmp.eq.s32.totalorder %s35, 1
      %p331 = por %p329, %p330
      %p332 = scmp.ne.s32.totalorder %s323, %s324
      %p333 = scmp.eq.s32.totalorder %s35, 0
      %p334 = por %p332, %p333
      %p335 = scmp.ne.s32.totalorder %s323, %s324
      %p336 = scmp.eq.s32.totalorder %s36, 1
      %p337 = por %p335, %p336
      %p339 = scmp.ne.s32.totalorder %s324, %s338
      %p340 = scmp.eq.s32.totalorder %s36, 0
      %p341 = por %p339, %p340
      %s343 = sadd.s32 %s342, 1
      %p346 = scmp.eq.s32.totalorder %s30, 1
      %p347 = scmp.ne.s32.totalorder %s342, %s344
      %p348 = scmp.eq.s32.totalorder %s30, 0
      %p349 = por %p347, %p348
      %p350 = scmp.ne.s32.totalorder %s342, %s344
      %p351 = scmp.eq.s32.totalorder %s35, 1
      %p352 = por %p350, %p351
      %p353 = scmp.ne.s32.totalorder %s344, %s345
      %p354 = scmp.eq.s32.totalorder %s35, 0
      %p355 = por %p353, %p354
      %p356 = scmp.ne.s32.totalorder %s344, %s345
      %p357 = scmp.eq.s32.totalorder %s36, 1
      %p358 = por %p356, %p357
      %p360 = scmp.ne.s32.totalorder %s345, %s359
      %p361 = scmp.eq.s32.totalorder %s36, 0
      %p362 = por %p360, %p361
      %s364 = sadd.s32 %s363, 1
      %p367 = scmp.eq.s32.totalorder %s30, 1
      %p368 = scmp.ne.s32.totalorder %s363, %s365
      %p369 = scmp.eq.s32.totalorder %s30, 0
      %p370 = por %p368, %p369
      %p371 = scmp.ne.s32.totalorder %s363, %s365
      %p372 = scmp.eq.s32.totalorder %s35, 1
      %p373 = por %p371, %p372
      %p374 = scmp.ne.s32.totalorder %s365, %s366
      %p375 = scmp.eq.s32.totalorder %s35, 0
      %p376 = por %p374, %p375
      %p377 = scmp.ne.s32.totalorder %s365, %s366
      %p378 = scmp.eq.s32.totalorder %s36, 1
      %p379 = por %p377, %p378
      %p381 = scmp.ne.s32.totalorder %s366, %s380
      %p382 = scmp.eq.s32.totalorder %s36, 0
      %p383 = por %p381, %p382
      %s385 = sadd.s32 %s384, 1
      %p388 = scmp.eq.s32.totalorder %s30, 1
      %p389 = scmp.ne.s32.totalorder %s384, %s386
      %p390 = scmp.eq.s32.totalorder %s30, 0
      %p391 = por %p389, %p390
      %p392 = scmp.ne.s32.totalorder %s384, %s386
      %p393 = scmp.eq.s32.totalorder %s35, 1
      %p394 = por %p392, %p393
      %p395 = scmp.ne.s32.totalorder %s386, %s387
      %p396 = scmp.eq.s32.totalorder %s35, 0
      %p397 = por %p395, %p396
      %p398 = scmp.ne.s32.totalorder %s386, %s387
      %p399 = scmp.eq.s32.totalorder %s36, 1
      %p400 = por %p398, %p399
      %p402 = scmp.ne.s32.totalorder %s387, %s401
      %p403 = scmp.eq.s32.totalorder %s36, 0
      %p404 = por %p402, %p403
      %s406 = sadd.s32 %s405, 1
      %p409 = scmp.eq.s32.totalorder %s30, 1
      %p410 = scmp.ne.s32.totalorder %s405, %s407
      %p411 = scmp.eq.s32.totalorder %s30, 0
      %p412 = por %p410, %p411
      %p413 = scmp.ne.s32.totalorder %s405, %s407
      %p414 = scmp.eq.s32.totalorder %s35, 1
      %p415 = por %p413, %p414
      %p416 = scmp.ne.s32.totalorder %s407, %s408
      %p417 = scmp.eq.s32.totalorder %s35, 0
      %p418 = por %p416, %p417
      %p419 = scmp.ne.s32.totalorder %s407, %s408
      %p420 = scmp.eq.s32.totalorder %s36, 1
      %p421 = por %p419, %p420
      %p423 = scmp.ne.s32.totalorder %s408, %s422
      %p424 = scmp.eq.s32.totalorder %s36, 0
      %p425 = por %p423, %p424
      %s426 = ssub.s32 %s30, %s37
      %p427 = scmp.eq.s32.totalorder %s426, 0
      %s429 = sadd.s32 %s428, 1
      %s430 = scalar_select %p427, %s428, %s429
      %p433 = pneg %p427
      %p434 = scmp.eq.s32.totalorder %s30, 1
      %p435 = por %p433, %p434
      %p436 = scmp.ne.s32.totalorder %s428, %s431
      %p437 = scmp.eq.s32.totalorder %s30, 0
      %p438 = por %p436, %p437
      %p439 = scmp.ne.s32.totalorder %s428, %s431
      %p440 = scmp.eq.s32.totalorder %s35, 1
      %p441 = por %p439, %p440
      %p442 = scmp.ne.s32.totalorder %s431, %s432
      %p443 = scmp.eq.s32.totalorder %s35, 0
      %p444 = por %p442, %p443
      %p445 = scmp.ne.s32.totalorder %s431, %s432
      %p446 = scmp.eq.s32.totalorder %s36, 1
      %p447 = por %p445, %p446
      %p449 = scmp.ne.s32.totalorder %s432, %s448
      %p450 = scmp.eq.s32.totalorder %s36, 0
      %p451 = por %p449, %p450
      %p452 = scmp.le.s32.totalorder 1, %s30
      %p453 = scmp.lt.s32.totalorder %s30, 3
      %p454 = pnand %p452, %p453
      %p455 = pneg %p454
      // Predicated region
      $region9: #{transformer_decoder_forward.5} parent=5 // pred_check
        _
      $region10: #{transformer_decoder_forward.5} parent=5 // pred_check_branch
        %457 = sbr.rel (%p454) target = $region12
      $region11: #{transformer_decoder_forward.5} parent=5 // pred_region
        %s458 = ssub.s32 %s30, 1
        // Predicated region
        $region13: #{transformer_decoder_forward.5} parent=11 // pred_check
          %p459 = pneg %p103
        $region14: #{transformer_decoder_forward.5} parent=11 // pred_check_branch
          %461 = sbr.rel (%p459) target = $region16
        $region15: #{transformer_decoder_forward.5} parent=11 // pred_region
          _
        $region16: #{transformer_decoder_forward.5} parent=11 // pred_fallthru
          _
        // Predicated region
        $region17: #{transformer_decoder_forward.5} parent=11 // pred_check
          %p462 = pneg %p124
        $region18: #{transformer_decoder_forward.5} parent=11 // pred_check_branch
          %464 = sbr.rel (%p462) target = $region20
        $region19: #{transformer_decoder_forward.5} parent=11 // pred_region
          _
        $region20: #{transformer_decoder_forward.5} parent=11 // pred_fallthru
          _
        // Predicated region
        $region21: #{transformer_decoder_forward.5} parent=11 // pred_check
          %p465 = pneg %p145
        $region22: #{transformer_decoder_forward.5} parent=11 // pred_check_branch
          %467 = sbr.rel (%p465) target = $region24
        $region23: #{transformer_decoder_forward.5} parent=11 // pred_region
          _
        $region24: #{transformer_decoder_forward.5} parent=11 // pred_fallthru
          _
        // Predicated region
        $region25: #{transformer_decoder_forward.5} parent=11 // pred_check
          %p468 = pneg %p166
        $region26: #{transformer_decoder_forward.5} parent=11 // pred_check_branch
          %470 = sbr.rel (%p468) target = $region28
        $region27: #{transformer_decoder_forward.5} parent=11 // pred_region
          %s472 = ssub.s32 16, 16
          %473 = vsyncadd [#allocation3], %s472
          %s475 = sshll.u32 [#allocation2], 4
          %s476 = int_to_ptr.vmem [resolvable:$true] %s475
          %478 = dma.hbm_to_vmem [thread:$0]  %s5, 16, %s476, [#allocation3]
        $region28: #{transformer_decoder_forward.5} parent=11 // pred_fallthru
          _
        // Predicated region
        $region29: #{transformer_decoder_forward.5} parent=11 // pred_check
          %p479 = pneg %p187
        $region30: #{transformer_decoder_forward.5} parent=11 // pred_check_branch
          %481 = sbr.rel (%p479) target = $region32
        $region31: #{transformer_decoder_forward.5} parent=11 // pred_region
          _
        $region32: #{transformer_decoder_forward.5} parent=11 // pred_fallthru
          _
        // Predicated region
        $region33: #{transformer_decoder_forward.5} parent=11 // pred_check
          %p482 = pneg %p208
        $region34: #{transformer_decoder_forward.5} parent=11 // pred_check_branch
          %484 = sbr.rel (%p482) target = $region36
        $region35: #{transformer_decoder_forward.5} parent=11 // pred_region
          _
        $region36: #{transformer_decoder_forward.5} parent=11 // pred_fallthru
          _
        // Predicated region
        $region37: #{transformer_decoder_forward.5} parent=11 // pred_check
          %p485 = pneg %p229
        $region38: #{transformer_decoder_forward.5} parent=11 // pred_check_branch
          %487 = sbr.rel (%p485) target = $region40
        $region39: #{transformer_decoder_forward.5} parent=11 // pred_region
          %s489 = ssub.s32 16, 16
          %490 = vsyncadd [#allocation5], %s489
          %s492 = sshll.u32 [#allocation4], 4
          %s493 = int_to_ptr.vmem [resolvable:$true] %s492
          %495 = dma.hbm_to_vmem [thread:$0]  %s8, 16, %s493, [#allocation5]
        $region40: #{transformer_decoder_forward.5} parent=11 // pred_fallthru
          _
        // Predicated region
        $region41: #{transformer_decoder_forward.5} parent=11 // pred_check
          %p496 = pneg %p250
        $region42: #{transformer_decoder_forward.5} parent=11 // pred_check_branch
          %498 = sbr.rel (%p496) target = $region44
        $region43: #{transformer_decoder_forward.5} parent=11 // pred_region
          %s500 = ssub.s32 16, 16
          %501 = vsyncadd [#allocation5], %s500
          %s503 = sshll.u32 [#allocation6], 4
          %s504 = int_to_ptr.vmem [resolvable:$true] %s503
          %506 = dma.hbm_to_vmem [thread:$0]  %s9, 16, %s504, [#allocation5]
        $region44: #{transformer_decoder_forward.5} parent=11 // pred_fallthru
          _
        // Predicated region
        $region45: #{transformer_decoder_forward.5} parent=11 // pred_check
          %p507 = pneg %p271
        $region46: #{transformer_decoder_forward.5} parent=11 // pred_check_branch
          %509 = sbr.rel (%p507) target = $region48
        $region47: #{transformer_decoder_forward.5} parent=11 // pred_region
          %s511 = ssub.s32 512, 512
          %512 = vsyncadd [#allocation8], %s511
          %s513 = sshll.u32 [#allocation7], 4
          %s514 = int_to_ptr.vmem [resolvable:$true] %s513
          %519 = dma.hbm_to_vmem [thread:$0]  %s10, 512, %s514, [#allocation8], 128, 128, 8
        $region48: #{transformer_decoder_forward.5} parent=11 // pred_fallthru
          _
        // Predicated region
        $region49: #{transformer_decoder_forward.5} parent=11 // pred_check
          %p520 = pneg %p292
        $region50: #{transformer_decoder_forward.5} parent=11 // pred_check_branch
          %522 = sbr.rel (%p520) target = $region52
        $region51: #{transformer_decoder_forward.5} parent=11 // pred_region
          %s524 = ssub.s32 16, 16
          %525 = vsyncadd [#allocation8], %s524
          %s527 = sshll.u32 [#allocation9], 4
          %s528 = int_to_ptr.vmem [resolvable:$true] %s527
          %530 = dma.hbm_to_vmem [thread:$0]  %s11, 16, %s528, [#allocation8]
        $region52: #{transformer_decoder_forward.5} parent=11 // pred_fallthru
          _
        // Predicated region
        $region53: #{transformer_decoder_forward.5} parent=11 // pred_check
          %p531 = pneg %p313
        $region54: #{transformer_decoder_forward.5} parent=11 // pred_check_branch
          %533 = sbr.rel (%p531) target = $region56
        $region55: #{transformer_decoder_forward.5} parent=11 // pred_region
          %s535 = ssub.s32 512, 512
          %536 = vsyncadd [#allocation11], %s535
          %s537 = sshll.u32 [#allocation10], 4
          %s538 = int_to_ptr.vmem [resolvable:$true] %s537
          %543 = dma.hbm_to_vmem [thread:$0]  %s12, 512, %s538, [#allocation11], 128, 128, 8
        $region56: #{transformer_decoder_forward.5} parent=11 // pred_fallthru
          _
        // Predicated region
        $region57: #{transformer_decoder_forward.5} parent=11 // pred_check
          %p544 = pneg %p334
        $region58: #{transformer_decoder_forward.5} parent=11 // pred_check_branch
          %546 = sbr.rel (%p544) target = $region60
        $region59: #{transformer_decoder_forward.5} parent=11 // pred_region
          %s548 = ssub.s32 16, 16
          %549 = vsyncadd [#allocation11], %s548
          %s551 = sshll.u32 [#allocation12], 4
          %s552 = int_to_ptr.vmem [resolvable:$true] %s551
          %554 = dma.hbm_to_vmem [thread:$0]  %s13, 16, %s552, [#allocation11]
        $region60: #{transformer_decoder_forward.5} parent=11 // pred_fallthru
          _
        // Predicated region
        $region61: #{transformer_decoder_forward.5} parent=11 // pred_check
          %p555 = pneg %p355
        $region62: #{transformer_decoder_forward.5} parent=11 // pred_check_branch
          %557 = sbr.rel (%p555) target = $region64
        $region63: #{transformer_decoder_forward.5} parent=11 // pred_region
          %s559 = ssub.s32 512, 512
          %560 = vsyncadd [#allocation14], %s559
          %s561 = sshll.u32 [#allocation13], 4
          %s562 = int_to_ptr.vmem [resolvable:$true] %s561
          %567 = dma.hbm_to_vmem [thread:$0]  %s14, 512, %s562, [#allocation14], 128, 128, 8
        $region64: #{transformer_decoder_forward.5} parent=11 // pred_fallthru
          _
        // Predicated region
        $region65: #{transformer_decoder_forward.5} parent=11 // pred_check
          %p568 = pneg %p376
        $region66: #{transformer_decoder_forward.5} parent=11 // pred_check_branch
          %570 = sbr.rel (%p568) target = $region68
        $region67: #{transformer_decoder_forward.5} parent=11 // pred_region
          %s572 = ssub.s32 16, 16
          %573 = vsyncadd [#allocation14], %s572
          %s575 = sshll.u32 [#allocation15], 4
          %s576 = int_to_ptr.vmem [resolvable:$true] %s575
          %578 = dma.hbm_to_vmem [thread:$0]  %s15, 16, %s576, [#allocation14]
        $region68: #{transformer_decoder_forward.5} parent=11 // pred_fallthru
          _
        // Predicated region
        $region69: #{transformer_decoder_forward.5} parent=11 // pred_check
          %p579 = pneg %p397
        $region70: #{transformer_decoder_forward.5} parent=11 // pred_check_branch
          %581 = sbr.rel (%p579) target = $region72
        $region71: #{transformer_decoder_forward.5} parent=11 // pred_region
          %s583 = ssub.s32 16, 16
          %584 = vsyncadd [#allocation17], %s583
          %s586 = sshll.u32 [#allocation16], 4
          %s587 = int_to_ptr.vmem [resolvable:$true] %s586
          %589 = dma.hbm_to_vmem [thread:$0]  %s16, 16, %s587, [#allocation17]
        $region72: #{transformer_decoder_forward.5} parent=11 // pred_fallthru
          _
        // Predicated region
        $region73: #{transformer_decoder_forward.5} parent=11 // pred_check
          %p590 = pneg %p418
        $region74: #{transformer_decoder_forward.5} parent=11 // pred_check_branch
          %592 = sbr.rel (%p590) target = $region76
        $region75: #{transformer_decoder_forward.5} parent=11 // pred_region
          %s594 = ssub.s32 16, 16
          %595 = vsyncadd [#allocation17], %s594
          %s597 = sshll.u32 [#allocation18], 4
          %s598 = int_to_ptr.vmem [resolvable:$true] %s597
          %600 = dma.hbm_to_vmem [thread:$0]  %s17, 16, %s598, [#allocation17]
        $region76: #{transformer_decoder_forward.5} parent=11 // pred_fallthru
          _
      $region12: #{transformer_decoder_forward.5} parent=5 // pred_fallthru
        _
      %p601 = scmp.lt.s32.totalorder %s30, 2
      // Predicated region
      $region77: #{transformer_decoder_forward.5} parent=5 // pred_check
        %p602 = pneg %p601
      $region78: #{transformer_decoder_forward.5} parent=5 // pred_check_branch
        %604 = sbr.rel (%p602) target = $region80
      $region79: #{transformer_decoder_forward.5} parent=5 // pred_region
        // Predicated region
        $region81: #{transformer_decoder_forward.5} parent=79 // pred_check
          %p605 = pneg %p50
        $region82: #{transformer_decoder_forward.5} parent=79 // pred_check_branch
          %607 = sbr.rel (%p605) target = $region84
        $region83: #{transformer_decoder_forward.5} parent=79 // pred_region
          %p608 = scmp.lt.s32.totalorder %s30, 1
          %s609 = scalar_select %p608, %s30, 1
          %s610 = smul.addr %s609, 8
          %s611 = scalar_lea.vmem %s0, %s610
        $region84: #{transformer_decoder_forward.5} parent=79 // pred_fallthru
          _
        // Predicated region
        $region85: #{transformer_decoder_forward.5} parent=79 // pred_check
          %p612 = pneg %p76
        $region86: #{transformer_decoder_forward.5} parent=79 // pred_check_branch
          %614 = sbr.rel (%p612) target = $region88
        $region87: #{transformer_decoder_forward.5} parent=79 // pred_region
          %p615 = scmp.lt.s32.totalorder %s30, 1
          %s616 = scalar_select %p615, %s30, 1
          %s617 = smul.addr %s616, 8
          %s618 = scalar_lea.vmem %s1, %s617
        $region88: #{transformer_decoder_forward.5} parent=79 // pred_fallthru
          _
      $region80: #{transformer_decoder_forward.5} parent=5 // pred_fallthru
        _
      %p619 = scmp.le.s32.totalorder 1, %s30
      %p620 = scmp.lt.s32.totalorder %s30, 3
      %p621 = pnand %p619, %p620
      %p622 = pneg %p621
      // Predicated region
      $region89: #{transformer_decoder_forward.5} parent=5 // pred_check
        _
      $region90: #{transformer_decoder_forward.5} parent=5 // pred_check_branch
        %624 = sbr.rel (%p621) target = $region92
      $region91: #{transformer_decoder_forward.5} parent=5 // pred_region
        %s625 = ssub.s32 %s30, 1
        // Predicated region
        $region93: #{transformer_decoder_forward.5} parent=91 // pred_check
          %p626 = pneg %p166
        $region94: #{transformer_decoder_forward.5} parent=91 // pred_check_branch
          %628 = sbr.rel (%p626) target = $region96
        $region95: #{transformer_decoder_forward.5} parent=91 // pred_region
          %629 = dma.done [#allocation3], 16
        $region96: #{transformer_decoder_forward.5} parent=91 // pred_fallthru
          _
        // Predicated region
        $region97: #{transformer_decoder_forward.5} parent=91 // pred_check
          %p630 = pneg %p229
        $region98: #{transformer_decoder_forward.5} parent=91 // pred_check_branch
          %632 = sbr.rel (%p630) target = $region100
        $region99: #{transformer_decoder_forward.5} parent=91 // pred_region
          %633 = dma.done [#allocation5], 16
        $region100: #{transformer_decoder_forward.5} parent=91 // pred_fallthru
          _
        // Predicated region
        $region101: #{transformer_decoder_forward.5} parent=91 // pred_check
          %p634 = pneg %p250
        $region102: #{transformer_decoder_forward.5} parent=91 // pred_check_branch
          %636 = sbr.rel (%p634) target = $region104
        $region103: #{transformer_decoder_forward.5} parent=91 // pred_region
          %637 = dma.done [#allocation5], 16
        $region104: #{transformer_decoder_forward.5} parent=91 // pred_fallthru
          _
        // Predicated region
        $region105: #{transformer_decoder_forward.5} parent=91 // pred_check
          %p638 = pneg %p271
        $region106: #{transformer_decoder_forward.5} parent=91 // pred_check_branch
          %640 = sbr.rel (%p638) target = $region108
        $region107: #{transformer_decoder_forward.5} parent=91 // pred_region
          %641 = dma.done [#allocation8], 512
        $region108: #{transformer_decoder_forward.5} parent=91 // pred_fallthru
          _
        // Predicated region
        $region109: #{transformer_decoder_forward.5} parent=91 // pred_check
          %p642 = pneg %p292
        $region110: #{transformer_decoder_forward.5} parent=91 // pred_check_branch
          %644 = sbr.rel (%p642) target = $region112
        $region111: #{transformer_decoder_forward.5} parent=91 // pred_region
          %645 = dma.done [#allocation8], 16
        $region112: #{transformer_decoder_forward.5} parent=91 // pred_fallthru
          _
        // Predicated region
        $region113: #{transformer_decoder_forward.5} parent=91 // pred_check
          %p646 = pneg %p313
        $region114: #{transformer_decoder_forward.5} parent=91 // pred_check_branch
          %648 = sbr.rel (%p646) target = $region116
        $region115: #{transformer_decoder_forward.5} parent=91 // pred_region
          %649 = dma.done [#allocation11], 512
        $region116: #{transformer_decoder_forward.5} parent=91 // pred_fallthru
          _
        // Predicated region
        $region117: #{transformer_decoder_forward.5} parent=91 // pred_check
          %p650 = pneg %p334
        $region118: #{transformer_decoder_forward.5} parent=91 // pred_check_branch
          %652 = sbr.rel (%p650) target = $region120
        $region119: #{transformer_decoder_forward.5} parent=91 // pred_region
          %653 = dma.done [#allocation11], 16
        $region120: #{transformer_decoder_forward.5} parent=91 // pred_fallthru
          _
        // Predicated region
        $region121: #{transformer_decoder_forward.5} parent=91 // pred_check
          %p654 = pneg %p355
        $region122: #{transformer_decoder_forward.5} parent=91 // pred_check_branch
          %656 = sbr.rel (%p654) target = $region124
        $region123: #{transformer_decoder_forward.5} parent=91 // pred_region
          %657 = dma.done [#allocation14], 512
        $region124: #{transformer_decoder_forward.5} parent=91 // pred_fallthru
          _
        // Predicated region
        $region125: #{transformer_decoder_forward.5} parent=91 // pred_check
          %p658 = pneg %p376
        $region126: #{transformer_decoder_forward.5} parent=91 // pred_check_branch
          %660 = sbr.rel (%p658) target = $region128
        $region127: #{transformer_decoder_forward.5} parent=91 // pred_region
          %661 = dma.done [#allocation14], 16
        $region128: #{transformer_decoder_forward.5} parent=91 // pred_fallthru
          _
        // Predicated region
        $region129: #{transformer_decoder_forward.5} parent=91 // pred_check
          %p662 = pneg %p397
        $region130: #{transformer_decoder_forward.5} parent=91 // pred_check_branch
          %664 = sbr.rel (%p662) target = $region132
        $region131: #{transformer_decoder_forward.5} parent=91 // pred_region
          %665 = dma.done [#allocation17], 16
        $region132: #{transformer_decoder_forward.5} parent=91 // pred_fallthru
          _
        // Predicated region
        $region133: #{transformer_decoder_forward.5} parent=91 // pred_check
          %p666 = pneg %p418
        $region134: #{transformer_decoder_forward.5} parent=91 // pred_check_branch
          %668 = sbr.rel (%p666) target = $region136
        $region135: #{transformer_decoder_forward.5} parent=91 // pred_region
          %669 = dma.done [#allocation17], 16
        $region136: #{transformer_decoder_forward.5} parent=91 // pred_fallthru
          _
        %p670 = scmp.lt.s32.totalorder %s35, 1
        %s671 = scalar_select %p670, %s35, 1
        %s672 = smul.addr %s671, 8
        %s673 = scalar_lea.vmem %s0, %s672
        %p674 = pneg %p56
        %p675 = pneg %p53
        %p676 = scmp.lt.s32.totalorder %s35, 1
        %s677 = scalar_select %p676, %s35, 1
        %s678 = smul.addr %s677, 8
        %s679 = scalar_lea.vmem %s1, %s678
        %p680 = pneg %p82
        %p681 = pneg %p79
        %p682 = pneg %p103
        %p683 = pneg %p100
        %p684 = pneg %p124
        %p685 = pneg %p121
        %p686 = pneg %p145
        %p687 = pneg %p142
        %p688 = pneg %p166
        %p689 = pneg %p163
        %p690 = pneg %p187
        %p691 = pneg %p184
        %p692 = pneg %p208
        %p693 = pneg %p205
        %p694 = pneg %p229
        %p695 = pneg %p226
        %p696 = pneg %p250
        %p697 = pneg %p247
        %p698 = pneg %p271
        %p699 = pneg %p268
        %p700 = pneg %p292
        %p701 = pneg %p289
        %p702 = pneg %p313
        %p703 = pneg %p310
        %p704 = pneg %p334
        %p705 = pneg %p331
        %p706 = pneg %p355
        %p707 = pneg %p352
        %p708 = pneg %p376
        %p709 = pneg %p373
        %p710 = pneg %p397
        %p711 = pneg %p394
        %p712 = pneg %p418
        %p713 = pneg %p415
        %p714 = pneg %p444
        %p715 = pneg %p441
        %p716 = scmp.lt.s32.totalorder %s35, 1
        %s717 = scalar_select %p716, %s35, 1
        %s718 = smul.addr %s717, 8
        %s719 = scalar_lea.vmem %s18, %s718
        %p720 = scmp.lt.s32.totalorder %s35, 1
        %s721 = scalar_select %p720, %s35, 1
        %s722 = smul.addr %s721, 8
        %s723 = scalar_lea.vmem %s0, %s722
        %p724 = scmp.lt.s32.totalorder %s35, 1
        %s725 = scalar_select %p724, %s35, 1
        %s726 = smul.addr %s725, 8
        %s727 = scalar_lea.vmem %s1, %s726
        %p728 = scmp.lt.s32.totalorder %s35, 1
        %s729 = scalar_select %p728, %s35, 1
        %s730 = smul.addr %s729, 8
        %s731 = scalar_lea.vmem %s18, %s730
        %v732 = vld [vmem:[%s723] sm:$0xff]
        %v733 = vld [vmem:[%s727] sm:$0xff]
        %v734 = vld [vmem:[%s2] sm:$0xff]
        %v735 = vld [vmem:[%s2 + $0x8] sm:$0xff]
        %v736 = vld [vmem:[%s2 + $0x10] sm:$0xff]
        %v737 = vld [vmem:[%s2 + $0x18] sm:$0xff]
        %v738 = vld [vmem:[%s3] sm:$0x1]
        %v739 = vld [vmem:[%s4] sm:$0xff]
        %v740 = vld [vmem:[%s4 + $0x8] sm:$0xff]
        %v741 = vld [vmem:[%s4 + $0x10] sm:$0xff]
        %v742 = vld [vmem:[%s4 + $0x18] sm:$0xff]
        %v743 = vld [vmem:[#allocation2] sm:$0x1]
        %v744 = vld [vmem:[%s6] sm:$0xff]
        %v745 = vld [vmem:[%s6 + $0x8] sm:$0xff]
        %v746 = vld [vmem:[%s6 + $0x10] sm:$0xff]
        %v747 = vld [vmem:[%s6 + $0x18] sm:$0xff]
        %v748 = vld [vmem:[%s7] sm:$0x1]
        %v749 = vld [vmem:[#allocation4] sm:$0x1]
        %v750 = vld [vmem:[#allocation6] sm:$0x1]
        %v752 = vlaneseq
        %v753 = vshrl.u32 %v752, 7
        %v754 = vsub.s32 0, %v753
        %v755 = vrot.slane %v738, %v754
        %vm757 = vcmask 261120
        %v759 = vsel %vm757, %v732, 0
        %761 = vmatprep.subr.mxu0 0.0
        %762 = vmatpush1.msra.mxu0 %v734
        %763 = vmatprep.subr.mxu0 0.0
        %764 = vmatpush1.msra.mxu0 %v735
        %765 = vmatprep.subr.mxu0 0.0
        %766 = vmatpush1.msra.mxu0 %v736
        %767 = vmatprep.subr.mxu0 0.0
        %768 = vmatpush1.msra.mxu0 %v737
        %769 = vmatprep.subr.mxu0 0.0
        %770 = vmatpush1.msra.mxu0 0.0
        %771 = vmatprep.subr.mxu0 0.0
        %772 = vmatpush1.msra.mxu0 0.0
        %773 = vmatprep.subr.mxu0 0.0
        %774 = vmatpush1.msra.mxu0 0.0
        %775 = vmatprep.subr.mxu0 0.0
        %776 = vmatpush1.msra.mxu0 0.0
        %777 = vmatprep.subr.mxu0 0.0
        %778 = vmatpush1.msra.mxu0 0.0
        %779 = vmatprep.subr.mxu0 0.0
        %780 = vmatpush1.msra.mxu0 0.0
        %781 = vmatprep.subr.mxu0 0.0
        %782 = vmatpush1.msra.mxu0 0.0
        %783 = vmatprep.subr.mxu0 0.0
        %784 = vmatpush1.msra.mxu0 0.0
        %785 = vmatprep.subr.mxu0 0.0
        %786 = vmatpush1.msra.mxu0 0.0
        %787 = vmatprep.subr.mxu0 0.0
        %788 = vmatpush1.msra.mxu0 0.0
        %789 = vmatprep.subr.mxu0 0.0
        %790 = vmatpush1.msra.mxu0 0.0
        %791 = vmatprep.subr.mxu0 0.0
        %792 = vmatpush1.msra.mxu0 0.0
        %793 = vmatprep.subr.mxu0 0.0
        %794 = vmatpush1.msra.mxu0 0.0
        %795 = vmatprep.subr.mxu0 0.0
        %796 = vmatpush1.msra.mxu0 0.0
        %797 = vmatprep.subr.mxu0 0.0
        %798 = vmatpush1.msra.mxu0 0.0
        %799 = vmatprep.subr.mxu0 0.0
        %800 = vmatpush1.msra.mxu0 0.0
        %801 = vmatprep.subr.mxu0 0.0
        %802 = vmatpush1.msra.mxu0 0.0
        %803 = vmatprep.subr.mxu0 0.0
        %804 = vmatpush1.msra.mxu0 0.0
        %805 = vmatprep.subr.mxu0 0.0
        %806 = vmatpush1.msra.mxu0 0.0
        %807 = vmatprep.subr.mxu0 0.0
        %808 = vmatpush1.msra.mxu0 0.0
        %809 = vmatprep.subr.mxu0 0.0
        %810 = vmatpush1.msra.mxu0 0.0
        %811 = vmatprep.subr.mxu0 0.0
        %812 = vmatpush1.msra.mxu0 0.0
        %813 = vmatprep.subr.mxu0 0.0
        %814 = vmatpush1.msra.mxu0 0.0
        %815 = vmatprep.subr.mxu0 0.0
        %816 = vmatpush1.msra.mxu0 0.0
        %817 = vmatprep.subr.mxu0 0.0
        %818 = vmatpush1.msra.mxu0 0.0
        %819 = vmatprep.subr.mxu0 0.0
        %820 = vmatpush1.msra.mxu0 0.0
        %821 = vmatprep.subr.mxu0 0.0
        %822 = vmatpush1.msra.mxu0 0.0
        %823 = vmatprep.subr.mxu0 0.0
        %824 = vmatpush1.msra.mxu0 0.0
        %825 = vmatprep.mubr.f32.mxu0 0.0
        %826 = vmatmul.mubr.f32.gmra.mrb[0].mxu0 %v759
        %v827 = vpop.f32.mrb[0].mxu0
        %v828 = vadd.f32 %v755, %v827
        %v829 = vpop.f32.mrb[0].mxu0
        %830 = vdwg.mxu0
        %v832 = vlaneseq
        %v833 = vshrl.u32 %v832, 7
        %v834 = vsub.s32 0, %v833
        %v835 = vrot.slane %v743, %v834
        %837 = vmatprep.subr.mxu0 0.0
        %838 = vmatpush1.msra.mxu0 %v739
        %839 = vmatprep.subr.mxu0 0.0
        %840 = vmatpush1.msra.mxu0 %v740
        %841 = vmatprep.subr.mxu0 0.0
        %842 = vmatpush1.msra.mxu0 %v741
        %843 = vmatprep.subr.mxu0 0.0
        %844 = vmatpush1.msra.mxu0 %v742
        %845 = vmatprep.subr.mxu0 0.0
        %846 = vmatpush1.msra.mxu0 0.0
        %847 = vmatprep.subr.mxu0 0.0
        %848 = vmatpush1.msra.mxu0 0.0
        %849 = vmatprep.subr.mxu0 0.0
        %850 = vmatpush1.msra.mxu0 0.0
        %851 = vmatprep.subr.mxu0 0.0
        %852 = vmatpush1.msra.mxu0 0.0
        %853 = vmatprep.subr.mxu0 0.0
        %854 = vmatpush1.msra.mxu0 0.0
        %855 = vmatprep.subr.mxu0 0.0
        %856 = vmatpush1.msra.mxu0 0.0
        %857 = vmatprep.subr.mxu0 0.0
        %858 = vmatpush1.msra.mxu0 0.0
        %859 = vmatprep.subr.mxu0 0.0
        %860 = vmatpush1.msra.mxu0 0.0
        %861 = vmatprep.subr.mxu0 0.0
        %862 = vmatpush1.msra.mxu0 0.0
        %863 = vmatprep.subr.mxu0 0.0
        %864 = vmatpush1.msra.mxu0 0.0
        %865 = vmatprep.subr.mxu0 0.0
        %866 = vmatpush1.msra.mxu0 0.0
        %867 = vmatprep.subr.mxu0 0.0
        %868 = vmatpush1.msra.mxu0 0.0
        %869 = vmatprep.subr.mxu0 0.0
        %870 = vmatpush1.msra.mxu0 0.0
        %871 = vmatprep.subr.mxu0 0.0
        %872 = vmatpush1.msra.mxu0 0.0
        %873 = vmatprep.subr.mxu0 0.0
        %874 = vmatpush1.msra.mxu0 0.0
        %875 = vmatprep.subr.mxu0 0.0
        %876 = vmatpush1.msra.mxu0 0.0
        %877 = vmatprep.subr.mxu0 0.0
        %878 = vmatpush1.msra.mxu0 0.0
        %879 = vmatprep.subr.mxu0 0.0
        %880 = vmatpush1.msra.mxu0 0.0
        %881 = vmatprep.subr.mxu0 0.0
        %882 = vmatpush1.msra.mxu0 0.0
        %883 = vmatprep.subr.mxu0 0.0
        %884 = vmatpush1.msra.mxu0 0.0
        %885 = vmatprep.subr.mxu0 0.0
        %886 = vmatpush1.msra.mxu0 0.0
        %887 = vmatprep.subr.mxu0 0.0
        %888 = vmatpush1.msra.mxu0 0.0
        %889 = vmatprep.subr.mxu0 0.0
        %890 = vmatpush1.msra.mxu0 0.0
        %891 = vmatprep.subr.mxu0 0.0
        %892 = vmatpush1.msra.mxu0 0.0
        %893 = vmatprep.subr.mxu0 0.0
        %894 = vmatpush1.msra.mxu0 0.0
        %895 = vmatprep.subr.mxu0 0.0
        %896 = vmatpush1.msra.mxu0 0.0
        %897 = vmatprep.subr.mxu0 0.0
        %898 = vmatpush1.msra.mxu0 0.0
        %899 = vmatprep.subr.mxu0 0.0
        %900 = vmatpush1.msra.mxu0 0.0
        %901 = vmatprep.mubr.f32.mxu0 0.0
        %902 = vmatmul.mubr.f32.gmra.mrb[0].mxu0 %v759
        %v903 = vpop.f32.mrb[0].mxu0
        %v904 = vadd.f32 %v835, %v903
        %v905 = vpop.f32.mrb[0].mxu0
        %906 = vdwg.mxu0
        %v908 = vlaneseq
        %v909 = vshrl.u32 %v908, 7
        %v910 = vsub.s32 0, %v909
        %v911 = vrot.slane %v748, %v910
        %v913 = vadd.f32 %v911, 0.0
        %v914 = vmul.f32 %v828, 0.35355338
        %vm915 = vcmask 64512
        %v917 = vsel %vm915, %v914, 0
        %v920 = vsel %vm915, %v904, 0
        %922 = vmatprep.subr.mxu0 0.0
        %923 = vmatpush1.xpose.msra.mxu0 %v920
        %924 = vmatprep.subr.mxu0 0.0
        %925 = vmatpush1.xpose.msra.mxu0 0.0
        %926 = vmatprep.subr.mxu0 0.0
        %927 = vmatpush1.xpose.msra.mxu0 0.0
        %928 = vmatprep.subr.mxu0 0.0
        %929 = vmatpush1.xpose.msra.mxu0 0.0
        %930 = vmatprep.subr.mxu0 0.0
        %931 = vmatpush1.xpose.msra.mxu0 0.0
        %932 = vmatprep.subr.mxu0 0.0
        %933 = vmatpush1.xpose.msra.mxu0 0.0
        %934 = vmatprep.subr.mxu0 0.0
        %935 = vmatpush1.xpose.msra.mxu0 0.0
        %936 = vmatprep.subr.mxu0 0.0
        %937 = vmatpush1.xpose.msra.mxu0 0.0
        %938 = vmatprep.subr.mxu0 0.0
        %939 = vmatpush1.xpose.msra.mxu0 0.0
        %940 = vmatprep.subr.mxu0 0.0
        %941 = vmatpush1.xpose.msra.mxu0 0.0
        %942 = vmatprep.subr.mxu0 0.0
        %943 = vmatpush1.xpose.msra.mxu0 0.0
        %944 = vmatprep.subr.mxu0 0.0
        %945 = vmatpush1.xpose.msra.mxu0 0.0
        %946 = vmatprep.subr.mxu0 0.0
        %947 = vmatpush1.xpose.msra.mxu0 0.0
        %948 = vmatprep.subr.mxu0 0.0
        %949 = vmatpush1.xpose.msra.mxu0 0.0
        %950 = vmatprep.subr.mxu0 0.0
        %951 = vmatpush1.xpose.msra.mxu0 0.0
        %952 = vmatprep.subr.mxu0 0.0
        %953 = vmatpush1.xpose.msra.mxu0 0.0
        %954 = vmatprep.subr.mxu0 0.0
        %955 = vmatpush1.xpose.msra.mxu0 0.0
        %956 = vmatprep.subr.mxu0 0.0
        %957 = vmatpush1.xpose.msra.mxu0 0.0
        %958 = vmatprep.subr.mxu0 0.0
        %959 = vmatpush1.xpose.msra.mxu0 0.0
        %960 = vmatprep.subr.mxu0 0.0
        %961 = vmatpush1.xpose.msra.mxu0 0.0
        %962 = vmatprep.subr.mxu0 0.0
        %963 = vmatpush1.xpose.msra.mxu0 0.0
        %964 = vmatprep.subr.mxu0 0.0
        %965 = vmatpush1.xpose.msra.mxu0 0.0
        %966 = vmatprep.subr.mxu0 0.0
        %967 = vmatpush1.xpose.msra.mxu0 0.0
        %968 = vmatprep.subr.mxu0 0.0
        %969 = vmatpush1.xpose.msra.mxu0 0.0
        %970 = vmatprep.subr.mxu0 0.0
        %971 = vmatpush1.xpose.msra.mxu0 0.0
        %972 = vmatprep.subr.mxu0 0.0
        %973 = vmatpush1.xpose.msra.mxu0 0.0
        %974 = vmatprep.subr.mxu0 0.0
        %975 = vmatpush1.xpose.msra.mxu0 0.0
        %976 = vmatprep.subr.mxu0 0.0
        %977 = vmatpush1.xpose.msra.mxu0 0.0
        %978 = vmatprep.subr.mxu0 0.0
        %979 = vmatpush1.xpose.msra.mxu0 0.0
        %980 = vmatprep.subr.mxu0 0.0
        %981 = vmatpush1.xpose.msra.mxu0 0.0
        %982 = vmatprep.subr.mxu0 0.0
        %983 = vmatpush1.xpose.msra.mxu0 0.0
        %984 = vmatprep.subr.mxu0 0.0
        %985 = vmatpush1.xpose.msra.mxu0 0.0
        %986 = vmatprep.mubr.f32.mxu0 0.0
        %987 = vmatmul.mubr.f32.gmra.mrb[0].mxu0 %v917
        %v988 = vpop.f32.mrb[0].mxu0
        %v989 = vadd.f32 0.0, %v988
        %v990 = vpop.f32.mrb[0].mxu0
        %991 = vdwg.mxu0
        %v992 = vsel %vm915, %v989, -inf
        %993 = vmax.xlane.f32.xlu0 %v992
        %v994 = vpop.xlane.xlu0 %993
        %v995 = vsub.f32 %v989, %v994
        %v996 = vmul.f32 %v995, 1.442695
        %v997 = vpow.pop %v996
        %v998 = vsel %vm915, %v997, 0.0
        %999 = vadd.xlane.f32.xlu0 %v998
        %v1000 = vpop.xlane.xlu0 %999
        %v1001 = vrcp.pop %v1000
        %v1002 = vmul.f32 %v997, %v1001
        %1003 = vrot.lane.b32.xlu0 %v904, 96
        %v1004 = vpop.permute.xlu0 %1003
        %v1007 = vsel %vm915, %v1002, 0
        %1009 = vmatprep.subr.mxu0 0.0
        %1010 = vmatpush1.msra.mxu0 %v1004
        %1011 = vmatprep.subr.mxu0 0.0
        %1012 = vmatpush1.msra.mxu0 0.0
        %1013 = vmatprep.subr.mxu0 0.0
        %1014 = vmatpush1.msra.mxu0 0.0
        %1015 = vmatprep.subr.mxu0 0.0
        %1016 = vmatpush1.msra.mxu0 0.0
        %1017 = vmatprep.subr.mxu0 0.0
        %1018 = vmatpush1.msra.mxu0 0.0
        %1019 = vmatprep.subr.mxu0 0.0
        %1020 = vmatpush1.msra.mxu0 0.0
        %1021 = vmatprep.subr.mxu0 0.0
        %1022 = vmatpush1.msra.mxu0 0.0
        %1023 = vmatprep.subr.mxu0 0.0
        %1024 = vmatpush1.msra.mxu0 0.0
        %1025 = vmatprep.subr.mxu0 0.0
        %1026 = vmatpush1.msra.mxu0 0.0
        %1027 = vmatprep.subr.mxu0 0.0
        %1028 = vmatpush1.msra.mxu0 0.0
        %1029 = vmatprep.subr.mxu0 0.0
        %1030 = vmatpush1.msra.mxu0 0.0
        %1031 = vmatprep.subr.mxu0 0.0
        %1032 = vmatpush1.msra.mxu0 0.0
        %1033 = vmatprep.subr.mxu0 0.0
        %1034 = vmatpush1.msra.mxu0 0.0
        %1035 = vmatprep.subr.mxu0 0.0
        %1036 = vmatpush1.msra.mxu0 0.0
        %1037 = vmatprep.subr.mxu0 0.0
        %1038 = vmatpush1.msra.mxu0 0.0
        %1039 = vmatprep.subr.mxu0 0.0
        %1040 = vmatpush1.msra.mxu0 0.0
        %1041 = vmatprep.subr.mxu0 0.0
        %1042 = vmatpush1.msra.mxu0 0.0
        %1043 = vmatprep.subr.mxu0 0.0
        %1044 = vmatpush1.msra.mxu0 0.0
        %1045 = vmatprep.subr.mxu0 0.0
        %1046 = vmatpush1.msra.mxu0 0.0
        %1047 = vmatprep.subr.mxu0 0.0
        %1048 = vmatpush1.msra.mxu0 0.0
        %1049 = vmatprep.subr.mxu0 0.0
        %1050 = vmatpush1.msra.mxu0 0.0
        %1051 = vmatprep.subr.mxu0 0.0
        %1052 = vmatpush1.msra.mxu0 0.0
        %1053 = vmatprep.subr.mxu0 0.0
        %1054 = vmatpush1.msra.mxu0 0.0
        %1055 = vmatprep.subr.mxu0 0.0
        %1056 = vmatpush1.msra.mxu0 0.0
        %1057 = vmatprep.subr.mxu0 0.0
        %1058 = vmatpush1.msra.mxu0 0.0
        %1059 = vmatprep.subr.mxu0 0.0
        %1060 = vmatpush1.msra.mxu0 0.0
        %1061 = vmatprep.subr.mxu0 0.0
        %1062 = vmatpush1.msra.mxu0 0.0
        %1063 = vmatprep.subr.mxu0 0.0
        %1064 = vmatpush1.msra.mxu0 0.0
        %1065 = vmatprep.subr.mxu0 0.0
        %1066 = vmatpush1.msra.mxu0 0.0
        %1067 = vmatprep.subr.mxu0 0.0
        %1068 = vmatpush1.msra.mxu0 0.0
        %1069 = vmatprep.subr.mxu0 0.0
        %1070 = vmatpush1.msra.mxu0 0.0
        %1071 = vmatprep.subr.mxu0 0.0
        %1072 = vmatpush1.msra.mxu0 0.0
        %1073 = vmatprep.mubr.f32.mxu0 0.0
        %1074 = vmatmul.mubr.f32.gmra.mrb[0].mxu0 %v1007
        %v1075 = vpop.f32.mrb[0].mxu0
        %v1076 = vadd.f32 0.0, %v1075
        %v1077 = vpop.f32.mrb[0].mxu0
        %1078 = vdwg.mxu0
        %v1080 = vsel %vm915, %v1076, 0
        %1082 = vmatprep.subr.mxu0 0.0
        %1083 = vmatpush1.msra.mxu0 %v744
        %1084 = vmatprep.subr.mxu0 0.0
        %1085 = vmatpush1.msra.mxu0 0.0
        %1086 = vmatprep.subr.mxu0 0.0
        %1087 = vmatpush1.msra.mxu0 0.0
        %1088 = vmatprep.subr.mxu0 0.0
        %1089 = vmatpush1.msra.mxu0 0.0
        %1090 = vmatprep.subr.mxu0 0.0
        %1091 = vmatpush1.msra.mxu0 0.0
        %1092 = vmatprep.subr.mxu0 0.0
        %1093 = vmatpush1.msra.mxu0 0.0
        %1094 = vmatprep.subr.mxu0 0.0
        %1095 = vmatpush1.msra.mxu0 0.0
        %1096 = vmatprep.subr.mxu0 0.0
        %1097 = vmatpush1.msra.mxu0 0.0
        %1098 = vmatprep.subr.mxu0 0.0
        %1099 = vmatpush1.msra.mxu0 0.0
        %1100 = vmatprep.subr.mxu0 0.0
        %1101 = vmatpush1.msra.mxu0 0.0
        %1102 = vmatprep.subr.mxu0 0.0
        %1103 = vmatpush1.msra.mxu0 0.0
        %1104 = vmatprep.subr.mxu0 0.0
        %1105 = vmatpush1.msra.mxu0 0.0
        %1106 = vmatprep.subr.mxu0 0.0
        %1107 = vmatpush1.msra.mxu0 0.0
        %1108 = vmatprep.subr.mxu0 0.0
        %1109 = vmatpush1.msra.mxu0 0.0
        %1110 = vmatprep.subr.mxu0 0.0
        %1111 = vmatpush1.msra.mxu0 0.0
        %1112 = vmatprep.subr.mxu0 0.0
        %1113 = vmatpush1.msra.mxu0 0.0
        %1114 = vmatprep.subr.mxu0 0.0
        %1115 = vmatpush1.msra.mxu0 0.0
        %1116 = vmatprep.subr.mxu0 0.0
        %1117 = vmatpush1.msra.mxu0 0.0
        %1118 = vmatprep.subr.mxu0 0.0
        %1119 = vmatpush1.msra.mxu0 0.0
        %1120 = vmatprep.subr.mxu0 0.0
        %1121 = vmatpush1.msra.mxu0 0.0
        %1122 = vmatprep.subr.mxu0 0.0
        %1123 = vmatpush1.msra.mxu0 0.0
        %1124 = vmatprep.subr.mxu0 0.0
        %1125 = vmatpush1.msra.mxu0 0.0
        %1126 = vmatprep.subr.mxu0 0.0
        %1127 = vmatpush1.msra.mxu0 0.0
        %1128 = vmatprep.subr.mxu0 0.0
        %1129 = vmatpush1.msra.mxu0 0.0
        %1130 = vmatprep.subr.mxu0 0.0
        %1131 = vmatpush1.msra.mxu0 0.0
        %1132 = vmatprep.subr.mxu0 0.0
        %1133 = vmatpush1.msra.mxu0 0.0
        %1134 = vmatprep.subr.mxu0 0.0
        %1135 = vmatpush1.msra.mxu0 0.0
        %1136 = vmatprep.subr.mxu0 0.0
        %1137 = vmatpush1.msra.mxu0 0.0
        %1138 = vmatprep.subr.mxu0 0.0
        %1139 = vmatpush1.msra.mxu0 0.0
        %1140 = vmatprep.subr.mxu0 0.0
        %1141 = vmatpush1.msra.mxu0 0.0
        %1142 = vmatprep.subr.mxu0 0.0
        %1143 = vmatpush1.msra.mxu0 0.0
        %1144 = vmatprep.subr.mxu0 0.0
        %1145 = vmatpush1.msra.mxu0 0.0
        %1146 = vmatprep.mubr.f32.mxu0 0.0
        %1147 = vmatmul.mubr.f32.gmra.mrb[0].mxu0 %v1080
        %v1148 = vpop.f32.mrb[0].mxu0
        %v1149 = vadd.f32 0.0, %v1148
        %v1150 = vpop.f32.mrb[0].mxu0
        %1151 = vdwg.mxu0
        %v1152 = vadd.f32 %v913, %v1149
        %1153 = vrot.lane.b32.xlu0 %v914, 120
        %v1154 = vpop.permute.xlu0 %1153
        %1155 = vrot.lane.b32.xlu0 %v904, 120
        %v1156 = vpop.permute.xlu0 %1155
        %v1157 = vsel %vm915, %v1154, 0
        %v1159 = vsel %vm915, %v1156, 0
        %1161 = vmatprep.subr.mxu0 0.0
        %1162 = vmatpush1.xpose.msra.mxu0 %v1159
        %1163 = vmatprep.subr.mxu0 0.0
        %1164 = vmatpush1.xpose.msra.mxu0 0.0
        %1165 = vmatprep.subr.mxu0 0.0
        %1166 = vmatpush1.xpose.msra.mxu0 0.0
        %1167 = vmatprep.subr.mxu0 0.0
        %1168 = vmatpush1.xpose.msra.mxu0 0.0
        %1169 = vmatprep.subr.mxu0 0.0
        %1170 = vmatpush1.xpose.msra.mxu0 0.0
        %1171 = vmatprep.subr.mxu0 0.0
        %1172 = vmatpush1.xpose.msra.mxu0 0.0
        %1173 = vmatprep.subr.mxu0 0.0
        %1174 = vmatpush1.xpose.msra.mxu0 0.0
        %1175 = vmatprep.subr.mxu0 0.0
        %1176 = vmatpush1.xpose.msra.mxu0 0.0
        %1177 = vmatprep.subr.mxu0 0.0
        %1178 = vmatpush1.xpose.msra.mxu0 0.0
        %1179 = vmatprep.subr.mxu0 0.0
        %1180 = vmatpush1.xpose.msra.mxu0 0.0
        %1181 = vmatprep.subr.mxu0 0.0
        %1182 = vmatpush1.xpose.msra.mxu0 0.0
        %1183 = vmatprep.subr.mxu0 0.0
        %1184 = vmatpush1.xpose.msra.mxu0 0.0
        %1185 = vmatprep.subr.mxu0 0.0
        %1186 = vmatpush1.xpose.msra.mxu0 0.0
        %1187 = vmatprep.subr.mxu0 0.0
        %1188 = vmatpush1.xpose.msra.mxu0 0.0
        %1189 = vmatprep.subr.mxu0 0.0
        %1190 = vmatpush1.xpose.msra.mxu0 0.0
        %1191 = vmatprep.subr.mxu0 0.0
        %1192 = vmatpush1.xpose.msra.mxu0 0.0
        %1193 = vmatprep.subr.mxu0 0.0
        %1194 = vmatpush1.xpose.msra.mxu0 0.0
        %1195 = vmatprep.subr.mxu0 0.0
        %1196 = vmatpush1.xpose.msra.mxu0 0.0
        %1197 = vmatprep.subr.mxu0 0.0
        %1198 = vmatpush1.xpose.msra.mxu0 0.0
        %1199 = vmatprep.subr.mxu0 0.0
        %1200 = vmatpush1.xpose.msra.mxu0 0.0
        %1201 = vmatprep.subr.mxu0 0.0
        %1202 = vmatpush1.xpose.msra.mxu0 0.0
        %1203 = vmatprep.subr.mxu0 0.0
        %1204 = vmatpush1.xpose.msra.mxu0 0.0
        %1205 = vmatprep.subr.mxu0 0.0
        %1206 = vmatpush1.xpose.msra.mxu0 0.0
        %1207 = vmatprep.subr.mxu0 0.0
        %1208 = vmatpush1.xpose.msra.mxu0 0.0
        %1209 = vmatprep.subr.mxu0 0.0
        %1210 = vmatpush1.xpose.msra.mxu0 0.0
        %1211 = vmatprep.subr.mxu0 0.0
        %1212 = vmatpush1.xpose.msra.mxu0 0.0
        %1213 = vmatprep.subr.mxu0 0.0
        %1214 = vmatpush1.xpose.msra.mxu0 0.0
        %1215 = vmatprep.subr.mxu0 0.0
        %1216 = vmatpush1.xpose.msra.mxu0 0.0
        %1217 = vmatprep.subr.mxu0 0.0
        %1218 = vmatpush1.xpose.msra.mxu0 0.0
        %1219 = vmatprep.subr.mxu0 0.0
        %1220 = vmatpush1.xpose.msra.mxu0 0.0
        %1221 = vmatprep.subr.mxu0 0.0
        %1222 = vmatpush1.xpose.msra.mxu0 0.0
        %1223 = vmatprep.subr.mxu0 0.0
        %1224 = vmatpush1.xpose.msra.mxu0 0.0
        %1225 = vmatprep.mubr.f32.mxu0 0.0
        %1226 = vmatmul.mubr.f32.gmra.mrb[0].mxu0 %v1157
        %v1227 = vpop.f32.mrb[0].mxu0
        %v1228 = vadd.f32 0.0, %v1227
        %v1229 = vpop.f32.mrb[0].mxu0
        %1230 = vdwg.mxu0
        %v1231 = vsel %vm915, %v1228, -inf
        %1232 = vmax.xlane.f32.xlu0 %v1231
        %v1233 = vpop.xlane.xlu0 %1232
        %v1234 = vsub.f32 %v1228, %v1233
        %v1235 = vmul.f32 %v1234, 1.442695
        %v1236 = vpow.pop %v1235
        %v1237 = vsel %vm915, %v1236, 0.0
        %1238 = vadd.xlane.f32.xlu0 %v1237
        %v1239 = vpop.xlane.xlu0 %1238
        %v1240 = vrcp.pop %v1239
        %v1241 = vmul.f32 %v1236, %v1240
        %1242 = vrot.lane.b32.xlu0 %v904, 88
        %v1243 = vpop.permute.xlu0 %1242
        %v1246 = vsel %vm915, %v1241, 0
        %1248 = vmatprep.subr.mxu0 0.0
        %1249 = vmatpush1.msra.mxu0 %v1243
        %1250 = vmatprep.subr.mxu0 0.0
        %1251 = vmatpush1.msra.mxu0 0.0
        %1252 = vmatprep.subr.mxu0 0.0
        %1253 = vmatpush1.msra.mxu0 0.0
        %1254 = vmatprep.subr.mxu0 0.0
        %1255 = vmatpush1.msra.mxu0 0.0
        %1256 = vmatprep.subr.mxu0 0.0
        %1257 = vmatpush1.msra.mxu0 0.0
        %1258 = vmatprep.subr.mxu0 0.0
        %1259 = vmatpush1.msra.mxu0 0.0
        %1260 = vmatprep.subr.mxu0 0.0
        %1261 = vmatpush1.msra.mxu0 0.0
        %1262 = vmatprep.subr.mxu0 0.0
        %1263 = vmatpush1.msra.mxu0 0.0
        %1264 = vmatprep.subr.mxu0 0.0
        %1265 = vmatpush1.msra.mxu0 0.0
        %1266 = vmatprep.subr.mxu0 0.0
        %1267 = vmatpush1.msra.mxu0 0.0
        %1268 = vmatprep.subr.mxu0 0.0
        %1269 = vmatpush1.msra.mxu0 0.0
        %1270 = vmatprep.subr.mxu0 0.0
        %1271 = vmatpush1.msra.mxu0 0.0
        %1272 = vmatprep.subr.mxu0 0.0
        %1273 = vmatpush1.msra.mxu0 0.0
        %1274 = vmatprep.subr.mxu0 0.0
        %1275 = vmatpush1.msra.mxu0 0.0
        %1276 = vmatprep.subr.mxu0 0.0
        %1277 = vmatpush1.msra.mxu0 0.0
        %1278 = vmatprep.subr.mxu0 0.0
        %1279 = vmatpush1.msra.mxu0 0.0
        %1280 = vmatprep.subr.mxu0 0.0
        %1281 = vmatpush1.msra.mxu0 0.0
        %1282 = vmatprep.subr.mxu0 0.0
        %1283 = vmatpush1.msra.mxu0 0.0
        %1284 = vmatprep.subr.mxu0 0.0
        %1285 = vmatpush1.msra.mxu0 0.0
        %1286 = vmatprep.subr.mxu0 0.0
        %1287 = vmatpush1.msra.mxu0 0.0
        %1288 = vmatprep.subr.mxu0 0.0
        %1289 = vmatpush1.msra.mxu0 0.0
        %1290 = vmatprep.subr.mxu0 0.0
        %1291 = vmatpush1.msra.mxu0 0.0
        %1292 = vmatprep.subr.mxu0 0.0
        %1293 = vmatpush1.msra.mxu0 0.0
        %1294 = vmatprep.subr.mxu0 0.0
        %1295 = vmatpush1.msra.mxu0 0.0
        %1296 = vmatprep.subr.mxu0 0.0
        %1297 = vmatpush1.msra.mxu0 0.0
        %1298 = vmatprep.subr.mxu0 0.0
        %1299 = vmatpush1.msra.mxu0 0.0
        %1300 = vmatprep.subr.mxu0 0.0
        %1301 = vmatpush1.msra.mxu0 0.0
        %1302 = vmatprep.subr.mxu0 0.0
        %1303 = vmatpush1.msra.mxu0 0.0
        %1304 = vmatprep.subr.mxu0 0.0
        %1305 = vmatpush1.msra.mxu0 0.0
        %1306 = vmatprep.subr.mxu0 0.0
        %1307 = vmatpush1.msra.mxu0 0.0
        %1308 = vmatprep.subr.mxu0 0.0
        %1309 = vmatpush1.msra.mxu0 0.0
        %1310 = vmatprep.subr.mxu0 0.0
        %1311 = vmatpush1.msra.mxu0 0.0
        %1312 = vmatprep.mubr.f32.mxu0 0.0
        %1313 = vmatmul.mubr.f32.gmra.mrb[0].mxu0 %v1246
        %v1314 = vpop.f32.mrb[0].mxu0
        %v1315 = vadd.f32 0.0, %v1314
        %v1316 = vpop.f32.mrb[0].mxu0
        %1317 = vdwg.mxu0
        %v1319 = vsel %vm915, %v1315, 0
        %1321 = vmatprep.subr.mxu0 0.0
        %1322 = vmatpush1.msra.mxu0 %v745
        %1323 = vmatprep.subr.mxu0 0.0
        %1324 = vmatpush1.msra.mxu0 0.0
        %1325 = vmatprep.subr.mxu0 0.0
        %1326 = vmatpush1.msra.mxu0 0.0
        %1327 = vmatprep.subr.mxu0 0.0
        %1328 = vmatpush1.msra.mxu0 0.0
        %1329 = vmatprep.subr.mxu0 0.0
        %1330 = vmatpush1.msra.mxu0 0.0
        %1331 = vmatprep.subr.mxu0 0.0
        %1332 = vmatpush1.msra.mxu0 0.0
        %1333 = vmatprep.subr.mxu0 0.0
        %1334 = vmatpush1.msra.mxu0 0.0
        %1335 = vmatprep.subr.mxu0 0.0
        %1336 = vmatpush1.msra.mxu0 0.0
        %1337 = vmatprep.subr.mxu0 0.0
        %1338 = vmatpush1.msra.mxu0 0.0
        %1339 = vmatprep.subr.mxu0 0.0
        %1340 = vmatpush1.msra.mxu0 0.0
        %1341 = vmatprep.subr.mxu0 0.0
        %1342 = vmatpush1.msra.mxu0 0.0
        %1343 = vmatprep.subr.mxu0 0.0
        %1344 = vmatpush1.msra.mxu0 0.0
        %1345 = vmatprep.subr.mxu0 0.0
        %1346 = vmatpush1.msra.mxu0 0.0
        %1347 = vmatprep.subr.mxu0 0.0
        %1348 = vmatpush1.msra.mxu0 0.0
        %1349 = vmatprep.subr.mxu0 0.0
        %1350 = vmatpush1.msra.mxu0 0.0
        %1351 = vmatprep.subr.mxu0 0.0
        %1352 = vmatpush1.msra.mxu0 0.0
        %1353 = vmatprep.subr.mxu0 0.0
        %1354 = vmatpush1.msra.mxu0 0.0
        %1355 = vmatprep.subr.mxu0 0.0
        %1356 = vmatpush1.msra.mxu0 0.0
        %1357 = vmatprep.subr.mxu0 0.0
        %1358 = vmatpush1.msra.mxu0 0.0
        %1359 = vmatprep.subr.mxu0 0.0
        %1360 = vmatpush1.msra.mxu0 0.0
        %1361 = vmatprep.subr.mxu0 0.0
        %1362 = vmatpush1.msra.mxu0 0.0
        %1363 = vmatprep.subr.mxu0 0.0
        %1364 = vmatpush1.msra.mxu0 0.0
        %1365 = vmatprep.subr.mxu0 0.0
        %1366 = vmatpush1.msra.mxu0 0.0
        %1367 = vmatprep.subr.mxu0 0.0
        %1368 = vmatpush1.msra.mxu0 0.0
        %1369 = vmatprep.subr.mxu0 0.0
        %1370 = vmatpush1.msra.mxu0 0.0
        %1371 = vmatprep.subr.mxu0 0.0
        %1372 = vmatpush1.msra.mxu0 0.0
        %1373 = vmatprep.subr.mxu0 0.0
        %1374 = vmatpush1.msra.mxu0 0.0
        %1375 = vmatprep.subr.mxu0 0.0
        %1376 = vmatpush1.msra.mxu0 0.0
        %1377 = vmatprep.subr.mxu0 0.0
        %1378 = vmatpush1.msra.mxu0 0.0
        %1379 = vmatprep.subr.mxu0 0.0
        %1380 = vmatpush1.msra.mxu0 0.0
        %1381 = vmatprep.subr.mxu0 0.0
        %1382 = vmatpush1.msra.mxu0 0.0
        %1383 = vmatprep.subr.mxu0 0.0
        %1384 = vmatpush1.msra.mxu0 0.0
        %1385 = vmatprep.mubr.f32.mxu0 0.0
        %1386 = vmatmul.mubr.f32.gmra.mrb[0].mxu0 %v1319
        %v1387 = vpop.f32.mrb[0].mxu0
        %v1388 = vadd.f32 0.0, %v1387
        %v1389 = vpop.f32.mrb[0].mxu0
        %1390 = vdwg.mxu0
        %v1391 = vadd.f32 %v1152, %v1388
        %1392 = vrot.lane.b32.xlu0 %v914, 112
        %v1393 = vpop.permute.xlu0 %1392
        %1394 = vrot.lane.b32.xlu0 %v904, 112
        %v1395 = vpop.permute.xlu0 %1394
        %v1396 = vsel %vm915, %v1393, 0
        %v1398 = vsel %vm915, %v1395, 0
        %1400 = vmatprep.subr.mxu0 0.0
        %1401 = vmatpush1.xpose.msra.mxu0 %v1398
        %1402 = vmatprep.subr.mxu0 0.0
        %1403 = vmatpush1.xpose.msra.mxu0 0.0
        %1404 = vmatprep.subr.mxu0 0.0
        %1405 = vmatpush1.xpose.msra.mxu0 0.0
        %1406 = vmatprep.subr.mxu0 0.0
        %1407 = vmatpush1.xpose.msra.mxu0 0.0
        %1408 = vmatprep.subr.mxu0 0.0
        %1409 = vmatpush1.xpose.msra.mxu0 0.0
        %1410 = vmatprep.subr.mxu0 0.0
        %1411 = vmatpush1.xpose.msra.mxu0 0.0
        %1412 = vmatprep.subr.mxu0 0.0
        %1413 = vmatpush1.xpose.msra.mxu0 0.0
        %1414 = vmatprep.subr.mxu0 0.0
        %1415 = vmatpush1.xpose.msra.mxu0 0.0
        %1416 = vmatprep.subr.mxu0 0.0
        %1417 = vmatpush1.xpose.msra.mxu0 0.0
        %1418 = vmatprep.subr.mxu0 0.0
        %1419 = vmatpush1.xpose.msra.mxu0 0.0
        %1420 = vmatprep.subr.mxu0 0.0
        %1421 = vmatpush1.xpose.msra.mxu0 0.0
        %1422 = vmatprep.subr.mxu0 0.0
        %1423 = vmatpush1.xpose.msra.mxu0 0.0
        %1424 = vmatprep.subr.mxu0 0.0
        %1425 = vmatpush1.xpose.msra.mxu0 0.0
        %1426 = vmatprep.subr.mxu0 0.0
        %1427 = vmatpush1.xpose.msra.mxu0 0.0
        %1428 = vmatprep.subr.mxu0 0.0
        %1429 = vmatpush1.xpose.msra.mxu0 0.0
        %1430 = vmatprep.subr.mxu0 0.0
        %1431 = vmatpush1.xpose.msra.mxu0 0.0
        %1432 = vmatprep.subr.mxu0 0.0
        %1433 = vmatpush1.xpose.msra.mxu0 0.0
        %1434 = vmatprep.subr.mxu0 0.0
        %1435 = vmatpush1.xpose.msra.mxu0 0.0
        %1436 = vmatprep.subr.mxu0 0.0
        %1437 = vmatpush1.xpose.msra.mxu0 0.0
        %1438 = vmatprep.subr.mxu0 0.0
        %1439 = vmatpush1.xpose.msra.mxu0 0.0
        %1440 = vmatprep.subr.mxu0 0.0
        %1441 = vmatpush1.xpose.msra.mxu0 0.0
        %1442 = vmatprep.subr.mxu0 0.0
        %1443 = vmatpush1.xpose.msra.mxu0 0.0
        %1444 = vmatprep.subr.mxu0 0.0
        %1445 = vmatpush1.xpose.msra.mxu0 0.0
        %1446 = vmatprep.subr.mxu0 0.0
        %1447 = vmatpush1.xpose.msra.mxu0 0.0
        %1448 = vmatprep.subr.mxu0 0.0
        %1449 = vmatpush1.xpose.msra.mxu0 0.0
        %1450 = vmatprep.subr.mxu0 0.0
        %1451 = vmatpush1.xpose.msra.mxu0 0.0
        %1452 = vmatprep.subr.mxu0 0.0
        %1453 = vmatpush1.xpose.msra.mxu0 0.0
        %1454 = vmatprep.subr.mxu0 0.0
        %1455 = vmatpush1.xpose.msra.mxu0 0.0
        %1456 = vmatprep.subr.mxu0 0.0
        %1457 = vmatpush1.xpose.msra.mxu0 0.0
        %1458 = vmatprep.subr.mxu0 0.0
        %1459 = vmatpush1.xpose.msra.mxu0 0.0
        %1460 = vmatprep.subr.mxu0 0.0
        %1461 = vmatpush1.xpose.msra.mxu0 0.0
        %1462 = vmatprep.subr.mxu0 0.0
        %1463 = vmatpush1.xpose.msra.mxu0 0.0
        %1464 = vmatprep.mubr.f32.mxu0 0.0
        %1465 = vmatmul.mubr.f32.gmra.mrb[0].mxu0 %v1396
        %v1466 = vpop.f32.mrb[0].mxu0
        %v1467 = vadd.f32 0.0, %v1466
        %v1468 = vpop.f32.mrb[0].mxu0
        %1469 = vdwg.mxu0
        %v1470 = vsel %vm915, %v1467, -inf
        %1471 = vmax.xlane.f32.xlu0 %v1470
        %v1472 = vpop.xlane.xlu0 %1471
        %v1473 = vsub.f32 %v1467, %v1472
        %v1474 = vmul.f32 %v1473, 1.442695
        %v1475 = vpow.pop %v1474
        %v1476 = vsel %vm915, %v1475, 0.0
        %1477 = vadd.xlane.f32.xlu0 %v1476
        %v1478 = vpop.xlane.xlu0 %1477
        %v1479 = vrcp.pop %v1478
        %v1480 = vmul.f32 %v1475, %v1479
        %1481 = vrot.lane.b32.xlu0 %v904, 80
        %v1482 = vpop.permute.xlu0 %1481
        %v1485 = vsel %vm915, %v1480, 0
        %1487 = vmatprep.subr.mxu0 0.0
        %1488 = vmatpush1.msra.mxu0 %v1482
        %1489 = vmatprep.subr.mxu0 0.0
        %1490 = vmatpush1.msra.mxu0 0.0
        %1491 = vmatprep.subr.mxu0 0.0
        %1492 = vmatpush1.msra.mxu0 0.0
        %1493 = vmatprep.subr.mxu0 0.0
        %1494 = vmatpush1.msra.mxu0 0.0
        %1495 = vmatprep.subr.mxu0 0.0
        %1496 = vmatpush1.msra.mxu0 0.0
        %1497 = vmatprep.subr.mxu0 0.0
        %1498 = vmatpush1.msra.mxu0 0.0
        %1499 = vmatprep.subr.mxu0 0.0
        %1500 = vmatpush1.msra.mxu0 0.0
        %1501 = vmatprep.subr.mxu0 0.0
        %1502 = vmatpush1.msra.mxu0 0.0
        %1503 = vmatprep.subr.mxu0 0.0
        %1504 = vmatpush1.msra.mxu0 0.0
        %1505 = vmatprep.subr.mxu0 0.0
        %1506 = vmatpush1.msra.mxu0 0.0
        %1507 = vmatprep.subr.mxu0 0.0
        %1508 = vmatpush1.msra.mxu0 0.0
        %1509 = vmatprep.subr.mxu0 0.0
        %1510 = vmatpush1.msra.mxu0 0.0
        %1511 = vmatprep.subr.mxu0 0.0
        %1512 = vmatpush1.msra.mxu0 0.0
        %1513 = vmatprep.subr.mxu0 0.0
        %1514 = vmatpush1.msra.mxu0 0.0
        %1515 = vmatprep.subr.mxu0 0.0
        %1516 = vmatpush1.msra.mxu0 0.0
        %1517 = vmatprep.subr.mxu0 0.0
        %1518 = vmatpush1.msra.mxu0 0.0
        %1519 = vmatprep.subr.mxu0 0.0
        %1520 = vmatpush1.msra.mxu0 0.0
        %1521 = vmatprep.subr.mxu0 0.0
        %1522 = vmatpush1.msra.mxu0 0.0
        %1523 = vmatprep.subr.mxu0 0.0
        %1524 = vmatpush1.msra.mxu0 0.0
        %1525 = vmatprep.subr.mxu0 0.0
        %1526 = vmatpush1.msra.mxu0 0.0
        %1527 = vmatprep.subr.mxu0 0.0
        %1528 = vmatpush1.msra.mxu0 0.0
        %1529 = vmatprep.subr.mxu0 0.0
        %1530 = vmatpush1.msra.mxu0 0.0
        %1531 = vmatprep.subr.mxu0 0.0
        %1532 = vmatpush1.msra.mxu0 0.0
        %1533 = vmatprep.subr.mxu0 0.0
        %1534 = vmatpush1.msra.mxu0 0.0
        %1535 = vmatprep.subr.mxu0 0.0
        %1536 = vmatpush1.msra.mxu0 0.0
        %1537 = vmatprep.subr.mxu0 0.0
        %1538 = vmatpush1.msra.mxu0 0.0
        %1539 = vmatprep.subr.mxu0 0.0
        %1540 = vmatpush1.msra.mxu0 0.0
        %1541 = vmatprep.subr.mxu0 0.0
        %1542 = vmatpush1.msra.mxu0 0.0
        %1543 = vmatprep.subr.mxu0 0.0
        %1544 = vmatpush1.msra.mxu0 0.0
        %1545 = vmatprep.subr.mxu0 0.0
        %1546 = vmatpush1.msra.mxu0 0.0
        %1547 = vmatprep.subr.mxu0 0.0
        %1548 = vmatpush1.msra.mxu0 0.0
        %1549 = vmatprep.subr.mxu0 0.0
        %1550 = vmatpush1.msra.mxu0 0.0
        %1551 = vmatprep.mubr.f32.mxu0 0.0
        %1552 = vmatmul.mubr.f32.gmra.mrb[0].mxu0 %v1485
        %v1553 = vpop.f32.mrb[0].mxu0
        %v1554 = vadd.f32 0.0, %v1553
        %v1555 = vpop.f32.mrb[0].mxu0
        %1556 = vdwg.mxu0
        %v1558 = vsel %vm915, %v1554, 0
        %1560 = vmatprep.subr.mxu0 0.0
        %1561 = vmatpush1.msra.mxu0 %v746
        %1562 = vmatprep.subr.mxu0 0.0
        %1563 = vmatpush1.msra.mxu0 0.0
        %1564 = vmatprep.subr.mxu0 0.0
        %1565 = vmatpush1.msra.mxu0 0.0
        %1566 = vmatprep.subr.mxu0 0.0
        %1567 = vmatpush1.msra.mxu0 0.0
        %1568 = vmatprep.subr.mxu0 0.0
        %1569 = vmatpush1.msra.mxu0 0.0
        %1570 = vmatprep.subr.mxu0 0.0
        %1571 = vmatpush1.msra.mxu0 0.0
        %1572 = vmatprep.subr.mxu0 0.0
        %1573 = vmatpush1.msra.mxu0 0.0
        %1574 = vmatprep.subr.mxu0 0.0
        %1575 = vmatpush1.msra.mxu0 0.0
        %1576 = vmatprep.subr.mxu0 0.0
        %1577 = vmatpush1.msra.mxu0 0.0
        %1578 = vmatprep.subr.mxu0 0.0
        %1579 = vmatpush1.msra.mxu0 0.0
        %1580 = vmatprep.subr.mxu0 0.0
        %1581 = vmatpush1.msra.mxu0 0.0
        %1582 = vmatprep.subr.mxu0 0.0
        %1583 = vmatpush1.msra.mxu0 0.0
        %1584 = vmatprep.subr.mxu0 0.0
        %1585 = vmatpush1.msra.mxu0 0.0
        %1586 = vmatprep.subr.mxu0 0.0
        %1587 = vmatpush1.msra.mxu0 0.0
        %1588 = vmatprep.subr.mxu0 0.0
        %1589 = vmatpush1.msra.mxu0 0.0
        %1590 = vmatprep.subr.mxu0 0.0
        %1591 = vmatpush1.msra.mxu0 0.0
        %1592 = vmatprep.subr.mxu0 0.0
        %1593 = vmatpush1.msra.mxu0 0.0
        %1594 = vmatprep.subr.mxu0 0.0
        %1595 = vmatpush1.msra.mxu0 0.0
        %1596 = vmatprep.subr.mxu0 0.0
        %1597 = vmatpush1.msra.mxu0 0.0
        %1598 = vmatprep.subr.mxu0 0.0
        %1599 = vmatpush1.msra.mxu0 0.0
        %1600 = vmatprep.subr.mxu0 0.0
        %1601 = vmatpush1.msra.mxu0 0.0
        %1602 = vmatprep.subr.mxu0 0.0
        %1603 = vmatpush1.msra.mxu0 0.0
        %1604 = vmatprep.subr.mxu0 0.0
        %1605 = vmatpush1.msra.mxu0 0.0
        %1606 = vmatprep.subr.mxu0 0.0
        %1607 = vmatpush1.msra.mxu0 0.0
        %1608 = vmatprep.subr.mxu0 0.0
        %1609 = vmatpush1.msra.mxu0 0.0
        %1610 = vmatprep.subr.mxu0 0.0
        %1611 = vmatpush1.msra.mxu0 0.0
        %1612 = vmatprep.subr.mxu0 0.0
        %1613 = vmatpush1.msra.mxu0 0.0
        %1614 = vmatprep.subr.mxu0 0.0
        %1615 = vmatpush1.msra.mxu0 0.0
        %1616 = vmatprep.subr.mxu0 0.0
        %1617 = vmatpush1.msra.mxu0 0.0
        %1618 = vmatprep.subr.mxu0 0.0
        %1619 = vmatpush1.msra.mxu0 0.0
        %1620 = vmatprep.subr.mxu0 0.0
        %1621 = vmatpush1.msra.mxu0 0.0
        %1622 = vmatprep.subr.mxu0 0.0
        %1623 = vmatpush1.msra.mxu0 0.0
        %1624 = vmatprep.mubr.f32.mxu0 0.0
        %1625 = vmatmul.mubr.f32.gmra.mrb[0].mxu0 %v1558
        %v1626 = vpop.f32.mrb[0].mxu0
        %v1627 = vadd.f32 0.0, %v1626
        %v1628 = vpop.f32.mrb[0].mxu0
        %1629 = vdwg.mxu0
        %v1630 = vadd.f32 %v1391, %v1627
        %1631 = vrot.lane.b32.xlu0 %v914, 104
        %v1632 = vpop.permute.xlu0 %1631
        %1633 = vrot.lane.b32.xlu0 %v904, 104
        %v1634 = vpop.permute.xlu0 %1633
        %v1635 = vsel %vm915, %v1632, 0
        %v1637 = vsel %vm915, %v1634, 0
        %1639 = vmatprep.subr.mxu0 0.0
        %1640 = vmatpush1.xpose.msra.mxu0 %v1637
        %1641 = vmatprep.subr.mxu0 0.0
        %1642 = vmatpush1.xpose.msra.mxu0 0.0
        %1643 = vmatprep.subr.mxu0 0.0
        %1644 = vmatpush1.xpose.msra.mxu0 0.0
        %1645 = vmatprep.subr.mxu0 0.0
        %1646 = vmatpush1.xpose.msra.mxu0 0.0
        %1647 = vmatprep.subr.mxu0 0.0
        %1648 = vmatpush1.xpose.msra.mxu0 0.0
        %1649 = vmatprep.subr.mxu0 0.0
        %1650 = vmatpush1.xpose.msra.mxu0 0.0
        %1651 = vmatprep.subr.mxu0 0.0
        %1652 = vmatpush1.xpose.msra.mxu0 0.0
        %1653 = vmatprep.subr.mxu0 0.0
        %1654 = vmatpush1.xpose.msra.mxu0 0.0
        %1655 = vmatprep.subr.mxu0 0.0
        %1656 = vmatpush1.xpose.msra.mxu0 0.0
        %1657 = vmatprep.subr.mxu0 0.0
        %1658 = vmatpush1.xpose.msra.mxu0 0.0
        %1659 = vmatprep.subr.mxu0 0.0
        %1660 = vmatpush1.xpose.msra.mxu0 0.0
        %1661 = vmatprep.subr.mxu0 0.0
        %1662 = vmatpush1.xpose.msra.mxu0 0.0
        %1663 = vmatprep.subr.mxu0 0.0
        %1664 = vmatpush1.xpose.msra.mxu0 0.0
        %1665 = vmatprep.subr.mxu0 0.0
        %1666 = vmatpush1.xpose.msra.mxu0 0.0
        %1667 = vmatprep.subr.mxu0 0.0
        %1668 = vmatpush1.xpose.msra.mxu0 0.0
        %1669 = vmatprep.subr.mxu0 0.0
        %1670 = vmatpush1.xpose.msra.mxu0 0.0
        %1671 = vmatprep.subr.mxu0 0.0
        %1672 = vmatpush1.xpose.msra.mxu0 0.0
        %1673 = vmatprep.subr.mxu0 0.0
        %1674 = vmatpush1.xpose.msra.mxu0 0.0
        %1675 = vmatprep.subr.mxu0 0.0
        %1676 = vmatpush1.xpose.msra.mxu0 0.0
        %1677 = vmatprep.subr.mxu0 0.0
        %1678 = vmatpush1.xpose.msra.mxu0 0.0
        %1679 = vmatprep.subr.mxu0 0.0
        %1680 = vmatpush1.xpose.msra.mxu0 0.0
        %1681 = vmatprep.subr.mxu0 0.0
        %1682 = vmatpush1.xpose.msra.mxu0 0.0
        %1683 = vmatprep.subr.mxu0 0.0
        %1684 = vmatpush1.xpose.msra.mxu0 0.0
        %1685 = vmatprep.subr.mxu0 0.0
        %1686 = vmatpush1.xpose.msra.mxu0 0.0
        %1687 = vmatprep.subr.mxu0 0.0
        %1688 = vmatpush1.xpose.msra.mxu0 0.0
        %1689 = vmatprep.subr.mxu0 0.0
        %1690 = vmatpush1.xpose.msra.mxu0 0.0
        %1691 = vmatprep.subr.mxu0 0.0
        %1692 = vmatpush1.xpose.msra.mxu0 0.0
        %1693 = vmatprep.subr.mxu0 0.0
        %1694 = vmatpush1.xpose.msra.mxu0 0.0
        %1695 = vmatprep.subr.mxu0 0.0
        %1696 = vmatpush1.xpose.msra.mxu0 0.0
        %1697 = vmatprep.subr.mxu0 0.0
        %1698 = vmatpush1.xpose.msra.mxu0 0.0
        %1699 = vmatprep.subr.mxu0 0.0
        %1700 = vmatpush1.xpose.msra.mxu0 0.0
        %1701 = vmatprep.subr.mxu0 0.0
        %1702 = vmatpush1.xpose.msra.mxu0 0.0
        %1703 = vmatprep.mubr.f32.mxu0 0.0
        %1704 = vmatmul.mubr.f32.gmra.mrb[0].mxu0 %v1635
        %v1705 = vpop.f32.mrb[0].mxu0
        %v1706 = vadd.f32 0.0, %v1705
        %v1707 = vpop.f32.mrb[0].mxu0
        %1708 = vdwg.mxu0
        %v1709 = vsel %vm915, %v1706, -inf
        %1710 = vmax.xlane.f32.xlu0 %v1709
        %v1711 = vpop.xlane.xlu0 %1710
        %v1712 = vsub.f32 %v1706, %v1711
        %v1713 = vmul.f32 %v1712, 1.442695
        %v1714 = vpow.pop %v1713
        %v1715 = vsel %vm915, %v1714, 0.0
        %1716 = vadd.xlane.f32.xlu0 %v1715
        %v1717 = vpop.xlane.xlu0 %1716
        %v1718 = vrcp.pop %v1717
        %v1719 = vmul.f32 %v1714, %v1718
        %1720 = vrot.lane.b32.xlu0 %v904, 72
        %v1721 = vpop.permute.xlu0 %1720
        %v1724 = vsel %vm915, %v1719, 0
        %1726 = vmatprep.subr.mxu0 0.0
        %1727 = vmatpush1.msra.mxu0 %v1721
        %1728 = vmatprep.subr.mxu0 0.0
        %1729 = vmatpush1.msra.mxu0 0.0
        %1730 = vmatprep.subr.mxu0 0.0
        %1731 = vmatpush1.msra.mxu0 0.0
        %1732 = vmatprep.subr.mxu0 0.0
        %1733 = vmatpush1.msra.mxu0 0.0
        %1734 = vmatprep.subr.mxu0 0.0
        %1735 = vmatpush1.msra.mxu0 0.0
        %1736 = vmatprep.subr.mxu0 0.0
        %1737 = vmatpush1.msra.mxu0 0.0
        %1738 = vmatprep.subr.mxu0 0.0
        %1739 = vmatpush1.msra.mxu0 0.0
        %1740 = vmatprep.subr.mxu0 0.0
        %1741 = vmatpush1.msra.mxu0 0.0
        %1742 = vmatprep.subr.mxu0 0.0
        %1743 = vmatpush1.msra.mxu0 0.0
        %1744 = vmatprep.subr.mxu0 0.0
        %1745 = vmatpush1.msra.mxu0 0.0
        %1746 = vmatprep.subr.mxu0 0.0
        %1747 = vmatpush1.msra.mxu0 0.0
        %1748 = vmatprep.subr.mxu0 0.0
        %1749 = vmatpush1.msra.mxu0 0.0
        %1750 = vmatprep.subr.mxu0 0.0
        %1751 = vmatpush1.msra.mxu0 0.0
        %1752 = vmatprep.subr.mxu0 0.0
        %1753 = vmatpush1.msra.mxu0 0.0
        %1754 = vmatprep.subr.mxu0 0.0
        %1755 = vmatpush1.msra.mxu0 0.0
        %1756 = vmatprep.subr.mxu0 0.0
        %1757 = vmatpush1.msra.mxu0 0.0
        %1758 = vmatprep.subr.mxu0 0.0
        %1759 = vmatpush1.msra.mxu0 0.0
        %1760 = vmatprep.subr.mxu0 0.0
        %1761 = vmatpush1.msra.mxu0 0.0
        %1762 = vmatprep.subr.mxu0 0.0
        %1763 = vmatpush1.msra.mxu0 0.0
        %1764 = vmatprep.subr.mxu0 0.0
        %1765 = vmatpush1.msra.mxu0 0.0
        %1766 = vmatprep.subr.mxu0 0.0
        %1767 = vmatpush1.msra.mxu0 0.0
        %1768 = vmatprep.subr.mxu0 0.0
        %1769 = vmatpush1.msra.mxu0 0.0
        %1770 = vmatprep.subr.mxu0 0.0
        %1771 = vmatpush1.msra.mxu0 0.0
        %1772 = vmatprep.subr.mxu0 0.0
        %1773 = vmatpush1.msra.mxu0 0.0
        %1774 = vmatprep.subr.mxu0 0.0
        %1775 = vmatpush1.msra.mxu0 0.0
        %1776 = vmatprep.subr.mxu0 0.0
        %1777 = vmatpush1.msra.mxu0 0.0
        %1778 = vmatprep.subr.mxu0 0.0
        %1779 = vmatpush1.msra.mxu0 0.0
        %1780 = vmatprep.subr.mxu0 0.0
        %1781 = vmatpush1.msra.mxu0 0.0
        %1782 = vmatprep.subr.mxu0 0.0
        %1783 = vmatpush1.msra.mxu0 0.0
        %1784 = vmatprep.subr.mxu0 0.0
        %1785 = vmatpush1.msra.mxu0 0.0
        %1786 = vmatprep.subr.mxu0 0.0
        %1787 = vmatpush1.msra.mxu0 0.0
        %1788 = vmatprep.subr.mxu0 0.0
        %1789 = vmatpush1.msra.mxu0 0.0
        %1790 = vmatprep.mubr.f32.mxu0 0.0
        %1791 = vmatmul.mubr.f32.gmra.mrb[0].mxu0 %v1724
        %v1792 = vpop.f32.mrb[0].mxu0
        %v1793 = vadd.f32 0.0, %v1792
        %v1794 = vpop.f32.mrb[0].mxu0
        %1795 = vdwg.mxu0
        %v1797 = vsel %vm915, %v1793, 0
        %1799 = vmatprep.subr.mxu0 0.0
        %1800 = vmatpush1.msra.mxu0 %v747
        %1801 = vmatprep.subr.mxu0 0.0
        %1802 = vmatpush1.msra.mxu0 0.0
        %1803 = vmatprep.subr.mxu0 0.0
        %1804 = vmatpush1.msra.mxu0 0.0
        %1805 = vmatprep.subr.mxu0 0.0
        %1806 = vmatpush1.msra.mxu0 0.0
        %1807 = vmatprep.subr.mxu0 0.0
        %1808 = vmatpush1.msra.mxu0 0.0
        %1809 = vmatprep.subr.mxu0 0.0
        %1810 = vmatpush1.msra.mxu0 0.0
        %1811 = vmatprep.subr.mxu0 0.0
        %1812 = vmatpush1.msra.mxu0 0.0
        %1813 = vmatprep.subr.mxu0 0.0
        %1814 = vmatpush1.msra.mxu0 0.0
        %1815 = vmatprep.subr.mxu0 0.0
        %1816 = vmatpush1.msra.mxu0 0.0
        %1817 = vmatprep.subr.mxu0 0.0
        %1818 = vmatpush1.msra.mxu0 0.0
        %1819 = vmatprep.subr.mxu0 0.0
        %1820 = vmatpush1.msra.mxu0 0.0
        %1821 = vmatprep.subr.mxu0 0.0
        %1822 = vmatpush1.msra.mxu0 0.0
        %1823 = vmatprep.subr.mxu0 0.0
        %1824 = vmatpush1.msra.mxu0 0.0
        %1825 = vmatprep.subr.mxu0 0.0
        %1826 = vmatpush1.msra.mxu0 0.0
        %1827 = vmatprep.subr.mxu0 0.0
        %1828 = vmatpush1.msra.mxu0 0.0
        %1829 = vmatprep.subr.mxu0 0.0
        %1830 = vmatpush1.msra.mxu0 0.0
        %1831 = vmatprep.subr.mxu0 0.0
        %1832 = vmatpush1.msra.mxu0 0.0
        %1833 = vmatprep.subr.mxu0 0.0
        %1834 = vmatpush1.msra.mxu0 0.0
        %1835 = vmatprep.subr.mxu0 0.0
        %1836 = vmatpush1.msra.mxu0 0.0
        %1837 = vmatprep.subr.mxu0 0.0
        %1838 = vmatpush1.msra.mxu0 0.0
        %1839 = vmatprep.subr.mxu0 0.0
        %1840 = vmatpush1.msra.mxu0 0.0
        %1841 = vmatprep.subr.mxu0 0.0
        %1842 = vmatpush1.msra.mxu0 0.0
        %1843 = vmatprep.subr.mxu0 0.0
        %1844 = vmatpush1.msra.mxu0 0.0
        %1845 = vmatprep.subr.mxu0 0.0
        %1846 = vmatpush1.msra.mxu0 0.0
        %1847 = vmatprep.subr.mxu0 0.0
        %1848 = vmatpush1.msra.mxu0 0.0
        %1849 = vmatprep.subr.mxu0 0.0
        %1850 = vmatpush1.msra.mxu0 0.0
        %1851 = vmatprep.subr.mxu0 0.0
        %1852 = vmatpush1.msra.mxu0 0.0
        %1853 = vmatprep.subr.mxu0 0.0
        %1854 = vmatpush1.msra.mxu0 0.0
        %1855 = vmatprep.subr.mxu0 0.0
        %1856 = vmatpush1.msra.mxu0 0.0
        %1857 = vmatprep.subr.mxu0 0.0
        %1858 = vmatpush1.msra.mxu0 0.0
        %1859 = vmatprep.subr.mxu0 0.0
        %1860 = vmatpush1.msra.mxu0 0.0
        %1861 = vmatprep.subr.mxu0 0.0
        %1862 = vmatpush1.msra.mxu0 0.0
        %1863 = vmatprep.mubr.f32.mxu0 0.0
        %1864 = vmatmul.mubr.f32.gmra.mrb[0].mxu0 %v1797
        %v1865 = vpop.f32.mrb[0].mxu0
        %v1866 = vadd.f32 0.0, %v1865
        %v1867 = vpop.f32.mrb[0].mxu0
        %1868 = vdwg.mxu0
        %v1869 = vadd.f32 %v1630, %v1866
        %v1870 = vadd.f32 %v732, %v1869
        %v1871 = vsel %vm757, %v1870, 0.0
        %1872 = vadd.xlane.f32.xlu0 %v1871
        %v1873 = vpop.xlane.xlu0 %1872
        %v1874 = vrcp.pop 32.0
        %v1875 = vmul.f32 %v1873, %v1874
        %v1876 = vsub.f32 %v1870, %v1875
        %v1877 = vmul.f32 %v1876, %v1876
        %v1878 = vsel %vm757, %v1877, 0.0
        %1879 = vadd.xlane.f32.xlu0 %v1878
        %v1880 = vpop.xlane.xlu0 %1879
        %v1881 = vmul.f32 %v1880, %v1874
        %v1882 = vadd.f32 %v1881, 1e-05
        %v1883 = vrsqrt.pop %v1882
        %v1884 = vmul.f32 %v1876, %v1883
        %v1886 = vlaneseq
        %v1887 = vshrl.u32 %v1886, 7
        %v1888 = vsub.s32 0, %v1887
        %v1889 = vrot.slane %v749, %v1888
        %v1891 = vmul.f32 %v1884, %v1889
        %v1893 = vlaneseq
        %v1894 = vshrl.u32 %v1893, 7
        %v1895 = vsub.s32 0, %v1894
        %v1896 = vrot.slane %v750, %v1895
        %v1898 = vadd.f32 %v1891, %v1896
        %v1899 = vld [vmem:[#allocation7] sm:$0xff]
        %v1900 = vld [vmem:[#allocation7 + $0x8] sm:$0xff]
        %v1901 = vld [vmem:[#allocation7 + $0x10] sm:$0xff]
        %v1902 = vld [vmem:[#allocation7 + $0x18] sm:$0xff]
        %v1903 = vld [vmem:[#allocation9] sm:$0x1]
        %v1904 = vld [vmem:[#allocation10] sm:$0xff]
        %v1905 = vld [vmem:[#allocation10 + $0x8] sm:$0xff]
        %v1906 = vld [vmem:[#allocation10 + $0x10] sm:$0xff]
        %v1907 = vld [vmem:[#allocation10 + $0x18] sm:$0xff]
        %v1908 = vld [vmem:[#allocation12] sm:$0x1]
        %v1909 = vld [vmem:[#allocation13] sm:$0xff]
        %v1910 = vld [vmem:[#allocation13 + $0x8] sm:$0xff]
        %v1911 = vld [vmem:[#allocation13 + $0x10] sm:$0xff]
        %v1912 = vld [vmem:[#allocation13 + $0x18] sm:$0xff]
        %v1913 = vld [vmem:[#allocation15] sm:$0x1]
        %v1914 = vld [vmem:[#allocation16] sm:$0x1]
        %v1915 = vld [vmem:[#allocation18] sm:$0x1]
        %v1917 = vlaneseq
        %v1918 = vshrl.u32 %v1917, 7
        %v1919 = vsub.s32 0, %v1918
        %v1920 = vrot.slane %v1903, %v1919
        %v1923 = vsel %vm757, %v1898, 0
        %1925 = vmatprep.subr.mxu0 0.0
        %1926 = vmatpush1.msra.mxu0 %v1899
        %1927 = vmatprep.subr.mxu0 0.0
        %1928 = vmatpush1.msra.mxu0 %v1900
        %1929 = vmatprep.subr.mxu0 0.0
        %1930 = vmatpush1.msra.mxu0 %v1901
        %1931 = vmatprep.subr.mxu0 0.0
        %1932 = vmatpush1.msra.mxu0 %v1902
        %1933 = vmatprep.subr.mxu0 0.0
        %1934 = vmatpush1.msra.mxu0 0.0
        %1935 = vmatprep.subr.mxu0 0.0
        %1936 = vmatpush1.msra.mxu0 0.0
        %1937 = vmatprep.subr.mxu0 0.0
        %1938 = vmatpush1.msra.mxu0 0.0
        %1939 = vmatprep.subr.mxu0 0.0
        %1940 = vmatpush1.msra.mxu0 0.0
        %1941 = vmatprep.subr.mxu0 0.0
        %1942 = vmatpush1.msra.mxu0 0.0
        %1943 = vmatprep.subr.mxu0 0.0
        %1944 = vmatpush1.msra.mxu0 0.0
        %1945 = vmatprep.subr.mxu0 0.0
        %1946 = vmatpush1.msra.mxu0 0.0
        %1947 = vmatprep.subr.mxu0 0.0
        %1948 = vmatpush1.msra.mxu0 0.0
        %1949 = vmatprep.subr.mxu0 0.0
        %1950 = vmatpush1.msra.mxu0 0.0
        %1951 = vmatprep.subr.mxu0 0.0
        %1952 = vmatpush1.msra.mxu0 0.0
        %1953 = vmatprep.subr.mxu0 0.0
        %1954 = vmatpush1.msra.mxu0 0.0
        %1955 = vmatprep.subr.mxu0 0.0
        %1956 = vmatpush1.msra.mxu0 0.0
        %1957 = vmatprep.subr.mxu0 0.0
        %1958 = vmatpush1.msra.mxu0 0.0
        %1959 = vmatprep.subr.mxu0 0.0
        %1960 = vmatpush1.msra.mxu0 0.0
        %1961 = vmatprep.subr.mxu0 0.0
        %1962 = vmatpush1.msra.mxu0 0.0
        %1963 = vmatprep.subr.mxu0 0.0
        %1964 = vmatpush1.msra.mxu0 0.0
        %1965 = vmatprep.subr.mxu0 0.0
        %1966 = vmatpush1.msra.mxu0 0.0
        %1967 = vmatprep.subr.mxu0 0.0
        %1968 = vmatpush1.msra.mxu0 0.0
        %1969 = vmatprep.subr.mxu0 0.0
        %1970 = vmatpush1.msra.mxu0 0.0
        %1971 = vmatprep.subr.mxu0 0.0
        %1972 = vmatpush1.msra.mxu0 0.0
        %1973 = vmatprep.subr.mxu0 0.0
        %1974 = vmatpush1.msra.mxu0 0.0
        %1975 = vmatprep.subr.mxu0 0.0
        %1976 = vmatpush1.msra.mxu0 0.0
        %1977 = vmatprep.subr.mxu0 0.0
        %1978 = vmatpush1.msra.mxu0 0.0
        %1979 = vmatprep.subr.mxu0 0.0
        %1980 = vmatpush1.msra.mxu0 0.0
        %1981 = vmatprep.subr.mxu0 0.0
        %1982 = vmatpush1.msra.mxu0 0.0
        %1983 = vmatprep.subr.mxu0 0.0
        %1984 = vmatpush1.msra.mxu0 0.0
        %1985 = vmatprep.subr.mxu0 0.0
        %1986 = vmatpush1.msra.mxu0 0.0
        %1987 = vmatprep.subr.mxu0 0.0
        %1988 = vmatpush1.msra.mxu0 0.0
        %1989 = vmatprep.mubr.f32.mxu0 0.0
        %1990 = vmatmul.mubr.f32.gmra.mrb[0].mxu0 %v1923
        %v1991 = vpop.f32.mrb[0].mxu0
        %v1992 = vadd.f32 %v1920, %v1991
        %v1993 = vpop.f32.mrb[0].mxu0
        %1994 = vdwg.mxu0
        %v1996 = vlaneseq
        %v1997 = vshrl.u32 %v1996, 7
        %v1998 = vsub.s32 0, %v1997
        %v1999 = vrot.slane %v1908, %v1998
        %v2002 = vsel %vm757, %v733, 0
        %2004 = vmatprep.subr.mxu0 0.0
        %2005 = vmatpush1.msra.mxu0 %v1904
        %2006 = vmatprep.subr.mxu0 0.0
        %2007 = vmatpush1.msra.mxu0 %v1905
        %2008 = vmatprep.subr.mxu0 0.0
        %2009 = vmatpush1.msra.mxu0 %v1906
        %2010 = vmatprep.subr.mxu0 0.0
        %2011 = vmatpush1.msra.mxu0 %v1907
        %2012 = vmatprep.subr.mxu0 0.0
        %2013 = vmatpush1.msra.mxu0 0.0
        %2014 = vmatprep.subr.mxu0 0.0
        %2015 = vmatpush1.msra.mxu0 0.0
        %2016 = vmatprep.subr.mxu0 0.0
        %2017 = vmatpush1.msra.mxu0 0.0
        %2018 = vmatprep.subr.mxu0 0.0
        %2019 = vmatpush1.msra.mxu0 0.0
        %2020 = vmatprep.subr.mxu0 0.0
        %2021 = vmatpush1.msra.mxu0 0.0
        %2022 = vmatprep.subr.mxu0 0.0
        %2023 = vmatpush1.msra.mxu0 0.0
        %2024 = vmatprep.subr.mxu0 0.0
        %2025 = vmatpush1.msra.mxu0 0.0
        %2026 = vmatprep.subr.mxu0 0.0
        %2027 = vmatpush1.msra.mxu0 0.0
        %2028 = vmatprep.subr.mxu0 0.0
        %2029 = vmatpush1.msra.mxu0 0.0
        %2030 = vmatprep.subr.mxu0 0.0
        %2031 = vmatpush1.msra.mxu0 0.0
        %2032 = vmatprep.subr.mxu0 0.0
        %2033 = vmatpush1.msra.mxu0 0.0
        %2034 = vmatprep.subr.mxu0 0.0
        %2035 = vmatpush1.msra.mxu0 0.0
        %2036 = vmatprep.subr.mxu0 0.0
        %2037 = vmatpush1.msra.mxu0 0.0
        %2038 = vmatprep.subr.mxu0 0.0
        %2039 = vmatpush1.msra.mxu0 0.0
        %2040 = vmatprep.subr.mxu0 0.0
        %2041 = vmatpush1.msra.mxu0 0.0
        %2042 = vmatprep.subr.mxu0 0.0
        %2043 = vmatpush1.msra.mxu0 0.0
        %2044 = vmatprep.subr.mxu0 0.0
        %2045 = vmatpush1.msra.mxu0 0.0
        %2046 = vmatprep.subr.mxu0 0.0
        %2047 = vmatpush1.msra.mxu0 0.0
        %2048 = vmatprep.subr.mxu0 0.0
        %2049 = vmatpush1.msra.mxu0 0.0
        %2050 = vmatprep.subr.mxu0 0.0
        %2051 = vmatpush1.msra.mxu0 0.0
        %2052 = vmatprep.subr.mxu0 0.0
        %2053 = vmatpush1.msra.mxu0 0.0
        %2054 = vmatprep.subr.mxu0 0.0
        %2055 = vmatpush1.msra.mxu0 0.0
        %2056 = vmatprep.subr.mxu0 0.0
        %2057 = vmatpush1.msra.mxu0 0.0
        %2058 = vmatprep.subr.mxu0 0.0
        %2059 = vmatpush1.msra.mxu0 0.0
        %2060 = vmatprep.subr.mxu0 0.0
        %2061 = vmatpush1.msra.mxu0 0.0
        %2062 = vmatprep.subr.mxu0 0.0
        %2063 = vmatpush1.msra.mxu0 0.0
        %2064 = vmatprep.subr.mxu0 0.0
        %2065 = vmatpush1.msra.mxu0 0.0
        %2066 = vmatprep.subr.mxu0 0.0
        %2067 = vmatpush1.msra.mxu0 0.0
        %2068 = vmatprep.mubr.f32.mxu0 0.0
        %2069 = vmatmul.mubr.f32.gmra.mrb[0].mxu0 %v2002
        %v2070 = vpop.f32.mrb[0].mxu0
        %v2071 = vadd.f32 %v1999, %v2070
        %v2072 = vpop.f32.mrb[0].mxu0
        %2073 = vdwg.mxu0
        %v2075 = vlaneseq
        %v2076 = vshrl.u32 %v2075, 7
        %v2077 = vsub.s32 0, %v2076
        %v2078 = vrot.slane %v1913, %v2077
        %v2080 = vadd.f32 %v2078, 0.0
        %v2081 = vmul.f32 %v1992, 0.35355338
        %v2083 = vsel %vm915, %v2081, 0
        %v2086 = vsel %vm915, %v2071, 0
        %2088 = vmatprep.subr.mxu0 0.0
        %2089 = vmatpush1.xpose.msra.mxu0 %v2086
        %2090 = vmatprep.subr.mxu0 0.0
        %2091 = vmatpush1.xpose.msra.mxu0 0.0
        %2092 = vmatprep.subr.mxu0 0.0
        %2093 = vmatpush1.xpose.msra.mxu0 0.0
        %2094 = vmatprep.subr.mxu0 0.0
        %2095 = vmatpush1.xpose.msra.mxu0 0.0
        %2096 = vmatprep.subr.mxu0 0.0
        %2097 = vmatpush1.xpose.msra.mxu0 0.0
        %2098 = vmatprep.subr.mxu0 0.0
        %2099 = vmatpush1.xpose.msra.mxu0 0.0
        %2100 = vmatprep.subr.mxu0 0.0
        %2101 = vmatpush1.xpose.msra.mxu0 0.0
        %2102 = vmatprep.subr.mxu0 0.0
        %2103 = vmatpush1.xpose.msra.mxu0 0.0
        %2104 = vmatprep.subr.mxu0 0.0
        %2105 = vmatpush1.xpose.msra.mxu0 0.0
        %2106 = vmatprep.subr.mxu0 0.0
        %2107 = vmatpush1.xpose.msra.mxu0 0.0
        %2108 = vmatprep.subr.mxu0 0.0
        %2109 = vmatpush1.xpose.msra.mxu0 0.0
        %2110 = vmatprep.subr.mxu0 0.0
        %2111 = vmatpush1.xpose.msra.mxu0 0.0
        %2112 = vmatprep.subr.mxu0 0.0
        %2113 = vmatpush1.xpose.msra.mxu0 0.0
        %2114 = vmatprep.subr.mxu0 0.0
        %2115 = vmatpush1.xpose.msra.mxu0 0.0
        %2116 = vmatprep.subr.mxu0 0.0
        %2117 = vmatpush1.xpose.msra.mxu0 0.0
        %2118 = vmatprep.subr.mxu0 0.0
        %2119 = vmatpush1.xpose.msra.mxu0 0.0
        %2120 = vmatprep.subr.mxu0 0.0
        %2121 = vmatpush1.xpose.msra.mxu0 0.0
        %2122 = vmatprep.subr.mxu0 0.0
        %2123 = vmatpush1.xpose.msra.mxu0 0.0
        %2124 = vmatprep.subr.mxu0 0.0
        %2125 = vmatpush1.xpose.msra.mxu0 0.0
        %2126 = vmatprep.subr.mxu0 0.0
        %2127 = vmatpush1.xpose.msra.mxu0 0.0
        %2128 = vmatprep.subr.mxu0 0.0
        %2129 = vmatpush1.xpose.msra.mxu0 0.0
        %2130 = vmatprep.subr.mxu0 0.0
        %2131 = vmatpush1.xpose.msra.mxu0 0.0
        %2132 = vmatprep.subr.mxu0 0.0
        %2133 = vmatpush1.xpose.msra.mxu0 0.0
        %2134 = vmatprep.subr.mxu0 0.0
        %2135 = vmatpush1.xpose.msra.mxu0 0.0
        %2136 = vmatprep.subr.mxu0 0.0
        %2137 = vmatpush1.xpose.msra.mxu0 0.0
        %2138 = vmatprep.subr.mxu0 0.0
        %2139 = vmatpush1.xpose.msra.mxu0 0.0
        %2140 = vmatprep.subr.mxu0 0.0
        %2141 = vmatpush1.xpose.msra.mxu0 0.0
        %2142 = vmatprep.subr.mxu0 0.0
        %2143 = vmatpush1.xpose.msra.mxu0 0.0
        %2144 = vmatprep.subr.mxu0 0.0
        %2145 = vmatpush1.xpose.msra.mxu0 0.0
        %2146 = vmatprep.subr.mxu0 0.0
        %2147 = vmatpush1.xpose.msra.mxu0 0.0
        %2148 = vmatprep.subr.mxu0 0.0
        %2149 = vmatpush1.xpose.msra.mxu0 0.0
        %2150 = vmatprep.subr.mxu0 0.0
        %2151 = vmatpush1.xpose.msra.mxu0 0.0
        %2152 = vmatprep.mubr.f32.mxu0 0.0
        %2153 = vmatmul.mubr.f32.gmra.mrb[0].mxu0 %v2083
        %v2154 = vpop.f32.mrb[0].mxu0
        %v2155 = vadd.f32 0.0, %v2154
        %v2156 = vpop.f32.mrb[0].mxu0
        %2157 = vdwg.mxu0
        %v2158 = vsel %vm915, %v2155, -inf
        %2159 = vmax.xlane.f32.xlu0 %v2158
        %v2160 = vpop.xlane.xlu0 %2159
        %v2161 = vsub.f32 %v2155, %v2160
        %v2162 = vmul.f32 %v2161, 1.442695
        %v2163 = vpow.pop %v2162
        %v2164 = vsel %vm915, %v2163, 0.0
        %2165 = vadd.xlane.f32.xlu0 %v2164
        %v2166 = vpop.xlane.xlu0 %2165
        %v2167 = vrcp.pop %v2166
        %v2168 = vmul.f32 %v2163, %v2167
        %2169 = vrot.lane.b32.xlu0 %v2071, 96
        %v2170 = vpop.permute.xlu0 %2169
        %v2173 = vsel %vm915, %v2168, 0
        %2175 = vmatprep.subr.mxu0 0.0
        %2176 = vmatpush1.msra.mxu0 %v2170
        %2177 = vmatprep.subr.mxu0 0.0
        %2178 = vmatpush1.msra.mxu0 0.0
        %2179 = vmatprep.subr.mxu0 0.0
        %2180 = vmatpush1.msra.mxu0 0.0
        %2181 = vmatprep.subr.mxu0 0.0
        %2182 = vmatpush1.msra.mxu0 0.0
        %2183 = vmatprep.subr.mxu0 0.0
        %2184 = vmatpush1.msra.mxu0 0.0
        %2185 = vmatprep.subr.mxu0 0.0
        %2186 = vmatpush1.msra.mxu0 0.0
        %2187 = vmatprep.subr.mxu0 0.0
        %2188 = vmatpush1.msra.mxu0 0.0
        %2189 = vmatprep.subr.mxu0 0.0
        %2190 = vmatpush1.msra.mxu0 0.0
        %2191 = vmatprep.subr.mxu0 0.0
        %2192 = vmatpush1.msra.mxu0 0.0
        %2193 = vmatprep.subr.mxu0 0.0
        %2194 = vmatpush1.msra.mxu0 0.0
        %2195 = vmatprep.subr.mxu0 0.0
        %2196 = vmatpush1.msra.mxu0 0.0
        %2197 = vmatprep.subr.mxu0 0.0
        %2198 = vmatpush1.msra.mxu0 0.0
        %2199 = vmatprep.subr.mxu0 0.0
        %2200 = vmatpush1.msra.mxu0 0.0
        %2201 = vmatprep.subr.mxu0 0.0
        %2202 = vmatpush1.msra.mxu0 0.0
        %2203 = vmatprep.subr.mxu0 0.0
        %2204 = vmatpush1.msra.mxu0 0.0
        %2205 = vmatprep.subr.mxu0 0.0
        %2206 = vmatpush1.msra.mxu0 0.0
        %2207 = vmatprep.subr.mxu0 0.0
        %2208 = vmatpush1.msra.mxu0 0.0
        %2209 = vmatprep.subr.mxu0 0.0
        %2210 = vmatpush1.msra.mxu0 0.0
        %2211 = vmatprep.subr.mxu0 0.0
        %2212 = vmatpush1.msra.mxu0 0.0
        %2213 = vmatprep.subr.mxu0 0.0
        %2214 = vmatpush1.msra.mxu0 0.0
        %2215 = vmatprep.subr.mxu0 0.0
        %2216 = vmatpush1.msra.mxu0 0.0
        %2217 = vmatprep.subr.mxu0 0.0
        %2218 = vmatpush1.msra.mxu0 0.0
        %2219 = vmatprep.subr.mxu0 0.0
        %2220 = vmatpush1.msra.mxu0 0.0
        %2221 = vmatprep.subr.mxu0 0.0
        %2222 = vmatpush1.msra.mxu0 0.0
        %2223 = vmatprep.subr.mxu0 0.0
        %2224 = vmatpush1.msra.mxu0 0.0
        %2225 = vmatprep.subr.mxu0 0.0
        %2226 = vmatpush1.msra.mxu0 0.0
        %2227 = vmatprep.subr.mxu0 0.0
        %2228 = vmatpush1.msra.mxu0 0.0
        %2229 = vmatprep.subr.mxu0 0.0
        %2230 = vmatpush1.msra.mxu0 0.0
        %2231 = vmatprep.subr.mxu0 0.0
        %2232 = vmatpush1.msra.mxu0 0.0
        %2233 = vmatprep.subr.mxu0 0.0
        %2234 = vmatpush1.msra.mxu0 0.0
        %2235 = vmatprep.subr.mxu0 0.0
        %2236 = vmatpush1.msra.mxu0 0.0
        %2237 = vmatprep.subr.mxu0 0.0
        %2238 = vmatpush1.msra.mxu0 0.0
        %2239 = vmatprep.mubr.f32.mxu0 0.0
        %2240 = vmatmul.mubr.f32.gmra.mrb[0].mxu0 %v2173
        %v2241 = vpop.f32.mrb[0].mxu0
        %v2242 = vadd.f32 0.0, %v2241
        %v2243 = vpop.f32.mrb[0].mxu0
        %2244 = vdwg.mxu0
        %v2246 = vsel %vm915, %v2242, 0
        %2248 = vmatprep.subr.mxu0 0.0
        %2249 = vmatpush1.msra.mxu0 %v1909
        %2250 = vmatprep.subr.mxu0 0.0
        %2251 = vmatpush1.msra.mxu0 0.0
        %2252 = vmatprep.subr.mxu0 0.0
        %2253 = vmatpush1.msra.mxu0 0.0
        %2254 = vmatprep.subr.mxu0 0.0
        %2255 = vmatpush1.msra.mxu0 0.0
        %2256 = vmatprep.subr.mxu0 0.0
        %2257 = vmatpush1.msra.mxu0 0.0
        %2258 = vmatprep.subr.mxu0 0.0
        %2259 = vmatpush1.msra.mxu0 0.0
        %2260 = vmatprep.subr.mxu0 0.0
        %2261 = vmatpush1.msra.mxu0 0.0
        %2262 = vmatprep.subr.mxu0 0.0
        %2263 = vmatpush1.msra.mxu0 0.0
        %2264 = vmatprep.subr.mxu0 0.0
        %2265 = vmatpush1.msra.mxu0 0.0
        %2266 = vmatprep.subr.mxu0 0.0
        %2267 = vmatpush1.msra.mxu0 0.0
        %2268 = vmatprep.subr.mxu0 0.0
        %2269 = vmatpush1.msra.mxu0 0.0
        %2270 = vmatprep.subr.mxu0 0.0
        %2271 = vmatpush1.msra.mxu0 0.0
        %2272 = vmatprep.subr.mxu0 0.0
        %2273 = vmatpush1.msra.mxu0 0.0
        %2274 = vmatprep.subr.mxu0 0.0
        %2275 = vmatpush1.msra.mxu0 0.0
        %2276 = vmatprep.subr.mxu0 0.0
        %2277 = vmatpush1.msra.mxu0 0.0
        %2278 = vmatprep.subr.mxu0 0.0
        %2279 = vmatpush1.msra.mxu0 0.0
        %2280 = vmatprep.subr.mxu0 0.0
        %2281 = vmatpush1.msra.mxu0 0.0
        %2282 = vmatprep.subr.mxu0 0.0
        %2283 = vmatpush1.msra.mxu0 0.0
        %2284 = vmatprep.subr.mxu0 0.0
        %2285 = vmatpush1.msra.mxu0 0.0
        %2286 = vmatprep.subr.mxu0 0.0
        %2287 = vmatpush1.msra.mxu0 0.0
        %2288 = vmatprep.subr.mxu0 0.0
        %2289 = vmatpush1.msra.mxu0 0.0
        %2290 = vmatprep.subr.mxu0 0.0
        %2291 = vmatpush1.msra.mxu0 0.0
        %2292 = vmatprep.subr.mxu0 0.0
        %2293 = vmatpush1.msra.mxu0 0.0
        %2294 = vmatprep.subr.mxu0 0.0
        %2295 = vmatpush1.msra.mxu0 0.0
        %2296 = vmatprep.subr.mxu0 0.0
        %2297 = vmatpush1.msra.mxu0 0.0
        %2298 = vmatprep.subr.mxu0 0.0
        %2299 = vmatpush1.msra.mxu0 0.0
        %2300 = vmatprep.subr.mxu0 0.0
        %2301 = vmatpush1.msra.mxu0 0.0
        %2302 = vmatprep.subr.mxu0 0.0
        %2303 = vmatpush1.msra.mxu0 0.0
        %2304 = vmatprep.subr.mxu0 0.0
        %2305 = vmatpush1.msra.mxu0 0.0
        %2306 = vmatprep.subr.mxu0 0.0
        %2307 = vmatpush1.msra.mxu0 0.0
        %2308 = vmatprep.subr.mxu0 0.0
        %2309 = vmatpush1.msra.mxu0 0.0
        %2310 = vmatprep.subr.mxu0 0.0
        %2311 = vmatpush1.msra.mxu0 0.0
        %2312 = vmatprep.mubr.f32.mxu0 0.0
        %2313 = vmatmul.mubr.f32.gmra.mrb[0].mxu0 %v2246
        %v2314 = vpop.f32.mrb[0].mxu0
        %v2315 = vadd.f32 0.0, %v2314
        %v2316 = vpop.f32.mrb[0].mxu0
        %2317 = vdwg.mxu0
        %v2318 = vadd.f32 %v2080, %v2315
        %2319 = vrot.lane.b32.xlu0 %v2081, 120
        %v2320 = vpop.permute.xlu0 %2319
        %2321 = vrot.lane.b32.xlu0 %v2071, 120
        %v2322 = vpop.permute.xlu0 %2321
        %v2323 = vsel %vm915, %v2320, 0
        %v2325 = vsel %vm915, %v2322, 0
        %2327 = vmatprep.subr.mxu0 0.0
        %2328 = vmatpush1.xpose.msra.mxu0 %v2325
        %2329 = vmatprep.subr.mxu0 0.0
        %2330 = vmatpush1.xpose.msra.mxu0 0.0
        %2331 = vmatprep.subr.mxu0 0.0
        %2332 = vmatpush1.xpose.msra.mxu0 0.0
        %2333 = vmatprep.subr.mxu0 0.0
        %2334 = vmatpush1.xpose.msra.mxu0 0.0
        %2335 = vmatprep.subr.mxu0 0.0
        %2336 = vmatpush1.xpose.msra.mxu0 0.0
        %2337 = vmatprep.subr.mxu0 0.0
        %2338 = vmatpush1.xpose.msra.mxu0 0.0
        %2339 = vmatprep.subr.mxu0 0.0
        %2340 = vmatpush1.xpose.msra.mxu0 0.0
        %2341 = vmatprep.subr.mxu0 0.0
        %2342 = vmatpush1.xpose.msra.mxu0 0.0
        %2343 = vmatprep.subr.mxu0 0.0
        %2344 = vmatpush1.xpose.msra.mxu0 0.0
        %2345 = vmatprep.subr.mxu0 0.0
        %2346 = vmatpush1.xpose.msra.mxu0 0.0
        %2347 = vmatprep.subr.mxu0 0.0
        %2348 = vmatpush1.xpose.msra.mxu0 0.0
        %2349 = vmatprep.subr.mxu0 0.0
        %2350 = vmatpush1.xpose.msra.mxu0 0.0
        %2351 = vmatprep.subr.mxu0 0.0
        %2352 = vmatpush1.xpose.msra.mxu0 0.0
        %2353 = vmatprep.subr.mxu0 0.0
        %2354 = vmatpush1.xpose.msra.mxu0 0.0
        %2355 = vmatprep.subr.mxu0 0.0
        %2356 = vmatpush1.xpose.msra.mxu0 0.0
        %2357 = vmatprep.subr.mxu0 0.0
        %2358 = vmatpush1.xpose.msra.mxu0 0.0
        %2359 = vmatprep.subr.mxu0 0.0
        %2360 = vmatpush1.xpose.msra.mxu0 0.0
        %2361 = vmatprep.subr.mxu0 0.0
        %2362 = vmatpush1.xpose.msra.mxu0 0.0
        %2363 = vmatprep.subr.mxu0 0.0
        %2364 = vmatpush1.xpose.msra.mxu0 0.0
        %2365 = vmatprep.subr.mxu0 0.0
        %2366 = vmatpush1.xpose.msra.mxu0 0.0
        %2367 = vmatprep.subr.mxu0 0.0
        %2368 = vmatpush1.xpose.msra.mxu0 0.0
        %2369 = vmatprep.subr.mxu0 0.0
        %2370 = vmatpush1.xpose.msra.mxu0 0.0
        %2371 = vmatprep.subr.mxu0 0.0
        %2372 = vmatpush1.xpose.msra.mxu0 0.0
        %2373 = vmatprep.subr.mxu0 0.0
        %2374 = vmatpush1.xpose.msra.mxu0 0.0
        %2375 = vmatprep.subr.mxu0 0.0
        %2376 = vmatpush1.xpose.msra.mxu0 0.0
        %2377 = vmatprep.subr.mxu0 0.0
        %2378 = vmatpush1.xpose.msra.mxu0 0.0
        %2379 = vmatprep.subr.mxu0 0.0
        %2380 = vmatpush1.xpose.msra.mxu0 0.0
        %2381 = vmatprep.subr.mxu0 0.0
        %2382 = vmatpush1.xpose.msra.mxu0 0.0
        %2383 = vmatprep.subr.mxu0 0.0
        %2384 = vmatpush1.xpose.msra.mxu0 0.0
        %2385 = vmatprep.subr.mxu0 0.0
        %2386 = vmatpush1.xpose.msra.mxu0 0.0
        %2387 = vmatprep.subr.mxu0 0.0
        %2388 = vmatpush1.xpose.msra.mxu0 0.0
        %2389 = vmatprep.subr.mxu0 0.0
        %2390 = vmatpush1.xpose.msra.mxu0 0.0
        %2391 = vmatprep.mubr.f32.mxu0 0.0
        %2392 = vmatmul.mubr.f32.gmra.mrb[0].mxu0 %v2323
        %v2393 = vpop.f32.mrb[0].mxu0
        %v2394 = vadd.f32 0.0, %v2393
        %v2395 = vpop.f32.mrb[0].mxu0
        %2396 = vdwg.mxu0
        %v2397 = vsel %vm915, %v2394, -inf
        %2398 = vmax.xlane.f32.xlu0 %v2397
        %v2399 = vpop.xlane.xlu0 %2398
        %v2400 = vsub.f32 %v2394, %v2399
        %v2401 = vmul.f32 %v2400, 1.442695
        %v2402 = vpow.pop %v2401
        %v2403 = vsel %vm915, %v2402, 0.0
        %2404 = vadd.xlane.f32.xlu0 %v2403
        %v2405 = vpop.xlane.xlu0 %2404
        %v2406 = vrcp.pop %v2405
        %v2407 = vmul.f32 %v2402, %v2406
        %2408 = vrot.lane.b32.xlu0 %v2071, 88
        %v2409 = vpop.permute.xlu0 %2408
        %v2412 = vsel %vm915, %v2407, 0
        %2414 = vmatprep.subr.mxu0 0.0
        %2415 = vmatpush1.msra.mxu0 %v2409
        %2416 = vmatprep.subr.mxu0 0.0
        %2417 = vmatpush1.msra.mxu0 0.0
        %2418 = vmatprep.subr.mxu0 0.0
        %2419 = vmatpush1.msra.mxu0 0.0
        %2420 = vmatprep.subr.mxu0 0.0
        %2421 = vmatpush1.msra.mxu0 0.0
        %2422 = vmatprep.subr.mxu0 0.0
        %2423 = vmatpush1.msra.mxu0 0.0
        %2424 = vmatprep.subr.mxu0 0.0
        %2425 = vmatpush1.msra.mxu0 0.0
        %2426 = vmatprep.subr.mxu0 0.0
        %2427 = vmatpush1.msra.mxu0 0.0
        %2428 = vmatprep.subr.mxu0 0.0
        %2429 = vmatpush1.msra.mxu0 0.0
        %2430 = vmatprep.subr.mxu0 0.0
        %2431 = vmatpush1.msra.mxu0 0.0
        %2432 = vmatprep.subr.mxu0 0.0
        %2433 = vmatpush1.msra.mxu0 0.0
        %2434 = vmatprep.subr.mxu0 0.0
        %2435 = vmatpush1.msra.mxu0 0.0
        %2436 = vmatprep.subr.mxu0 0.0
        %2437 = vmatpush1.msra.mxu0 0.0
        %2438 = vmatprep.subr.mxu0 0.0
        %2439 = vmatpush1.msra.mxu0 0.0
        %2440 = vmatprep.subr.mxu0 0.0
        %2441 = vmatpush1.msra.mxu0 0.0
        %2442 = vmatprep.subr.mxu0 0.0
        %2443 = vmatpush1.msra.mxu0 0.0
        %2444 = vmatprep.subr.mxu0 0.0
        %2445 = vmatpush1.msra.mxu0 0.0
        %2446 = vmatprep.subr.mxu0 0.0
        %2447 = vmatpush1.msra.mxu0 0.0
        %2448 = vmatprep.subr.mxu0 0.0
        %2449 = vmatpush1.msra.mxu0 0.0
        %2450 = vmatprep.subr.mxu0 0.0
        %2451 = vmatpush1.msra.mxu0 0.0
        %2452 = vmatprep.subr.mxu0 0.0
        %2453 = vmatpush1.msra.mxu0 0.0
        %2454 = vmatprep.subr.mxu0 0.0
        %2455 = vmatpush1.msra.mxu0 0.0
        %2456 = vmatprep.subr.mxu0 0.0
        %2457 = vmatpush1.msra.mxu0 0.0
        %2458 = vmatprep.subr.mxu0 0.0
        %2459 = vmatpush1.msra.mxu0 0.0
        %2460 = vmatprep.subr.mxu0 0.0
        %2461 = vmatpush1.msra.mxu0 0.0
        %2462 = vmatprep.subr.mxu0 0.0
        %2463 = vmatpush1.msra.mxu0 0.0
        %2464 = vmatprep.subr.mxu0 0.0
        %2465 = vmatpush1.msra.mxu0 0.0
        %2466 = vmatprep.subr.mxu0 0.0
        %2467 = vmatpush1.msra.mxu0 0.0
        %2468 = vmatprep.subr.mxu0 0.0
        %2469 = vmatpush1.msra.mxu0 0.0
        %2470 = vmatprep.subr.mxu0 0.0
        %2471 = vmatpush1.msra.mxu0 0.0
        %2472 = vmatprep.subr.mxu0 0.0
        %2473 = vmatpush1.msra.mxu0 0.0
        %2474 = vmatprep.subr.mxu0 0.0
        %2475 = vmatpush1.msra.mxu0 0.0
        %2476 = vmatprep.subr.mxu0 0.0
        %2477 = vmatpush1.msra.mxu0 0.0
        %2478 = vmatprep.mubr.f32.mxu0 0.0
        %2479 = vmatmul.mubr.f32.gmra.mrb[0].mxu0 %v2412
        %v2480 = vpop.f32.mrb[0].mxu0
        %v2481 = vadd.f32 0.0, %v2480
        %v2482 = vpop.f32.mrb[0].mxu0
        %2483 = vdwg.mxu0
        %v2485 = vsel %vm915, %v2481, 0
        %2487 = vmatprep.subr.mxu0 0.0
        %2488 = vmatpush1.msra.mxu0 %v1910
        %2489 = vmatprep.subr.mxu0 0.0
        %2490 = vmatpush1.msra.mxu0 0.0
        %2491 = vmatprep.subr.mxu0 0.0
        %2492 = vmatpush1.msra.mxu0 0.0
        %2493 = vmatprep.subr.mxu0 0.0
        %2494 = vmatpush1.msra.mxu0 0.0
        %2495 = vmatprep.subr.mxu0 0.0
        %2496 = vmatpush1.msra.mxu0 0.0
        %2497 = vmatprep.subr.mxu0 0.0
        %2498 = vmatpush1.msra.mxu0 0.0
        %2499 = vmatprep.subr.mxu0 0.0
        %2500 = vmatpush1.msra.mxu0 0.0
        %2501 = vmatprep.subr.mxu0 0.0
        %2502 = vmatpush1.msra.mxu0 0.0
        %2503 = vmatprep.subr.mxu0 0.0
        %2504 = vmatpush1.msra.mxu0 0.0
        %2505 = vmatprep.subr.mxu0 0.0
        %2506 = vmatpush1.msra.mxu0 0.0
        %2507 = vmatprep.subr.mxu0 0.0
        %2508 = vmatpush1.msra.mxu0 0.0
        %2509 = vmatprep.subr.mxu0 0.0
        %2510 = vmatpush1.msra.mxu0 0.0
        %2511 = vmatprep.subr.mxu0 0.0
        %2512 = vmatpush1.msra.mxu0 0.0
        %2513 = vmatprep.subr.mxu0 0.0
        %2514 = vmatpush1.msra.mxu0 0.0
        %2515 = vmatprep.subr.mxu0 0.0
        %2516 = vmatpush1.msra.mxu0 0.0
        %2517 = vmatprep.subr.mxu0 0.0
        %2518 = vmatpush1.msra.mxu0 0.0
        %2519 = vmatprep.subr.mxu0 0.0
        %2520 = vmatpush1.msra.mxu0 0.0
        %2521 = vmatprep.subr.mxu0 0.0
        %2522 = vmatpush1.msra.mxu0 0.0
        %2523 = vmatprep.subr.mxu0 0.0
        %2524 = vmatpush1.msra.mxu0 0.0
        %2525 = vmatprep.subr.mxu0 0.0
        %2526 = vmatpush1.msra.mxu0 0.0
        %2527 = vmatprep.subr.mxu0 0.0
        %2528 = vmatpush1.msra.mxu0 0.0
        %2529 = vmatprep.subr.mxu0 0.0
        %2530 = vmatpush1.msra.mxu0 0.0
        %2531 = vmatprep.subr.mxu0 0.0
        %2532 = vmatpush1.msra.mxu0 0.0
        %2533 = vmatprep.subr.mxu0 0.0
        %2534 = vmatpush1.msra.mxu0 0.0
        %2535 = vmatprep.subr.mxu0 0.0
        %2536 = vmatpush1.msra.mxu0 0.0
        %2537 = vmatprep.subr.mxu0 0.0
        %2538 = vmatpush1.msra.mxu0 0.0
        %2539 = vmatprep.subr.mxu0 0.0
        %2540 = vmatpush1.msra.mxu0 0.0
        %2541 = vmatprep.subr.mxu0 0.0
        %2542 = vmatpush1.msra.mxu0 0.0
        %2543 = vmatprep.subr.mxu0 0.0
        %2544 = vmatpush1.msra.mxu0 0.0
        %2545 = vmatprep.subr.mxu0 0.0
        %2546 = vmatpush1.msra.mxu0 0.0
        %2547 = vmatprep.subr.mxu0 0.0
        %2548 = vmatpush1.msra.mxu0 0.0
        %2549 = vmatprep.subr.mxu0 0.0
        %2550 = vmatpush1.msra.mxu0 0.0
        %2551 = vmatprep.mubr.f32.mxu0 0.0
        %2552 = vmatmul.mubr.f32.gmra.mrb[0].mxu0 %v2485
        %v2553 = vpop.f32.mrb[0].mxu0
        %v2554 = vadd.f32 0.0, %v2553
        %v2555 = vpop.f32.mrb[0].mxu0
        %2556 = vdwg.mxu0
        %v2557 = vadd.f32 %v2318, %v2554
        %2558 = vrot.lane.b32.xlu0 %v2081, 112
        %v2559 = vpop.permute.xlu0 %2558
        %2560 = vrot.lane.b32.xlu0 %v2071, 112
        %v2561 = vpop.permute.xlu0 %2560
        %v2562 = vsel %vm915, %v2559, 0
        %v2564 = vsel %vm915, %v2561, 0
        %2566 = vmatprep.subr.mxu0 0.0
        %2567 = vmatpush1.xpose.msra.mxu0 %v2564
        %2568 = vmatprep.subr.mxu0 0.0
        %2569 = vmatpush1.xpose.msra.mxu0 0.0
        %2570 = vmatprep.subr.mxu0 0.0
        %2571 = vmatpush1.xpose.msra.mxu0 0.0
        %2572 = vmatprep.subr.mxu0 0.0
        %2573 = vmatpush1.xpose.msra.mxu0 0.0
        %2574 = vmatprep.subr.mxu0 0.0
        %2575 = vmatpush1.xpose.msra.mxu0 0.0
        %2576 = vmatprep.subr.mxu0 0.0
        %2577 = vmatpush1.xpose.msra.mxu0 0.0
        %2578 = vmatprep.subr.mxu0 0.0
        %2579 = vmatpush1.xpose.msra.mxu0 0.0
        %2580 = vmatprep.subr.mxu0 0.0
        %2581 = vmatpush1.xpose.msra.mxu0 0.0
        %2582 = vmatprep.subr.mxu0 0.0
        %2583 = vmatpush1.xpose.msra.mxu0 0.0
        %2584 = vmatprep.subr.mxu0 0.0
        %2585 = vmatpush1.xpose.msra.mxu0 0.0
        %2586 = vmatprep.subr.mxu0 0.0
        %2587 = vmatpush1.xpose.msra.mxu0 0.0
        %2588 = vmatprep.subr.mxu0 0.0
        %2589 = vmatpush1.xpose.msra.mxu0 0.0
        %2590 = vmatprep.subr.mxu0 0.0
        %2591 = vmatpush1.xpose.msra.mxu0 0.0
        %2592 = vmatprep.subr.mxu0 0.0
        %2593 = vmatpush1.xpose.msra.mxu0 0.0
        %2594 = vmatprep.subr.mxu0 0.0
        %2595 = vmatpush1.xpose.msra.mxu0 0.0
        %2596 = vmatprep.subr.mxu0 0.0
        %2597 = vmatpush1.xpose.msra.mxu0 0.0
        %2598 = vmatprep.subr.mxu0 0.0
        %2599 = vmatpush1.xpose.msra.mxu0 0.0
        %2600 = vmatprep.subr.mxu0 0.0
        %2601 = vmatpush1.xpose.msra.mxu0 0.0
        %2602 = vmatprep.subr.mxu0 0.0
        %2603 = vmatpush1.xpose.msra.mxu0 0.0
        %2604 = vmatprep.subr.mxu0 0.0
        %2605 = vmatpush1.xpose.msra.mxu0 0.0
        %2606 = vmatprep.subr.mxu0 0.0
        %2607 = vmatpush1.xpose.msra.mxu0 0.0
        %2608 = vmatprep.subr.mxu0 0.0
        %2609 = vmatpush1.xpose.msra.mxu0 0.0
        %2610 = vmatprep.subr.mxu0 0.0
        %2611 = vmatpush1.xpose.msra.mxu0 0.0
        %2612 = vmatprep.subr.mxu0 0.0
        %2613 = vmatpush1.xpose.msra.mxu0 0.0
        %2614 = vmatprep.subr.mxu0 0.0
        %2615 = vmatpush1.xpose.msra.mxu0 0.0
        %2616 = vmatprep.subr.mxu0 0.0
        %2617 = vmatpush1.xpose.msra.mxu0 0.0
        %2618 = vmatprep.subr.mxu0 0.0
        %2619 = vmatpush1.xpose.msra.mxu0 0.0
        %2620 = vmatprep.subr.mxu0 0.0
        %2621 = vmatpush1.xpose.msra.mxu0 0.0
        %2622 = vmatprep.subr.mxu0 0.0
        %2623 = vmatpush1.xpose.msra.mxu0 0.0
        %2624 = vmatprep.subr.mxu0 0.0
        %2625 = vmatpush1.xpose.msra.mxu0 0.0
        %2626 = vmatprep.subr.mxu0 0.0
        %2627 = vmatpush1.xpose.msra.mxu0 0.0
        %2628 = vmatprep.subr.mxu0 0.0
        %2629 = vmatpush1.xpose.msra.mxu0 0.0
        %2630 = vmatprep.mubr.f32.mxu0 0.0
        %2631 = vmatmul.mubr.f32.gmra.mrb[0].mxu0 %v2562
        %v2632 = vpop.f32.mrb[0].mxu0
        %v2633 = vadd.f32 0.0, %v2632
        %v2634 = vpop.f32.mrb[0].mxu0
        %2635 = vdwg.mxu0
        %v2636 = vsel %vm915, %v2633, -inf
        %2637 = vmax.xlane.f32.xlu0 %v2636
        %v2638 = vpop.xlane.xlu0 %2637
        %v2639 = vsub.f32 %v2633, %v2638
        %v2640 = vmul.f32 %v2639, 1.442695
        %v2641 = vpow.pop %v2640
        %v2642 = vsel %vm915, %v2641, 0.0
        %2643 = vadd.xlane.f32.xlu0 %v2642
        %v2644 = vpop.xlane.xlu0 %2643
        %v2645 = vrcp.pop %v2644
        %v2646 = vmul.f32 %v2641, %v2645
        %2647 = vrot.lane.b32.xlu0 %v2071, 80
        %v2648 = vpop.permute.xlu0 %2647
        %v2651 = vsel %vm915, %v2646, 0
        %2653 = vmatprep.subr.mxu0 0.0
        %2654 = vmatpush1.msra.mxu0 %v2648
        %2655 = vmatprep.subr.mxu0 0.0
        %2656 = vmatpush1.msra.mxu0 0.0
        %2657 = vmatprep.subr.mxu0 0.0
        %2658 = vmatpush1.msra.mxu0 0.0
        %2659 = vmatprep.subr.mxu0 0.0
        %2660 = vmatpush1.msra.mxu0 0.0
        %2661 = vmatprep.subr.mxu0 0.0
        %2662 = vmatpush1.msra.mxu0 0.0
        %2663 = vmatprep.subr.mxu0 0.0
        %2664 = vmatpush1.msra.mxu0 0.0
        %2665 = vmatprep.subr.mxu0 0.0
        %2666 = vmatpush1.msra.mxu0 0.0
        %2667 = vmatprep.subr.mxu0 0.0
        %2668 = vmatpush1.msra.mxu0 0.0
        %2669 = vmatprep.subr.mxu0 0.0
        %2670 = vmatpush1.msra.mxu0 0.0
        %2671 = vmatprep.subr.mxu0 0.0
        %2672 = vmatpush1.msra.mxu0 0.0
        %2673 = vmatprep.subr.mxu0 0.0
        %2674 = vmatpush1.msra.mxu0 0.0
        %2675 = vmatprep.subr.mxu0 0.0
        %2676 = vmatpush1.msra.mxu0 0.0
        %2677 = vmatprep.subr.mxu0 0.0
        %2678 = vmatpush1.msra.mxu0 0.0
        %2679 = vmatprep.subr.mxu0 0.0
        %2680 = vmatpush1.msra.mxu0 0.0
        %2681 = vmatprep.subr.mxu0 0.0
        %2682 = vmatpush1.msra.mxu0 0.0
        %2683 = vmatprep.subr.mxu0 0.0
        %2684 = vmatpush1.msra.mxu0 0.0
        %2685 = vmatprep.subr.mxu0 0.0
        %2686 = vmatpush1.msra.mxu0 0.0
        %2687 = vmatprep.subr.mxu0 0.0
        %2688 = vmatpush1.msra.mxu0 0.0
        %2689 = vmatprep.subr.mxu0 0.0
        %2690 = vmatpush1.msra.mxu0 0.0
        %2691 = vmatprep.subr.mxu0 0.0
        %2692 = vmatpush1.msra.mxu0 0.0
        %2693 = vmatprep.subr.mxu0 0.0
        %2694 = vmatpush1.msra.mxu0 0.0
        %2695 = vmatprep.subr.mxu0 0.0
        %2696 = vmatpush1.msra.mxu0 0.0
        %2697 = vmatprep.subr.mxu0 0.0
        %2698 = vmatpush1.msra.mxu0 0.0
        %2699 = vmatprep.subr.mxu0 0.0
        %2700 = vmatpush1.msra.mxu0 0.0
        %2701 = vmatprep.subr.mxu0 0.0
        %2702 = vmatpush1.msra.mxu0 0.0
        %2703 = vmatprep.subr.mxu0 0.0
        %2704 = vmatpush1.msra.mxu0 0.0
        %2705 = vmatprep.subr.mxu0 0.0
        %2706 = vmatpush1.msra.mxu0 0.0
        %2707 = vmatprep.subr.mxu0 0.0
        %2708 = vmatpush1.msra.mxu0 0.0
        %2709 = vmatprep.subr.mxu0 0.0
        %2710 = vmatpush1.msra.mxu0 0.0
        %2711 = vmatprep.subr.mxu0 0.0
        %2712 = vmatpush1.msra.mxu0 0.0
        %2713 = vmatprep.subr.mxu0 0.0
        %2714 = vmatpush1.msra.mxu0 0.0
        %2715 = vmatprep.subr.mxu0 0.0
        %2716 = vmatpush1.msra.mxu0 0.0
        %2717 = vmatprep.mubr.f32.mxu0 0.0
        %2718 = vmatmul.mubr.f32.gmra.mrb[0].mxu0 %v2651
        %v2719 = vpop.f32.mrb[0].mxu0
        %v2720 = vadd.f32 0.0, %v2719
        %v2721 = vpop.f32.mrb[0].mxu0
        %2722 = vdwg.mxu0
        %v2724 = vsel %vm915, %v2720, 0
        %2726 = vmatprep.subr.mxu0 0.0
        %2727 = vmatpush1.msra.mxu0 %v1911
        %2728 = vmatprep.subr.mxu0 0.0
        %2729 = vmatpush1.msra.mxu0 0.0
        %2730 = vmatprep.subr.mxu0 0.0
        %2731 = vmatpush1.msra.mxu0 0.0
        %2732 = vmatprep.subr.mxu0 0.0
        %2733 = vmatpush1.msra.mxu0 0.0
        %2734 = vmatprep.subr.mxu0 0.0
        %2735 = vmatpush1.msra.mxu0 0.0
        %2736 = vmatprep.subr.mxu0 0.0
        %2737 = vmatpush1.msra.mxu0 0.0
        %2738 = vmatprep.subr.mxu0 0.0
        %2739 = vmatpush1.msra.mxu0 0.0
        %2740 = vmatprep.subr.mxu0 0.0
        %2741 = vmatpush1.msra.mxu0 0.0
        %2742 = vmatprep.subr.mxu0 0.0
        %2743 = vmatpush1.msra.mxu0 0.0
        %2744 = vmatprep.subr.mxu0 0.0
        %2745 = vmatpush1.msra.mxu0 0.0
        %2746 = vmatprep.subr.mxu0 0.0
        %2747 = vmatpush1.msra.mxu0 0.0
        %2748 = vmatprep.subr.mxu0 0.0
        %2749 = vmatpush1.msra.mxu0 0.0
        %2750 = vmatprep.subr.mxu0 0.0
        %2751 = vmatpush1.msra.mxu0 0.0
        %2752 = vmatprep.subr.mxu0 0.0
        %2753 = vmatpush1.msra.mxu0 0.0
        %2754 = vmatprep.subr.mxu0 0.0
        %2755 = vmatpush1.msra.mxu0 0.0
        %2756 = vmatprep.subr.mxu0 0.0
        %2757 = vmatpush1.msra.mxu0 0.0
        %2758 = vmatprep.subr.mxu0 0.0
        %2759 = vmatpush1.msra.mxu0 0.0
        %2760 = vmatprep.subr.mxu0 0.0
        %2761 = vmatpush1.msra.mxu0 0.0
        %2762 = vmatprep.subr.mxu0 0.0
        %2763 = vmatpush1.msra.mxu0 0.0
        %2764 = vmatprep.subr.mxu0 0.0
        %2765 = vmatpush1.msra.mxu0 0.0
        %2766 = vmatprep.subr.mxu0 0.0
        %2767 = vmatpush1.msra.mxu0 0.0
        %2768 = vmatprep.subr.mxu0 0.0
        %2769 = vmatpush1.msra.mxu0 0.0
        %2770 = vmatprep.subr.mxu0 0.0
        %2771 = vmatpush1.msra.mxu0 0.0
        %2772 = vmatprep.subr.mxu0 0.0
        %2773 = vmatpush1.msra.mxu0 0.0
        %2774 = vmatprep.subr.mxu0 0.0
        %2775 = vmatpush1.msra.mxu0 0.0
        %2776 = vmatprep.subr.mxu0 0.0
        %2777 = vmatpush1.msra.mxu0 0.0
        %2778 = vmatprep.subr.mxu0 0.0
        %2779 = vmatpush1.msra.mxu0 0.0
        %2780 = vmatprep.subr.mxu0 0.0
        %2781 = vmatpush1.msra.mxu0 0.0
        %2782 = vmatprep.subr.mxu0 0.0
        %2783 = vmatpush1.msra.mxu0 0.0
        %2784 = vmatprep.subr.mxu0 0.0
        %2785 = vmatpush1.msra.mxu0 0.0
        %2786 = vmatprep.subr.mxu0 0.0
        %2787 = vmatpush1.msra.mxu0 0.0
        %2788 = vmatprep.subr.mxu0 0.0
        %2789 = vmatpush1.msra.mxu0 0.0
        %2790 = vmatprep.mubr.f32.mxu0 0.0
        %2791 = vmatmul.mubr.f32.gmra.mrb[0].mxu0 %v2724
        %v2792 = vpop.f32.mrb[0].mxu0
        %v2793 = vadd.f32 0.0, %v2792
        %v2794 = vpop.f32.mrb[0].mxu0
        %2795 = vdwg.mxu0
        %v2796 = vadd.f32 %v2557, %v2793
        %2797 = vrot.lane.b32.xlu0 %v2081, 104
        %v2798 = vpop.permute.xlu0 %2797
        %2799 = vrot.lane.b32.xlu0 %v2071, 104
        %v2800 = vpop.permute.xlu0 %2799
        %v2801 = vsel %vm915, %v2798, 0
        %v2803 = vsel %vm915, %v2800, 0
        %2805 = vmatprep.subr.mxu0 0.0
        %2806 = vmatpush1.xpose.msra.mxu0 %v2803
        %2807 = vmatprep.subr.mxu0 0.0
        %2808 = vmatpush1.xpose.msra.mxu0 0.0
        %2809 = vmatprep.subr.mxu0 0.0
        %2810 = vmatpush1.xpose.msra.mxu0 0.0
        %2811 = vmatprep.subr.mxu0 0.0
        %2812 = vmatpush1.xpose.msra.mxu0 0.0
        %2813 = vmatprep.subr.mxu0 0.0
        %2814 = vmatpush1.xpose.msra.mxu0 0.0
        %2815 = vmatprep.subr.mxu0 0.0
        %2816 = vmatpush1.xpose.msra.mxu0 0.0
        %2817 = vmatprep.subr.mxu0 0.0
        %2818 = vmatpush1.xpose.msra.mxu0 0.0
        %2819 = vmatprep.subr.mxu0 0.0
        %2820 = vmatpush1.xpose.msra.mxu0 0.0
        %2821 = vmatprep.subr.mxu0 0.0
        %2822 = vmatpush1.xpose.msra.mxu0 0.0
        %2823 = vmatprep.subr.mxu0 0.0
        %2824 = vmatpush1.xpose.msra.mxu0 0.0
        %2825 = vmatprep.subr.mxu0 0.0
        %2826 = vmatpush1.xpose.msra.mxu0 0.0
        %2827 = vmatprep.subr.mxu0 0.0
        %2828 = vmatpush1.xpose.msra.mxu0 0.0
        %2829 = vmatprep.subr.mxu0 0.0
        %2830 = vmatpush1.xpose.msra.mxu0 0.0
        %2831 = vmatprep.subr.mxu0 0.0
        %2832 = vmatpush1.xpose.msra.mxu0 0.0
        %2833 = vmatprep.subr.mxu0 0.0
        %2834 = vmatpush1.xpose.msra.mxu0 0.0
        %2835 = vmatprep.subr.mxu0 0.0
        %2836 = vmatpush1.xpose.msra.mxu0 0.0
        %2837 = vmatprep.subr.mxu0 0.0
        %2838 = vmatpush1.xpose.msra.mxu0 0.0
        %2839 = vmatprep.subr.mxu0 0.0
        %2840 = vmatpush1.xpose.msra.mxu0 0.0
        %2841 = vmatprep.subr.mxu0 0.0
        %2842 = vmatpush1.xpose.msra.mxu0 0.0
        %2843 = vmatprep.subr.mxu0 0.0
        %2844 = vmatpush1.xpose.msra.mxu0 0.0
        %2845 = vmatprep.subr.mxu0 0.0
        %2846 = vmatpush1.xpose.msra.mxu0 0.0
        %2847 = vmatprep.subr.mxu0 0.0
        %2848 = vmatpush1.xpose.msra.mxu0 0.0
        %2849 = vmatprep.subr.mxu0 0.0
        %2850 = vmatpush1.xpose.msra.mxu0 0.0
        %2851 = vmatprep.subr.mxu0 0.0
        %2852 = vmatpush1.xpose.msra.mxu0 0.0
        %2853 = vmatprep.subr.mxu0 0.0
        %2854 = vmatpush1.xpose.msra.mxu0 0.0
        %2855 = vmatprep.subr.mxu0 0.0
        %2856 = vmatpush1.xpose.msra.mxu0 0.0
        %2857 = vmatprep.subr.mxu0 0.0
        %2858 = vmatpush1.xpose.msra.mxu0 0.0
        %2859 = vmatprep.subr.mxu0 0.0
        %2860 = vmatpush1.xpose.msra.mxu0 0.0
        %2861 = vmatprep.subr.mxu0 0.0
        %2862 = vmatpush1.xpose.msra.mxu0 0.0
        %2863 = vmatprep.subr.mxu0 0.0
        %2864 = vmatpush1.xpose.msra.mxu0 0.0
        %2865 = vmatprep.subr.mxu0 0.0
        %2866 = vmatpush1.xpose.msra.mxu0 0.0
        %2867 = vmatprep.subr.mxu0 0.0
        %2868 = vmatpush1.xpose.msra.mxu0 0.0
        %2869 = vmatprep.mubr.f32.mxu0 0.0
        %2870 = vmatmul.mubr.f32.gmra.mrb[0].mxu0 %v2801
        %v2871 = vpop.f32.mrb[0].mxu0
        %v2872 = vadd.f32 0.0, %v2871
        %v2873 = vpop.f32.mrb[0].mxu0
        %2874 = vdwg.mxu0
        %v2875 = vsel %vm915, %v2872, -inf
        %2876 = vmax.xlane.f32.xlu0 %v2875
        %v2877 = vpop.xlane.xlu0 %2876
        %v2878 = vsub.f32 %v2872, %v2877
        %v2879 = vmul.f32 %v2878, 1.442695
        %v2880 = vpow.pop %v2879
        %v2881 = vsel %vm915, %v2880, 0.0
        %2882 = vadd.xlane.f32.xlu0 %v2881
        %v2883 = vpop.xlane.xlu0 %2882
        %v2884 = vrcp.pop %v2883
        %v2885 = vmul.f32 %v2880, %v2884
        %2886 = vrot.lane.b32.xlu0 %v2071, 72
        %v2887 = vpop.permute.xlu0 %2886
        %v2890 = vsel %vm915, %v2885, 0
        %2892 = vmatprep.subr.mxu0 0.0
        %2893 = vmatpush1.msra.mxu0 %v2887
        %2894 = vmatprep.subr.mxu0 0.0
        %2895 = vmatpush1.msra.mxu0 0.0
        %2896 = vmatprep.subr.mxu0 0.0
        %2897 = vmatpush1.msra.mxu0 0.0
        %2898 = vmatprep.subr.mxu0 0.0
        %2899 = vmatpush1.msra.mxu0 0.0
        %2900 = vmatprep.subr.mxu0 0.0
        %2901 = vmatpush1.msra.mxu0 0.0
        %2902 = vmatprep.subr.mxu0 0.0
        %2903 = vmatpush1.msra.mxu0 0.0
        %2904 = vmatprep.subr.mxu0 0.0
        %2905 = vmatpush1.msra.mxu0 0.0
        %2906 = vmatprep.subr.mxu0 0.0
        %2907 = vmatpush1.msra.mxu0 0.0
        %2908 = vmatprep.subr.mxu0 0.0
        %2909 = vmatpush1.msra.mxu0 0.0
        %2910 = vmatprep.subr.mxu0 0.0
        %2911 = vmatpush1.msra.mxu0 0.0
        %2912 = vmatprep.subr.mxu0 0.0
        %2913 = vmatpush1.msra.mxu0 0.0
        %2914 = vmatprep.subr.mxu0 0.0
        %2915 = vmatpush1.msra.mxu0 0.0
        %2916 = vmatprep.subr.mxu0 0.0
        %2917 = vmatpush1.msra.mxu0 0.0
        %2918 = vmatprep.subr.mxu0 0.0
        %2919 = vmatpush1.msra.mxu0 0.0
        %2920 = vmatprep.subr.mxu0 0.0
        %2921 = vmatpush1.msra.mxu0 0.0
        %2922 = vmatprep.subr.mxu0 0.0
        %2923 = vmatpush1.msra.mxu0 0.0
        %2924 = vmatprep.subr.mxu0 0.0
        %2925 = vmatpush1.msra.mxu0 0.0
        %2926 = vmatprep.subr.mxu0 0.0
        %2927 = vmatpush1.msra.mxu0 0.0
        %2928 = vmatprep.subr.mxu0 0.0
        %2929 = vmatpush1.msra.mxu0 0.0
        %2930 = vmatprep.subr.mxu0 0.0
        %2931 = vmatpush1.msra.mxu0 0.0
        %2932 = vmatprep.subr.mxu0 0.0
        %2933 = vmatpush1.msra.mxu0 0.0
        %2934 = vmatprep.subr.mxu0 0.0
        %2935 = vmatpush1.msra.mxu0 0.0
        %2936 = vmatprep.subr.mxu0 0.0
        %2937 = vmatpush1.msra.mxu0 0.0
        %2938 = vmatprep.subr.mxu0 0.0
        %2939 = vmatpush1.msra.mxu0 0.0
        %2940 = vmatprep.subr.mxu0 0.0
        %2941 = vmatpush1.msra.mxu0 0.0
        %2942 = vmatprep.subr.mxu0 0.0
        %2943 = vmatpush1.msra.mxu0 0.0
        %2944 = vmatprep.subr.mxu0 0.0
        %2945 = vmatpush1.msra.mxu0 0.0
        %2946 = vmatprep.subr.mxu0 0.0
        %2947 = vmatpush1.msra.mxu0 0.0
        %2948 = vmatprep.subr.mxu0 0.0
        %2949 = vmatpush1.msra.mxu0 0.0
        %2950 = vmatprep.subr.mxu0 0.0
        %2951 = vmatpush1.msra.mxu0 0.0
        %2952 = vmatprep.subr.mxu0 0.0
        %2953 = vmatpush1.msra.mxu0 0.0
        %2954 = vmatprep.subr.mxu0 0.0
        %2955 = vmatpush1.msra.mxu0 0.0
        %2956 = vmatprep.mubr.f32.mxu0 0.0
        %2957 = vmatmul.mubr.f32.gmra.mrb[0].mxu0 %v2890
        %v2958 = vpop.f32.mrb[0].mxu0
        %v2959 = vadd.f32 0.0, %v2958
        %v2960 = vpop.f32.mrb[0].mxu0
        %2961 = vdwg.mxu0
        %v2963 = vsel %vm915, %v2959, 0
        %2965 = vmatprep.subr.mxu0 0.0
        %2966 = vmatpush1.msra.mxu0 %v1912
        %2967 = vmatprep.subr.mxu0 0.0
        %2968 = vmatpush1.msra.mxu0 0.0
        %2969 = vmatprep.subr.mxu0 0.0
        %2970 = vmatpush1.msra.mxu0 0.0
        %2971 = vmatprep.subr.mxu0 0.0
        %2972 = vmatpush1.msra.mxu0 0.0
        %2973 = vmatprep.subr.mxu0 0.0
        %2974 = vmatpush1.msra.mxu0 0.0
        %2975 = vmatprep.subr.mxu0 0.0
        %2976 = vmatpush1.msra.mxu0 0.0
        %2977 = vmatprep.subr.mxu0 0.0
        %2978 = vmatpush1.msra.mxu0 0.0
        %2979 = vmatprep.subr.mxu0 0.0
        %2980 = vmatpush1.msra.mxu0 0.0
        %2981 = vmatprep.subr.mxu0 0.0
        %2982 = vmatpush1.msra.mxu0 0.0
        %2983 = vmatprep.subr.mxu0 0.0
        %2984 = vmatpush1.msra.mxu0 0.0
        %2985 = vmatprep.subr.mxu0 0.0
        %2986 = vmatpush1.msra.mxu0 0.0
        %2987 = vmatprep.subr.mxu0 0.0
        %2988 = vmatpush1.msra.mxu0 0.0
        %2989 = vmatprep.subr.mxu0 0.0
        %2990 = vmatpush1.msra.mxu0 0.0
        %2991 = vmatprep.subr.mxu0 0.0
        %2992 = vmatpush1.msra.mxu0 0.0
        %2993 = vmatprep.subr.mxu0 0.0
        %2994 = vmatpush1.msra.mxu0 0.0
        %2995 = vmatprep.subr.mxu0 0.0
        %2996 = vmatpush1.msra.mxu0 0.0
        %2997 = vmatprep.subr.mxu0 0.0
        %2998 = vmatpush1.msra.mxu0 0.0
        %2999 = vmatprep.subr.mxu0 0.0
        %3000 = vmatpush1.msra.mxu0 0.0
        %3001 = vmatprep.subr.mxu0 0.0
        %3002 = vmatpush1.msra.mxu0 0.0
        %3003 = vmatprep.subr.mxu0 0.0
        %3004 = vmatpush1.msra.mxu0 0.0
        %3005 = vmatprep.subr.mxu0 0.0
        %3006 = vmatpush1.msra.mxu0 0.0
        %3007 = vmatprep.subr.mxu0 0.0
        %3008 = vmatpush1.msra.mxu0 0.0
        %3009 = vmatprep.subr.mxu0 0.0
        %3010 = vmatpush1.msra.mxu0 0.0
        %3011 = vmatprep.subr.mxu0 0.0
        %3012 = vmatpush1.msra.mxu0 0.0
        %3013 = vmatprep.subr.mxu0 0.0
        %3014 = vmatpush1.msra.mxu0 0.0
        %3015 = vmatprep.subr.mxu0 0.0
        %3016 = vmatpush1.msra.mxu0 0.0
        %3017 = vmatprep.subr.mxu0 0.0
        %3018 = vmatpush1.msra.mxu0 0.0
        %3019 = vmatprep.subr.mxu0 0.0
        %3020 = vmatpush1.msra.mxu0 0.0
        %3021 = vmatprep.subr.mxu0 0.0
        %3022 = vmatpush1.msra.mxu0 0.0
        %3023 = vmatprep.subr.mxu0 0.0
        %3024 = vmatpush1.msra.mxu0 0.0
        %3025 = vmatprep.subr.mxu0 0.0
        %3026 = vmatpush1.msra.mxu0 0.0
        %3027 = vmatprep.subr.mxu0 0.0
        %3028 = vmatpush1.msra.mxu0 0.0
        %3029 = vmatprep.mubr.f32.mxu0 0.0
        %3030 = vmatmul.mubr.f32.gmra.mrb[0].mxu0 %v2963
        %v3031 = vpop.f32.mrb[0].mxu0
        %v3032 = vadd.f32 0.0, %v3031
        %v3033 = vpop.f32.mrb[0].mxu0
        %3034 = vdwg.mxu0
        %v3035 = vadd.f32 %v2796, %v3032
        %v3036 = vadd.f32 %v1898, %v3035
        %v3037 = vsel %vm757, %v3036, 0.0
        %3038 = vadd.xlane.f32.xlu0 %v3037
        %v3039 = vpop.xlane.xlu0 %3038
        %v3040 = vmul.f32 %v3039, %v1874
        %v3041 = vsub.f32 %v3036, %v3040
        %v3042 = vmul.f32 %v3041, %v3041
        %v3043 = vsel %vm757, %v3042, 0.0
        %3044 = vadd.xlane.f32.xlu0 %v3043
        %v3045 = vpop.xlane.xlu0 %3044
        %v3046 = vmul.f32 %v3045, %v1874
        %v3047 = vadd.f32 %v3046, 1e-05
        %v3048 = vrsqrt.pop %v3047
        %v3049 = vmul.f32 %v3041, %v3048
        %v3051 = vlaneseq
        %v3052 = vshrl.u32 %v3051, 7
        %v3053 = vsub.s32 0, %v3052
        %v3054 = vrot.slane %v1914, %v3053
        %v3056 = vmul.f32 %v3049, %v3054
        %v3058 = vlaneseq
        %v3059 = vshrl.u32 %v3058, 7
        %v3060 = vsub.s32 0, %v3059
        %v3061 = vrot.slane %v1915, %v3060
        %v3063 = vadd.f32 %v3056, %v3061
        %3064 = vst.msk [vmem:[%s731] sm:$0xff] %vm757, %v3063
        %p3065 = scmp.lt.s32.totalorder %s35, 1
        %s3066 = scalar_select %p3065, %s35, 1
        %s3067 = smul.addr %s3066, 8
        %s3068 = scalar_lea.vmem %s18, %s3067
        // Predicated region
        $region137: #{transformer_decoder_forward.5} parent=91 // pred_check
          %p3069 = pneg %p441
        $region138: #{transformer_decoder_forward.5} parent=91 // pred_check_branch
          %3071 = sbr.rel (%p3069) target = $region140
        $region139: #{transformer_decoder_forward.5} parent=91 // pred_region
          _
        $region140: #{transformer_decoder_forward.5} parent=91 // pred_fallthru
          _
      $region92: #{transformer_decoder_forward.5} parent=5 // pred_fallthru
        _
      %p3072 = scmp.le.s32.totalorder 2, %s30
      // Predicated region
      $region141: #{transformer_decoder_forward.5} parent=5 // pred_check
        %p3073 = pneg %p3072
      $region142: #{transformer_decoder_forward.5} parent=5 // pred_check_branch
        %3075 = sbr.rel (%p3073) target = $region144
      $region143: #{transformer_decoder_forward.5} parent=5 // pred_region
        %s3076 = ssub.s32 %s30, 2
        // Predicated region
        $region145: #{transformer_decoder_forward.5} parent=143 // pred_check
          %p3077 = pneg %p447
        $region146: #{transformer_decoder_forward.5} parent=143 // pred_check_branch
          %3079 = sbr.rel (%p3077) target = $region148
        $region147: #{transformer_decoder_forward.5} parent=143 // pred_region
          %p3080 = scmp.lt.s32.totalorder %s36, 1
          %s3081 = scalar_select %p3080, %s36, 1
          %s3082 = smul.addr %s3081, 8
          %s3083 = scalar_lea.vmem %s18, %s3082
        $region148: #{transformer_decoder_forward.5} parent=143 // pred_fallthru
          _
      $region144: #{transformer_decoder_forward.5} parent=5 // pred_fallthru
        _
    $region6: #{transformer_decoder_forward.5} parent=1 // loop_footer
      %s34 = sadd.s32 1, %s30
    $region7: #{transformer_decoder_forward.5} parent=1 // loop_footer_branch
      %29 = sbr.rel target = $region3
    $region8: #{transformer_decoder_forward.5} parent=1 // loop_exit
      _
    %3084 = vsyncpa [#allocation3], 1
    %s3085 = scalar_lea.sflag [#allocation3], 1
    %3086 = vsyncpa %s3085, 1
    %3087 = vsyncpa [#allocation5], 1
    %3088 = vsyncpa [#allocation8], 1
    %3089 = vsyncpa [#allocation11], 1
    %3090 = vsyncpa [#allocation14], 1
    %3091 = vsyncpa [#allocation17], 1

// kernel: transformer_decoder_forward.7
$region0: #{transformer_decoder_forward.7}
  #allocation0 [shape = 'u32[]', space=smem, size = 0x4, offset = 0x4, fixed_abs, tag = 'smem constant byte address 0x4 - core index']
  #allocation1 [shape = 'u32[144,128]{1,0:T(1,128)}', space=vmem, size = 0x12000, scoped, tag = 'internal scratch']
  %s0 = inlined_call_operand.vmem [shape: f32[2,8,32], index: 0, kind: input, shape index: {}]
  %s1 = inlined_call_operand.vmem [shape: f32[2,8,32], index: 1, kind: input, shape index: {}]
  %s2 = inlined_call_operand.vmem [shape: f32[32,32], index: 2, kind: input, shape index: {}]
  %s3 = inlined_call_operand.vmem [shape: f32[1,32], index: 3, kind: input, shape index: {}]
  %s4 = inlined_call_operand.vmem [shape: f32[32,64], index: 4, kind: input, shape index: {}]
  %s5 = inlined_call_operand.vmem [shape: f32[1,64], index: 5, kind: input, shape index: {}]
  %s6 = inlined_call_operand.vmem [shape: f32[32,32], index: 6, kind: input, shape index: {}]
  %s7 = inlined_call_operand.vmem [shape: f32[1,32], index: 7, kind: input, shape index: {}]
  %s8 = inlined_call_operand.vmem [shape: f32[1,32], index: 8, kind: input, shape index: {}]
  %s9 = inlined_call_operand.vmem [shape: f32[1,32], index: 9, kind: input, shape index: {}]
  %s10 = inlined_call_operand.vmem [shape: f32[32,32], index: 10, kind: input, shape index: {}]
  %s11 = inlined_call_operand.vmem [shape: f32[1,32], index: 11, kind: input, shape index: {}]
  %s12 = inlined_call_operand.vmem [shape: f32[32,64], index: 12, kind: input, shape index: {}]
  %s13 = inlined_call_operand.vmem [shape: f32[1,64], index: 13, kind: input, shape index: {}]
  %s14 = inlined_call_operand.vmem [shape: f32[32,32], index: 14, kind: input, shape index: {}]
  %s15 = inlined_call_operand.vmem [shape: f32[1,32], index: 15, kind: input, shape index: {}]
  %s16 = inlined_call_operand.vmem [shape: f32[1,32], index: 16, kind: input, shape index: {}]
  %s17 = inlined_call_operand.vmem [shape: f32[1,32], index: 17, kind: input, shape index: {}]
  %s18 = inlined_call_operand.vmem [shape: f32[2,8,32], index: 18, kind: output, shape index: {}]
  %s19 = sld [smem:[#allocation0]]
  $region105: #{transformer_decoder_forward.7} parent=0
    _
  %s21 = ssub.s32 1, %s19
  %s22 = scalar_select 0, %s21, %s19
  loop: start=0, step=1, limit=4
  $region2: #{transformer_decoder_forward.7} parent=0 // loop_pre_header
    _
  $region3: #{transformer_decoder_forward.7} parent=0 // loop_header
    %s24 = sphi 0, %s28
    %p25 = scmp.ge.s32.totalorder %s24, 4
    %s34 = sphi 0, %s36
    %s37 = sphi 0, %s34
    %s38 = sphi 0, %s37
    %s54 = sphi 0, %s38
    %s60 = sphi 0, %s62
    %s63 = sphi 0, %s60
    %s64 = sphi 0, %s63
    %s80 = sphi 0, %s64
    %s84 = sphi 0, %s84
    %s86 = sphi 0, %s84
    %s87 = sphi 0, %s86
    %s101 = sphi 0, %s87
    %s105 = sphi 0, %s105
    %s107 = sphi 0, %s105
    %s108 = sphi 0, %s107
    %s122 = sphi 0, %s108
    %s126 = sphi 0, %s126
    %s128 = sphi 0, %s126
    %s129 = sphi 0, %s128
    %s143 = sphi 0, %s129
    %s147 = sphi 0, %s147
    %s149 = sphi 0, %s147
    %s150 = sphi 0, %s149
    %s164 = sphi 0, %s150
    %s168 = sphi 0, %s168
    %s170 = sphi 0, %s168
    %s171 = sphi 0, %s170
    %s185 = sphi 0, %s171
    %s189 = sphi 0, %s189
    %s191 = sphi 0, %s189
    %s192 = sphi 0, %s191
    %s206 = sphi 0, %s192
    %s210 = sphi 0, %s210
    %s212 = sphi 0, %s210
    %s213 = sphi 0, %s212
    %s227 = sphi 0, %s213
    %s231 = sphi 0, %s231
    %s233 = sphi 0, %s231
    %s234 = sphi 0, %s233
    %s248 = sphi 0, %s234
    %s252 = sphi 0, %s252
    %s254 = sphi 0, %s252
    %s255 = sphi 0, %s254
    %s269 = sphi 0, %s255
    %s273 = sphi 0, %s273
    %s275 = sphi 0, %s273
    %s276 = sphi 0, %s275
    %s290 = sphi 0, %s276
    %s294 = sphi 0, %s294
    %s296 = sphi 0, %s294
    %s297 = sphi 0, %s296
    %s311 = sphi 0, %s297
    %s315 = sphi 0, %s315
    %s317 = sphi 0, %s315
    %s318 = sphi 0, %s317
    %s332 = sphi 0, %s318
    %s336 = sphi 0, %s336
    %s338 = sphi 0, %s336
    %s339 = sphi 0, %s338
    %s353 = sphi 0, %s339
    %s357 = sphi 0, %s357
    %s359 = sphi 0, %s357
    %s360 = sphi 0, %s359
    %s374 = sphi 0, %s360
    %s378 = sphi 0, %s378
    %s380 = sphi 0, %s378
    %s381 = sphi 0, %s380
    %s395 = sphi 0, %s381
    %s399 = sphi 0, %s399
    %s401 = sphi 0, %s399
    %s402 = sphi 0, %s401
    %s416 = sphi 0, %s402
    %s422 = sphi 0, %s424
    %s425 = sphi 0, %s422
    %s426 = sphi 0, %s425
    %s442 = sphi 0, %s426
  $region4: #{transformer_decoder_forward.7} parent=0 // loop_header_branch
    %27 = sbr.rel (%p25) target = $region8
  $region5: #{transformer_decoder_forward.7} parent=0 // loop_body
    %s29 = ssub.s32 %s24, 1
    %s30 = ssub.s32 %s24, 2
    %s31 = sadd.s32 %s24, 1
    %s32 = ssub.s32 %s24, %s31
    %p33 = scmp.eq.s32.totalorder %s32, 0
    %s35 = sadd.s32 %s34, 1
    %s36 = scalar_select %p33, %s34, %s35
    %p39 = pneg %p33
    %p40 = scmp.eq.s32.totalorder %s24, 1
    %p41 = por %p39, %p40
    %p42 = scmp.ne.s32.totalorder %s34, %s37
    %p43 = scmp.eq.s32.totalorder %s24, 0
    %p44 = por %p42, %p43
    %p45 = scmp.ne.s32.totalorder %s34, %s37
    %p46 = scmp.eq.s32.totalorder %s29, 1
    %p47 = por %p45, %p46
    %p48 = scmp.ne.s32.totalorder %s37, %s38
    %p49 = scmp.eq.s32.totalorder %s29, 0
    %p50 = por %p48, %p49
    %p51 = scmp.ne.s32.totalorder %s37, %s38
    %p52 = scmp.eq.s32.totalorder %s30, 1
    %p53 = por %p51, %p52
    %p55 = scmp.ne.s32.totalorder %s38, %s54
    %p56 = scmp.eq.s32.totalorder %s30, 0
    %p57 = por %p55, %p56
    %s58 = ssub.s32 %s24, %s31
    %p59 = scmp.eq.s32.totalorder %s58, 0
    %s61 = sadd.s32 %s60, 1
    %s62 = scalar_select %p59, %s60, %s61
    %p65 = pneg %p59
    %p66 = scmp.eq.s32.totalorder %s24, 1
    %p67 = por %p65, %p66
    %p68 = scmp.ne.s32.totalorder %s60, %s63
    %p69 = scmp.eq.s32.totalorder %s24, 0
    %p70 = por %p68, %p69
    %p71 = scmp.ne.s32.totalorder %s60, %s63
    %p72 = scmp.eq.s32.totalorder %s29, 1
    %p73 = por %p71, %p72
    %p74 = scmp.ne.s32.totalorder %s63, %s64
    %p75 = scmp.eq.s32.totalorder %s29, 0
    %p76 = por %p74, %p75
    %p77 = scmp.ne.s32.totalorder %s63, %s64
    %p78 = scmp.eq.s32.totalorder %s30, 1
    %p79 = por %p77, %p78
    %p81 = scmp.ne.s32.totalorder %s64, %s80
    %p82 = scmp.eq.s32.totalorder %s30, 0
    %p83 = por %p81, %p82
    %s85 = sadd.s32 %s84, 1
    %p88 = scmp.eq.s32.totalorder %s24, 1
    %p89 = scmp.ne.s32.totalorder %s84, %s86
    %p90 = scmp.eq.s32.totalorder %s24, 0
    %p91 = por %p89, %p90
    %p92 = scmp.ne.s32.totalorder %s84, %s86
    %p93 = scmp.eq.s32.totalorder %s29, 1
    %p94 = por %p92, %p93
    %p95 = scmp.ne.s32.totalorder %s86, %s87
    %p96 = scmp.eq.s32.totalorder %s29, 0
    %p97 = por %p95, %p96
    %p98 = scmp.ne.s32.totalorder %s86, %s87
    %p99 = scmp.eq.s32.totalorder %s30, 1
    %p100 = por %p98, %p99
    %p102 = scmp.ne.s32.totalorder %s87, %s101
    %p103 = scmp.eq.s32.totalorder %s30, 0
    %p104 = por %p102, %p103
    %s106 = sadd.s32 %s105, 1
    %p109 = scmp.eq.s32.totalorder %s24, 1
    %p110 = scmp.ne.s32.totalorder %s105, %s107
    %p111 = scmp.eq.s32.totalorder %s24, 0
    %p112 = por %p110, %p111
    %p113 = scmp.ne.s32.totalorder %s105, %s107
    %p114 = scmp.eq.s32.totalorder %s29, 1
    %p115 = por %p113, %p114
    %p116 = scmp.ne.s32.totalorder %s107, %s108
    %p117 = scmp.eq.s32.totalorder %s29, 0
    %p118 = por %p116, %p117
    %p119 = scmp.ne.s32.totalorder %s107, %s108
    %p120 = scmp.eq.s32.totalorder %s30, 1
    %p121 = por %p119, %p120
    %p123 = scmp.ne.s32.totalorder %s108, %s122
    %p124 = scmp.eq.s32.totalorder %s30, 0
    %p125 = por %p123, %p124
    %s127 = sadd.s32 %s126, 1
    %p130 = scmp.eq.s32.totalorder %s24, 1
    %p131 = scmp.ne.s32.totalorder %s126, %s128
    %p132 = scmp.eq.s32.totalorder %s24, 0
    %p133 = por %p131, %p132
    %p134 = scmp.ne.s32.totalorder %s126, %s128
    %p135 = scmp.eq.s32.totalorder %s29, 1
    %p136 = por %p134, %p135
    %p137 = scmp.ne.s32.totalorder %s128, %s129
    %p138 = scmp.eq.s32.totalorder %s29, 0
    %p139 = por %p137, %p138
    %p140 = scmp.ne.s32.totalorder %s128, %s129
    %p141 = scmp.eq.s32.totalorder %s30, 1
    %p142 = por %p140, %p141
    %p144 = scmp.ne.s32.totalorder %s129, %s143
    %p145 = scmp.eq.s32.totalorder %s30, 0
    %p146 = por %p144, %p145
    %s148 = sadd.s32 %s147, 1
    %p151 = scmp.eq.s32.totalorder %s24, 1
    %p152 = scmp.ne.s32.totalorder %s147, %s149
    %p153 = scmp.eq.s32.totalorder %s24, 0
    %p154 = por %p152, %p153
    %p155 = scmp.ne.s32.totalorder %s147, %s149
    %p156 = scmp.eq.s32.totalorder %s29, 1
    %p157 = por %p155, %p156
    %p158 = scmp.ne.s32.totalorder %s149, %s150
    %p159 = scmp.eq.s32.totalorder %s29, 0
    %p160 = por %p158, %p159
    %p161 = scmp.ne.s32.totalorder %s149, %s150
    %p162 = scmp.eq.s32.totalorder %s30, 1
    %p163 = por %p161, %p162
    %p165 = scmp.ne.s32.totalorder %s150, %s164
    %p166 = scmp.eq.s32.totalorder %s30, 0
    %p167 = por %p165, %p166
    %s169 = sadd.s32 %s168, 1
    %p172 = scmp.eq.s32.totalorder %s24, 1
    %p173 = scmp.ne.s32.totalorder %s168, %s170
    %p174 = scmp.eq.s32.totalorder %s24, 0
    %p175 = por %p173, %p174
    %p176 = scmp.ne.s32.totalorder %s168, %s170
    %p177 = scmp.eq.s32.totalorder %s29, 1
    %p178 = por %p176, %p177
    %p179 = scmp.ne.s32.totalorder %s170, %s171
    %p180 = scmp.eq.s32.totalorder %s29, 0
    %p181 = por %p179, %p180
    %p182 = scmp.ne.s32.totalorder %s170, %s171
    %p183 = scmp.eq.s32.totalorder %s30, 1
    %p184 = por %p182, %p183
    %p186 = scmp.ne.s32.totalorder %s171, %s185
    %p187 = scmp.eq.s32.totalorder %s30, 0
    %p188 = por %p186, %p187
    %s190 = sadd.s32 %s189, 1
    %p193 = scmp.eq.s32.totalorder %s24, 1
    %p194 = scmp.ne.s32.totalorder %s189, %s191
    %p195 = scmp.eq.s32.totalorder %s24, 0
    %p196 = por %p194, %p195
    %p197 = scmp.ne.s32.totalorder %s189, %s191
    %p198 = scmp.eq.s32.totalorder %s29, 1
    %p199 = por %p197, %p198
    %p200 = scmp.ne.s32.totalorder %s191, %s192
    %p201 = scmp.eq.s32.totalorder %s29, 0
    %p202 = por %p200, %p201
    %p203 = scmp.ne.s32.totalorder %s191, %s192
    %p204 = scmp.eq.s32.totalorder %s30, 1
    %p205 = por %p203, %p204
    %p207 = scmp.ne.s32.totalorder %s192, %s206
    %p208 = scmp.eq.s32.totalorder %s30, 0
    %p209 = por %p207, %p208
    %s211 = sadd.s32 %s210, 1
    %p214 = scmp.eq.s32.totalorder %s24, 1
    %p215 = scmp.ne.s32.totalorder %s210, %s212
    %p216 = scmp.eq.s32.totalorder %s24, 0
    %p217 = por %p215, %p216
    %p218 = scmp.ne.s32.totalorder %s210, %s212
    %p219 = scmp.eq.s32.totalorder %s29, 1
    %p220 = por %p218, %p219
    %p221 = scmp.ne.s32.totalorder %s212, %s213
    %p222 = scmp.eq.s32.totalorder %s29, 0
    %p223 = por %p221, %p222
    %p224 = scmp.ne.s32.totalorder %s212, %s213
    %p225 = scmp.eq.s32.totalorder %s30, 1
    %p226 = por %p224, %p225
    %p228 = scmp.ne.s32.totalorder %s213, %s227
    %p229 = scmp.eq.s32.totalorder %s30, 0
    %p230 = por %p228, %p229
    %s232 = sadd.s32 %s231, 1
    %p235 = scmp.eq.s32.totalorder %s24, 1
    %p236 = scmp.ne.s32.totalorder %s231, %s233
    %p237 = scmp.eq.s32.totalorder %s24, 0
    %p238 = por %p236, %p237
    %p239 = scmp.ne.s32.totalorder %s231, %s233
    %p240 = scmp.eq.s32.totalorder %s29, 1
    %p241 = por %p239, %p240
    %p242 = scmp.ne.s32.totalorder %s233, %s234
    %p243 = scmp.eq.s32.totalorder %s29, 0
    %p244 = por %p242, %p243
    %p245 = scmp.ne.s32.totalorder %s233, %s234
    %p246 = scmp.eq.s32.totalorder %s30, 1
    %p247 = por %p245, %p246
    %p249 = scmp.ne.s32.totalorder %s234, %s248
    %p250 = scmp.eq.s32.totalorder %s30, 0
    %p251 = por %p249, %p250
    %s253 = sadd.s32 %s252, 1
    %p256 = scmp.eq.s32.totalorder %s24, 1
    %p257 = scmp.ne.s32.totalorder %s252, %s254
    %p258 = scmp.eq.s32.totalorder %s24, 0
    %p259 = por %p257, %p258
    %p260 = scmp.ne.s32.totalorder %s252, %s254
    %p261 = scmp.eq.s32.totalorder %s29, 1
    %p262 = por %p260, %p261
    %p263 = scmp.ne.s32.totalorder %s254, %s255
    %p264 = scmp.eq.s32.totalorder %s29, 0
    %p265 = por %p263, %p264
    %p266 = scmp.ne.s32.totalorder %s254, %s255
    %p267 = scmp.eq.s32.totalorder %s30, 1
    %p268 = por %p266, %p267
    %p270 = scmp.ne.s32.totalorder %s255, %s269
    %p271 = scmp.eq.s32.totalorder %s30, 0
    %p272 = por %p270, %p271
    %s274 = sadd.s32 %s273, 1
    %p277 = scmp.eq.s32.totalorder %s24, 1
    %p278 = scmp.ne.s32.totalorder %s273, %s275
    %p279 = scmp.eq.s32.totalorder %s24, 0
    %p280 = por %p278, %p279
    %p281 = scmp.ne.s32.totalorder %s273, %s275
    %p282 = scmp.eq.s32.totalorder %s29, 1
    %p283 = por %p281, %p282
    %p284 = scmp.ne.s32.totalorder %s275, %s276
    %p285 = scmp.eq.s32.totalorder %s29, 0
    %p286 = por %p284, %p285
    %p287 = scmp.ne.s32.totalorder %s275, %s276
    %p288 = scmp.eq.s32.totalorder %s30, 1
    %p289 = por %p287, %p288
    %p291 = scmp.ne.s32.totalorder %s276, %s290
    %p292 = scmp.eq.s32.totalorder %s30, 0
    %p293 = por %p291, %p292
    %s295 = sadd.s32 %s294, 1
    %p298 = scmp.eq.s32.totalorder %s24, 1
    %p299 = scmp.ne.s32.totalorder %s294, %s296
    %p300 = scmp.eq.s32.totalorder %s24, 0
    %p301 = por %p299, %p300
    %p302 = scmp.ne.s32.totalorder %s294, %s296
    %p303 = scmp.eq.s32.totalorder %s29, 1
    %p304 = por %p302, %p303
    %p305 = scmp.ne.s32.totalorder %s296, %s297
    %p306 = scmp.eq.s32.totalorder %s29, 0
    %p307 = por %p305, %p306
    %p308 = scmp.ne.s32.totalorder %s296, %s297
    %p309 = scmp.eq.s32.totalorder %s30, 1
    %p310 = por %p308, %p309
    %p312 = scmp.ne.s32.totalorder %s297, %s311
    %p313 = scmp.eq.s32.totalorder %s30, 0
    %p314 = por %p312, %p313
    %s316 = sadd.s32 %s315, 1
    %p319 = scmp.eq.s32.totalorder %s24, 1
    %p320 = scmp.ne.s32.totalorder %s315, %s317
    %p321 = scmp.eq.s32.totalorder %s24, 0
    %p322 = por %p320, %p321
    %p323 = scmp.ne.s32.totalorder %s315, %s317
    %p324 = scmp.eq.s32.totalorder %s29, 1
    %p325 = por %p323, %p324
    %p326 = scmp.ne.s32.totalorder %s317, %s318
    %p327 = scmp.eq.s32.totalorder %s29, 0
    %p328 = por %p326, %p327
    %p329 = scmp.ne.s32.totalorder %s317, %s318
    %p330 = scmp.eq.s32.totalorder %s30, 1
    %p331 = por %p329, %p330
    %p333 = scmp.ne.s32.totalorder %s318, %s332
    %p334 = scmp.eq.s32.totalorder %s30, 0
    %p335 = por %p333, %p334
    %s337 = sadd.s32 %s336, 1
    %p340 = scmp.eq.s32.totalorder %s24, 1
    %p341 = scmp.ne.s32.totalorder %s336, %s338
    %p342 = scmp.eq.s32.totalorder %s24, 0
    %p343 = por %p341, %p342
    %p344 = scmp.ne.s32.totalorder %s336, %s338
    %p345 = scmp.eq.s32.totalorder %s29, 1
    %p346 = por %p344, %p345
    %p347 = scmp.ne.s32.totalorder %s338, %s339
    %p348 = scmp.eq.s32.totalorder %s29, 0
    %p349 = por %p347, %p348
    %p350 = scmp.ne.s32.totalorder %s338, %s339
    %p351 = scmp.eq.s32.totalorder %s30, 1
    %p352 = por %p350, %p351
    %p354 = scmp.ne.s32.totalorder %s339, %s353
    %p355 = scmp.eq.s32.totalorder %s30, 0
    %p356 = por %p354, %p355
    %s358 = sadd.s32 %s357, 1
    %p361 = scmp.eq.s32.totalorder %s24, 1
    %p362 = scmp.ne.s32.totalorder %s357, %s359
    %p363 = scmp.eq.s32.totalorder %s24, 0
    %p364 = por %p362, %p363
    %p365 = scmp.ne.s32.totalorder %s357, %s359
    %p366 = scmp.eq.s32.totalorder %s29, 1
    %p367 = por %p365, %p366
    %p368 = scmp.ne.s32.totalorder %s359, %s360
    %p369 = scmp.eq.s32.totalorder %s29, 0
    %p370 = por %p368, %p369
    %p371 = scmp.ne.s32.totalorder %s359, %s360
    %p372 = scmp.eq.s32.totalorder %s30, 1
    %p373 = por %p371, %p372
    %p375 = scmp.ne.s32.totalorder %s360, %s374
    %p376 = scmp.eq.s32.totalorder %s30, 0
    %p377 = por %p375, %p376
    %s379 = sadd.s32 %s378, 1
    %p382 = scmp.eq.s32.totalorder %s24, 1
    %p383 = scmp.ne.s32.totalorder %s378, %s380
    %p384 = scmp.eq.s32.totalorder %s24, 0
    %p385 = por %p383, %p384
    %p386 = scmp.ne.s32.totalorder %s378, %s380
    %p387 = scmp.eq.s32.totalorder %s29, 1
    %p388 = por %p386, %p387
    %p389 = scmp.ne.s32.totalorder %s380, %s381
    %p390 = scmp.eq.s32.totalorder %s29, 0
    %p391 = por %p389, %p390
    %p392 = scmp.ne.s32.totalorder %s380, %s381
    %p393 = scmp.eq.s32.totalorder %s30, 1
    %p394 = por %p392, %p393
    %p396 = scmp.ne.s32.totalorder %s381, %s395
    %p397 = scmp.eq.s32.totalorder %s30, 0
    %p398 = por %p396, %p397
    %s400 = sadd.s32 %s399, 1
    %p403 = scmp.eq.s32.totalorder %s24, 1
    %p404 = scmp.ne.s32.totalorder %s399, %s401
    %p405 = scmp.eq.s32.totalorder %s24, 0
    %p406 = por %p404, %p405
    %p407 = scmp.ne.s32.totalorder %s399, %s401
    %p408 = scmp.eq.s32.totalorder %s29, 1
    %p409 = por %p407, %p408
    %p410 = scmp.ne.s32.totalorder %s401, %s402
    %p411 = scmp.eq.s32.totalorder %s29, 0
    %p412 = por %p410, %p411
    %p413 = scmp.ne.s32.totalorder %s401, %s402
    %p414 = scmp.eq.s32.totalorder %s30, 1
    %p415 = por %p413, %p414
    %p417 = scmp.ne.s32.totalorder %s402, %s416
    %p418 = scmp.eq.s32.totalorder %s30, 0
    %p419 = por %p417, %p418
    %s420 = ssub.s32 %s24, %s31
    %p421 = scmp.eq.s32.totalorder %s420, 0
    %s423 = sadd.s32 %s422, 1
    %s424 = scalar_select %p421, %s422, %s423
    %p427 = pneg %p421
    %p428 = scmp.eq.s32.totalorder %s24, 1
    %p429 = por %p427, %p428
    %p430 = scmp.ne.s32.totalorder %s422, %s425
    %p431 = scmp.eq.s32.totalorder %s24, 0
    %p432 = por %p430, %p431
    %p433 = scmp.ne.s32.totalorder %s422, %s425
    %p434 = scmp.eq.s32.totalorder %s29, 1
    %p435 = por %p433, %p434
    %p436 = scmp.ne.s32.totalorder %s425, %s426
    %p437 = scmp.eq.s32.totalorder %s29, 0
    %p438 = por %p436, %p437
    %p439 = scmp.ne.s32.totalorder %s425, %s426
    %p440 = scmp.eq.s32.totalorder %s30, 1
    %p441 = por %p439, %p440
    %p443 = scmp.ne.s32.totalorder %s426, %s442
    %p444 = scmp.eq.s32.totalorder %s30, 0
    %p445 = por %p443, %p444
    %p446 = scmp.le.s32.totalorder 1, %s24
    %p447 = scmp.lt.s32.totalorder %s24, 3
    %p448 = pnand %p446, %p447
    %p449 = pneg %p448
    // Predicated region
    $region9: #{transformer_decoder_forward.7} parent=5 // pred_check
      _
    $region10: #{transformer_decoder_forward.7} parent=5 // pred_check_branch
      %451 = sbr.rel (%p448) target = $region12
    $region11: #{transformer_decoder_forward.7} parent=5 // pred_region
      %s452 = ssub.s32 %s24, 1
      // Predicated region
      $region13: #{transformer_decoder_forward.7} parent=11 // pred_check
        %p453 = pneg %p97
      $region14: #{transformer_decoder_forward.7} parent=11 // pred_check_branch
        %455 = sbr.rel (%p453) target = $region16
      $region15: #{transformer_decoder_forward.7} parent=11 // pred_region
        _
      $region16: #{transformer_decoder_forward.7} parent=11 // pred_fallthru
        _
      // Predicated region
      $region17: #{transformer_decoder_forward.7} parent=11 // pred_check
        %p456 = pneg %p118
      $region18: #{transformer_decoder_forward.7} parent=11 // pred_check_branch
        %458 = sbr.rel (%p456) target = $region20
      $region19: #{transformer_decoder_forward.7} parent=11 // pred_region
        _
      $region20: #{transformer_decoder_forward.7} parent=11 // pred_fallthru
        _
      // Predicated region
      $region21: #{transformer_decoder_forward.7} parent=11 // pred_check
        %p459 = pneg %p139
      $region22: #{transformer_decoder_forward.7} parent=11 // pred_check_branch
        %461 = sbr.rel (%p459) target = $region24
      $region23: #{transformer_decoder_forward.7} parent=11 // pred_region
        _
      $region24: #{transformer_decoder_forward.7} parent=11 // pred_fallthru
        _
      // Predicated region
      $region25: #{transformer_decoder_forward.7} parent=11 // pred_check
        %p462 = pneg %p160
      $region26: #{transformer_decoder_forward.7} parent=11 // pred_check_branch
        %464 = sbr.rel (%p462) target = $region28
      $region27: #{transformer_decoder_forward.7} parent=11 // pred_region
        _
      $region28: #{transformer_decoder_forward.7} parent=11 // pred_fallthru
        _
      // Predicated region
      $region29: #{transformer_decoder_forward.7} parent=11 // pred_check
        %p465 = pneg %p181
      $region30: #{transformer_decoder_forward.7} parent=11 // pred_check_branch
        %467 = sbr.rel (%p465) target = $region32
      $region31: #{transformer_decoder_forward.7} parent=11 // pred_region
        _
      $region32: #{transformer_decoder_forward.7} parent=11 // pred_fallthru
        _
      // Predicated region
      $region33: #{transformer_decoder_forward.7} parent=11 // pred_check
        %p468 = pneg %p202
      $region34: #{transformer_decoder_forward.7} parent=11 // pred_check_branch
        %470 = sbr.rel (%p468) target = $region36
      $region35: #{transformer_decoder_forward.7} parent=11 // pred_region
        _
      $region36: #{transformer_decoder_forward.7} parent=11 // pred_fallthru
        _
      // Predicated region
      $region37: #{transformer_decoder_forward.7} parent=11 // pred_check
        %p471 = pneg %p223
      $region38: #{transformer_decoder_forward.7} parent=11 // pred_check_branch
        %473 = sbr.rel (%p471) target = $region40
      $region39: #{transformer_decoder_forward.7} parent=11 // pred_region
        _
      $region40: #{transformer_decoder_forward.7} parent=11 // pred_fallthru
        _
      // Predicated region
      $region41: #{transformer_decoder_forward.7} parent=11 // pred_check
        %p474 = pneg %p244
      $region42: #{transformer_decoder_forward.7} parent=11 // pred_check_branch
        %476 = sbr.rel (%p474) target = $region44
      $region43: #{transformer_decoder_forward.7} parent=11 // pred_region
        _
      $region44: #{transformer_decoder_forward.7} parent=11 // pred_fallthru
        _
      // Predicated region
      $region45: #{transformer_decoder_forward.7} parent=11 // pred_check
        %p477 = pneg %p265
      $region46: #{transformer_decoder_forward.7} parent=11 // pred_check_branch
        %479 = sbr.rel (%p477) target = $region48
      $region47: #{transformer_decoder_forward.7} parent=11 // pred_region
        _
      $region48: #{transformer_decoder_forward.7} parent=11 // pred_fallthru
        _
      // Predicated region
      $region49: #{transformer_decoder_forward.7} parent=11 // pred_check
        %p480 = pneg %p286
      $region50: #{transformer_decoder_forward.7} parent=11 // pred_check_branch
        %482 = sbr.rel (%p480) target = $region52
      $region51: #{transformer_decoder_forward.7} parent=11 // pred_region
        _
      $region52: #{transformer_decoder_forward.7} parent=11 // pred_fallthru
        _
      // Predicated region
      $region53: #{transformer_decoder_forward.7} parent=11 // pred_check
        %p483 = pneg %p307
      $region54: #{transformer_decoder_forward.7} parent=11 // pred_check_branch
        %485 = sbr.rel (%p483) target = $region56
      $region55: #{transformer_decoder_forward.7} parent=11 // pred_region
        _
      $region56: #{transformer_decoder_forward.7} parent=11 // pred_fallthru
        _
      // Predicated region
      $region57: #{transformer_decoder_forward.7} parent=11 // pred_check
        %p486 = pneg %p328
      $region58: #{transformer_decoder_forward.7} parent=11 // pred_check_branch
        %488 = sbr.rel (%p486) target = $region60
      $region59: #{transformer_decoder_forward.7} parent=11 // pred_region
        _
      $region60: #{transformer_decoder_forward.7} parent=11 // pred_fallthru
        _
      // Predicated region
      $region61: #{transformer_decoder_forward.7} parent=11 // pred_check
        %p489 = pneg %p349
      $region62: #{transformer_decoder_forward.7} parent=11 // pred_check_branch
        %491 = sbr.rel (%p489) target = $region64
      $region63: #{transformer_decoder_forward.7} parent=11 // pred_region
        _
      $region64: #{transformer_decoder_forward.7} parent=11 // pred_fallthru
        _
      // Predicated region
      $region65: #{transformer_decoder_forward.7} parent=11 // pred_check
        %p492 = pneg %p370
      $region66: #{transformer_decoder_forward.7} parent=11 // pred_check_branch
        %494 = sbr.rel (%p492) target = $region68
      $region67: #{transformer_decoder_forward.7} parent=11 // pred_region
        _
      $region68: #{transformer_decoder_forward.7} parent=11 // pred_fallthru
        _
      // Predicated region
      $region69: #{transformer_decoder_forward.7} parent=11 // pred_check
        %p495 = pneg %p391
      $region70: #{transformer_decoder_forward.7} parent=11 // pred_check_branch
        %497 = sbr.rel (%p495) target = $region72
      $region71: #{transformer_decoder_forward.7} parent=11 // pred_region
        _
      $region72: #{transformer_decoder_forward.7} parent=11 // pred_fallthru
        _
      // Predicated region
      $region73: #{transformer_decoder_forward.7} parent=11 // pred_check
        %p498 = pneg %p412
      $region74: #{transformer_decoder_forward.7} parent=11 // pred_check_branch
        %500 = sbr.rel (%p498) target = $region76
      $region75: #{transformer_decoder_forward.7} parent=11 // pred_region
        _
      $region76: #{transformer_decoder_forward.7} parent=11 // pred_fallthru
        _
    $region12: #{transformer_decoder_forward.7} parent=5 // pred_fallthru
      _
    %p501 = scmp.lt.s32.totalorder %s24, 2
    // Predicated region
    $region77: #{transformer_decoder_forward.7} parent=5 // pred_check
      %p502 = pneg %p501
    $region78: #{transformer_decoder_forward.7} parent=5 // pred_check_branch
      %504 = sbr.rel (%p502) target = $region80
    $region79: #{transformer_decoder_forward.7} parent=5 // pred_region
      // Predicated region
      $region81: #{transformer_decoder_forward.7} parent=79 // pred_check
        %p505 = pneg %p44
      $region82: #{transformer_decoder_forward.7} parent=79 // pred_check_branch
        %507 = sbr.rel (%p505) target = $region84
      $region83: #{transformer_decoder_forward.7} parent=79 // pred_region
        %p508 = scmp.lt.s32.totalorder %s24, 1
        %s509 = scalar_select %p508, %s24, 1
        %s510 = smul.addr %s509, 8
        %s511 = scalar_lea.vmem %s0, %s510
      $region84: #{transformer_decoder_forward.7} parent=79 // pred_fallthru
        _
      // Predicated region
      $region85: #{transformer_decoder_forward.7} parent=79 // pred_check
        %p512 = pneg %p70
      $region86: #{transformer_decoder_forward.7} parent=79 // pred_check_branch
        %514 = sbr.rel (%p512) target = $region88
      $region87: #{transformer_decoder_forward.7} parent=79 // pred_region
        %p515 = scmp.lt.s32.totalorder %s24, 1
        %s516 = scalar_select %p515, %s24, 1
        %s517 = smul.addr %s516, 8
        %s518 = scalar_lea.vmem %s1, %s517
      $region88: #{transformer_decoder_forward.7} parent=79 // pred_fallthru
        _
    $region80: #{transformer_decoder_forward.7} parent=5 // pred_fallthru
      _
    %p519 = scmp.le.s32.totalorder 1, %s24
    %p520 = scmp.lt.s32.totalorder %s24, 3
    %p521 = pnand %p519, %p520
    %p522 = pneg %p521
    // Predicated region
    $region89: #{transformer_decoder_forward.7} parent=5 // pred_check
      _
    $region90: #{transformer_decoder_forward.7} parent=5 // pred_check_branch
      %524 = sbr.rel (%p521) target = $region92
    $region91: #{transformer_decoder_forward.7} parent=5 // pred_region
      %s525 = ssub.s32 %s24, 1
      %p526 = scmp.lt.s32.totalorder %s29, 1
      %s527 = scalar_select %p526, %s29, 1
      %s528 = smul.addr %s527, 8
      %s529 = scalar_lea.vmem %s0, %s528
      %p530 = pneg %p50
      %p531 = pneg %p47
      %p532 = scmp.lt.s32.totalorder %s29, 1
      %s533 = scalar_select %p532, %s29, 1
      %s534 = smul.addr %s533, 8
      %s535 = scalar_lea.vmem %s1, %s534
      %p536 = pneg %p76
      %p537 = pneg %p73
      %p538 = pneg %p97
      %p539 = pneg %p94
      %p540 = pneg %p118
      %p541 = pneg %p115
      %p542 = pneg %p139
      %p543 = pneg %p136
      %p544 = pneg %p160
      %p545 = pneg %p157
      %p546 = pneg %p181
      %p547 = pneg %p178
      %p548 = pneg %p202
      %p549 = pneg %p199
      %p550 = pneg %p223
      %p551 = pneg %p220
      %p552 = pneg %p244
      %p553 = pneg %p241
      %p554 = pneg %p265
      %p555 = pneg %p262
      %p556 = pneg %p286
      %p557 = pneg %p283
      %p558 = pneg %p307
      %p559 = pneg %p304
      %p560 = pneg %p328
      %p561 = pneg %p325
      %p562 = pneg %p349
      %p563 = pneg %p346
      %p564 = pneg %p370
      %p565 = pneg %p367
      %p566 = pneg %p391
      %p567 = pneg %p388
      %p568 = pneg %p412
      %p569 = pneg %p409
      %p570 = pneg %p438
      %p571 = pneg %p435
      %p572 = scmp.lt.s32.totalorder %s29, 1
      %s573 = scalar_select %p572, %s29, 1
      %s574 = smul.addr %s573, 8
      %s575 = scalar_lea.vmem %s18, %s574
      %p576 = scmp.lt.s32.totalorder %s29, 1
      %s577 = scalar_select %p576, %s29, 1
      %s578 = smul.addr %s577, 8
      %s579 = scalar_lea.vmem %s0, %s578
      %p580 = scmp.lt.s32.totalorder %s29, 1
      %s581 = scalar_select %p580, %s29, 1
      %s582 = smul.addr %s581, 8
      %s583 = scalar_lea.vmem %s1, %s582
      %p584 = scmp.lt.s32.totalorder %s29, 1
      %s585 = scalar_select %p584, %s29, 1
      %s586 = smul.addr %s585, 8
      %s587 = scalar_lea.vmem %s18, %s586
      %v588 = vld [vmem:[%s579] sm:$0xff]
      %v589 = vld [vmem:[%s583] sm:$0xff]
      %v590 = vld [vmem:[%s2] sm:$0xff]
      %v591 = vld [vmem:[%s2 + $0x8] sm:$0xff]
      %v592 = vld [vmem:[%s2 + $0x10] sm:$0xff]
      %v593 = vld [vmem:[%s2 + $0x18] sm:$0xff]
      %v594 = vld [vmem:[%s3] sm:$0x1]
      %v595 = vld [vmem:[%s4] sm:$0xff]
      %v596 = vld [vmem:[%s4 + $0x8] sm:$0xff]
      %v597 = vld [vmem:[%s4 + $0x10] sm:$0xff]
      %v598 = vld [vmem:[%s4 + $0x18] sm:$0xff]
      %v599 = vld [vmem:[%s5] sm:$0x1]
      %v600 = vld [vmem:[%s6] sm:$0xff]
      %v601 = vld [vmem:[%s6 + $0x8] sm:$0xff]
      %v602 = vld [vmem:[%s6 + $0x10] sm:$0xff]
      %v603 = vld [vmem:[%s6 + $0x18] sm:$0xff]
      %v604 = vld [vmem:[%s7] sm:$0x1]
      %v605 = vld [vmem:[%s8] sm:$0x1]
      %v606 = vld [vmem:[%s9] sm:$0x1]
      %v608 = vlaneseq
      %v609 = vshrl.u32 %v608, 7
      %v610 = vsub.s32 0, %v609
      %v611 = vrot.slane %v594, %v610
      %vm613 = vcmask 261120
      %v615 = vsel %vm613, %v588, 0
      %617 = vmatprep.subr.mxu0 0.0
      %618 = vmatpush1.msra.mxu0 %v590
      %619 = vmatprep.subr.mxu0 0.0
      %620 = vmatpush1.msra.mxu0 %v591
      %621 = vmatprep.subr.mxu0 0.0
      %622 = vmatpush1.msra.mxu0 %v592
      %623 = vmatprep.subr.mxu0 0.0
      %624 = vmatpush1.msra.mxu0 %v593
      %625 = vmatprep.subr.mxu0 0.0
      %626 = vmatpush1.msra.mxu0 0.0
      %627 = vmatprep.subr.mxu0 0.0
      %628 = vmatpush1.msra.mxu0 0.0
      %629 = vmatprep.subr.mxu0 0.0
      %630 = vmatpush1.msra.mxu0 0.0
      %631 = vmatprep.subr.mxu0 0.0
      %632 = vmatpush1.msra.mxu0 0.0
      %633 = vmatprep.subr.mxu0 0.0
      %634 = vmatpush1.msra.mxu0 0.0
      %635 = vmatprep.subr.mxu0 0.0
      %636 = vmatpush1.msra.mxu0 0.0
      %637 = vmatprep.subr.mxu0 0.0
      %638 = vmatpush1.msra.mxu0 0.0
      %639 = vmatprep.subr.mxu0 0.0
      %640 = vmatpush1.msra.mxu0 0.0
      %641 = vmatprep.subr.mxu0 0.0
      %642 = vmatpush1.msra.mxu0 0.0
      %643 = vmatprep.subr.mxu0 0.0
      %644 = vmatpush1.msra.mxu0 0.0
      %645 = vmatprep.subr.mxu0 0.0
      %646 = vmatpush1.msra.mxu0 0.0
      %647 = vmatprep.subr.mxu0 0.0
      %648 = vmatpush1.msra.mxu0 0.0
      %649 = vmatprep.subr.mxu0 0.0
      %650 = vmatpush1.msra.mxu0 0.0
      %651 = vmatprep.subr.mxu0 0.0
      %652 = vmatpush1.msra.mxu0 0.0
      %653 = vmatprep.subr.mxu0 0.0
      %654 = vmatpush1.msra.mxu0 0.0
      %655 = vmatprep.subr.mxu0 0.0
      %656 = vmatpush1.msra.mxu0 0.0
      %657 = vmatprep.subr.mxu0 0.0
      %658 = vmatpush1.msra.mxu0 0.0
      %659 = vmatprep.subr.mxu0 0.0
      %660 = vmatpush1.msra.mxu0 0.0
      %661 = vmatprep.subr.mxu0 0.0
      %662 = vmatpush1.msra.mxu0 0.0
      %663 = vmatprep.subr.mxu0 0.0
      %664 = vmatpush1.msra.mxu0 0.0
      %665 = vmatprep.subr.mxu0 0.0
      %666 = vmatpush1.msra.mxu0 0.0
      %667 = vmatprep.subr.mxu0 0.0
      %668 = vmatpush1.msra.mxu0 0.0
      %669 = vmatprep.subr.mxu0 0.0
      %670 = vmatpush1.msra.mxu0 0.0
      %671 = vmatprep.subr.mxu0 0.0
      %672 = vmatpush1.msra.mxu0 0.0
      %673 = vmatprep.subr.mxu0 0.0
      %674 = vmatpush1.msra.mxu0 0.0
      %675 = vmatprep.subr.mxu0 0.0
      %676 = vmatpush1.msra.mxu0 0.0
      %677 = vmatprep.subr.mxu0 0.0
      %678 = vmatpush1.msra.mxu0 0.0
      %679 = vmatprep.subr.mxu0 0.0
      %680 = vmatpush1.msra.mxu0 0.0
      %681 = vmatprep.mubr.f32.mxu0 0.0
      %682 = vmatmul.mubr.f32.gmra.mrb[0].mxu0 %v615
      %v683 = vpop.f32.mrb[0].mxu0
      %v684 = vadd.f32 %v611, %v683
      %v685 = vpop.f32.mrb[0].mxu0
      %686 = vdwg.mxu0
      %v688 = vlaneseq
      %v689 = vshrl.u32 %v688, 7
      %v690 = vsub.s32 0, %v689
      %v691 = vrot.slane %v599, %v690
      %693 = vmatprep.subr.mxu0 0.0
      %694 = vmatpush1.msra.mxu0 %v595
      %695 = vmatprep.subr.mxu0 0.0
      %696 = vmatpush1.msra.mxu0 %v596
      %697 = vmatprep.subr.mxu0 0.0
      %698 = vmatpush1.msra.mxu0 %v597
      %699 = vmatprep.subr.mxu0 0.0
      %700 = vmatpush1.msra.mxu0 %v598
      %701 = vmatprep.subr.mxu0 0.0
      %702 = vmatpush1.msra.mxu0 0.0
      %703 = vmatprep.subr.mxu0 0.0
      %704 = vmatpush1.msra.mxu0 0.0
      %705 = vmatprep.subr.mxu0 0.0
      %706 = vmatpush1.msra.mxu0 0.0
      %707 = vmatprep.subr.mxu0 0.0
      %708 = vmatpush1.msra.mxu0 0.0
      %709 = vmatprep.subr.mxu0 0.0
      %710 = vmatpush1.msra.mxu0 0.0
      %711 = vmatprep.subr.mxu0 0.0
      %712 = vmatpush1.msra.mxu0 0.0
      %713 = vmatprep.subr.mxu0 0.0
      %714 = vmatpush1.msra.mxu0 0.0
      %715 = vmatprep.subr.mxu0 0.0
      %716 = vmatpush1.msra.mxu0 0.0
      %717 = vmatprep.subr.mxu0 0.0
      %718 = vmatpush1.msra.mxu0 0.0
      %719 = vmatprep.subr.mxu0 0.0
      %720 = vmatpush1.msra.mxu0 0.0
      %721 = vmatprep.subr.mxu0 0.0
      %722 = vmatpush1.msra.mxu0 0.0
      %723 = vmatprep.subr.mxu0 0.0
      %724 = vmatpush1.msra.mxu0 0.0
      %725 = vmatprep.subr.mxu0 0.0
      %726 = vmatpush1.msra.mxu0 0.0
      %727 = vmatprep.subr.mxu0 0.0
      %728 = vmatpush1.msra.mxu0 0.0
      %729 = vmatprep.subr.mxu0 0.0
      %730 = vmatpush1.msra.mxu0 0.0
      %731 = vmatprep.subr.mxu0 0.0
      %732 = vmatpush1.msra.mxu0 0.0
      %733 = vmatprep.subr.mxu0 0.0
      %734 = vmatpush1.msra.mxu0 0.0
      %735 = vmatprep.subr.mxu0 0.0
      %736 = vmatpush1.msra.mxu0 0.0
      %737 = vmatprep.subr.mxu0 0.0
      %738 = vmatpush1.msra.mxu0 0.0
      %739 = vmatprep.subr.mxu0 0.0
      %740 = vmatpush1.msra.mxu0 0.0
      %741 = vmatprep.subr.mxu0 0.0
      %742 = vmatpush1.msra.mxu0 0.0
      %743 = vmatprep.subr.mxu0 0.0
      %744 = vmatpush1.msra.mxu0 0.0
      %745 = vmatprep.subr.mxu0 0.0
      %746 = vmatpush1.msra.mxu0 0.0
      %747 = vmatprep.subr.mxu0 0.0
      %748 = vmatpush1.msra.mxu0 0.0
      %749 = vmatprep.subr.mxu0 0.0
      %750 = vmatpush1.msra.mxu0 0.0
      %751 = vmatprep.subr.mxu0 0.0
      %752 = vmatpush1.msra.mxu0 0.0
      %753 = vmatprep.subr.mxu0 0.0
      %754 = vmatpush1.msra.mxu0 0.0
      %755 = vmatprep.subr.mxu0 0.0
      %756 = vmatpush1.msra.mxu0 0.0
      %757 = vmatprep.mubr.f32.mxu0 0.0
      %758 = vmatmul.mubr.f32.gmra.mrb[0].mxu0 %v615
      %v759 = vpop.f32.mrb[0].mxu0
      %v760 = vadd.f32 %v691, %v759
      %v761 = vpop.f32.mrb[0].mxu0
      %762 = vdwg.mxu0
      %v764 = vlaneseq
      %v765 = vshrl.u32 %v764, 7
      %v766 = vsub.s32 0, %v765
      %v767 = vrot.slane %v604, %v766
      %v769 = vadd.f32 %v767, 0.0
      %v770 = vmul.f32 %v684, 0.35355338
      %vm771 = vcmask 64512
      %v773 = vsel %vm771, %v770, 0
      %v776 = vsel %vm771, %v760, 0
      %778 = vmatprep.subr.mxu0 0.0
      %779 = vmatpush1.xpose.msra.mxu0 %v776
      %780 = vmatprep.subr.mxu0 0.0
      %781 = vmatpush1.xpose.msra.mxu0 0.0
      %782 = vmatprep.subr.mxu0 0.0
      %783 = vmatpush1.xpose.msra.mxu0 0.0
      %784 = vmatprep.subr.mxu0 0.0
      %785 = vmatpush1.xpose.msra.mxu0 0.0
      %786 = vmatprep.subr.mxu0 0.0
      %787 = vmatpush1.xpose.msra.mxu0 0.0
      %788 = vmatprep.subr.mxu0 0.0
      %789 = vmatpush1.xpose.msra.mxu0 0.0
      %790 = vmatprep.subr.mxu0 0.0
      %791 = vmatpush1.xpose.msra.mxu0 0.0
      %792 = vmatprep.subr.mxu0 0.0
      %793 = vmatpush1.xpose.msra.mxu0 0.0
      %794 = vmatprep.subr.mxu0 0.0
      %795 = vmatpush1.xpose.msra.mxu0 0.0
      %796 = vmatprep.subr.mxu0 0.0
      %797 = vmatpush1.xpose.msra.mxu0 0.0
      %798 = vmatprep.subr.mxu0 0.0
      %799 = vmatpush1.xpose.msra.mxu0 0.0
      %800 = vmatprep.subr.mxu0 0.0
      %801 = vmatpush1.xpose.msra.mxu0 0.0
      %802 = vmatprep.subr.mxu0 0.0
      %803 = vmatpush1.xpose.msra.mxu0 0.0
      %804 = vmatprep.subr.mxu0 0.0
      %805 = vmatpush1.xpose.msra.mxu0 0.0
      %806 = vmatprep.subr.mxu0 0.0
      %807 = vmatpush1.xpose.msra.mxu0 0.0
      %808 = vmatprep.subr.mxu0 0.0
      %809 = vmatpush1.xpose.msra.mxu0 0.0
      %810 = vmatprep.subr.mxu0 0.0
      %811 = vmatpush1.xpose.msra.mxu0 0.0
      %812 = vmatprep.subr.mxu0 0.0
      %813 = vmatpush1.xpose.msra.mxu0 0.0
      %814 = vmatprep.subr.mxu0 0.0
      %815 = vmatpush1.xpose.msra.mxu0 0.0
      %816 = vmatprep.subr.mxu0 0.0
      %817 = vmatpush1.xpose.msra.mxu0 0.0
      %818 = vmatprep.subr.mxu0 0.0
      %819 = vmatpush1.xpose.msra.mxu0 0.0
      %820 = vmatprep.subr.mxu0 0.0
      %821 = vmatpush1.xpose.msra.mxu0 0.0
      %822 = vmatprep.subr.mxu0 0.0
      %823 = vmatpush1.xpose.msra.mxu0 0.0
      %824 = vmatprep.subr.mxu0 0.0
      %825 = vmatpush1.xpose.msra.mxu0 0.0
      %826 = vmatprep.subr.mxu0 0.0
      %827 = vmatpush1.xpose.msra.mxu0 0.0
      %828 = vmatprep.subr.mxu0 0.0
      %829 = vmatpush1.xpose.msra.mxu0 0.0
      %830 = vmatprep.subr.mxu0 0.0
      %831 = vmatpush1.xpose.msra.mxu0 0.0
      %832 = vmatprep.subr.mxu0 0.0
      %833 = vmatpush1.xpose.msra.mxu0 0.0
      %834 = vmatprep.subr.mxu0 0.0
      %835 = vmatpush1.xpose.msra.mxu0 0.0
      %836 = vmatprep.subr.mxu0 0.0
      %837 = vmatpush1.xpose.msra.mxu0 0.0
      %838 = vmatprep.subr.mxu0 0.0
      %839 = vmatpush1.xpose.msra.mxu0 0.0
      %840 = vmatprep.subr.mxu0 0.0
      %841 = vmatpush1.xpose.msra.mxu0 0.0
      %842 = vmatprep.mubr.f32.mxu0 0.0
      %843 = vmatmul.mubr.f32.gmra.mrb[0].mxu0 %v773
      %v844 = vpop.f32.mrb[0].mxu0
      %v845 = vadd.f32 0.0, %v844
      %v846 = vpop.f32.mrb[0].mxu0
      %847 = vdwg.mxu0
      %v848 = vsel %vm771, %v845, -inf
      %849 = vmax.xlane.f32.xlu0 %v848
      %v850 = vpop.xlane.xlu0 %849
      %v851 = vsub.f32 %v845, %v850
      %v852 = vmul.f32 %v851, 1.442695
      %v853 = vpow.pop %v852
      %v854 = vsel %vm771, %v853, 0.0
      %855 = vadd.xlane.f32.xlu0 %v854
      %v856 = vpop.xlane.xlu0 %855
      %v857 = vrcp.pop %v856
      %v858 = vmul.f32 %v853, %v857
      %859 = vrot.lane.b32.xlu0 %v760, 96
      %v860 = vpop.permute.xlu0 %859
      %v863 = vsel %vm771, %v858, 0
      %865 = vmatprep.subr.mxu0 0.0
      %866 = vmatpush1.msra.mxu0 %v860
      %867 = vmatprep.subr.mxu0 0.0
      %868 = vmatpush1.msra.mxu0 0.0
      %869 = vmatprep.subr.mxu0 0.0
      %870 = vmatpush1.msra.mxu0 0.0
      %871 = vmatprep.subr.mxu0 0.0
      %872 = vmatpush1.msra.mxu0 0.0
      %873 = vmatprep.subr.mxu0 0.0
      %874 = vmatpush1.msra.mxu0 0.0
      %875 = vmatprep.subr.mxu0 0.0
      %876 = vmatpush1.msra.mxu0 0.0
      %877 = vmatprep.subr.mxu0 0.0
      %878 = vmatpush1.msra.mxu0 0.0
      %879 = vmatprep.subr.mxu0 0.0
      %880 = vmatpush1.msra.mxu0 0.0
      %881 = vmatprep.subr.mxu0 0.0
      %882 = vmatpush1.msra.mxu0 0.0
      %883 = vmatprep.subr.mxu0 0.0
      %884 = vmatpush1.msra.mxu0 0.0
      %885 = vmatprep.subr.mxu0 0.0
      %886 = vmatpush1.msra.mxu0 0.0
      %887 = vmatprep.subr.mxu0 0.0
      %888 = vmatpush1.msra.mxu0 0.0
      %889 = vmatprep.subr.mxu0 0.0
      %890 = vmatpush1.msra.mxu0 0.0
      %891 = vmatprep.subr.mxu0 0.0
      %892 = vmatpush1.msra.mxu0 0.0
      %893 = vmatprep.subr.mxu0 0.0
      %894 = vmatpush1.msra.mxu0 0.0
      %895 = vmatprep.subr.mxu0 0.0
      %896 = vmatpush1.msra.mxu0 0.0
      %897 = vmatprep.subr.mxu0 0.0
      %898 = vmatpush1.msra.mxu0 0.0
      %899 = vmatprep.subr.mxu0 0.0
      %900 = vmatpush1.msra.mxu0 0.0
      %901 = vmatprep.subr.mxu0 0.0
      %902 = vmatpush1.msra.mxu0 0.0
      %903 = vmatprep.subr.mxu0 0.0
      %904 = vmatpush1.msra.mxu0 0.0
      %905 = vmatprep.subr.mxu0 0.0
      %906 = vmatpush1.msra.mxu0 0.0
      %907 = vmatprep.subr.mxu0 0.0
      %908 = vmatpush1.msra.mxu0 0.0
      %909 = vmatprep.subr.mxu0 0.0
      %910 = vmatpush1.msra.mxu0 0.0
      %911 = vmatprep.subr.mxu0 0.0
      %912 = vmatpush1.msra.mxu0 0.0
      %913 = vmatprep.subr.mxu0 0.0
      %914 = vmatpush1.msra.mxu0 0.0
      %915 = vmatprep.subr.mxu0 0.0
      %916 = vmatpush1.msra.mxu0 0.0
      %917 = vmatprep.subr.mxu0 0.0
      %918 = vmatpush1.msra.mxu0 0.0
      %919 = vmatprep.subr.mxu0 0.0
      %920 = vmatpush1.msra.mxu0 0.0
      %921 = vmatprep.subr.mxu0 0.0
      %922 = vmatpush1.msra.mxu0 0.0
      %923 = vmatprep.subr.mxu0 0.0
      %924 = vmatpush1.msra.mxu0 0.0
      %925 = vmatprep.subr.mxu0 0.0
      %926 = vmatpush1.msra.mxu0 0.0
      %927 = vmatprep.subr.mxu0 0.0
      %928 = vmatpush1.msra.mxu0 0.0
      %929 = vmatprep.mubr.f32.mxu0 0.0
      %930 = vmatmul.mubr.f32.gmra.mrb[0].mxu0 %v863
      %v931 = vpop.f32.mrb[0].mxu0
      %v932 = vadd.f32 0.0, %v931
      %v933 = vpop.f32.mrb[0].mxu0
      %934 = vdwg.mxu0
      %v936 = vsel %vm771, %v932, 0
      %938 = vmatprep.subr.mxu0 0.0
      %939 = vmatpush1.msra.mxu0 %v600
      %940 = vmatprep.subr.mxu0 0.0
      %941 = vmatpush1.msra.mxu0 0.0
      %942 = vmatprep.subr.mxu0 0.0
      %943 = vmatpush1.msra.mxu0 0.0
      %944 = vmatprep.subr.mxu0 0.0
      %945 = vmatpush1.msra.mxu0 0.0
      %946 = vmatprep.subr.mxu0 0.0
      %947 = vmatpush1.msra.mxu0 0.0
      %948 = vmatprep.subr.mxu0 0.0
      %949 = vmatpush1.msra.mxu0 0.0
      %950 = vmatprep.subr.mxu0 0.0
      %951 = vmatpush1.msra.mxu0 0.0
      %952 = vmatprep.subr.mxu0 0.0
      %953 = vmatpush1.msra.mxu0 0.0
      %954 = vmatprep.subr.mxu0 0.0
      %955 = vmatpush1.msra.mxu0 0.0
      %956 = vmatprep.subr.mxu0 0.0
      %957 = vmatpush1.msra.mxu0 0.0
      %958 = vmatprep.subr.mxu0 0.0
      %959 = vmatpush1.msra.mxu0 0.0
      %960 = vmatprep.subr.mxu0 0.0
      %961 = vmatpush1.msra.mxu0 0.0
      %962 = vmatprep.subr.mxu0 0.0
      %963 = vmatpush1.msra.mxu0 0.0
      %964 = vmatprep.subr.mxu0 0.0
      %965 = vmatpush1.msra.mxu0 0.0
      %966 = vmatprep.subr.mxu0 0.0
      %967 = vmatpush1.msra.mxu0 0.0
      %968 = vmatprep.subr.mxu0 0.0
      %969 = vmatpush1.msra.mxu0 0.0
      %970 = vmatprep.subr.mxu0 0.0
      %971 = vmatpush1.msra.mxu0 0.0
      %972 = vmatprep.subr.mxu0 0.0
      %973 = vmatpush1.msra.mxu0 0.0
      %974 = vmatprep.subr.mxu0 0.0
      %975 = vmatpush1.msra.mxu0 0.0
      %976 = vmatprep.subr.mxu0 0.0
      %977 = vmatpush1.msra.mxu0 0.0
      %978 = vmatprep.subr.mxu0 0.0
      %979 = vmatpush1.msra.mxu0 0.0
      %980 = vmatprep.subr.mxu0 0.0
      %981 = vmatpush1.msra.mxu0 0.0
      %982 = vmatprep.subr.mxu0 0.0
      %983 = vmatpush1.msra.mxu0 0.0
      %984 = vmatprep.subr.mxu0 0.0
      %985 = vmatpush1.msra.mxu0 0.0
      %986 = vmatprep.subr.mxu0 0.0
      %987 = vmatpush1.msra.mxu0 0.0
      %988 = vmatprep.subr.mxu0 0.0
      %989 = vmatpush1.msra.mxu0 0.0
      %990 = vmatprep.subr.mxu0 0.0
      %991 = vmatpush1.msra.mxu0 0.0
      %992 = vmatprep.subr.mxu0 0.0
      %993 = vmatpush1.msra.mxu0 0.0
      %994 = vmatprep.subr.mxu0 0.0
      %995 = vmatpush1.msra.mxu0 0.0
      %996 = vmatprep.subr.mxu0 0.0
      %997 = vmatpush1.msra.mxu0 0.0
      %998 = vmatprep.subr.mxu0 0.0
      %999 = vmatpush1.msra.mxu0 0.0
      %1000 = vmatprep.subr.mxu0 0.0
      %1001 = vmatpush1.msra.mxu0 0.0
      %1002 = vmatprep.mubr.f32.mxu0 0.0
      %1003 = vmatmul.mubr.f32.gmra.mrb[0].mxu0 %v936
      %v1004 = vpop.f32.mrb[0].mxu0
      %v1005 = vadd.f32 0.0, %v1004
      %v1006 = vpop.f32.mrb[0].mxu0
      %1007 = vdwg.mxu0
      %v1008 = vadd.f32 %v769, %v1005
      %1009 = vrot.lane.b32.xlu0 %v770, 120
      %v1010 = vpop.permute.xlu0 %1009
      %1011 = vrot.lane.b32.xlu0 %v760, 120
      %v1012 = vpop.permute.xlu0 %1011
      %v1013 = vsel %vm771, %v1010, 0
      %v1015 = vsel %vm771, %v1012, 0
      %1017 = vmatprep.subr.mxu0 0.0
      %1018 = vmatpush1.xpose.msra.mxu0 %v1015
      %1019 = vmatprep.subr.mxu0 0.0
      %1020 = vmatpush1.xpose.msra.mxu0 0.0
      %1021 = vmatprep.subr.mxu0 0.0
      %1022 = vmatpush1.xpose.msra.mxu0 0.0
      %1023 = vmatprep.subr.mxu0 0.0
      %1024 = vmatpush1.xpose.msra.mxu0 0.0
      %1025 = vmatprep.subr.mxu0 0.0
      %1026 = vmatpush1.xpose.msra.mxu0 0.0
      %1027 = vmatprep.subr.mxu0 0.0
      %1028 = vmatpush1.xpose.msra.mxu0 0.0
      %1029 = vmatprep.subr.mxu0 0.0
      %1030 = vmatpush1.xpose.msra.mxu0 0.0
      %1031 = vmatprep.subr.mxu0 0.0
      %1032 = vmatpush1.xpose.msra.mxu0 0.0
      %1033 = vmatprep.subr.mxu0 0.0
      %1034 = vmatpush1.xpose.msra.mxu0 0.0
      %1035 = vmatprep.subr.mxu0 0.0
      %1036 = vmatpush1.xpose.msra.mxu0 0.0
      %1037 = vmatprep.subr.mxu0 0.0
      %1038 = vmatpush1.xpose.msra.mxu0 0.0
      %1039 = vmatprep.subr.mxu0 0.0
      %1040 = vmatpush1.xpose.msra.mxu0 0.0
      %1041 = vmatprep.subr.mxu0 0.0
      %1042 = vmatpush1.xpose.msra.mxu0 0.0
      %1043 = vmatprep.subr.mxu0 0.0
      %1044 = vmatpush1.xpose.msra.mxu0 0.0
      %1045 = vmatprep.subr.mxu0 0.0
      %1046 = vmatpush1.xpose.msra.mxu0 0.0
      %1047 = vmatprep.subr.mxu0 0.0
      %1048 = vmatpush1.xpose.msra.mxu0 0.0
      %1049 = vmatprep.subr.mxu0 0.0
      %1050 = vmatpush1.xpose.msra.mxu0 0.0
      %1051 = vmatprep.subr.mxu0 0.0
      %1052 = vmatpush1.xpose.msra.mxu0 0.0
      %1053 = vmatprep.subr.mxu0 0.0
      %1054 = vmatpush1.xpose.msra.mxu0 0.0
      %1055 = vmatprep.subr.mxu0 0.0
      %1056 = vmatpush1.xpose.msra.mxu0 0.0
      %1057 = vmatprep.subr.mxu0 0.0
      %1058 = vmatpush1.xpose.msra.mxu0 0.0
      %1059 = vmatprep.subr.mxu0 0.0
      %1060 = vmatpush1.xpose.msra.mxu0 0.0
      %1061 = vmatprep.subr.mxu0 0.0
      %1062 = vmatpush1.xpose.msra.mxu0 0.0
      %1063 = vmatprep.subr.mxu0 0.0
      %1064 = vmatpush1.xpose.msra.mxu0 0.0
      %1065 = vmatprep.subr.mxu0 0.0
      %1066 = vmatpush1.xpose.msra.mxu0 0.0
      %1067 = vmatprep.subr.mxu0 0.0
      %1068 = vmatpush1.xpose.msra.mxu0 0.0
      %1069 = vmatprep.subr.mxu0 0.0
      %1070 = vmatpush1.xpose.msra.mxu0 0.0
      %1071 = vmatprep.subr.mxu0 0.0
      %1072 = vmatpush1.xpose.msra.mxu0 0.0
      %1073 = vmatprep.subr.mxu0 0.0
      %1074 = vmatpush1.xpose.msra.mxu0 0.0
      %1075 = vmatprep.subr.mxu0 0.0
      %1076 = vmatpush1.xpose.msra.mxu0 0.0
      %1077 = vmatprep.subr.mxu0 0.0
      %1078 = vmatpush1.xpose.msra.mxu0 0.0
      %1079 = vmatprep.subr.mxu0 0.0
      %1080 = vmatpush1.xpose.msra.mxu0 0.0
      %1081 = vmatprep.mubr.f32.mxu0 0.0
      %1082 = vmatmul.mubr.f32.gmra.mrb[0].mxu0 %v1013
      %v1083 = vpop.f32.mrb[0].mxu0
      %v1084 = vadd.f32 0.0, %v1083
      %v1085 = vpop.f32.mrb[0].mxu0
      %1086 = vdwg.mxu0
      %v1087 = vsel %vm771, %v1084, -inf
      %1088 = vmax.xlane.f32.xlu0 %v1087
      %v1089 = vpop.xlane.xlu0 %1088
      %v1090 = vsub.f32 %v1084, %v1089
      %v1091 = vmul.f32 %v1090, 1.442695
      %v1092 = vpow.pop %v1091
      %v1093 = vsel %vm771, %v1092, 0.0
      %1094 = vadd.xlane.f32.xlu0 %v1093
      %v1095 = vpop.xlane.xlu0 %1094
      %v1096 = vrcp.pop %v1095
      %v1097 = vmul.f32 %v1092, %v1096
      %1098 = vrot.lane.b32.xlu0 %v760, 88
      %v1099 = vpop.permute.xlu0 %1098
      %v1102 = vsel %vm771, %v1097, 0
      %1104 = vmatprep.subr.mxu0 0.0
      %1105 = vmatpush1.msra.mxu0 %v1099
      %1106 = vmatprep.subr.mxu0 0.0
      %1107 = vmatpush1.msra.mxu0 0.0
      %1108 = vmatprep.subr.mxu0 0.0
      %1109 = vmatpush1.msra.mxu0 0.0
      %1110 = vmatprep.subr.mxu0 0.0
      %1111 = vmatpush1.msra.mxu0 0.0
      %1112 = vmatprep.subr.mxu0 0.0
      %1113 = vmatpush1.msra.mxu0 0.0
      %1114 = vmatprep.subr.mxu0 0.0
      %1115 = vmatpush1.msra.mxu0 0.0
      %1116 = vmatprep.subr.mxu0 0.0
      %1117 = vmatpush1.msra.mxu0 0.0
      %1118 = vmatprep.subr.mxu0 0.0
      %1119 = vmatpush1.msra.mxu0 0.0
      %1120 = vmatprep.subr.mxu0 0.0
      %1121 = vmatpush1.msra.mxu0 0.0
      %1122 = vmatprep.subr.mxu0 0.0
      %1123 = vmatpush1.msra.mxu0 0.0
      %1124 = vmatprep.subr.mxu0 0.0
      %1125 = vmatpush1.msra.mxu0 0.0
      %1126 = vmatprep.subr.mxu0 0.0
      %1127 = vmatpush1.msra.mxu0 0.0
      %1128 = vmatprep.subr.mxu0 0.0
      %1129 = vmatpush1.msra.mxu0 0.0
      %1130 = vmatprep.subr.mxu0 0.0
      %1131 = vmatpush1.msra.mxu0 0.0
      %1132 = vmatprep.subr.mxu0 0.0
      %1133 = vmatpush1.msra.mxu0 0.0
      %1134 = vmatprep.subr.mxu0 0.0
      %1135 = vmatpush1.msra.mxu0 0.0
      %1136 = vmatprep.subr.mxu0 0.0
      %1137 = vmatpush1.msra.mxu0 0.0
      %1138 = vmatprep.subr.mxu0 0.0
      %1139 = vmatpush1.msra.mxu0 0.0
      %1140 = vmatprep.subr.mxu0 0.0
      %1141 = vmatpush1.msra.mxu0 0.0
      %1142 = vmatprep.subr.mxu0 0.0
      %1143 = vmatpush1.msra.mxu0 0.0
      %1144 = vmatprep.subr.mxu0 0.0
      %1145 = vmatpush1.msra.mxu0 0.0
      %1146 = vmatprep.subr.mxu0 0.0
      %1147 = vmatpush1.msra.mxu0 0.0
      %1148 = vmatprep.subr.mxu0 0.0
      %1149 = vmatpush1.msra.mxu0 0.0
      %1150 = vmatprep.subr.mxu0 0.0
      %1151 = vmatpush1.msra.mxu0 0.0
      %1152 = vmatprep.subr.mxu0 0.0
      %1153 = vmatpush1.msra.mxu0 0.0
      %1154 = vmatprep.subr.mxu0 0.0
      %1155 = vmatpush1.msra.mxu0 0.0
      %1156 = vmatprep.subr.mxu0 0.0
      %1157 = vmatpush1.msra.mxu0 0.0
      %1158 = vmatprep.subr.mxu0 0.0
      %1159 = vmatpush1.msra.mxu0 0.0
      %1160 = vmatprep.subr.mxu0 0.0
      %1161 = vmatpush1.msra.mxu0 0.0
      %1162 = vmatprep.subr.mxu0 0.0
      %1163 = vmatpush1.msra.mxu0 0.0
      %1164 = vmatprep.subr.mxu0 0.0
      %1165 = vmatpush1.msra.mxu0 0.0
      %1166 = vmatprep.subr.mxu0 0.0
      %1167 = vmatpush1.msra.mxu0 0.0
      %1168 = vmatprep.mubr.f32.mxu0 0.0
      %1169 = vmatmul.mubr.f32.gmra.mrb[0].mxu0 %v1102
      %v1170 = vpop.f32.mrb[0].mxu0
      %v1171 = vadd.f32 0.0, %v1170
      %v1172 = vpop.f32.mrb[0].mxu0
      %1173 = vdwg.mxu0
      %v1175 = vsel %vm771, %v1171, 0
      %1177 = vmatprep.subr.mxu0 0.0
      %1178 = vmatpush1.msra.mxu0 %v601
      %1179 = vmatprep.subr.mxu0 0.0
      %1180 = vmatpush1.msra.mxu0 0.0
      %1181 = vmatprep.subr.mxu0 0.0
      %1182 = vmatpush1.msra.mxu0 0.0
      %1183 = vmatprep.subr.mxu0 0.0
      %1184 = vmatpush1.msra.mxu0 0.0
      %1185 = vmatprep.subr.mxu0 0.0
      %1186 = vmatpush1.msra.mxu0 0.0
      %1187 = vmatprep.subr.mxu0 0.0
      %1188 = vmatpush1.msra.mxu0 0.0
      %1189 = vmatprep.subr.mxu0 0.0
      %1190 = vmatpush1.msra.mxu0 0.0
      %1191 = vmatprep.subr.mxu0 0.0
      %1192 = vmatpush1.msra.mxu0 0.0
      %1193 = vmatprep.subr.mxu0 0.0
      %1194 = vmatpush1.msra.mxu0 0.0
      %1195 = vmatprep.subr.mxu0 0.0
      %1196 = vmatpush1.msra.mxu0 0.0
      %1197 = vmatprep.subr.mxu0 0.0
      %1198 = vmatpush1.msra.mxu0 0.0
      %1199 = vmatprep.subr.mxu0 0.0
      %1200 = vmatpush1.msra.mxu0 0.0
      %1201 = vmatprep.subr.mxu0 0.0
      %1202 = vmatpush1.msra.mxu0 0.0
      %1203 = vmatprep.subr.mxu0 0.0
      %1204 = vmatpush1.msra.mxu0 0.0
      %1205 = vmatprep.subr.mxu0 0.0
      %1206 = vmatpush1.msra.mxu0 0.0
      %1207 = vmatprep.subr.mxu0 0.0
      %1208 = vmatpush1.msra.mxu0 0.0
      %1209 = vmatprep.subr.mxu0 0.0
      %1210 = vmatpush1.msra.mxu0 0.0
      %1211 = vmatprep.subr.mxu0 0.0
      %1212 = vmatpush1.msra.mxu0 0.0
      %1213 = vmatprep.subr.mxu0 0.0
      %1214 = vmatpush1.msra.mxu0 0.0
      %1215 = vmatprep.subr.mxu0 0.0
      %1216 = vmatpush1.msra.mxu0 0.0
      %1217 = vmatprep.subr.mxu0 0.0
      %1218 = vmatpush1.msra.mxu0 0.0
      %1219 = vmatprep.subr.mxu0 0.0
      %1220 = vmatpush1.msra.mxu0 0.0
      %1221 = vmatprep.subr.mxu0 0.0
      %1222 = vmatpush1.msra.mxu0 0.0
      %1223 = vmatprep.subr.mxu0 0.0
      %1224 = vmatpush1.msra.mxu0 0.0
      %1225 = vmatprep.subr.mxu0 0.0
      %1226 = vmatpush1.msra.mxu0 0.0
      %1227 = vmatprep.subr.mxu0 0.0
      %1228 = vmatpush1.msra.mxu0 0.0
      %1229 = vmatprep.subr.mxu0 0.0
      %1230 = vmatpush1.msra.mxu0 0.0
      %1231 = vmatprep.subr.mxu0 0.0
      %1232 = vmatpush1.msra.mxu0 0.0
      %1233 = vmatprep.subr.mxu0 0.0
      %1234 = vmatpush1.msra.mxu0 0.0
      %1235 = vmatprep.subr.mxu0 0.0
      %1236 = vmatpush1.msra.mxu0 0.0
      %1237 = vmatprep.subr.mxu0 0.0
      %1238 = vmatpush1.msra.mxu0 0.0
      %1239 = vmatprep.subr.mxu0 0.0
      %1240 = vmatpush1.msra.mxu0 0.0
      %1241 = vmatprep.mubr.f32.mxu0 0.0
      %1242 = vmatmul.mubr.f32.gmra.mrb[0].mxu0 %v1175
      %v1243 = vpop.f32.mrb[0].mxu0
      %v1244 = vadd.f32 0.0, %v1243
      %v1245 = vpop.f32.mrb[0].mxu0
      %1246 = vdwg.mxu0
      %v1247 = vadd.f32 %v1008, %v1244
      %1248 = vrot.lane.b32.xlu0 %v770, 112
      %v1249 = vpop.permute.xlu0 %1248
      %1250 = vrot.lane.b32.xlu0 %v760, 112
      %v1251 = vpop.permute.xlu0 %1250
      %v1252 = vsel %vm771, %v1249, 0
      %v1254 = vsel %vm771, %v1251, 0
      %1256 = vmatprep.subr.mxu0 0.0
      %1257 = vmatpush1.xpose.msra.mxu0 %v1254
      %1258 = vmatprep.subr.mxu0 0.0
      %1259 = vmatpush1.xpose.msra.mxu0 0.0
      %1260 = vmatprep.subr.mxu0 0.0
      %1261 = vmatpush1.xpose.msra.mxu0 0.0
      %1262 = vmatprep.subr.mxu0 0.0
      %1263 = vmatpush1.xpose.msra.mxu0 0.0
      %1264 = vmatprep.subr.mxu0 0.0
      %1265 = vmatpush1.xpose.msra.mxu0 0.0
      %1266 = vmatprep.subr.mxu0 0.0
      %1267 = vmatpush1.xpose.msra.mxu0 0.0
      %1268 = vmatprep.subr.mxu0 0.0
      %1269 = vmatpush1.xpose.msra.mxu0 0.0
      %1270 = vmatprep.subr.mxu0 0.0
      %1271 = vmatpush1.xpose.msra.mxu0 0.0
      %1272 = vmatprep.subr.mxu0 0.0
      %1273 = vmatpush1.xpose.msra.mxu0 0.0
      %1274 = vmatprep.subr.mxu0 0.0
      %1275 = vmatpush1.xpose.msra.mxu0 0.0
      %1276 = vmatprep.subr.mxu0 0.0
      %1277 = vmatpush1.xpose.msra.mxu0 0.0
      %1278 = vmatprep.subr.mxu0 0.0
      %1279 = vmatpush1.xpose.msra.mxu0 0.0
      %1280 = vmatprep.subr.mxu0 0.0
      %1281 = vmatpush1.xpose.msra.mxu0 0.0
      %1282 = vmatprep.subr.mxu0 0.0
      %1283 = vmatpush1.xpose.msra.mxu0 0.0
      %1284 = vmatprep.subr.mxu0 0.0
      %1285 = vmatpush1.xpose.msra.mxu0 0.0
      %1286 = vmatprep.subr.mxu0 0.0
      %1287 = vmatpush1.xpose.msra.mxu0 0.0
      %1288 = vmatprep.subr.mxu0 0.0
      %1289 = vmatpush1.xpose.msra.mxu0 0.0
      %1290 = vmatprep.subr.mxu0 0.0
      %1291 = vmatpush1.xpose.msra.mxu0 0.0
      %1292 = vmatprep.subr.mxu0 0.0
      %1293 = vmatpush1.xpose.msra.mxu0 0.0
      %1294 = vmatprep.subr.mxu0 0.0
      %1295 = vmatpush1.xpose.msra.mxu0 0.0
      %1296 = vmatprep.subr.mxu0 0.0
      %1297 = vmatpush1.xpose.msra.mxu0 0.0
      %1298 = vmatprep.subr.mxu0 0.0
      %1299 = vmatpush1.xpose.msra.mxu0 0.0
      %1300 = vmatprep.subr.mxu0 0.0
      %1301 = vmatpush1.xpose.msra.mxu0 0.0
      %1302 = vmatprep.subr.mxu0 0.0
      %1303 = vmatpush1.xpose.msra.mxu0 0.0
      %1304 = vmatprep.subr.mxu0 0.0
      %1305 = vmatpush1.xpose.msra.mxu0 0.0
      %1306 = vmatprep.subr.mxu0 0.0
      %1307 = vmatpush1.xpose.msra.mxu0 0.0
      %1308 = vmatprep.subr.mxu0 0.0
      %1309 = vmatpush1.xpose.msra.mxu0 0.0
      %1310 = vmatprep.subr.mxu0 0.0
      %1311 = vmatpush1.xpose.msra.mxu0 0.0
      %1312 = vmatprep.subr.mxu0 0.0
      %1313 = vmatpush1.xpose.msra.mxu0 0.0
      %1314 = vmatprep.subr.mxu0 0.0
      %1315 = vmatpush1.xpose.msra.mxu0 0.0
      %1316 = vmatprep.subr.mxu0 0.0
      %1317 = vmatpush1.xpose.msra.mxu0 0.0
      %1318 = vmatprep.subr.mxu0 0.0
      %1319 = vmatpush1.xpose.msra.mxu0 0.0
      %1320 = vmatprep.mubr.f32.mxu0 0.0
      %1321 = vmatmul.mubr.f32.gmra.mrb[0].mxu0 %v1252
      %v1322 = vpop.f32.mrb[0].mxu0
      %v1323 = vadd.f32 0.0, %v1322
      %v1324 = vpop.f32.mrb[0].mxu0
      %1325 = vdwg.mxu0
      %v1326 = vsel %vm771, %v1323, -inf
      %1327 = vmax.xlane.f32.xlu0 %v1326
      %v1328 = vpop.xlane.xlu0 %1327
      %v1329 = vsub.f32 %v1323, %v1328
      %v1330 = vmul.f32 %v1329, 1.442695
      %v1331 = vpow.pop %v1330
      %v1332 = vsel %vm771, %v1331, 0.0
      %1333 = vadd.xlane.f32.xlu0 %v1332
      %v1334 = vpop.xlane.xlu0 %1333
      %v1335 = vrcp.pop %v1334
      %v1336 = vmul.f32 %v1331, %v1335
      %1337 = vrot.lane.b32.xlu0 %v760, 80
      %v1338 = vpop.permute.xlu0 %1337
      %v1341 = vsel %vm771, %v1336, 0
      %1343 = vmatprep.subr.mxu0 0.0
      %1344 = vmatpush1.msra.mxu0 %v1338
      %1345 = vmatprep.subr.mxu0 0.0
      %1346 = vmatpush1.msra.mxu0 0.0
      %1347 = vmatprep.subr.mxu0 0.0
      %1348 = vmatpush1.msra.mxu0 0.0
      %1349 = vmatprep.subr.mxu0 0.0
      %1350 = vmatpush1.msra.mxu0 0.0
      %1351 = vmatprep.subr.mxu0 0.0
      %1352 = vmatpush1.msra.mxu0 0.0
      %1353 = vmatprep.subr.mxu0 0.0
      %1354 = vmatpush1.msra.mxu0 0.0
      %1355 = vmatprep.subr.mxu0 0.0
      %1356 = vmatpush1.msra.mxu0 0.0
      %1357 = vmatprep.subr.mxu0 0.0
      %1358 = vmatpush1.msra.mxu0 0.0
      %1359 = vmatprep.subr.mxu0 0.0
      %1360 = vmatpush1.msra.mxu0 0.0
      %1361 = vmatprep.subr.mxu0 0.0
      %1362 = vmatpush1.msra.mxu0 0.0
      %1363 = vmatprep.subr.mxu0 0.0
      %1364 = vmatpush1.msra.mxu0 0.0
      %1365 = vmatprep.subr.mxu0 0.0
      %1366 = vmatpush1.msra.mxu0 0.0
      %1367 = vmatprep.subr.mxu0 0.0
      %1368 = vmatpush1.msra.mxu0 0.0
      %1369 = vmatprep.subr.mxu0 0.0
      %1370 = vmatpush1.msra.mxu0 0.0
      %1371 = vmatprep.subr.mxu0 0.0
      %1372 = vmatpush1.msra.mxu0 0.0
      %1373 = vmatprep.subr.mxu0 0.0
      %1374 = vmatpush1.msra.mxu0 0.0
      %1375 = vmatprep.subr.mxu0 0.0
      %1376 = vmatpush1.msra.mxu0 0.0
      %1377 = vmatprep.subr.mxu0 0.0
      %1378 = vmatpush1.msra.mxu0 0.0
      %1379 = vmatprep.subr.mxu0 0.0
      %1380 = vmatpush1.msra.mxu0 0.0
      %1381 = vmatprep.subr.mxu0 0.0
      %1382 = vmatpush1.msra.mxu0 0.0
      %1383 = vmatprep.subr.mxu0 0.0
      %1384 = vmatpush1.msra.mxu0 0.0
      %1385 = vmatprep.subr.mxu0 0.0
      %1386 = vmatpush1.msra.mxu0 0.0
      %1387 = vmatprep.subr.mxu0 0.0
      %1388 = vmatpush1.msra.mxu0 0.0
      %1389 = vmatprep.subr.mxu0 0.0
      %1390 = vmatpush1.msra.mxu0 0.0
      %1391 = vmatprep.subr.mxu0 0.0
      %1392 = vmatpush1.msra.mxu0 0.0
      %1393 = vmatprep.subr.mxu0 0.0
      %1394 = vmatpush1.msra.mxu0 0.0
      %1395 = vmatprep.subr.mxu0 0.0
      %1396 = vmatpush1.msra.mxu0 0.0
      %1397 = vmatprep.subr.mxu0 0.0
      %1398 = vmatpush1.msra.mxu0 0.0
      %1399 = vmatprep.subr.mxu0 0.0
      %1400 = vmatpush1.msra.mxu0 0.0
      %1401 = vmatprep.subr.mxu0 0.0
      %1402 = vmatpush1.msra.mxu0 0.0
      %1403 = vmatprep.subr.mxu0 0.0
      %1404 = vmatpush1.msra.mxu0 0.0
      %1405 = vmatprep.subr.mxu0 0.0
      %1406 = vmatpush1.msra.mxu0 0.0
      %1407 = vmatprep.mubr.f32.mxu0 0.0
      %1408 = vmatmul.mubr.f32.gmra.mrb[0].mxu0 %v1341
      %v1409 = vpop.f32.mrb[0].mxu0
      %v1410 = vadd.f32 0.0, %v1409
      %v1411 = vpop.f32.mrb[0].mxu0
      %1412 = vdwg.mxu0
      %v1414 = vsel %vm771, %v1410, 0
      %1416 = vmatprep.subr.mxu0 0.0
      %1417 = vmatpush1.msra.mxu0 %v602
      %1418 = vmatprep.subr.mxu0 0.0
      %1419 = vmatpush1.msra.mxu0 0.0
      %1420 = vmatprep.subr.mxu0 0.0
      %1421 = vmatpush1.msra.mxu0 0.0
      %1422 = vmatprep.subr.mxu0 0.0
      %1423 = vmatpush1.msra.mxu0 0.0
      %1424 = vmatprep.subr.mxu0 0.0
      %1425 = vmatpush1.msra.mxu0 0.0
      %1426 = vmatprep.subr.mxu0 0.0
      %1427 = vmatpush1.msra.mxu0 0.0
      %1428 = vmatprep.subr.mxu0 0.0
      %1429 = vmatpush1.msra.mxu0 0.0
      %1430 = vmatprep.subr.mxu0 0.0
      %1431 = vmatpush1.msra.mxu0 0.0
      %1432 = vmatprep.subr.mxu0 0.0
      %1433 = vmatpush1.msra.mxu0 0.0
      %1434 = vmatprep.subr.mxu0 0.0
      %1435 = vmatpush1.msra.mxu0 0.0
      %1436 = vmatprep.subr.mxu0 0.0
      %1437 = vmatpush1.msra.mxu0 0.0
      %1438 = vmatprep.subr.mxu0 0.0
      %1439 = vmatpush1.msra.mxu0 0.0
      %1440 = vmatprep.subr.mxu0 0.0
      %1441 = vmatpush1.msra.mxu0 0.0
      %1442 = vmatprep.subr.mxu0 0.0
      %1443 = vmatpush1.msra.mxu0 0.0
      %1444 = vmatprep.subr.mxu0 0.0
      %1445 = vmatpush1.msra.mxu0 0.0
      %1446 = vmatprep.subr.mxu0 0.0
      %1447 = vmatpush1.msra.mxu0 0.0
      %1448 = vmatprep.subr.mxu0 0.0
      %1449 = vmatpush1.msra.mxu0 0.0
      %1450 = vmatprep.subr.mxu0 0.0
      %1451 = vmatpush1.msra.mxu0 0.0
      %1452 = vmatprep.subr.mxu0 0.0
      %1453 = vmatpush1.msra.mxu0 0.0
      %1454 = vmatprep.subr.mxu0 0.0
      %1455 = vmatpush1.msra.mxu0 0.0
      %1456 = vmatprep.subr.mxu0 0.0
      %1457 = vmatpush1.msra.mxu0 0.0
      %1458 = vmatprep.subr.mxu0 0.0
      %1459 = vmatpush1.msra.mxu0 0.0
      %1460 = vmatprep.subr.mxu0 0.0
      %1461 = vmatpush1.msra.mxu0 0.0
      %1462 = vmatprep.subr.mxu0 0.0
      %1463 = vmatpush1.msra.mxu0 0.0
      %1464 = vmatprep.subr.mxu0 0.0
      %1465 = vmatpush1.msra.mxu0 0.0
      %1466 = vmatprep.subr.mxu0 0.0
      %1467 = vmatpush1.msra.mxu0 0.0
      %1468 = vmatprep.subr.mxu0 0.0
      %1469 = vmatpush1.msra.mxu0 0.0
      %1470 = vmatprep.subr.mxu0 0.0
      %1471 = vmatpush1.msra.mxu0 0.0
      %1472 = vmatprep.subr.mxu0 0.0
      %1473 = vmatpush1.msra.mxu0 0.0
      %1474 = vmatprep.subr.mxu0 0.0
      %1475 = vmatpush1.msra.mxu0 0.0
      %1476 = vmatprep.subr.mxu0 0.0
      %1477 = vmatpush1.msra.mxu0 0.0
      %1478 = vmatprep.subr.mxu0 0.0
      %1479 = vmatpush1.msra.mxu0 0.0
      %1480 = vmatprep.mubr.f32.mxu0 0.0
      %1481 = vmatmul.mubr.f32.gmra.mrb[0].mxu0 %v1414
      %v1482 = vpop.f32.mrb[0].mxu0
      %v1483 = vadd.f32 0.0, %v1482
      %v1484 = vpop.f32.mrb[0].mxu0
      %1485 = vdwg.mxu0
      %v1486 = vadd.f32 %v1247, %v1483
      %1487 = vrot.lane.b32.xlu0 %v770, 104
      %v1488 = vpop.permute.xlu0 %1487
      %1489 = vrot.lane.b32.xlu0 %v760, 104
      %v1490 = vpop.permute.xlu0 %1489
      %v1491 = vsel %vm771, %v1488, 0
      %v1493 = vsel %vm771, %v1490, 0
      %1495 = vmatprep.subr.mxu0 0.0
      %1496 = vmatpush1.xpose.msra.mxu0 %v1493
      %1497 = vmatprep.subr.mxu0 0.0
      %1498 = vmatpush1.xpose.msra.mxu0 0.0
      %1499 = vmatprep.subr.mxu0 0.0
      %1500 = vmatpush1.xpose.msra.mxu0 0.0
      %1501 = vmatprep.subr.mxu0 0.0
      %1502 = vmatpush1.xpose.msra.mxu0 0.0
      %1503 = vmatprep.subr.mxu0 0.0
      %1504 = vmatpush1.xpose.msra.mxu0 0.0
      %1505 = vmatprep.subr.mxu0 0.0
      %1506 = vmatpush1.xpose.msra.mxu0 0.0
      %1507 = vmatprep.subr.mxu0 0.0
      %1508 = vmatpush1.xpose.msra.mxu0 0.0
      %1509 = vmatprep.subr.mxu0 0.0
      %1510 = vmatpush1.xpose.msra.mxu0 0.0
      %1511 = vmatprep.subr.mxu0 0.0
      %1512 = vmatpush1.xpose.msra.mxu0 0.0
      %1513 = vmatprep.subr.mxu0 0.0
      %1514 = vmatpush1.xpose.msra.mxu0 0.0
      %1515 = vmatprep.subr.mxu0 0.0
      %1516 = vmatpush1.xpose.msra.mxu0 0.0
      %1517 = vmatprep.subr.mxu0 0.0
      %1518 = vmatpush1.xpose.msra.mxu0 0.0
      %1519 = vmatprep.subr.mxu0 0.0
      %1520 = vmatpush1.xpose.msra.mxu0 0.0
      %1521 = vmatprep.subr.mxu0 0.0
      %1522 = vmatpush1.xpose.msra.mxu0 0.0
      %1523 = vmatprep.subr.mxu0 0.0
      %1524 = vmatpush1.xpose.msra.mxu0 0.0
      %1525 = vmatprep.subr.mxu0 0.0
      %1526 = vmatpush1.xpose.msra.mxu0 0.0
      %1527 = vmatprep.subr.mxu0 0.0
      %1528 = vmatpush1.xpose.msra.mxu0 0.0
      %1529 = vmatprep.subr.mxu0 0.0
      %1530 = vmatpush1.xpose.msra.mxu0 0.0
      %1531 = vmatprep.subr.mxu0 0.0
      %1532 = vmatpush1.xpose.msra.mxu0 0.0
      %1533 = vmatprep.subr.mxu0 0.0
      %1534 = vmatpush1.xpose.msra.mxu0 0.0
      %1535 = vmatprep.subr.mxu0 0.0
      %1536 = vmatpush1.xpose.msra.mxu0 0.0
      %1537 = vmatprep.subr.mxu0 0.0
      %1538 = vmatpush1.xpose.msra.mxu0 0.0
      %1539 = vmatprep.subr.mxu0 0.0
      %1540 = vmatpush1.xpose.msra.mxu0 0.0
      %1541 = vmatprep.subr.mxu0 0.0
      %1542 = vmatpush1.xpose.msra.mxu0 0.0
      %1543 = vmatprep.subr.mxu0 0.0
      %1544 = vmatpush1.xpose.msra.mxu0 0.0
      %1545 = vmatprep.subr.mxu0 0.0
      %1546 = vmatpush1.xpose.msra.mxu0 0.0
      %1547 = vmatprep.subr.mxu0 0.0
      %1548 = vmatpush1.xpose.msra.mxu0 0.0
      %1549 = vmatprep.subr.mxu0 0.0
      %1550 = vmatpush1.xpose.msra.mxu0 0.0
      %1551 = vmatprep.subr.mxu0 0.0
      %1552 = vmatpush1.xpose.msra.mxu0 0.0
      %1553 = vmatprep.subr.mxu0 0.0
      %1554 = vmatpush1.xpose.msra.mxu0 0.0
      %1555 = vmatprep.subr.mxu0 0.0
      %1556 = vmatpush1.xpose.msra.mxu0 0.0
      %1557 = vmatprep.subr.mxu0 0.0
      %1558 = vmatpush1.xpose.msra.mxu0 0.0
      %1559 = vmatprep.mubr.f32.mxu0 0.0
      %1560 = vmatmul.mubr.f32.gmra.mrb[0].mxu0 %v1491
      %v1561 = vpop.f32.mrb[0].mxu0
      %v1562 = vadd.f32 0.0, %v1561
      %v1563 = vpop.f32.mrb[0].mxu0
      %1564 = vdwg.mxu0
      %v1565 = vsel %vm771, %v1562, -inf
      %1566 = vmax.xlane.f32.xlu0 %v1565
      %v1567 = vpop.xlane.xlu0 %1566
      %v1568 = vsub.f32 %v1562, %v1567
      %v1569 = vmul.f32 %v1568, 1.442695
      %v1570 = vpow.pop %v1569
      %v1571 = vsel %vm771, %v1570, 0.0
      %1572 = vadd.xlane.f32.xlu0 %v1571
      %v1573 = vpop.xlane.xlu0 %1572
      %v1574 = vrcp.pop %v1573
      %v1575 = vmul.f32 %v1570, %v1574
      %1576 = vrot.lane.b32.xlu0 %v760, 72
      %v1577 = vpop.permute.xlu0 %1576
      %v1580 = vsel %vm771, %v1575, 0
      %1582 = vmatprep.subr.mxu0 0.0
      %1583 = vmatpush1.msra.mxu0 %v1577
      %1584 = vmatprep.subr.mxu0 0.0
      %1585 = vmatpush1.msra.mxu0 0.0
      %1586 = vmatprep.subr.mxu0 0.0
      %1587 = vmatpush1.msra.mxu0 0.0
      %1588 = vmatprep.subr.mxu0 0.0
      %1589 = vmatpush1.msra.mxu0 0.0
      %1590 = vmatprep.subr.mxu0 0.0
      %1591 = vmatpush1.msra.mxu0 0.0
      %1592 = vmatprep.subr.mxu0 0.0
      %1593 = vmatpush1.msra.mxu0 0.0
      %1594 = vmatprep.subr.mxu0 0.0
      %1595 = vmatpush1.msra.mxu0 0.0
      %1596 = vmatprep.subr.mxu0 0.0
      %1597 = vmatpush1.msra.mxu0 0.0
      %1598 = vmatprep.subr.mxu0 0.0
      %1599 = vmatpush1.msra.mxu0 0.0
      %1600 = vmatprep.subr.mxu0 0.0
      %1601 = vmatpush1.msra.mxu0 0.0
      %1602 = vmatprep.subr.mxu0 0.0
      %1603 = vmatpush1.msra.mxu0 0.0
      %1604 = vmatprep.subr.mxu0 0.0
      %1605 = vmatpush1.msra.mxu0 0.0
      %1606 = vmatprep.subr.mxu0 0.0
      %1607 = vmatpush1.msra.mxu0 0.0
      %1608 = vmatprep.subr.mxu0 0.0
      %1609 = vmatpush1.msra.mxu0 0.0
      %1610 = vmatprep.subr.mxu0 0.0
      %1611 = vmatpush1.msra.mxu0 0.0
      %1612 = vmatprep.subr.mxu0 0.0
      %1613 = vmatpush1.msra.mxu0 0.0
      %1614 = vmatprep.subr.mxu0 0.0
      %1615 = vmatpush1.msra.mxu0 0.0
      %1616 = vmatprep.subr.mxu0 0.0
      %1617 = vmatpush1.msra.mxu0 0.0
      %1618 = vmatprep.subr.mxu0 0.0
      %1619 = vmatpush1.msra.mxu0 0.0
      %1620 = vmatprep.subr.mxu0 0.0
      %1621 = vmatpush1.msra.mxu0 0.0
      %1622 = vmatprep.subr.mxu0 0.0
      %1623 = vmatpush1.msra.mxu0 0.0
      %1624 = vmatprep.subr.mxu0 0.0
      %1625 = vmatpush1.msra.mxu0 0.0
      %1626 = vmatprep.subr.mxu0 0.0
      %1627 = vmatpush1.msra.mxu0 0.0
      %1628 = vmatprep.subr.mxu0 0.0
      %1629 = vmatpush1.msra.mxu0 0.0
      %1630 = vmatprep.subr.mxu0 0.0
      %1631 = vmatpush1.msra.mxu0 0.0
      %1632 = vmatprep.subr.mxu0 0.0
      %1633 = vmatpush1.msra.mxu0 0.0
      %1634 = vmatprep.subr.mxu0 0.0
      %1635 = vmatpush1.msra.mxu0 0.0
      %1636 = vmatprep.subr.mxu0 0.0
      %1637 = vmatpush1.msra.mxu0 0.0
      %1638 = vmatprep.subr.mxu0 0.0
      %1639 = vmatpush1.msra.mxu0 0.0
      %1640 = vmatprep.subr.mxu0 0.0
      %1641 = vmatpush1.msra.mxu0 0.0
      %1642 = vmatprep.subr.mxu0 0.0
      %1643 = vmatpush1.msra.mxu0 0.0
      %1644 = vmatprep.subr.mxu0 0.0
      %1645 = vmatpush1.msra.mxu0 0.0
      %1646 = vmatprep.mubr.f32.mxu0 0.0
      %1647 = vmatmul.mubr.f32.gmra.mrb[0].mxu0 %v1580
      %v1648 = vpop.f32.mrb[0].mxu0
      %v1649 = vadd.f32 0.0, %v1648
      %v1650 = vpop.f32.mrb[0].mxu0
      %1651 = vdwg.mxu0
      %v1653 = vsel %vm771, %v1649, 0
      %1655 = vmatprep.subr.mxu0 0.0
      %1656 = vmatpush1.msra.mxu0 %v603
      %1657 = vmatprep.subr.mxu0 0.0
      %1658 = vmatpush1.msra.mxu0 0.0
      %1659 = vmatprep.subr.mxu0 0.0
      %1660 = vmatpush1.msra.mxu0 0.0
      %1661 = vmatprep.subr.mxu0 0.0
      %1662 = vmatpush1.msra.mxu0 0.0
      %1663 = vmatprep.subr.mxu0 0.0
      %1664 = vmatpush1.msra.mxu0 0.0
      %1665 = vmatprep.subr.mxu0 0.0
      %1666 = vmatpush1.msra.mxu0 0.0
      %1667 = vmatprep.subr.mxu0 0.0
      %1668 = vmatpush1.msra.mxu0 0.0
      %1669 = vmatprep.subr.mxu0 0.0
      %1670 = vmatpush1.msra.mxu0 0.0
      %1671 = vmatprep.subr.mxu0 0.0
      %1672 = vmatpush1.msra.mxu0 0.0
      %1673 = vmatprep.subr.mxu0 0.0
      %1674 = vmatpush1.msra.mxu0 0.0
      %1675 = vmatprep.subr.mxu0 0.0
      %1676 = vmatpush1.msra.mxu0 0.0
      %1677 = vmatprep.subr.mxu0 0.0
      %1678 = vmatpush1.msra.mxu0 0.0
      %1679 = vmatprep.subr.mxu0 0.0
      %1680 = vmatpush1.msra.mxu0 0.0
      %1681 = vmatprep.subr.mxu0 0.0
      %1682 = vmatpush1.msra.mxu0 0.0
      %1683 = vmatprep.subr.mxu0 0.0
      %1684 = vmatpush1.msra.mxu0 0.0
      %1685 = vmatprep.subr.mxu0 0.0
      %1686 = vmatpush1.msra.mxu0 0.0
      %1687 = vmatprep.subr.mxu0 0.0
      %1688 = vmatpush1.msra.mxu0 0.0
      %1689 = vmatprep.subr.mxu0 0.0
      %1690 = vmatpush1.msra.mxu0 0.0
      %1691 = vmatprep.subr.mxu0 0.0
      %1692 = vmatpush1.msra.mxu0 0.0
      %1693 = vmatprep.subr.mxu0 0.0
      %1694 = vmatpush1.msra.mxu0 0.0
      %1695 = vmatprep.subr.mxu0 0.0
      %1696 = vmatpush1.msra.mxu0 0.0
      %1697 = vmatprep.subr.mxu0 0.0
      %1698 = vmatpush1.msra.mxu0 0.0
      %1699 = vmatprep.subr.mxu0 0.0
      %1700 = vmatpush1.msra.mxu0 0.0
      %1701 = vmatprep.subr.mxu0 0.0
      %1702 = vmatpush1.msra.mxu0 0.0
      %1703 = vmatprep.subr.mxu0 0.0
      %1704 = vmatpush1.msra.mxu0 0.0
      %1705 = vmatprep.subr.mxu0 0.0
      %1706 = vmatpush1.msra.mxu0 0.0
      %1707 = vmatprep.subr.mxu0 0.0
      %1708 = vmatpush1.msra.mxu0 0.0
      %1709 = vmatprep.subr.mxu0 0.0
      %1710 = vmatpush1.msra.mxu0 0.0
      %1711 = vmatprep.subr.mxu0 0.0
      %1712 = vmatpush1.msra.mxu0 0.0
      %1713 = vmatprep.subr.mxu0 0.0
      %1714 = vmatpush1.msra.mxu0 0.0
      %1715 = vmatprep.subr.mxu0 0.0
      %1716 = vmatpush1.msra.mxu0 0.0
      %1717 = vmatprep.subr.mxu0 0.0
      %1718 = vmatpush1.msra.mxu0 0.0
      %1719 = vmatprep.mubr.f32.mxu0 0.0
      %1720 = vmatmul.mubr.f32.gmra.mrb[0].mxu0 %v1653
      %v1721 = vpop.f32.mrb[0].mxu0
      %v1722 = vadd.f32 0.0, %v1721
      %v1723 = vpop.f32.mrb[0].mxu0
      %1724 = vdwg.mxu0
      %v1725 = vadd.f32 %v1486, %v1722
      %v1726 = vadd.f32 %v588, %v1725
      %v1727 = vsel %vm613, %v1726, 0.0
      %1728 = vadd.xlane.f32.xlu0 %v1727
      %v1729 = vpop.xlane.xlu0 %1728
      %v1730 = vrcp.pop 32.0
      %v1731 = vmul.f32 %v1729, %v1730
      %v1732 = vsub.f32 %v1726, %v1731
      %v1733 = vmul.f32 %v1732, %v1732
      %v1734 = vsel %vm613, %v1733, 0.0
      %1735 = vadd.xlane.f32.xlu0 %v1734
      %v1736 = vpop.xlane.xlu0 %1735
      %v1737 = vmul.f32 %v1736, %v1730
      %v1738 = vadd.f32 %v1737, 1e-05
      %v1739 = vrsqrt.pop %v1738
      %v1740 = vmul.f32 %v1732, %v1739
      %v1742 = vlaneseq
      %v1743 = vshrl.u32 %v1742, 7
      %v1744 = vsub.s32 0, %v1743
      %v1745 = vrot.slane %v605, %v1744
      %v1747 = vmul.f32 %v1740, %v1745
      %v1749 = vlaneseq
      %v1750 = vshrl.u32 %v1749, 7
      %v1751 = vsub.s32 0, %v1750
      %v1752 = vrot.slane %v606, %v1751
      %v1754 = vadd.f32 %v1747, %v1752
      %v1755 = vld [vmem:[%s10] sm:$0xff]
      %v1756 = vld [vmem:[%s10 + $0x8] sm:$0xff]
      %v1757 = vld [vmem:[%s10 + $0x10] sm:$0xff]
      %v1758 = vld [vmem:[%s10 + $0x18] sm:$0xff]
      %v1759 = vld [vmem:[%s11] sm:$0x1]
      %v1760 = vld [vmem:[%s12] sm:$0xff]
      %v1761 = vld [vmem:[%s12 + $0x8] sm:$0xff]
      %v1762 = vld [vmem:[%s12 + $0x10] sm:$0xff]
      %v1763 = vld [vmem:[%s12 + $0x18] sm:$0xff]
      %v1764 = vld [vmem:[%s13] sm:$0x1]
      %v1765 = vld [vmem:[%s14] sm:$0xff]
      %v1766 = vld [vmem:[%s14 + $0x8] sm:$0xff]
      %v1767 = vld [vmem:[%s14 + $0x10] sm:$0xff]
      %v1768 = vld [vmem:[%s14 + $0x18] sm:$0xff]
      %v1769 = vld [vmem:[%s15] sm:$0x1]
      %v1770 = vld [vmem:[%s16] sm:$0x1]
      %v1771 = vld [vmem:[%s17] sm:$0x1]
      %v1773 = vlaneseq
      %v1774 = vshrl.u32 %v1773, 7
      %v1775 = vsub.s32 0, %v1774
      %v1776 = vrot.slane %v1759, %v1775
      %v1779 = vsel %vm613, %v1754, 0
      %1781 = vmatprep.subr.mxu0 0.0
      %1782 = vmatpush1.msra.mxu0 %v1755
      %1783 = vmatprep.subr.mxu0 0.0
      %1784 = vmatpush1.msra.mxu0 %v1756
      %1785 = vmatprep.subr.mxu0 0.0
      %1786 = vmatpush1.msra.mxu0 %v1757
      %1787 = vmatprep.subr.mxu0 0.0
      %1788 = vmatpush1.msra.mxu0 %v1758
      %1789 = vmatprep.subr.mxu0 0.0
      %1790 = vmatpush1.msra.mxu0 0.0
      %1791 = vmatprep.subr.mxu0 0.0
      %1792 = vmatpush1.msra.mxu0 0.0
      %1793 = vmatprep.subr.mxu0 0.0
      %1794 = vmatpush1.msra.mxu0 0.0
      %1795 = vmatprep.subr.mxu0 0.0
      %1796 = vmatpush1.msra.mxu0 0.0
      %1797 = vmatprep.subr.mxu0 0.0
      %1798 = vmatpush1.msra.mxu0 0.0
      %1799 = vmatprep.subr.mxu0 0.0
      %1800 = vmatpush1.msra.mxu0 0.0
      %1801 = vmatprep.subr.mxu0 0.0
      %1802 = vmatpush1.msra.mxu0 0.0
      %1803 = vmatprep.subr.mxu0 0.0
      %1804 = vmatpush1.msra.mxu0 0.0
      %1805 = vmatprep.subr.mxu0 0.0
      %1806 = vmatpush1.msra.mxu0 0.0
      %1807 = vmatprep.subr.mxu0 0.0
      %1808 = vmatpush1.msra.mxu0 0.0
      %1809 = vmatprep.subr.mxu0 0.0
      %1810 = vmatpush1.msra.mxu0 0.0
      %1811 = vmatprep.subr.mxu0 0.0
      %1812 = vmatpush1.msra.mxu0 0.0
      %1813 = vmatprep.subr.mxu0 0.0
      %1814 = vmatpush1.msra.mxu0 0.0
      %1815 = vmatprep.subr.mxu0 0.0
      %1816 = vmatpush1.msra.mxu0 0.0
      %1817 = vmatprep.subr.mxu0 0.0
      %1818 = vmatpush1.msra.mxu0 0.0
      %1819 = vmatprep.subr.mxu0 0.0
      %1820 = vmatpush1.msra.mxu0 0.0
      %1821 = vmatprep.subr.mxu0 0.0
      %1822 = vmatpush1.msra.mxu0 0.0
      %1823 = vmatprep.subr.mxu0 0.0
      %1824 = vmatpush1.msra.mxu0 0.0
      %1825 = vmatprep.subr.mxu0 0.0
      %1826 = vmatpush1.msra.mxu0 0.0
      %1827 = vmatprep.subr.mxu0 0.0
      %1828 = vmatpush1.msra.mxu0 0.0
      %1829 = vmatprep.subr.mxu0 0.0
      %1830 = vmatpush1.msra.mxu0 0.0
      %1831 = vmatprep.subr.mxu0 0.0
      %1832 = vmatpush1.msra.mxu0 0.0
      %1833 = vmatprep.subr.mxu0 0.0
      %1834 = vmatpush1.msra.mxu0 0.0
      %1835 = vmatprep.subr.mxu0 0.0
      %1836 = vmatpush1.msra.mxu0 0.0
      %1837 = vmatprep.subr.mxu0 0.0
      %1838 = vmatpush1.msra.mxu0 0.0
      %1839 = vmatprep.subr.mxu0 0.0
      %1840 = vmatpush1.msra.mxu0 0.0
      %1841 = vmatprep.subr.mxu0 0.0
      %1842 = vmatpush1.msra.mxu0 0.0
      %1843 = vmatprep.subr.mxu0 0.0
      %1844 = vmatpush1.msra.mxu0 0.0
      %1845 = vmatprep.mubr.f32.mxu0 0.0
      %1846 = vmatmul.mubr.f32.gmra.mrb[0].mxu0 %v1779
      %v1847 = vpop.f32.mrb[0].mxu0
      %v1848 = vadd.f32 %v1776, %v1847
      %v1849 = vpop.f32.mrb[0].mxu0
      %1850 = vdwg.mxu0
      %v1852 = vlaneseq
      %v1853 = vshrl.u32 %v1852, 7
      %v1854 = vsub.s32 0, %v1853
      %v1855 = vrot.slane %v1764, %v1854
      %v1858 = vsel %vm613, %v589, 0
      %1860 = vmatprep.subr.mxu0 0.0
      %1861 = vmatpush1.msra.mxu0 %v1760
      %1862 = vmatprep.subr.mxu0 0.0
      %1863 = vmatpush1.msra.mxu0 %v1761
      %1864 = vmatprep.subr.mxu0 0.0
      %1865 = vmatpush1.msra.mxu0 %v1762
      %1866 = vmatprep.subr.mxu0 0.0
      %1867 = vmatpush1.msra.mxu0 %v1763
      %1868 = vmatprep.subr.mxu0 0.0
      %1869 = vmatpush1.msra.mxu0 0.0
      %1870 = vmatprep.subr.mxu0 0.0
      %1871 = vmatpush1.msra.mxu0 0.0
      %1872 = vmatprep.subr.mxu0 0.0
      %1873 = vmatpush1.msra.mxu0 0.0
      %1874 = vmatprep.subr.mxu0 0.0
      %1875 = vmatpush1.msra.mxu0 0.0
      %1876 = vmatprep.subr.mxu0 0.0
      %1877 = vmatpush1.msra.mxu0 0.0
      %1878 = vmatprep.subr.mxu0 0.0
      %1879 = vmatpush1.msra.mxu0 0.0
      %1880 = vmatprep.subr.mxu0 0.0
      %1881 = vmatpush1.msra.mxu0 0.0
      %1882 = vmatprep.subr.mxu0 0.0
      %1883 = vmatpush1.msra.mxu0 0.0
      %1884 = vmatprep.subr.mxu0 0.0
      %1885 = vmatpush1.msra.mxu0 0.0
      %1886 = vmatprep.subr.mxu0 0.0
      %1887 = vmatpush1.msra.mxu0 0.0
      %1888 = vmatprep.subr.mxu0 0.0
      %1889 = vmatpush1.msra.mxu0 0.0
      %1890 = vmatprep.subr.mxu0 0.0
      %1891 = vmatpush1.msra.mxu0 0.0
      %1892 = vmatprep.subr.mxu0 0.0
      %1893 = vmatpush1.msra.mxu0 0.0
      %1894 = vmatprep.subr.mxu0 0.0
      %1895 = vmatpush1.msra.mxu0 0.0
      %1896 = vmatprep.subr.mxu0 0.0
      %1897 = vmatpush1.msra.mxu0 0.0
      %1898 = vmatprep.subr.mxu0 0.0
      %1899 = vmatpush1.msra.mxu0 0.0
      %1900 = vmatprep.subr.mxu0 0.0
      %1901 = vmatpush1.msra.mxu0 0.0
      %1902 = vmatprep.subr.mxu0 0.0
      %1903 = vmatpush1.msra.mxu0 0.0
      %1904 = vmatprep.subr.mxu0 0.0
      %1905 = vmatpush1.msra.mxu0 0.0
      %1906 = vmatprep.subr.mxu0 0.0
      %1907 = vmatpush1.msra.mxu0 0.0
      %1908 = vmatprep.subr.mxu0 0.0
      %1909 = vmatpush1.msra.mxu0 0.0
      %1910 = vmatprep.subr.mxu0 0.0
      %1911 = vmatpush1.msra.mxu0 0.0
      %1912 = vmatprep.subr.mxu0 0.0
      %1913 = vmatpush1.msra.mxu0 0.0
      %1914 = vmatprep.subr.mxu0 0.0
      %1915 = vmatpush1.msra.mxu0 0.0
      %1916 = vmatprep.subr.mxu0 0.0
      %1917 = vmatpush1.msra.mxu0 0.0
      %1918 = vmatprep.subr.mxu0 0.0
      %1919 = vmatpush1.msra.mxu0 0.0
      %1920 = vmatprep.subr.mxu0 0.0
      %1921 = vmatpush1.msra.mxu0 0.0
      %1922 = vmatprep.subr.mxu0 0.0
      %1923 = vmatpush1.msra.mxu0 0.0
      %1924 = vmatprep.mubr.f32.mxu0 0.0
      %1925 = vmatmul.mubr.f32.gmra.mrb[0].mxu0 %v1858
      %v1926 = vpop.f32.mrb[0].mxu0
      %v1927 = vadd.f32 %v1855, %v1926
      %v1928 = vpop.f32.mrb[0].mxu0
      %1929 = vdwg.mxu0
      %v1931 = vlaneseq
      %v1932 = vshrl.u32 %v1931, 7
      %v1933 = vsub.s32 0, %v1932
      %v1934 = vrot.slane %v1769, %v1933
      %v1936 = vadd.f32 %v1934, 0.0
      %v1937 = vmul.f32 %v1848, 0.35355338
      %v1939 = vsel %vm771, %v1937, 0
      %v1942 = vsel %vm771, %v1927, 0
      %1944 = vmatprep.subr.mxu0 0.0
      %1945 = vmatpush1.xpose.msra.mxu0 %v1942
      %1946 = vmatprep.subr.mxu0 0.0
      %1947 = vmatpush1.xpose.msra.mxu0 0.0
      %1948 = vmatprep.subr.mxu0 0.0
      %1949 = vmatpush1.xpose.msra.mxu0 0.0
      %1950 = vmatprep.subr.mxu0 0.0
      %1951 = vmatpush1.xpose.msra.mxu0 0.0
      %1952 = vmatprep.subr.mxu0 0.0
      %1953 = vmatpush1.xpose.msra.mxu0 0.0
      %1954 = vmatprep.subr.mxu0 0.0
      %1955 = vmatpush1.xpose.msra.mxu0 0.0
      %1956 = vmatprep.subr.mxu0 0.0
      %1957 = vmatpush1.xpose.msra.mxu0 0.0
      %1958 = vmatprep.subr.mxu0 0.0
      %1959 = vmatpush1.xpose.msra.mxu0 0.0
      %1960 = vmatprep.subr.mxu0 0.0
      %1961 = vmatpush1.xpose.msra.mxu0 0.0
      %1962 = vmatprep.subr.mxu0 0.0
      %1963 = vmatpush1.xpose.msra.mxu0 0.0
      %1964 = vmatprep.subr.mxu0 0.0
      %1965 = vmatpush1.xpose.msra.mxu0 0.0
      %1966 = vmatprep.subr.mxu0 0.0
      %1967 = vmatpush1.xpose.msra.mxu0 0.0
      %1968 = vmatprep.subr.mxu0 0.0
      %1969 = vmatpush1.xpose.msra.mxu0 0.0
      %1970 = vmatprep.subr.mxu0 0.0
      %1971 = vmatpush1.xpose.msra.mxu0 0.0
      %1972 = vmatprep.subr.mxu0 0.0
      %1973 = vmatpush1.xpose.msra.mxu0 0.0
      %1974 = vmatprep.subr.mxu0 0.0
      %1975 = vmatpush1.xpose.msra.mxu0 0.0
      %1976 = vmatprep.subr.mxu0 0.0
      %1977 = vmatpush1.xpose.msra.mxu0 0.0
      %1978 = vmatprep.subr.mxu0 0.0
      %1979 = vmatpush1.xpose.msra.mxu0 0.0
      %1980 = vmatprep.subr.mxu0 0.0
      %1981 = vmatpush1.xpose.msra.mxu0 0.0
      %1982 = vmatprep.subr.mxu0 0.0
      %1983 = vmatpush1.xpose.msra.mxu0 0.0
      %1984 = vmatprep.subr.mxu0 0.0
      %1985 = vmatpush1.xpose.msra.mxu0 0.0
      %1986 = vmatprep.subr.mxu0 0.0
      %1987 = vmatpush1.xpose.msra.mxu0 0.0
      %1988 = vmatprep.subr.mxu0 0.0
      %1989 = vmatpush1.xpose.msra.mxu0 0.0
      %1990 = vmatprep.subr.mxu0 0.0
      %1991 = vmatpush1.xpose.msra.mxu0 0.0
      %1992 = vmatprep.subr.mxu0 0.0
      %1993 = vmatpush1.xpose.msra.mxu0 0.0
      %1994 = vmatprep.subr.mxu0 0.0
      %1995 = vmatpush1.xpose.msra.mxu0 0.0
      %1996 = vmatprep.subr.mxu0 0.0
      %1997 = vmatpush1.xpose.msra.mxu0 0.0
      %1998 = vmatprep.subr.mxu0 0.0
      %1999 = vmatpush1.xpose.msra.mxu0 0.0
      %2000 = vmatprep.subr.mxu0 0.0
      %2001 = vmatpush1.xpose.msra.mxu0 0.0
      %2002 = vmatprep.subr.mxu0 0.0
      %2003 = vmatpush1.xpose.msra.mxu0 0.0
      %2004 = vmatprep.subr.mxu0 0.0
      %2005 = vmatpush1.xpose.msra.mxu0 0.0
      %2006 = vmatprep.subr.mxu0 0.0
      %2007 = vmatpush1.xpose.msra.mxu0 0.0
      %2008 = vmatprep.mubr.f32.mxu0 0.0
      %2009 = vmatmul.mubr.f32.gmra.mrb[0].mxu0 %v1939
      %v2010 = vpop.f32.mrb[0].mxu0
      %v2011 = vadd.f32 0.0, %v2010
      %v2012 = vpop.f32.mrb[0].mxu0
      %2013 = vdwg.mxu0
      %v2014 = vsel %vm771, %v2011, -inf
      %2015 = vmax.xlane.f32.xlu0 %v2014
      %v2016 = vpop.xlane.xlu0 %2015
      %v2017 = vsub.f32 %v2011, %v2016
      %v2018 = vmul.f32 %v2017, 1.442695
      %v2019 = vpow.pop %v2018
      %v2020 = vsel %vm771, %v2019, 0.0
      %2021 = vadd.xlane.f32.xlu0 %v2020
      %v2022 = vpop.xlane.xlu0 %2021
      %v2023 = vrcp.pop %v2022
      %v2024 = vmul.f32 %v2019, %v2023
      %2025 = vrot.lane.b32.xlu0 %v1927, 96
      %v2026 = vpop.permute.xlu0 %2025
      %v2029 = vsel %vm771, %v2024, 0
      %2031 = vmatprep.subr.mxu0 0.0
      %2032 = vmatpush1.msra.mxu0 %v2026
      %2033 = vmatprep.subr.mxu0 0.0
      %2034 = vmatpush1.msra.mxu0 0.0
      %2035 = vmatprep.subr.mxu0 0.0
      %2036 = vmatpush1.msra.mxu0 0.0
      %2037 = vmatprep.subr.mxu0 0.0
      %2038 = vmatpush1.msra.mxu0 0.0
      %2039 = vmatprep.subr.mxu0 0.0
      %2040 = vmatpush1.msra.mxu0 0.0
      %2041 = vmatprep.subr.mxu0 0.0
      %2042 = vmatpush1.msra.mxu0 0.0
      %2043 = vmatprep.subr.mxu0 0.0
      %2044 = vmatpush1.msra.mxu0 0.0
      %2045 = vmatprep.subr.mxu0 0.0
      %2046 = vmatpush1.msra.mxu0 0.0
      %2047 = vmatprep.subr.mxu0 0.0
      %2048 = vmatpush1.msra.mxu0 0.0
      %2049 = vmatprep.subr.mxu0 0.0
      %2050 = vmatpush1.msra.mxu0 0.0
      %2051 = vmatprep.subr.mxu0 0.0
      %2052 = vmatpush1.msra.mxu0 0.0
      %2053 = vmatprep.subr.mxu0 0.0
      %2054 = vmatpush1.msra.mxu0 0.0
      %2055 = vmatprep.subr.mxu0 0.0
      %2056 = vmatpush1.msra.mxu0 0.0
      %2057 = vmatprep.subr.mxu0 0.0
      %2058 = vmatpush1.msra.mxu0 0.0
      %2059 = vmatprep.subr.mxu0 0.0
      %2060 = vmatpush1.msra.mxu0 0.0
      %2061 = vmatprep.subr.mxu0 0.0
      %2062 = vmatpush1.msra.mxu0 0.0
      %2063 = vmatprep.subr.mxu0 0.0
      %2064 = vmatpush1.msra.mxu0 0.0
      %2065 = vmatprep.subr.mxu0 0.0
      %2066 = vmatpush1.msra.mxu0 0.0
      %2067 = vmatprep.subr.mxu0 0.0
      %2068 = vmatpush1.msra.mxu0 0.0
      %2069 = vmatprep.subr.mxu0 0.0
      %2070 = vmatpush1.msra.mxu0 0.0
      %2071 = vmatprep.subr.mxu0 0.0
      %2072 = vmatpush1.msra.mxu0 0.0
      %2073 = vmatprep.subr.mxu0 0.0
      %2074 = vmatpush1.msra.mxu0 0.0
      %2075 = vmatprep.subr.mxu0 0.0
      %2076 = vmatpush1.msra.mxu0 0.0
      %2077 = vmatprep.subr.mxu0 0.0
      %2078 = vmatpush1.msra.mxu0 0.0
      %2079 = vmatprep.subr.mxu0 0.0
      %2080 = vmatpush1.msra.mxu0 0.0
      %2081 = vmatprep.subr.mxu0 0.0
      %2082 = vmatpush1.msra.mxu0 0.0
      %2083 = vmatprep.subr.mxu0 0.0
      %2084 = vmatpush1.msra.mxu0 0.0
      %2085 = vmatprep.subr.mxu0 0.0
      %2086 = vmatpush1.msra.mxu0 0.0
      %2087 = vmatprep.subr.mxu0 0.0
      %2088 = vmatpush1.msra.mxu0 0.0
      %2089 = vmatprep.subr.mxu0 0.0
      %2090 = vmatpush1.msra.mxu0 0.0
      %2091 = vmatprep.subr.mxu0 0.0
      %2092 = vmatpush1.msra.mxu0 0.0
      %2093 = vmatprep.subr.mxu0 0.0
      %2094 = vmatpush1.msra.mxu0 0.0
      %2095 = vmatprep.mubr.f32.mxu0 0.0
      %2096 = vmatmul.mubr.f32.gmra.mrb[0].mxu0 %v2029
      %v2097 = vpop.f32.mrb[0].mxu0
      %v2098 = vadd.f32 0.0, %v2097
      %v2099 = vpop.f32.mrb[0].mxu0
      %2100 = vdwg.mxu0
      %v2102 = vsel %vm771, %v2098, 0
      %2104 = vmatprep.subr.mxu0 0.0
      %2105 = vmatpush1.msra.mxu0 %v1765
      %2106 = vmatprep.subr.mxu0 0.0
      %2107 = vmatpush1.msra.mxu0 0.0
      %2108 = vmatprep.subr.mxu0 0.0
      %2109 = vmatpush1.msra.mxu0 0.0
      %2110 = vmatprep.subr.mxu0 0.0
      %2111 = vmatpush1.msra.mxu0 0.0
      %2112 = vmatprep.subr.mxu0 0.0
      %2113 = vmatpush1.msra.mxu0 0.0
      %2114 = vmatprep.subr.mxu0 0.0
      %2115 = vmatpush1.msra.mxu0 0.0
      %2116 = vmatprep.subr.mxu0 0.0
      %2117 = vmatpush1.msra.mxu0 0.0
      %2118 = vmatprep.subr.mxu0 0.0
      %2119 = vmatpush1.msra.mxu0 0.0
      %2120 = vmatprep.subr.mxu0 0.0
      %2121 = vmatpush1.msra.mxu0 0.0
      %2122 = vmatprep.subr.mxu0 0.0
      %2123 = vmatpush1.msra.mxu0 0.0
      %2124 = vmatprep.subr.mxu0 0.0
      %2125 = vmatpush1.msra.mxu0 0.0
      %2126 = vmatprep.subr.mxu0 0.0
      %2127 = vmatpush1.msra.mxu0 0.0
      %2128 = vmatprep.subr.mxu0 0.0
      %2129 = vmatpush1.msra.mxu0 0.0
      %2130 = vmatprep.subr.mxu0 0.0
      %2131 = vmatpush1.msra.mxu0 0.0
      %2132 = vmatprep.subr.mxu0 0.0
      %2133 = vmatpush1.msra.mxu0 0.0
      %2134 = vmatprep.subr.mxu0 0.0
      %2135 = vmatpush1.msra.mxu0 0.0
      %2136 = vmatprep.subr.mxu0 0.0
      %2137 = vmatpush1.msra.mxu0 0.0
      %2138 = vmatprep.subr.mxu0 0.0
      %2139 = vmatpush1.msra.mxu0 0.0
      %2140 = vmatprep.subr.mxu0 0.0
      %2141 = vmatpush1.msra.mxu0 0.0
      %2142 = vmatprep.subr.mxu0 0.0
      %2143 = vmatpush1.msra.mxu0 0.0
      %2144 = vmatprep.subr.mxu0 0.0
      %2145 = vmatpush1.msra.mxu0 0.0
      %2146 = vmatprep.subr.mxu0 0.0
      %2147 = vmatpush1.msra.mxu0 0.0
      %2148 = vmatprep.subr.mxu0 0.0
      %2149 = vmatpush1.msra.mxu0 0.0
      %2150 = vmatprep.subr.mxu0 0.0
      %2151 = vmatpush1.msra.mxu0 0.0
      %2152 = vmatprep.subr.mxu0 0.0
      %2153 = vmatpush1.msra.mxu0 0.0
      %2154 = vmatprep.subr.mxu0 0.0
      %2155 = vmatpush1.msra.mxu0 0.0
      %2156 = vmatprep.subr.mxu0 0.0
      %2157 = vmatpush1.msra.mxu0 0.0
      %2158 = vmatprep.subr.mxu0 0.0
      %2159 = vmatpush1.msra.mxu0 0.0
      %2160 = vmatprep.subr.mxu0 0.0
      %2161 = vmatpush1.msra.mxu0 0.0
      %2162 = vmatprep.subr.mxu0 0.0
      %2163 = vmatpush1.msra.mxu0 0.0
      %2164 = vmatprep.subr.mxu0 0.0
      %2165 = vmatpush1.msra.mxu0 0.0
      %2166 = vmatprep.subr.mxu0 0.0
      %2167 = vmatpush1.msra.mxu0 0.0
      %2168 = vmatprep.mubr.f32.mxu0 0.0
      %2169 = vmatmul.mubr.f32.gmra.mrb[0].mxu0 %v2102
      %v2170 = vpop.f32.mrb[0].mxu0
      %v2171 = vadd.f32 0.0, %v2170
      %v2172 = vpop.f32.mrb[0].mxu0
      %2173 = vdwg.mxu0
      %v2174 = vadd.f32 %v1936, %v2171
      %2175 = vrot.lane.b32.xlu0 %v1937, 120
      %v2176 = vpop.permute.xlu0 %2175
      %2177 = vrot.lane.b32.xlu0 %v1927, 120
      %v2178 = vpop.permute.xlu0 %2177
      %v2179 = vsel %vm771, %v2176, 0
      %v2181 = vsel %vm771, %v2178, 0
      %2183 = vmatprep.subr.mxu0 0.0
      %2184 = vmatpush1.xpose.msra.mxu0 %v2181
      %2185 = vmatprep.subr.mxu0 0.0
      %2186 = vmatpush1.xpose.msra.mxu0 0.0
      %2187 = vmatprep.subr.mxu0 0.0
      %2188 = vmatpush1.xpose.msra.mxu0 0.0
      %2189 = vmatprep.subr.mxu0 0.0
      %2190 = vmatpush1.xpose.msra.mxu0 0.0
      %2191 = vmatprep.subr.mxu0 0.0
      %2192 = vmatpush1.xpose.msra.mxu0 0.0
      %2193 = vmatprep.subr.mxu0 0.0
      %2194 = vmatpush1.xpose.msra.mxu0 0.0
      %2195 = vmatprep.subr.mxu0 0.0
      %2196 = vmatpush1.xpose.msra.mxu0 0.0
      %2197 = vmatprep.subr.mxu0 0.0
      %2198 = vmatpush1.xpose.msra.mxu0 0.0
      %2199 = vmatprep.subr.mxu0 0.0
      %2200 = vmatpush1.xpose.msra.mxu0 0.0
      %2201 = vmatprep.subr.mxu0 0.0
      %2202 = vmatpush1.xpose.msra.mxu0 0.0
      %2203 = vmatprep.subr.mxu0 0.0
      %2204 = vmatpush1.xpose.msra.mxu0 0.0
      %2205 = vmatprep.subr.mxu0 0.0
      %2206 = vmatpush1.xpose.msra.mxu0 0.0
      %2207 = vmatprep.subr.mxu0 0.0
      %2208 = vmatpush1.xpose.msra.mxu0 0.0
      %2209 = vmatprep.subr.mxu0 0.0
      %2210 = vmatpush1.xpose.msra.mxu0 0.0
      %2211 = vmatprep.subr.mxu0 0.0
      %2212 = vmatpush1.xpose.msra.mxu0 0.0
      %2213 = vmatprep.subr.mxu0 0.0
      %2214 = vmatpush1.xpose.msra.mxu0 0.0
      %2215 = vmatprep.subr.mxu0 0.0
      %2216 = vmatpush1.xpose.msra.mxu0 0.0
      %2217 = vmatprep.subr.mxu0 0.0
      %2218 = vmatpush1.xpose.msra.mxu0 0.0
      %2219 = vmatprep.subr.mxu0 0.0
      %2220 = vmatpush1.xpose.msra.mxu0 0.0
      %2221 = vmatprep.subr.mxu0 0.0
      %2222 = vmatpush1.xpose.msra.mxu0 0.0
      %2223 = vmatprep.subr.mxu0 0.0
      %2224 = vmatpush1.xpose.msra.mxu0 0.0
      %2225 = vmatprep.subr.mxu0 0.0
      %2226 = vmatpush1.xpose.msra.mxu0 0.0
      %2227 = vmatprep.subr.mxu0 0.0
      %2228 = vmatpush1.xpose.msra.mxu0 0.0
      %2229 = vmatprep.subr.mxu0 0.0
      %2230 = vmatpush1.xpose.msra.mxu0 0.0
      %2231 = vmatprep.subr.mxu0 0.0
      %2232 = vmatpush1.xpose.msra.mxu0 0.0
      %2233 = vmatprep.subr.mxu0 0.0
      %2234 = vmatpush1.xpose.msra.mxu0 0.0
      %2235 = vmatprep.subr.mxu0 0.0
      %2236 = vmatpush1.xpose.msra.mxu0 0.0
      %2237 = vmatprep.subr.mxu0 0.0
      %2238 = vmatpush1.xpose.msra.mxu0 0.0
      %2239 = vmatprep.subr.mxu0 0.0
      %2240 = vmatpush1.xpose.msra.mxu0 0.0
      %2241 = vmatprep.subr.mxu0 0.0
      %2242 = vmatpush1.xpose.msra.mxu0 0.0
      %2243 = vmatprep.subr.mxu0 0.0
      %2244 = vmatpush1.xpose.msra.mxu0 0.0
      %2245 = vmatprep.subr.mxu0 0.0
      %2246 = vmatpush1.xpose.msra.mxu0 0.0
      %2247 = vmatprep.mubr.f32.mxu0 0.0
      %2248 = vmatmul.mubr.f32.gmra.mrb[0].mxu0 %v2179
      %v2249 = vpop.f32.mrb[0].mxu0
      %v2250 = vadd.f32 0.0, %v2249
      %v2251 = vpop.f32.mrb[0].mxu0
      %2252 = vdwg.mxu0
      %v2253 = vsel %vm771, %v2250, -inf
      %2254 = vmax.xlane.f32.xlu0 %v2253
      %v2255 = vpop.xlane.xlu0 %2254
      %v2256 = vsub.f32 %v2250, %v2255
      %v2257 = vmul.f32 %v2256, 1.442695
      %v2258 = vpow.pop %v2257
      %v2259 = vsel %vm771, %v2258, 0.0
      %2260 = vadd.xlane.f32.xlu0 %v2259
      %v2261 = vpop.xlane.xlu0 %2260
      %v2262 = vrcp.pop %v2261
      %v2263 = vmul.f32 %v2258, %v2262
      %2264 = vrot.lane.b32.xlu0 %v1927, 88
      %v2265 = vpop.permute.xlu0 %2264
      %v2268 = vsel %vm771, %v2263, 0
      %2270 = vmatprep.subr.mxu0 0.0
      %2271 = vmatpush1.msra.mxu0 %v2265
      %2272 = vmatprep.subr.mxu0 0.0
      %2273 = vmatpush1.msra.mxu0 0.0
      %2274 = vmatprep.subr.mxu0 0.0
      %2275 = vmatpush1.msra.mxu0 0.0
      %2276 = vmatprep.subr.mxu0 0.0
      %2277 = vmatpush1.msra.mxu0 0.0
      %2278 = vmatprep.subr.mxu0 0.0
      %2279 = vmatpush1.msra.mxu0 0.0
      %2280 = vmatprep.subr.mxu0 0.0
      %2281 = vmatpush1.msra.mxu0 0.0
      %2282 = vmatprep.subr.mxu0 0.0
      %2283 = vmatpush1.msra.mxu0 0.0
      %2284 = vmatprep.subr.mxu0 0.0
      %2285 = vmatpush1.msra.mxu0 0.0
      %2286 = vmatprep.subr.mxu0 0.0
      %2287 = vmatpush1.msra.mxu0 0.0
      %2288 = vmatprep.subr.mxu0 0.0
      %2289 = vmatpush1.msra.mxu0 0.0
      %2290 = vmatprep.subr.mxu0 0.0
      %2291 = vmatpush1.msra.mxu0 0.0
      %2292 = vmatprep.subr.mxu0 0.0
      %2293 = vmatpush1.msra.mxu0 0.0
      %2294 = vmatprep.subr.mxu0 0.0
      %2295 = vmatpush1.msra.mxu0 0.0
      %2296 = vmatprep.subr.mxu0 0.0
      %2297 = vmatpush1.msra.mxu0 0.0
      %2298 = vmatprep.subr.mxu0 0.0
      %2299 = vmatpush1.msra.mxu0 0.0
      %2300 = vmatprep.subr.mxu0 0.0
      %2301 = vmatpush1.msra.mxu0 0.0
      %2302 = vmatprep.subr.mxu0 0.0
      %2303 = vmatpush1.msra.mxu0 0.0
      %2304 = vmatprep.subr.mxu0 0.0
      %2305 = vmatpush1.msra.mxu0 0.0
      %2306 = vmatprep.subr.mxu0 0.0
      %2307 = vmatpush1.msra.mxu0 0.0
      %2308 = vmatprep.subr.mxu0 0.0
      %2309 = vmatpush1.msra.mxu0 0.0
      %2310 = vmatprep.subr.mxu0 0.0
      %2311 = vmatpush1.msra.mxu0 0.0
      %2312 = vmatprep.subr.mxu0 0.0
      %2313 = vmatpush1.msra.mxu0 0.0
      %2314 = vmatprep.subr.mxu0 0.0
      %2315 = vmatpush1.msra.mxu0 0.0
      %2316 = vmatprep.subr.mxu0 0.0
      %2317 = vmatpush1.msra.mxu0 0.0
      %2318 = vmatprep.subr.mxu0 0.0
      %2319 = vmatpush1.msra.mxu0 0.0
      %2320 = vmatprep.subr.mxu0 0.0
      %2321 = vmatpush1.msra.mxu0 0.0
      %2322 = vmatprep.subr.mxu0 0.0
      %2323 = vmatpush1.msra.mxu0 0.0
      %2324 = vmatprep.subr.mxu0 0.0
      %2325 = vmatpush1.msra.mxu0 0.0
      %2326 = vmatprep.subr.mxu0 0.0
      %2327 = vmatpush1.msra.mxu0 0.0
      %2328 = vmatprep.subr.mxu0 0.0
      %2329 = vmatpush1.msra.mxu0 0.0
      %2330 = vmatprep.subr.mxu0 0.0
      %2331 = vmatpush1.msra.mxu0 0.0
      %2332 = vmatprep.subr.mxu0 0.0
      %2333 = vmatpush1.msra.mxu0 0.0
      %2334 = vmatprep.mubr.f32.mxu0 0.0
      %2335 = vmatmul.mubr.f32.gmra.mrb[0].mxu0 %v2268
      %v2336 = vpop.f32.mrb[0].mxu0
      %v2337 = vadd.f32 0.0, %v2336
      %v2338 = vpop.f32.mrb[0].mxu0
      %2339 = vdwg.mxu0
      %v2341 = vsel %vm771, %v2337, 0
      %2343 = vmatprep.subr.mxu0 0.0
      %2344 = vmatpush1.msra.mxu0 %v1766
      %2345 = vmatprep.subr.mxu0 0.0
      %2346 = vmatpush1.msra.mxu0 0.0
      %2347 = vmatprep.subr.mxu0 0.0
      %2348 = vmatpush1.msra.mxu0 0.0
      %2349 = vmatprep.subr.mxu0 0.0
      %2350 = vmatpush1.msra.mxu0 0.0
      %2351 = vmatprep.subr.mxu0 0.0
      %2352 = vmatpush1.msra.mxu0 0.0
      %2353 = vmatprep.subr.mxu0 0.0
      %2354 = vmatpush1.msra.mxu0 0.0
      %2355 = vmatprep.subr.mxu0 0.0
      %2356 = vmatpush1.msra.mxu0 0.0
      %2357 = vmatprep.subr.mxu0 0.0
      %2358 = vmatpush1.msra.mxu0 0.0
      %2359 = vmatprep.subr.mxu0 0.0
      %2360 = vmatpush1.msra.mxu0 0.0
      %2361 = vmatprep.subr.mxu0 0.0
      %2362 = vmatpush1.msra.mxu0 0.0
      %2363 = vmatprep.subr.mxu0 0.0
      %2364 = vmatpush1.msra.mxu0 0.0
      %2365 = vmatprep.subr.mxu0 0.0
      %2366 = vmatpush1.msra.mxu0 0.0
      %2367 = vmatprep.subr.mxu0 0.0
      %2368 = vmatpush1.msra.mxu0 0.0
      %2369 = vmatprep.subr.mxu0 0.0
      %2370 = vmatpush1.msra.mxu0 0.0
      %2371 = vmatprep.subr.mxu0 0.0
      %2372 = vmatpush1.msra.mxu0 0.0
      %2373 = vmatprep.subr.mxu0 0.0
      %2374 = vmatpush1.msra.mxu0 0.0
      %2375 = vmatprep.subr.mxu0 0.0
      %2376 = vmatpush1.msra.mxu0 0.0
      %2377 = vmatprep.subr.mxu0 0.0
      %2378 = vmatpush1.msra.mxu0 0.0
      %2379 = vmatprep.subr.mxu0 0.0
      %2380 = vmatpush1.msra.mxu0 0.0
      %2381 = vmatprep.subr.mxu0 0.0
      %2382 = vmatpush1.msra.mxu0 0.0
      %2383 = vmatprep.subr.mxu0 0.0
      %2384 = vmatpush1.msra.mxu0 0.0
      %2385 = vmatprep.subr.mxu0 0.0
      %2386 = vmatpush1.msra.mxu0 0.0
      %2387 = vmatprep.subr.mxu0 0.0
      %2388 = vmatpush1.msra.mxu0 0.0
      %2389 = vmatprep.subr.mxu0 0.0
      %2390 = vmatpush1.msra.mxu0 0.0
      %2391 = vmatprep.subr.mxu0 0.0
      %2392 = vmatpush1.msra.mxu0 0.0
      %2393 = vmatprep.subr.mxu0 0.0
      %2394 = vmatpush1.msra.mxu0 0.0
      %2395 = vmatprep.subr.mxu0 0.0
      %2396 = vmatpush1.msra.mxu0 0.0
      %2397 = vmatprep.subr.mxu0 0.0
      %2398 = vmatpush1.msra.mxu0 0.0
      %2399 = vmatprep.subr.mxu0 0.0
      %2400 = vmatpush1.msra.mxu0 0.0
      %2401 = vmatprep.subr.mxu0 0.0
      %2402 = vmatpush1.msra.mxu0 0.0
      %2403 = vmatprep.subr.mxu0 0.0
      %2404 = vmatpush1.msra.mxu0 0.0
      %2405 = vmatprep.subr.mxu0 0.0
      %2406 = vmatpush1.msra.mxu0 0.0
      %2407 = vmatprep.mubr.f32.mxu0 0.0
      %2408 = vmatmul.mubr.f32.gmra.mrb[0].mxu0 %v2341
      %v2409 = vpop.f32.mrb[0].mxu0
      %v2410 = vadd.f32 0.0, %v2409
      %v2411 = vpop.f32.mrb[0].mxu0
      %2412 = vdwg.mxu0
      %v2413 = vadd.f32 %v2174, %v2410
      %2414 = vrot.lane.b32.xlu0 %v1937, 112
      %v2415 = vpop.permute.xlu0 %2414
      %2416 = vrot.lane.b32.xlu0 %v1927, 112
      %v2417 = vpop.permute.xlu0 %2416
      %v2418 = vsel %vm771, %v2415, 0
      %v2420 = vsel %vm771, %v2417, 0
      %2422 = vmatprep.subr.mxu0 0.0
      %2423 = vmatpush1.xpose.msra.mxu0 %v2420
      %2424 = vmatprep.subr.mxu0 0.0
      %2425 = vmatpush1.xpose.msra.mxu0 0.0
      %2426 = vmatprep.subr.mxu0 0.0
      %2427 = vmatpush1.xpose.msra.mxu0 0.0
      %2428 = vmatprep.subr.mxu0 0.0
      %2429 = vmatpush1.xpose.msra.mxu0 0.0
      %2430 = vmatprep.subr.mxu0 0.0
      %2431 = vmatpush1.xpose.msra.mxu0 0.0
      %2432 = vmatprep.subr.mxu0 0.0
      %2433 = vmatpush1.xpose.msra.mxu0 0.0
      %2434 = vmatprep.subr.mxu0 0.0
      %2435 = vmatpush1.xpose.msra.mxu0 0.0
      %2436 = vmatprep.subr.mxu0 0.0
      %2437 = vmatpush1.xpose.msra.mxu0 0.0
      %2438 = vmatprep.subr.mxu0 0.0
      %2439 = vmatpush1.xpose.msra.mxu0 0.0
      %2440 = vmatprep.subr.mxu0 0.0
      %2441 = vmatpush1.xpose.msra.mxu0 0.0
      %2442 = vmatprep.subr.mxu0 0.0
      %2443 = vmatpush1.xpose.msra.mxu0 0.0
      %2444 = vmatprep.subr.mxu0 0.0
      %2445 = vmatpush1.xpose.msra.mxu0 0.0
      %2446 = vmatprep.subr.mxu0 0.0
      %2447 = vmatpush1.xpose.msra.mxu0 0.0
      %2448 = vmatprep.subr.mxu0 0.0
      %2449 = vmatpush1.xpose.msra.mxu0 0.0
      %2450 = vmatprep.subr.mxu0 0.0
      %2451 = vmatpush1.xpose.msra.mxu0 0.0
      %2452 = vmatprep.subr.mxu0 0.0
      %2453 = vmatpush1.xpose.msra.mxu0 0.0
      %2454 = vmatprep.subr.mxu0 0.0
      %2455 = vmatpush1.xpose.msra.mxu0 0.0
      %2456 = vmatprep.subr.mxu0 0.0
      %2457 = vmatpush1.xpose.msra.mxu0 0.0
      %2458 = vmatprep.subr.mxu0 0.0
      %2459 = vmatpush1.xpose.msra.mxu0 0.0
      %2460 = vmatprep.subr.mxu0 0.0
      %2461 = vmatpush1.xpose.msra.mxu0 0.0
      %2462 = vmatprep.subr.mxu0 0.0
      %2463 = vmatpush1.xpose.msra.mxu0 0.0
      %2464 = vmatprep.subr.mxu0 0.0
      %2465 = vmatpush1.xpose.msra.mxu0 0.0
      %2466 = vmatprep.subr.mxu0 0.0
      %2467 = vmatpush1.xpose.msra.mxu0 0.0
      %2468 = vmatprep.subr.mxu0 0.0
      %2469 = vmatpush1.xpose.msra.mxu0 0.0
      %2470 = vmatprep.subr.mxu0 0.0
      %2471 = vmatpush1.xpose.msra.mxu0 0.0
      %2472 = vmatprep.subr.mxu0 0.0
      %2473 = vmatpush1.xpose.msra.mxu0 0.0
      %2474 = vmatprep.subr.mxu0 0.0
      %2475 = vmatpush1.xpose.msra.mxu0 0.0
      %2476 = vmatprep.subr.mxu0 0.0
      %2477 = vmatpush1.xpose.msra.mxu0 0.0
      %2478 = vmatprep.subr.mxu0 0.0
      %2479 = vmatpush1.xpose.msra.mxu0 0.0
      %2480 = vmatprep.subr.mxu0 0.0
      %2481 = vmatpush1.xpose.msra.mxu0 0.0
      %2482 = vmatprep.subr.mxu0 0.0
      %2483 = vmatpush1.xpose.msra.mxu0 0.0
      %2484 = vmatprep.subr.mxu0 0.0
      %2485 = vmatpush1.xpose.msra.mxu0 0.0
      %2486 = vmatprep.mubr.f32.mxu0 0.0
      %2487 = vmatmul.mubr.f32.gmra.mrb[0].mxu0 %v2418
      %v2488 = vpop.f32.mrb[0].mxu0
      %v2489 = vadd.f32 0.0, %v2488
      %v2490 = vpop.f32.mrb[0].mxu0
      %2491 = vdwg.mxu0
      %v2492 = vsel %vm771, %v2489, -inf
      %2493 = vmax.xlane.f32.xlu0 %v2492
      %v2494 = vpop.xlane.xlu0 %2493
      %v2495 = vsub.f32 %v2489, %v2494
      %v2496 = vmul.f32 %v2495, 1.442695
      %v2497 = vpow.pop %v2496
      %v2498 = vsel %vm771, %v2497, 0.0
      %2499 = vadd.xlane.f32.xlu0 %v2498
      %v2500 = vpop.xlane.xlu0 %2499
      %v2501 = vrcp.pop %v2500
      %v2502 = vmul.f32 %v2497, %v2501
      %2503 = vrot.lane.b32.xlu0 %v1927, 80
      %v2504 = vpop.permute.xlu0 %2503
      %v2507 = vsel %vm771, %v2502, 0
      %2509 = vmatprep.subr.mxu0 0.0
      %2510 = vmatpush1.msra.mxu0 %v2504
      %2511 = vmatprep.subr.mxu0 0.0
      %2512 = vmatpush1.msra.mxu0 0.0
      %2513 = vmatprep.subr.mxu0 0.0
      %2514 = vmatpush1.msra.mxu0 0.0
      %2515 = vmatprep.subr.mxu0 0.0
      %2516 = vmatpush1.msra.mxu0 0.0
      %2517 = vmatprep.subr.mxu0 0.0
      %2518 = vmatpush1.msra.mxu0 0.0
      %2519 = vmatprep.subr.mxu0 0.0
      %2520 = vmatpush1.msra.mxu0 0.0
      %2521 = vmatprep.subr.mxu0 0.0
      %2522 = vmatpush1.msra.mxu0 0.0
      %2523 = vmatprep.subr.mxu0 0.0
      %2524 = vmatpush1.msra.mxu0 0.0
      %2525 = vmatprep.subr.mxu0 0.0
      %2526 = vmatpush1.msra.mxu0 0.0
      %2527 = vmatprep.subr.mxu0 0.0
      %2528 = vmatpush1.msra.mxu0 0.0
      %2529 = vmatprep.subr.mxu0 0.0
      %2530 = vmatpush1.msra.mxu0 0.0
      %2531 = vmatprep.subr.mxu0 0.0
      %2532 = vmatpush1.msra.mxu0 0.0
      %2533 = vmatprep.subr.mxu0 0.0
      %2534 = vmatpush1.msra.mxu0 0.0
      %2535 = vmatprep.subr.mxu0 0.0
      %2536 = vmatpush1.msra.mxu0 0.0
      %2537 = vmatprep.subr.mxu0 0.0
      %2538 = vmatpush1.msra.mxu0 0.0
      %2539 = vmatprep.subr.mxu0 0.0
      %2540 = vmatpush1.msra.mxu0 0.0
      %2541 = vmatprep.subr.mxu0 0.0
      %2542 = vmatpush1.msra.mxu0 0.0
      %2543 = vmatprep.subr.mxu0 0.0
      %2544 = vmatpush1.msra.mxu0 0.0
      %2545 = vmatprep.subr.mxu0 0.0
      %2546 = vmatpush1.msra.mxu0 0.0
      %2547 = vmatprep.subr.mxu0 0.0
      %2548 = vmatpush1.msra.mxu0 0.0
      %2549 = vmatprep.subr.mxu0 0.0
      %2550 = vmatpush1.msra.mxu0 0.0
      %2551 = vmatprep.subr.mxu0 0.0
      %2552 = vmatpush1.msra.mxu0 0.0
      %2553 = vmatprep.subr.mxu0 0.0
      %2554 = vmatpush1.msra.mxu0 0.0
      %2555 = vmatprep.subr.mxu0 0.0
      %2556 = vmatpush1.msra.mxu0 0.0
      %2557 = vmatprep.subr.mxu0 0.0
      %2558 = vmatpush1.msra.mxu0 0.0
      %2559 = vmatprep.subr.mxu0 0.0
      %2560 = vmatpush1.msra.mxu0 0.0
      %2561 = vmatprep.subr.mxu0 0.0
      %2562 = vmatpush1.msra.mxu0 0.0
      %2563 = vmatprep.subr.mxu0 0.0
      %2564 = vmatpush1.msra.mxu0 0.0
      %2565 = vmatprep.subr.mxu0 0.0
      %2566 = vmatpush1.msra.mxu0 0.0
      %2567 = vmatprep.subr.mxu0 0.0
      %2568 = vmatpush1.msra.mxu0 0.0
      %2569 = vmatprep.subr.mxu0 0.0
      %2570 = vmatpush1.msra.mxu0 0.0
      %2571 = vmatprep.subr.mxu0 0.0
      %2572 = vmatpush1.msra.mxu0 0.0
      %2573 = vmatprep.mubr.f32.mxu0 0.0
      %2574 = vmatmul.mubr.f32.gmra.mrb[0].mxu0 %v2507
      %v2575 = vpop.f32.mrb[0].mxu0
      %v2576 = vadd.f32 0.0, %v2575
      %v2577 = vpop.f32.mrb[0].mxu0
      %2578 = vdwg.mxu0
      %v2580 = vsel %vm771, %v2576, 0
      %2582 = vmatprep.subr.mxu0 0.0
      %2583 = vmatpush1.msra.mxu0 %v1767
      %2584 = vmatprep.subr.mxu0 0.0
      %2585 = vmatpush1.msra.mxu0 0.0
      %2586 = vmatprep.subr.mxu0 0.0
      %2587 = vmatpush1.msra.mxu0 0.0
      %2588 = vmatprep.subr.mxu0 0.0
      %2589 = vmatpush1.msra.mxu0 0.0
      %2590 = vmatprep.subr.mxu0 0.0
      %2591 = vmatpush1.msra.mxu0 0.0
      %2592 = vmatprep.subr.mxu0 0.0
      %2593 = vmatpush1.msra.mxu0 0.0
      %2594 = vmatprep.subr.mxu0 0.0
      %2595 = vmatpush1.msra.mxu0 0.0
      %2596 = vmatprep.subr.mxu0 0.0
      %2597 = vmatpush1.msra.mxu0 0.0
      %2598 = vmatprep.subr.mxu0 0.0
      %2599 = vmatpush1.msra.mxu0 0.0
      %2600 = vmatprep.subr.mxu0 0.0
      %2601 = vmatpush1.msra.mxu0 0.0
      %2602 = vmatprep.subr.mxu0 0.0
      %2603 = vmatpush1.msra.mxu0 0.0
      %2604 = vmatprep.subr.mxu0 0.0
      %2605 = vmatpush1.msra.mxu0 0.0
      %2606 = vmatprep.subr.mxu0 0.0
      %2607 = vmatpush1.msra.mxu0 0.0
      %2608 = vmatprep.subr.mxu0 0.0
      %2609 = vmatpush1.msra.mxu0 0.0
      %2610 = vmatprep.subr.mxu0 0.0
      %2611 = vmatpush1.msra.mxu0 0.0
      %2612 = vmatprep.subr.mxu0 0.0
      %2613 = vmatpush1.msra.mxu0 0.0
      %2614 = vmatprep.subr.mxu0 0.0
      %2615 = vmatpush1.msra.mxu0 0.0
      %2616 = vmatprep.subr.mxu0 0.0
      %2617 = vmatpush1.msra.mxu0 0.0
      %2618 = vmatprep.subr.mxu0 0.0
      %2619 = vmatpush1.msra.mxu0 0.0
      %2620 = vmatprep.subr.mxu0 0.0
      %2621 = vmatpush1.msra.mxu0 0.0
      %2622 = vmatprep.subr.mxu0 0.0
      %2623 = vmatpush1.msra.mxu0 0.0
      %2624 = vmatprep.subr.mxu0 0.0
      %2625 = vmatpush1.msra.mxu0 0.0
      %2626 = vmatprep.subr.mxu0 0.0
      %2627 = vmatpush1.msra.mxu0 0.0
      %2628 = vmatprep.subr.mxu0 0.0
      %2629 = vmatpush1.msra.mxu0 0.0
      %2630 = vmatprep.subr.mxu0 0.0
      %2631 = vmatpush1.msra.mxu0 0.0
      %2632 = vmatprep.subr.mxu0 0.0
      %2633 = vmatpush1.msra.mxu0 0.0
      %2634 = vmatprep.subr.mxu0 0.0
      %2635 = vmatpush1.msra.mxu0 0.0
      %2636 = vmatprep.subr.mxu0 0.0
      %2637 = vmatpush1.msra.mxu0 0.0
      %2638 = vmatprep.subr.mxu0 0.0
      %2639 = vmatpush1.msra.mxu0 0.0
      %2640 = vmatprep.subr.mxu0 0.0
      %2641 = vmatpush1.msra.mxu0 0.0
      %2642 = vmatprep.subr.mxu0 0.0
      %2643 = vmatpush1.msra.mxu0 0.0
      %2644 = vmatprep.subr.mxu0 0.0
      %2645 = vmatpush1.msra.mxu0 0.0
      %2646 = vmatprep.mubr.f32.mxu0 0.0
      %2647 = vmatmul.mubr.f32.gmra.mrb[0].mxu0 %v2580
      %v2648 = vpop.f32.mrb[0].mxu0
      %v2649 = vadd.f32 0.0, %v2648
      %v2650 = vpop.f32.mrb[0].mxu0
      %2651 = vdwg.mxu0
      %v2652 = vadd.f32 %v2413, %v2649
      %2653 = vrot.lane.b32.xlu0 %v1937, 104
      %v2654 = vpop.permute.xlu0 %2653
      %2655 = vrot.lane.b32.xlu0 %v1927, 104
      %v2656 = vpop.permute.xlu0 %2655
      %v2657 = vsel %vm771, %v2654, 0
      %v2659 = vsel %vm771, %v2656, 0
      %2661 = vmatprep.subr.mxu0 0.0
      %2662 = vmatpush1.xpose.msra.mxu0 %v2659
      %2663 = vmatprep.subr.mxu0 0.0
      %2664 = vmatpush1.xpose.msra.mxu0 0.0
      %2665 = vmatprep.subr.mxu0 0.0
      %2666 = vmatpush1.xpose.msra.mxu0 0.0
      %2667 = vmatprep.subr.mxu0 0.0
      %2668 = vmatpush1.xpose.msra.mxu0 0.0
      %2669 = vmatprep.subr.mxu0 0.0
      %2670 = vmatpush1.xpose.msra.mxu0 0.0
      %2671 = vmatprep.subr.mxu0 0.0
      %2672 = vmatpush1.xpose.msra.mxu0 0.0
      %2673 = vmatprep.subr.mxu0 0.0
      %2674 = vmatpush1.xpose.msra.mxu0 0.0
      %2675 = vmatprep.subr.mxu0 0.0
      %2676 = vmatpush1.xpose.msra.mxu0 0.0
      %2677 = vmatprep.subr.mxu0 0.0
      %2678 = vmatpush1.xpose.msra.mxu0 0.0
      %2679 = vmatprep.subr.mxu0 0.0
      %2680 = vmatpush1.xpose.msra.mxu0 0.0
      %2681 = vmatprep.subr.mxu0 0.0
      %2682 = vmatpush1.xpose.msra.mxu0 0.0
      %2683 = vmatprep.subr.mxu0 0.0
      %2684 = vmatpush1.xpose.msra.mxu0 0.0
      %2685 = vmatprep.subr.mxu0 0.0
      %2686 = vmatpush1.xpose.msra.mxu0 0.0
      %2687 = vmatprep.subr.mxu0 0.0
      %2688 = vmatpush1.xpose.msra.mxu0 0.0
      %2689 = vmatprep.subr.mxu0 0.0
      %2690 = vmatpush1.xpose.msra.mxu0 0.0
      %2691 = vmatprep.subr.mxu0 0.0
      %2692 = vmatpush1.xpose.msra.mxu0 0.0
      %2693 = vmatprep.subr.mxu0 0.0
      %2694 = vmatpush1.xpose.msra.mxu0 0.0
      %2695 = vmatprep.subr.mxu0 0.0
      %2696 = vmatpush1.xpose.msra.mxu0 0.0
      %2697 = vmatprep.subr.mxu0 0.0
      %2698 = vmatpush1.xpose.msra.mxu0 0.0
      %2699 = vmatprep.subr.mxu0 0.0
      %2700 = vmatpush1.xpose.msra.mxu0 0.0
      %2701 = vmatprep.subr.mxu0 0.0
      %2702 = vmatpush1.xpose.msra.mxu0 0.0
      %2703 = vmatprep.subr.mxu0 0.0
      %2704 = vmatpush1.xpose.msra.mxu0 0.0
      %2705 = vmatprep.subr.mxu0 0.0
      %2706 = vmatpush1.xpose.msra.mxu0 0.0
      %2707 = vmatprep.subr.mxu0 0.0
      %2708 = vmatpush1.xpose.msra.mxu0 0.0
      %2709 = vmatprep.subr.mxu0 0.0
      %2710 = vmatpush1.xpose.msra.mxu0 0.0
      %2711 = vmatprep.subr.mxu0 0.0
      %2712 = vmatpush1.xpose.msra.mxu0 0.0
      %2713 = vmatprep.subr.mxu0 0.0
      %2714 = vmatpush1.xpose.msra.mxu0 0.0
      %2715 = vmatprep.subr.mxu0 0.0
      %2716 = vmatpush1.xpose.msra.mxu0 0.0
      %2717 = vmatprep.subr.mxu0 0.0
      %2718 = vmatpush1.xpose.msra.mxu0 0.0
      %2719 = vmatprep.subr.mxu0 0.0
      %2720 = vmatpush1.xpose.msra.mxu0 0.0
      %2721 = vmatprep.subr.mxu0 0.0
      %2722 = vmatpush1.xpose.msra.mxu0 0.0
      %2723 = vmatprep.subr.mxu0 0.0
      %2724 = vmatpush1.xpose.msra.mxu0 0.0
      %2725 = vmatprep.mubr.f32.mxu0 0.0
      %2726 = vmatmul.mubr.f32.gmra.mrb[0].mxu0 %v2657
      %v2727 = vpop.f32.mrb[0].mxu0
      %v2728 = vadd.f32 0.0, %v2727
      %v2729 = vpop.f32.mrb[0].mxu0
      %2730 = vdwg.mxu0
      %v2731 = vsel %vm771, %v2728, -inf
      %2732 = vmax.xlane.f32.xlu0 %v2731
      %v2733 = vpop.xlane.xlu0 %2732
      %v2734 = vsub.f32 %v2728, %v2733
      %v2735 = vmul.f32 %v2734, 1.442695
      %v2736 = vpow.pop %v2735
      %v2737 = vsel %vm771, %v2736, 0.0
      %2738 = vadd.xlane.f32.xlu0 %v2737
      %v2739 = vpop.xlane.xlu0 %2738
      %v2740 = vrcp.pop %v2739
      %v2741 = vmul.f32 %v2736, %v2740
      %2742 = vrot.lane.b32.xlu0 %v1927, 72
      %v2743 = vpop.permute.xlu0 %2742
      %v2746 = vsel %vm771, %v2741, 0
      %2748 = vmatprep.subr.mxu0 0.0
      %2749 = vmatpush1.msra.mxu0 %v2743
      %2750 = vmatprep.subr.mxu0 0.0
      %2751 = vmatpush1.msra.mxu0 0.0
      %2752 = vmatprep.subr.mxu0 0.0
      %2753 = vmatpush1.msra.mxu0 0.0
      %2754 = vmatprep.subr.mxu0 0.0
      %2755 = vmatpush1.msra.mxu0 0.0
      %2756 = vmatprep.subr.mxu0 0.0
      %2757 = vmatpush1.msra.mxu0 0.0
      %2758 = vmatprep.subr.mxu0 0.0
      %2759 = vmatpush1.msra.mxu0 0.0
      %2760 = vmatprep.subr.mxu0 0.0
      %2761 = vmatpush1.msra.mxu0 0.0
      %2762 = vmatprep.subr.mxu0 0.0
      %2763 = vmatpush1.msra.mxu0 0.0
      %2764 = vmatprep.subr.mxu0 0.0
      %2765 = vmatpush1.msra.mxu0 0.0
      %2766 = vmatprep.subr.mxu0 0.0
      %2767 = vmatpush1.msra.mxu0 0.0
      %2768 = vmatprep.subr.mxu0 0.0
      %2769 = vmatpush1.msra.mxu0 0.0
      %2770 = vmatprep.subr.mxu0 0.0
      %2771 = vmatpush1.msra.mxu0 0.0
      %2772 = vmatprep.subr.mxu0 0.0
      %2773 = vmatpush1.msra.mxu0 0.0
      %2774 = vmatprep.subr.mxu0 0.0
      %2775 = vmatpush1.msra.mxu0 0.0
      %2776 = vmatprep.subr.mxu0 0.0
      %2777 = vmatpush1.msra.mxu0 0.0
      %2778 = vmatprep.subr.mxu0 0.0
      %2779 = vmatpush1.msra.mxu0 0.0
      %2780 = vmatprep.subr.mxu0 0.0
      %2781 = vmatpush1.msra.mxu0 0.0
      %2782 = vmatprep.subr.mxu0 0.0
      %2783 = vmatpush1.msra.mxu0 0.0
      %2784 = vmatprep.subr.mxu0 0.0
      %2785 = vmatpush1.msra.mxu0 0.0
      %2786 = vmatprep.subr.mxu0 0.0
      %2787 = vmatpush1.msra.mxu0 0.0
      %2788 = vmatprep.subr.mxu0 0.0
      %2789 = vmatpush1.msra.mxu0 0.0
      %2790 = vmatprep.subr.mxu0 0.0
      %2791 = vmatpush1.msra.mxu0 0.0
      %2792 = vmatprep.subr.mxu0 0.0
      %2793 = vmatpush1.msra.mxu0 0.0
      %2794 = vmatprep.subr.mxu0 0.0
      %2795 = vmatpush1.msra.mxu0 0.0
      %2796 = vmatprep.subr.mxu0 0.0
      %2797 = vmatpush1.msra.mxu0 0.0
      %2798 = vmatprep.subr.mxu0 0.0
      %2799 = vmatpush1.msra.mxu0 0.0
      %2800 = vmatprep.subr.mxu0 0.0
      %2801 = vmatpush1.msra.mxu0 0.0
      %2802 = vmatprep.subr.mxu0 0.0
      %2803 = vmatpush1.msra.mxu0 0.0
      %2804 = vmatprep.subr.mxu0 0.0
      %2805 = vmatpush1.msra.mxu0 0.0
      %2806 = vmatprep.subr.mxu0 0.0
      %2807 = vmatpush1.msra.mxu0 0.0
      %2808 = vmatprep.subr.mxu0 0.0
      %2809 = vmatpush1.msra.mxu0 0.0
      %2810 = vmatprep.subr.mxu0 0.0
      %2811 = vmatpush1.msra.mxu0 0.0
      %2812 = vmatprep.mubr.f32.mxu0 0.0
      %2813 = vmatmul.mubr.f32.gmra.mrb[0].mxu0 %v2746
      %v2814 = vpop.f32.mrb[0].mxu0
      %v2815 = vadd.f32 0.0, %v2814
      %v2816 = vpop.f32.mrb[0].mxu0
      %2817 = vdwg.mxu0
      %v2819 = vsel %vm771, %v2815, 0
      %2821 = vmatprep.subr.mxu0 0.0
      %2822 = vmatpush1.msra.mxu0 %v1768
      %2823 = vmatprep.subr.mxu0 0.0
      %2824 = vmatpush1.msra.mxu0 0.0
      %2825 = vmatprep.subr.mxu0 0.0
      %2826 = vmatpush1.msra.mxu0 0.0
      %2827 = vmatprep.subr.mxu0 0.0
      %2828 = vmatpush1.msra.mxu0 0.0
      %2829 = vmatprep.subr.mxu0 0.0
      %2830 = vmatpush1.msra.mxu0 0.0
      %2831 = vmatprep.subr.mxu0 0.0
      %2832 = vmatpush1.msra.mxu0 0.0
      %2833 = vmatprep.subr.mxu0 0.0
      %2834 = vmatpush1.msra.mxu0 0.0
      %2835 = vmatprep.subr.mxu0 0.0
      %2836 = vmatpush1.msra.mxu0 0.0
      %2837 = vmatprep.subr.mxu0 0.0
      %2838 = vmatpush1.msra.mxu0 0.0
      %2839 = vmatprep.subr.mxu0 0.0
      %2840 = vmatpush1.msra.mxu0 0.0
      %2841 = vmatprep.subr.mxu0 0.0
      %2842 = vmatpush1.msra.mxu0 0.0
      %2843 = vmatprep.subr.mxu0 0.0
      %2844 = vmatpush1.msra.mxu0 0.0
      %2845 = vmatprep.subr.mxu0 0.0
      %2846 = vmatpush1.msra.mxu0 0.0
      %2847 = vmatprep.subr.mxu0 0.0
      %2848 = vmatpush1.msra.mxu0 0.0
      %2849 = vmatprep.subr.mxu0 0.0
      %2850 = vmatpush1.msra.mxu0 0.0
      %2851 = vmatprep.subr.mxu0 0.0
      %2852 = vmatpush1.msra.mxu0 0.0
      %2853 = vmatprep.subr.mxu0 0.0
      %2854 = vmatpush1.msra.mxu0 0.0
      %2855 = vmatprep.subr.mxu0 0.0
      %2856 = vmatpush1.msra.mxu0 0.0
      %2857 = vmatprep.subr.mxu0 0.0
      %2858 = vmatpush1.msra.mxu0 0.0
      %2859 = vmatprep.subr.mxu0 0.0
      %2860 = vmatpush1.msra.mxu0 0.0
      %2861 = vmatprep.subr.mxu0 0.0
      %2862 = vmatpush1.msra.mxu0 0.0
      %2863 = vmatprep.subr.mxu0 0.0
      %2864 = vmatpush1.msra.mxu0 0.0
      %2865 = vmatprep.subr.mxu0 0.0
      %2866 = vmatpush1.msra.mxu0 0.0
      %2867 = vmatprep.subr.mxu0 0.0
      %2868 = vmatpush1.msra.mxu0 0.0
      %2869 = vmatprep.subr.mxu0 0.0
      %2870 = vmatpush1.msra.mxu0 0.0
      %2871 = vmatprep.subr.mxu0 0.0
      %2872 = vmatpush1.msra.mxu0 0.0
      %2873 = vmatprep.subr.mxu0 0.0
      %2874 = vmatpush1.msra.mxu0 0.0
      %2875 = vmatprep.subr.mxu0 0.0
      %2876 = vmatpush1.msra.mxu0 0.0
      %2877 = vmatprep.subr.mxu0 0.0
      %2878 = vmatpush1.msra.mxu0 0.0
      %2879 = vmatprep.subr.mxu0 0.0
      %2880 = vmatpush1.msra.mxu0 0.0
      %2881 = vmatprep.subr.mxu0 0.0
      %2882 = vmatpush1.msra.mxu0 0.0
      %2883 = vmatprep.subr.mxu0 0.0
      %2884 = vmatpush1.msra.mxu0 0.0
      %2885 = vmatprep.mubr.f32.mxu0 0.0
      %2886 = vmatmul.mubr.f32.gmra.mrb[0].mxu0 %v2819
      %v2887 = vpop.f32.mrb[0].mxu0
      %v2888 = vadd.f32 0.0, %v2887
      %v2889 = vpop.f32.mrb[0].mxu0
      %2890 = vdwg.mxu0
      %v2891 = vadd.f32 %v2652, %v2888
      %v2892 = vadd.f32 %v1754, %v2891
      %v2893 = vsel %vm613, %v2892, 0.0
      %2894 = vadd.xlane.f32.xlu0 %v2893
      %v2895 = vpop.xlane.xlu0 %2894
      %v2896 = vmul.f32 %v2895, %v1730
      %v2897 = vsub.f32 %v2892, %v2896
      %v2898 = vmul.f32 %v2897, %v2897
      %v2899 = vsel %vm613, %v2898, 0.0
      %2900 = vadd.xlane.f32.xlu0 %v2899
      %v2901 = vpop.xlane.xlu0 %2900
      %v2902 = vmul.f32 %v2901, %v1730
      %v2903 = vadd.f32 %v2902, 1e-05
      %v2904 = vrsqrt.pop %v2903
      %v2905 = vmul.f32 %v2897, %v2904
      %v2907 = vlaneseq
      %v2908 = vshrl.u32 %v2907, 7
      %v2909 = vsub.s32 0, %v2908
      %v2910 = vrot.slane %v1770, %v2909
      %v2912 = vmul.f32 %v2905, %v2910
      %v2914 = vlaneseq
      %v2915 = vshrl.u32 %v2914, 7
      %v2916 = vsub.s32 0, %v2915
      %v2917 = vrot.slane %v1771, %v2916
      %v2919 = vadd.f32 %v2912, %v2917
      %2920 = vst.msk [vmem:[%s587] sm:$0xff] %vm613, %v2919
      %p2921 = scmp.lt.s32.totalorder %s29, 1
      %s2922 = scalar_select %p2921, %s29, 1
      %s2923 = smul.addr %s2922, 8
      %s2924 = scalar_lea.vmem %s18, %s2923
      // Predicated region
      $region93: #{transformer_decoder_forward.7} parent=91 // pred_check
        %p2925 = pneg %p435
      $region94: #{transformer_decoder_forward.7} parent=91 // pred_check_branch
        %2927 = sbr.rel (%p2925) target = $region96
      $region95: #{transformer_decoder_forward.7} parent=91 // pred_region
        _
      $region96: #{transformer_decoder_forward.7} parent=91 // pred_fallthru
        _
    $region92: #{transformer_decoder_forward.7} parent=5 // pred_fallthru
      _
    %p2928 = scmp.le.s32.totalorder 2, %s24
    // Predicated region
    $region97: #{transformer_decoder_forward.7} parent=5 // pred_check
      %p2929 = pneg %p2928
    $region98: #{transformer_decoder_forward.7} parent=5 // pred_check_branch
      %2931 = sbr.rel (%p2929) target = $region100
    $region99: #{transformer_decoder_forward.7} parent=5 // pred_region
      %s2932 = ssub.s32 %s24, 2
      // Predicated region
      $region101: #{transformer_decoder_forward.7} parent=99 // pred_check
        %p2933 = pneg %p441
      $region102: #{transformer_decoder_forward.7} parent=99 // pred_check_branch
        %2935 = sbr.rel (%p2933) target = $region104
      $region103: #{transformer_decoder_forward.7} parent=99 // pred_region
        %p2936 = scmp.lt.s32.totalorder %s30, 1
        %s2937 = scalar_select %p2936, %s30, 1
        %s2938 = smul.addr %s2937, 8
        %s2939 = scalar_lea.vmem %s18, %s2938
      $region104: #{transformer_decoder_forward.7} parent=99 // pred_fallthru
        _
    $region100: #{transformer_decoder_forward.7} parent=5 // pred_fallthru
      _
  $region6: #{transformer_decoder_forward.7} parent=0 // loop_footer
    %s28 = sadd.s32 1, %s24
  $region7: #{transformer_decoder_forward.7} parent=0 // loop_footer_branch
    %23 = sbr.rel target = $region3
  $region8: #{transformer_decoder_forward.7} parent=0 // loop_exit
    _

</llo_original>
